<compile_context>
chip_gen: v7x
topology: tpu7x:2x2x1
jax: 0.10.0
libtpu: 0.0.40
codegen_flags: <defaults>
</compile_context>

<pallas_src>
import jax
import jax.numpy as jnp
from jax.experimental import pallas as pl
from jax.experimental.pallas import tpu as pltpu

# Keep f32 matmul semantics (matches the PyTorch module) for kernel + reference.
jax.config.update("jax_default_matmul_precision", "highest")

CLIP = 2.0
LN_EPS = 1e-5
B_TILE = 8   # batch rows per grid step (sublane-aligned)


def nprnn_kernel(x_ref, hp_ref, hebb_ref,
                 w_in_ref, w_rec_ref, alpha_ref,
                 w_out_ref, b_out_ref, stk_ref,
                 e_ref, t_ref, s_ref,
                 out_ref, h_post_ref, m_ref, hebb_out_ref):
    f32 = jnp.float32

    x = x_ref[...]                      # (Bt, In)
    hp = hp_ref[...]                    # (Bt, H)
    hebb = hebb_ref[...]                # (Bt, H*H)  flat, lane-dense

    stk = stk_ref[...]                  # (8, H) packed small params
    b_in, ln_g, ln_b = stk[0:1], stk[1:2], stk[2:3]
    w_fan, b_fan, w_mod = stk[3:4], stk[4:5], stk[5:6]
    b_mod = stk[6:7, 0:1]               # (1, 1)

    # hp_exp[b, h*H+k] = hp[b, h]   (row expansion via constant 0/1 matmul)
    hp_exp = jnp.dot(hp, e_ref[...], preferred_element_type=f32)        # (Bt, H*H)

    # recurrent term, split: shared weight (batched MXU) + plastic part (flat)
    rec = jnp.dot(hp, w_rec_ref[...], preferred_element_type=f32)       # (Bt, H)
    plastic = jnp.dot(hp_exp * (alpha_ref[...] * hebb), s_ref[...],
                      preferred_element_type=f32)                        # (Bt, H)

    h = (jnp.dot(x, w_in_ref[...], preferred_element_type=f32)
         + b_in + rec + plastic)                                         # (Bt, H)

    # h_post = tanh(LayerNorm(h))
    mu = jnp.mean(h, axis=-1, keepdims=True)
    var = jnp.mean(jnp.square(h - mu), axis=-1, keepdims=True)
    h_post = jnp.tanh((h - mu) * jax.lax.rsqrt(var + LN_EPS) * ln_g + ln_b)

    # out = fc_out(h_post)
    out = jnp.dot(h_post, w_out_ref[...], preferred_element_type=f32) + b_out_ref[...]

    # modulator Linear(H,1) as elementwise multiply + lane reduction (no (H,1) matmul)
    m = jnp.tanh(jnp.sum(h_post * w_mod, axis=-1, keepdims=True) + b_mod)  # (Bt, 1)

    # eta = modfanout(m); delta[b, h*H+k] = eta[b,k] * h_pre[b,h] * h_post[b,k]
    g = (m * w_fan + b_fan) * h_post                                     # (Bt, H)
    g_tile = jnp.dot(g, t_ref[...], preferred_element_type=f32)          # (Bt, H*H)
    hebb_new = jnp.clip(hebb + hp_exp * g_tile, -CLIP, CLIP)

    out_ref[...] = out
    h_post_ref[...] = h_post
    m_ref[...] = m
    hebb_out_ref[...] = hebb_new


def nprnn_cell_forward(x, h_pre, hebb, params, *, b_tile=B_TILE):
    B, In = x.shape
    H = h_pre.shape[1]
    Out = params["w_out"].shape[1]
    HH = H * H
    f32 = jnp.float32

    # Lane-dense flat hebb.
    hebb_flat = hebb.reshape(B, HH)

    # Pad the batch to a multiple of the (sublane-aligned) tile.
    B_pad = pl.cdiv(B, b_tile) * b_tile
    if B_pad != B:
        pad = ((0, B_pad - B), (0, 0))
        x = jnp.pad(x, pad)
        h_pre = jnp.pad(h_pre, pad)
        hebb_flat = jnp.pad(hebb_flat, pad)

    # Pack the small (1,H)-shaped params into one resident (8, H) block.
    rows = jnp.concatenate([
        params["b_in"].reshape(1, H),
        params["ln_g"].reshape(1, H),
        params["ln_b"].reshape(1, H),
        params["w_fan"].reshape(1, H),
        params["b_fan"].reshape(1, H),
        params["w_mod"].reshape(1, H),
        jnp.full((1, H), params["b_mod"].reshape(()), f32),
    ], axis=0)
    stack = jnp.zeros((8, H), f32).at[:7].set(rows)

    alpha_flat = params["alpha"].reshape(1, HH)

    # Constant 0/1 expansion matrices keeping the flat-hebb math on the MXU.
    eye = jnp.eye(H, dtype=f32)
    ones_row = jnp.ones((1, H), f32)
    e_mat = jnp.kron(eye, ones_row)     # (H, H*H): E[h, h*H+k] = 1
    t_mat = jnp.kron(ones_row, eye)     # (H, H*H): T[k, h*H+k] = 1
    s_mat = t_mat.T                     # (H*H, H): sum over h

    grid = (B_pad // b_tile,)

    def batched(width):
        return pl.BlockSpec((b_tile, width), lambda i: (i, 0))

    def resident(shape):
        return pl.BlockSpec(shape, lambda i: (0,) * len(shape))

    in_specs = [
        batched(In),               # x
        batched(H),                # h_pre
        batched(HH),               # hebb (flat)
        resident((In, H)),         # fc_in weight^T
        resident((H, H)),          # recurrent weight
        resident((1, HH)),         # alpha (flat)
        resident((H, Out)),        # fc_out weight^T
        resident((1, Out)),        # fc_out bias
        resident((8, H)),          # packed small params
        resident((H, HH)),         # E
        resident((H, HH)),         # T
        resident((HH, H)),         # S
    ]
    out_specs = [
        batched(Out),              # out
        batched(H),                # h_post
        batched(1),                # m
        batched(HH),               # hebb (flat, aliased with input)
    ]
    out_shape = (
        jax.ShapeDtypeStruct((B_pad, Out), f32),
        jax.ShapeDtypeStruct((B_pad, H), f32),
        jax.ShapeDtypeStruct((B_pad, 1), f32),
        jax.ShapeDtypeStruct((B_pad, HH), f32),
    )

    fn = pl.pallas_call(
        nprnn_kernel,
        out_shape=out_shape,
        grid_spec=pltpu.PrefetchScalarGridSpec(
            num_scalar_prefetch=0,
            grid=grid,
            in_specs=in_specs,
            out_specs=out_specs,
        ),
        input_output_aliases={2: 3},   # hebb buffer read + written in place
        compiler_params=pltpu.CompilerParams(
            dimension_semantics=("parallel",)),
    )
    out, h_post, m, hebb_new_flat = fn(
        x, h_pre, hebb_flat,
        params["w_in"], params["weight"], alpha_flat,
        params["w_out"], params["b_out"], stack,
        e_mat, t_mat, s_mat)

    return (out[:B], h_post[:B], m[:B], hebb_new_flat[:B].reshape(B, H, H))


def nprnn_cell_reference(x, h_pre, hebb, params):
    """Pure-JAX reference mirroring the PyTorch forward."""
    w_eff = params["weight"][None] + params["alpha"][None] * hebb        # (B,H,H)
    h = (x @ params["w_in"] + params["b_in"]
         + jnp.einsum("bh,bhk->bk", h_pre, w_eff))
    mu = jnp.mean(h, axis=-1, keepdims=True)
    var = jnp.mean((h - mu) ** 2, axis=-1, keepdims=True)
    h_post = jnp.tanh((h - mu) / jnp.sqrt(var + LN_EPS) * params["ln_g"]
                      + params["ln_b"])
    out = h_post @ params["w_out"] + params["b_out"]
    m = jnp.tanh(h_post @ params["w_mod"].T + params["b_mod"])           # (B,1)
    eta = m * params["w_fan"] + params["b_fan"]                          # (B,H)
    delta = eta[:, None, :] * (h_pre[:, :, None] * h_post[:, None, :])   # (B,H,H)
    hebb_new = jnp.clip(hebb + delta, -CLIP, CLIP)
    return out, h_post, m, hebb_new


def init_params(key, input_size, hidden_size, output_size):
    ks = jax.random.split(key, 10)
    f32 = jnp.float32
    return {
        "w_in": jax.random.normal(ks[0], (input_size, hidden_size), f32) * 0.1,
        "b_in": jax.random.normal(ks[1], (1, hidden_size), f32) * 0.1,
        "weight": jax.random.normal(ks[2], (hidden_size, hidden_size), f32) * 0.001,
        "alpha": jax.random.normal(ks[3], (hidden_size, hidden_size), f32) * 0.001,
        "ln_g": jnp.ones((1, hidden_size), f32),
        "ln_b": jnp.zeros((1, hidden_size), f32),
        "w_out": jax.random.normal(ks[4], (hidden_size, output_size), f32) * 0.1,
        "b_out": jax.random.normal(ks[5], (1, output_size), f32) * 0.1,
        "w_mod": jax.random.normal(ks[6], (1, hidden_size), f32) * 0.1,   # modulator.weight
        "b_mod": jax.random.normal(ks[7], (1, 1), f32) * 0.1,
        "w_fan": jax.random.normal(ks[8], (1, hidden_size), f32) * 0.1,   # modfanout.weight.T
        "b_fan": jax.random.normal(ks[9], (1, hidden_size), f32) * 0.1,
    }


if __name__ == "__main__":
    In, H, Out = 16, 32, 8
    key = jax.random.PRNGKey(0)
    params = init_params(jax.random.fold_in(key, 0), In, H, Out)

    fwd = jax.jit(nprnn_cell_forward)

    # B=8: single aligned tile; B=20: ragged batch -> padded, 3 grid steps.
    for B in (8, 20):
        kx, kh, kb = jax.random.split(jax.random.fold_in(key, B), 3)
        x = jax.random.normal(kx, (B, In), jnp.float32)
        h_pre = jax.random.normal(kh, (B, H), jnp.float32)
        hebb = jax.random.normal(kb, (B, H, H), jnp.float32) * 0.01

        got = jax.block_until_ready(fwd(x, h_pre, hebb, params))
        want = nprnn_cell_reference(x, h_pre, hebb, params)
        for g, w in zip(got, want):
            assert g.shape == w.shape, (g.shape, w.shape)
            err = float(jnp.max(jnp.abs(g - w)))
            assert err < 2e-4, err

    print("KERNEL_OK")
</pallas_src>

<mosaic_0001>
module attributes {stable_mosaic.version = 11 : i64} {
  func.func @nprnn_kernel(%arg0: i32, %arg1: memref<8x16xf32, #tpu.memory_space<vmem>>, %arg2: memref<8x32xf32, #tpu.memory_space<vmem>>, %arg3: memref<8x1024xf32, #tpu.memory_space<vmem>>, %arg4: memref<16x32xf32, #tpu.memory_space<vmem>>, %arg5: memref<32x32xf32, #tpu.memory_space<vmem>>, %arg6: memref<1x1024xf32, #tpu.memory_space<vmem>>, %arg7: memref<32x8xf32, #tpu.memory_space<vmem>>, %arg8: memref<1x8xf32, #tpu.memory_space<vmem>>, %arg9: memref<8x32xf32, #tpu.memory_space<vmem>>, %arg10: memref<32x1024xf32, #tpu.memory_space<vmem>>, %arg11: memref<32x1024xf32, #tpu.memory_space<vmem>>, %arg12: memref<1024x32xf32, #tpu.memory_space<vmem>>, %arg13: memref<8x8xf32, #tpu.memory_space<vmem>>, %arg14: memref<8x32xf32, #tpu.memory_space<vmem>>, %arg15: memref<8x1xf32, #tpu.memory_space<vmem>>, %arg16: memref<8x1024xf32, #tpu.memory_space<vmem>>) attributes {dimension_semantics = [#tpu.dimension_semantics<parallel>], iteration_bounds = array<i64: 1>, scalar_prefetch = 0 : i64, scratch_operands = 0 : i64, tpu.core_type = #tpu.core_type<tc>, window_params = [{transform_indices = @transform_0, window_bounds = array<i64: 8, 16>}, {transform_indices = @transform_1, window_bounds = array<i64: 8, 32>}, {transform_indices = @transform_2, window_bounds = array<i64: 8, 1024>}, {pipeline_mode = #tpu.pipeline_mode<synchronous>, transform_indices = @transform_3, window_bounds = array<i64: 16, 32>}, {pipeline_mode = #tpu.pipeline_mode<synchronous>, transform_indices = @transform_4, window_bounds = array<i64: 32, 32>}, {pipeline_mode = #tpu.pipeline_mode<synchronous>, transform_indices = @transform_5, window_bounds = array<i64: 1, 1024>}, {pipeline_mode = #tpu.pipeline_mode<synchronous>, transform_indices = @transform_6, window_bounds = array<i64: 32, 8>}, {pipeline_mode = #tpu.pipeline_mode<synchronous>, transform_indices = @transform_7, window_bounds = array<i64: 1, 8>}, {pipeline_mode = #tpu.pipeline_mode<synchronous>, transform_indices = @transform_8, window_bounds = array<i64: 8, 32>}, {pipeline_mode = #tpu.pipeline_mode<synchronous>, transform_indices = @transform_9, window_bounds = array<i64: 32, 1024>}, {pipeline_mode = #tpu.pipeline_mode<synchronous>, transform_indices = @transform_10, window_bounds = array<i64: 32, 1024>}, {pipeline_mode = #tpu.pipeline_mode<synchronous>, transform_indices = @transform_11, window_bounds = array<i64: 1024, 32>}, {transform_indices = @transform_12, window_bounds = array<i64: 8, 8>}, {transform_indices = @transform_13, window_bounds = array<i64: 8, 32>}, {transform_indices = @transform_14, window_bounds = array<i64: 8, 1>}, {transform_indices = @transform_15, window_bounds = array<i64: 8, 1024>}]} {
    %c0 = arith.constant 0 : index
    %c0_0 = arith.constant 0 : index
    %0 = vector.load %arg1[%c0, %c0_0] : memref<8x16xf32, #tpu.memory_space<vmem>>, vector<8x16xf32>
    %c0_1 = arith.constant 0 : index
    %c0_2 = arith.constant 0 : index
    %1 = vector.load %arg2[%c0_1, %c0_2] : memref<8x32xf32, #tpu.memory_space<vmem>>, vector<8x32xf32>
    %c0_3 = arith.constant 0 : index
    %c0_4 = arith.constant 0 : index
    %2 = vector.load %arg3[%c0_3, %c0_4] : memref<8x1024xf32, #tpu.memory_space<vmem>>, vector<8x1024xf32>
    %c0_5 = arith.constant 0 : index
    %c0_6 = arith.constant 0 : index
    %3 = vector.load %arg9[%c0_5, %c0_6] : memref<8x32xf32, #tpu.memory_space<vmem>>, vector<8x32xf32>
    %4 = vector.extract_strided_slice %3 {offsets = [0, 0], sizes = [1, 32], strides = [1, 1]} : vector<8x32xf32> to vector<1x32xf32>
    %5 = vector.extract_strided_slice %3 {offsets = [1, 0], sizes = [1, 32], strides = [1, 1]} : vector<8x32xf32> to vector<1x32xf32>
    %6 = vector.extract_strided_slice %3 {offsets = [2, 0], sizes = [1, 32], strides = [1, 1]} : vector<8x32xf32> to vector<1x32xf32>
    %7 = vector.extract_strided_slice %3 {offsets = [3, 0], sizes = [1, 32], strides = [1, 1]} : vector<8x32xf32> to vector<1x32xf32>
    %8 = vector.extract_strided_slice %3 {offsets = [4, 0], sizes = [1, 32], strides = [1, 1]} : vector<8x32xf32> to vector<1x32xf32>
    %9 = vector.extract_strided_slice %3 {offsets = [5, 0], sizes = [1, 32], strides = [1, 1]} : vector<8x32xf32> to vector<1x32xf32>
    %10 = vector.extract_strided_slice %3 {offsets = [6, 0], sizes = [1, 1], strides = [1, 1]} : vector<8x32xf32> to vector<1x1xf32>
    %c0_7 = arith.constant 0 : index
    %c0_8 = arith.constant 0 : index
    %11 = vector.load %arg10[%c0_7, %c0_8] : memref<32x1024xf32, #tpu.memory_space<vmem>>, vector<32x1024xf32>
    %cst = arith.constant dense<0.000000e+00> : vector<8x1024xf32>
    %12 = tpu.matmul %1, %11, %cst {dimension_numbers = #tpu.dot_dimension_numbers<[1], [0], [0], [1], [0, 0, 1, 1], [], []>, precision = #tpu.contract_precision<fp32>} : vector<8x32xf32>, vector<32x1024xf32>, vector<8x1024xf32> -> vector<8x1024xf32>
    %c0_9 = arith.constant 0 : index
    %c0_10 = arith.constant 0 : index
    %13 = vector.load %arg5[%c0_9, %c0_10] : memref<32x32xf32, #tpu.memory_space<vmem>>, vector<32x32xf32>
    %cst_11 = arith.constant dense<0.000000e+00> : vector<8x32xf32>
    %14 = tpu.matmul %1, %13, %cst_11 {dimension_numbers = #tpu.dot_dimension_numbers<[1], [0], [0], [1], [0, 0, 1, 1], [], []>, precision = #tpu.contract_precision<fp32>} : vector<8x32xf32>, vector<32x32xf32>, vector<8x32xf32> -> vector<8x32xf32>
    %c0_12 = arith.constant 0 : index
    %c0_13 = arith.constant 0 : index
    %15 = vector.load %arg6[%c0_12, %c0_13] : memref<1x1024xf32, #tpu.memory_space<vmem>>, vector<1x1024xf32>
    %16 = vector.broadcast %15 : vector<1x1024xf32> to vector<8x1024xf32>
    %17 = arith.mulf %16, %2 : vector<8x1024xf32>
    %18 = arith.mulf %12, %17 : vector<8x1024xf32>
    %c0_14 = arith.constant 0 : index
    %c0_15 = arith.constant 0 : index
    %19 = vector.load %arg12[%c0_14, %c0_15] : memref<1024x32xf32, #tpu.memory_space<vmem>>, vector<1024x32xf32>
    %cst_16 = arith.constant dense<0.000000e+00> : vector<8x32xf32>
    %20 = tpu.matmul %18, %19, %cst_16 {dimension_numbers = #tpu.dot_dimension_numbers<[1], [0], [0], [1], [0, 0, 1, 1], [], []>, precision = #tpu.contract_precision<fp32>} : vector<8x1024xf32>, vector<1024x32xf32>, vector<8x32xf32> -> vector<8x32xf32>
    %c0_17 = arith.constant 0 : index
    %c0_18 = arith.constant 0 : index
    %21 = vector.load %arg4[%c0_17, %c0_18] : memref<16x32xf32, #tpu.memory_space<vmem>>, vector<16x32xf32>
    %cst_19 = arith.constant dense<0.000000e+00> : vector<8x32xf32>
    %22 = tpu.matmul %0, %21, %cst_19 {dimension_numbers = #tpu.dot_dimension_numbers<[1], [0], [0], [1], [0, 0, 1, 1], [], []>, precision = #tpu.contract_precision<fp32>} : vector<8x16xf32>, vector<16x32xf32>, vector<8x32xf32> -> vector<8x32xf32>
    %23 = vector.broadcast %4 : vector<1x32xf32> to vector<8x32xf32>
    %24 = arith.addf %22, %23 : vector<8x32xf32>
    %25 = arith.addf %24, %14 : vector<8x32xf32>
    %26 = arith.addf %25, %20 : vector<8x32xf32>
    %cst_20 = arith.constant dense<0.000000e+00> : vector<8xf32>
    %27 = vector.multi_reduction <add>, %26, %cst_20 [1] : vector<8x32xf32> to vector<8xf32>
    %28 = vector.shape_cast %27 : vector<8xf32> to vector<8x1xf32>
    %cst_21 = arith.constant 3.200000e+01 : f32
    %29 = vector.broadcast %cst_21 : f32 to vector<8x1xf32>
    %30 = arith.divf %28, %29 : vector<8x1xf32>
    %31 = vector.broadcast %30 : vector<8x1xf32> to vector<8x32xf32>
    %32 = arith.subf %26, %31 : vector<8x32xf32>
    %33 = arith.mulf %32, %32 : vector<8x32xf32>
    %cst_22 = arith.constant dense<0.000000e+00> : vector<8xf32>
    %34 = vector.multi_reduction <add>, %33, %cst_22 [1] : vector<8x32xf32> to vector<8xf32>
    %35 = vector.shape_cast %34 : vector<8xf32> to vector<8x1xf32>
    %cst_23 = arith.constant 3.200000e+01 : f32
    %36 = vector.broadcast %cst_23 : f32 to vector<8x1xf32>
    %37 = arith.divf %35, %36 : vector<8x1xf32>
    %38 = vector.broadcast %30 : vector<8x1xf32> to vector<8x32xf32>
    %39 = arith.subf %26, %38 : vector<8x32xf32>
    %cst_24 = arith.constant 9.99999974E-6 : f32
    %40 = vector.broadcast %cst_24 : f32 to vector<8x1xf32>
    %41 = arith.addf %37, %40 : vector<8x1xf32>
    %42 = math.rsqrt %41 : vector<8x1xf32>
    %43 = vector.broadcast %42 : vector<8x1xf32> to vector<8x32xf32>
    %44 = arith.mulf %39, %43 : vector<8x32xf32>
    %45 = vector.broadcast %5 : vector<1x32xf32> to vector<8x32xf32>
    %46 = arith.mulf %44, %45 : vector<8x32xf32>
    %47 = vector.broadcast %6 : vector<1x32xf32> to vector<8x32xf32>
    %48 = arith.addf %46, %47 : vector<8x32xf32>
    %49 = math.tanh %48 : vector<8x32xf32>
    %c0_25 = arith.constant 0 : index
    %c0_26 = arith.constant 0 : index
    %50 = vector.load %arg7[%c0_25, %c0_26] : memref<32x8xf32, #tpu.memory_space<vmem>>, vector<32x8xf32>
    %cst_27 = arith.constant dense<0.000000e+00> : vector<8x8xf32>
    %51 = tpu.matmul %49, %50, %cst_27 {dimension_numbers = #tpu.dot_dimension_numbers<[1], [0], [0], [1], [0, 0, 1, 1], [], []>, precision = #tpu.contract_precision<fp32>} : vector<8x32xf32>, vector<32x8xf32>, vector<8x8xf32> -> vector<8x8xf32>
    %c0_28 = arith.constant 0 : index
    %c0_29 = arith.constant 0 : index
    %52 = vector.load %arg8[%c0_28, %c0_29] : memref<1x8xf32, #tpu.memory_space<vmem>>, vector<1x8xf32>
    %53 = vector.broadcast %52 : vector<1x8xf32> to vector<8x8xf32>
    %54 = arith.addf %51, %53 : vector<8x8xf32>
    %55 = vector.broadcast %9 : vector<1x32xf32> to vector<8x32xf32>
    %56 = arith.mulf %49, %55 : vector<8x32xf32>
    %cst_30 = arith.constant dense<0.000000e+00> : vector<8xf32>
    %57 = vector.multi_reduction <add>, %56, %cst_30 [1] : vector<8x32xf32> to vector<8xf32>
    %58 = vector.shape_cast %57 : vector<8xf32> to vector<8x1xf32>
    %59 = vector.broadcast %10 : vector<1x1xf32> to vector<8x1xf32>
    %60 = arith.addf %58, %59 : vector<8x1xf32>
    %61 = math.tanh %60 : vector<8x1xf32>
    %62 = vector.broadcast %61 : vector<8x1xf32> to vector<8x32xf32>
    %63 = vector.broadcast %7 : vector<1x32xf32> to vector<8x32xf32>
    %64 = arith.mulf %62, %63 : vector<8x32xf32>
    %65 = vector.broadcast %8 : vector<1x32xf32> to vector<8x32xf32>
    %66 = arith.addf %64, %65 : vector<8x32xf32>
    %67 = arith.mulf %66, %49 : vector<8x32xf32>
    %c0_31 = arith.constant 0 : index
    %c0_32 = arith.constant 0 : index
    %68 = vector.load %arg11[%c0_31, %c0_32] : memref<32x1024xf32, #tpu.memory_space<vmem>>, vector<32x1024xf32>
    %cst_33 = arith.constant dense<0.000000e+00> : vector<8x1024xf32>
    %69 = tpu.matmul %67, %68, %cst_33 {dimension_numbers = #tpu.dot_dimension_numbers<[1], [0], [0], [1], [0, 0, 1, 1], [], []>, precision = #tpu.contract_precision<fp32>} : vector<8x32xf32>, vector<32x1024xf32>, vector<8x1024xf32> -> vector<8x1024xf32>
    %70 = arith.mulf %12, %69 : vector<8x1024xf32>
    %71 = arith.addf %2, %70 : vector<8x1024xf32>
    %cst_34 = arith.constant -2.000000e+00 : f32
    %cst_35 = arith.constant 2.000000e+00 : f32
    %72 = vector.broadcast %cst_34 : f32 to vector<8x1024xf32>
    %73 = arith.maximumf %72, %71 : vector<8x1024xf32>
    %74 = vector.broadcast %cst_35 : f32 to vector<8x1024xf32>
    %75 = arith.minimumf %74, %73 : vector<8x1024xf32>
    %c0_36 = arith.constant 0 : index
    %c0_37 = arith.constant 0 : index
    %76 = vector.load %arg13[%c0_36, %c0_37] : memref<8x8xf32, #tpu.memory_space<vmem>>, vector<8x8xf32>
    tpu.vector_store %arg13[%c0_36, %c0_37], %54 {strides = array<i32>} : memref<8x8xf32, #tpu.memory_space<vmem>>, vector<8x8xf32>,
    %c0_38 = arith.constant 0 : index
    %c0_39 = arith.constant 0 : index
    %77 = vector.load %arg14[%c0_38, %c0_39] : memref<8x32xf32, #tpu.memory_space<vmem>>, vector<8x32xf32>
    tpu.vector_store %arg14[%c0_38, %c0_39], %49 {strides = array<i32>} : memref<8x32xf32, #tpu.memory_space<vmem>>, vector<8x32xf32>,
    %c0_40 = arith.constant 0 : index
    %c0_41 = arith.constant 0 : index
    %78 = vector.load %arg15[%c0_40, %c0_41] : memref<8x1xf32, #tpu.memory_space<vmem>>, vector<8x1xf32>
    tpu.vector_store %arg15[%c0_40, %c0_41], %61 {strides = array<i32>} : memref<8x1xf32, #tpu.memory_space<vmem>>, vector<8x1xf32>,
    %c0_42 = arith.constant 0 : index
    %c0_43 = arith.constant 0 : index
    %79 = vector.load %arg16[%c0_42, %c0_43] : memref<8x1024xf32, #tpu.memory_space<vmem>>, vector<8x1024xf32>
    tpu.vector_store %arg16[%c0_42, %c0_43], %75 {strides = array<i32>} : memref<8x1024xf32, #tpu.memory_space<vmem>>, vector<8x1024xf32>,
    return
  }
  func.func @transform_0(%arg0: i32) -> (i32, i32) {
    %c0_i32 = arith.constant 0 : i32
    %c0_i32_0 = arith.constant 0 : i32
    return %arg0, %c0_i32 : i32, i32
  }
  func.func @transform_1(%arg0: i32) -> (i32, i32) {
    %c0_i32 = arith.constant 0 : i32
    %c0_i32_0 = arith.constant 0 : i32
    return %arg0, %c0_i32 : i32, i32
  }
  func.func @transform_2(%arg0: i32) -> (i32, i32) {
    %c0_i32 = arith.constant 0 : i32
    %c0_i32_0 = arith.constant 0 : i32
    return %arg0, %c0_i32 : i32, i32
  }
  func.func @transform_3(%arg0: i32) -> (i32, i32) {
    %c0_i32 = arith.constant 0 : i32
    %c0_i32_0 = arith.constant 0 : i32
    %c0_i32_1 = arith.constant 0 : i32
    return %c0_i32, %c0_i32_0 : i32, i32
  }
  func.func @transform_4(%arg0: i32) -> (i32, i32) {
    %c0_i32 = arith.constant 0 : i32
    %c0_i32_0 = arith.constant 0 : i32
    %c0_i32_1 = arith.constant 0 : i32
    return %c0_i32, %c0_i32_0 : i32, i32
  }
  func.func @transform_5(%arg0: i32) -> (i32, i32) {
    %c0_i32 = arith.constant 0 : i32
    %c0_i32_0 = arith.constant 0 : i32
    %c0_i32_1 = arith.constant 0 : i32
    return %c0_i32, %c0_i32_0 : i32, i32
  }
  func.func @transform_6(%arg0: i32) -> (i32, i32) {
    %c0_i32 = arith.constant 0 : i32
    %c0_i32_0 = arith.constant 0 : i32
    %c0_i32_1 = arith.constant 0 : i32
    return %c0_i32, %c0_i32_0 : i32, i32
  }
  func.func @transform_7(%arg0: i32) -> (i32, i32) {
    %c0_i32 = arith.constant 0 : i32
    %c0_i32_0 = arith.constant 0 : i32
    %c0_i32_1 = arith.constant 0 : i32
    return %c0_i32, %c0_i32_0 : i32, i32
  }
  func.func @transform_8(%arg0: i32) -> (i32, i32) {
    %c0_i32 = arith.constant 0 : i32
    %c0_i32_0 = arith.constant 0 : i32
    %c0_i32_1 = arith.constant 0 : i32
    return %c0_i32, %c0_i32_0 : i32, i32
  }
  func.func @transform_9(%arg0: i32) -> (i32, i32) {
    %c0_i32 = arith.constant 0 : i32
    %c0_i32_0 = arith.constant 0 : i32
    %c0_i32_1 = arith.constant 0 : i32
    return %c0_i32, %c0_i32_0 : i32, i32
  }
  func.func @transform_10(%arg0: i32) -> (i32, i32) {
    %c0_i32 = arith.constant 0 : i32
    %c0_i32_0 = arith.constant 0 : i32
    %c0_i32_1 = arith.constant 0 : i32
    return %c0_i32, %c0_i32_0 : i32, i32
  }
  func.func @transform_11(%arg0: i32) -> (i32, i32) {
    %c0_i32 = arith.constant 0 : i32
    %c0_i32_0 = arith.constant 0 : i32
    %c0_i32_1 = arith.constant 0 : i32
    return %c0_i32, %c0_i32_0 : i32, i32
  }
  func.func @transform_12(%arg0: i32) -> (i32, i32) {
    %c0_i32 = arith.constant 0 : i32
    %c0_i32_0 = arith.constant 0 : i32
    return %arg0, %c0_i32 : i32, i32
  }
  func.func @transform_13(%arg0: i32) -> (i32, i32) {
    %c0_i32 = arith.constant 0 : i32
    %c0_i32_0 = arith.constant 0 : i32
    return %arg0, %c0_i32 : i32, i32
  }
  func.func @transform_14(%arg0: i32) -> (i32, i32) {
    %c0_i32 = arith.constant 0 : i32
    %c0_i32_0 = arith.constant 0 : i32
    return %arg0, %c0_i32 : i32, i32
  }
  func.func @transform_15(%arg0: i32) -> (i32, i32) {
    %c0_i32 = arith.constant 0 : i32
    %c0_i32_0 = arith.constant 0 : i32
    return %arg0, %c0_i32 : i32, i32
  }
}

</mosaic_0001>

<llo_original>
// kernel: nprnn_cell_forward.1
$region0: #{nprnn_cell_forward.1}
  #allocation0 [shape = 'u32[]', space=smem, size = 0x4, offset = 0x4, fixed_abs, tag = 'smem constant byte address 0x4 - core index']
  #allocation1 [shape = 'u32[144,128]{1,0:T(1,128)}', space=vmem, size = 0x12000, scoped, tag = 'internal scratch']
  %s0 = inlined_call_operand.vmem [shape: f32[8,16], index: 0, kind: input, shape index: {}]
  %s1 = inlined_call_operand.vmem [shape: f32[8,32], index: 1, kind: input, shape index: {}]
  %s2 = inlined_call_operand.vmem [shape: f32[8,1024], index: 2, kind: input, shape index: {}, may-alias: {2,15}]
  %s3 = inlined_call_operand.vmem [shape: f32[16,32], index: 3, kind: input, shape index: {}]
  %s4 = inlined_call_operand.vmem [shape: f32[32,32], index: 4, kind: input, shape index: {}]
  %s5 = inlined_call_operand.vmem [shape: f32[1,1024], index: 5, kind: input, shape index: {}]
  %s6 = inlined_call_operand.vmem [shape: f32[32,8], index: 6, kind: input, shape index: {}]
  %s7 = inlined_call_operand.vmem [shape: f32[1,8], index: 7, kind: input, shape index: {}]
  %s8 = inlined_call_operand.vmem [shape: f32[8,32], index: 8, kind: input, shape index: {}]
  %s9 = inlined_call_operand.vmem [shape: f32[32,1024], index: 9, kind: input, shape index: {}]
  %s10 = inlined_call_operand.vmem [shape: f32[32,1024], index: 10, kind: input, shape index: {}]
  %s11 = inlined_call_operand.vmem [shape: f32[1024,32], index: 11, kind: input, shape index: {}]
  %s12 = inlined_call_operand.hbm [shape: f32[8,8], index: 12, kind: output, shape index: {0}]
  %s13 = inlined_call_operand.hbm [shape: f32[8,32], index: 13, kind: output, shape index: {1}]
  %s14 = inlined_call_operand.vmem [shape: f32[8,1], index: 14, kind: output, shape index: {2}]
  %s15 = inlined_call_operand.vmem [shape: f32[8,1024], index: 15, kind: output, shape index: {3}, may-alias: {2,15}]
  %16 = xla_tuple %s12, %s13, %s14, %s15
  %s17 = sld [smem:[#allocation0]]
  $region82: #{nprnn_cell_forward.1} parent=0
    _
  %s19 = ssub.s32 1, %s17
  %s20 = scalar_select 0, %s19, %s17
  $region1: #{nprnn_cell_forward.1} parent=0
    #allocation2 [shape = 'u8[4096]{0}', space=vmem, size = 0x1000, scoped, tag = 'output window, operand 0, single buffered']
    #allocation3 [shape = 's32[1]{0}', space=sflag, size = 0x4, scoped, tag = 'scoped memory for nprnn_cell_forward.1']
    #allocation4 [shape = 'u8[4096]{0}', space=vmem, size = 0x1000, scoped, tag = 'output window, operand 1, single buffered']
    #allocation5 [shape = 's32[1]{0}', space=sflag, size = 0x4, scoped, tag = 'scoped memory for nprnn_cell_forward.1']
    %21 = vsyncpa [#allocation3], 0
    %22 = vsyncpa [#allocation5], 0
    // Predicated region
    $region2: #{nprnn_cell_forward.1} parent=1 // pred_check
      _
    $region3: #{nprnn_cell_forward.1} parent=1 // pred_check_branch
      %24 = sbr.rel (0) target = $region5
    $region4: #{nprnn_cell_forward.1} parent=1 // pred_region
      _
    $region5: #{nprnn_cell_forward.1} parent=1 // pred_fallthru
      _
    // Predicated region
    $region6: #{nprnn_cell_forward.1} parent=1 // pred_check
      _
    $region7: #{nprnn_cell_forward.1} parent=1 // pred_check_branch
      %26 = sbr.rel (0) target = $region9
    $region8: #{nprnn_cell_forward.1} parent=1 // pred_region
      _
    $region9: #{nprnn_cell_forward.1} parent=1 // pred_fallthru
      _
    // Predicated region
    $region10: #{nprnn_cell_forward.1} parent=1 // pred_check
      _
    $region11: #{nprnn_cell_forward.1} parent=1 // pred_check_branch
      %28 = sbr.rel (0) target = $region13
    $region12: #{nprnn_cell_forward.1} parent=1 // pred_region
      _
    $region13: #{nprnn_cell_forward.1} parent=1 // pred_fallthru
      _
    // Predicated region
    $region14: #{nprnn_cell_forward.1} parent=1 // pred_check
      _
    $region15: #{nprnn_cell_forward.1} parent=1 // pred_check_branch
      %30 = sbr.rel (0) target = $region17
    $region16: #{nprnn_cell_forward.1} parent=1 // pred_region
      _
    $region17: #{nprnn_cell_forward.1} parent=1 // pred_fallthru
      _
    // Predicated region
    $region18: #{nprnn_cell_forward.1} parent=1 // pred_check
      _
    $region19: #{nprnn_cell_forward.1} parent=1 // pred_check_branch
      %32 = sbr.rel (0) target = $region21
    $region20: #{nprnn_cell_forward.1} parent=1 // pred_region
      _
    $region21: #{nprnn_cell_forward.1} parent=1 // pred_fallthru
      _
    // Predicated region
    $region22: #{nprnn_cell_forward.1} parent=1 // pred_check
      _
    $region23: #{nprnn_cell_forward.1} parent=1 // pred_check_branch
      %34 = sbr.rel (0) target = $region25
    $region24: #{nprnn_cell_forward.1} parent=1 // pred_region
      _
    $region25: #{nprnn_cell_forward.1} parent=1 // pred_fallthru
      _
    // Predicated region
    $region26: #{nprnn_cell_forward.1} parent=1 // pred_check
      _
    $region27: #{nprnn_cell_forward.1} parent=1 // pred_check_branch
      %36 = sbr.rel (0) target = $region29
    $region28: #{nprnn_cell_forward.1} parent=1 // pred_region
      _
    $region29: #{nprnn_cell_forward.1} parent=1 // pred_fallthru
      _
    // Predicated region
    $region30: #{nprnn_cell_forward.1} parent=1 // pred_check
      _
    $region31: #{nprnn_cell_forward.1} parent=1 // pred_check_branch
      %38 = sbr.rel (0) target = $region33
    $region32: #{nprnn_cell_forward.1} parent=1 // pred_region
      _
    $region33: #{nprnn_cell_forward.1} parent=1 // pred_fallthru
      _
    // Predicated region
    $region34: #{nprnn_cell_forward.1} parent=1 // pred_check
      _
    $region35: #{nprnn_cell_forward.1} parent=1 // pred_check_branch
      %40 = sbr.rel (0) target = $region37
    $region36: #{nprnn_cell_forward.1} parent=1 // pred_region
      _
    $region37: #{nprnn_cell_forward.1} parent=1 // pred_fallthru
      _
    // Predicated region
    $region38: #{nprnn_cell_forward.1} parent=1 // pred_check
      _
    $region39: #{nprnn_cell_forward.1} parent=1 // pred_check_branch
      %42 = sbr.rel (0) target = $region41
    $region40: #{nprnn_cell_forward.1} parent=1 // pred_region
      _
    $region41: #{nprnn_cell_forward.1} parent=1 // pred_fallthru
      _
    // Predicated region
    $region42: #{nprnn_cell_forward.1} parent=1 // pred_check
      _
    $region43: #{nprnn_cell_forward.1} parent=1 // pred_check_branch
      %44 = sbr.rel (0) target = $region45
    $region44: #{nprnn_cell_forward.1} parent=1 // pred_region
      _
    $region45: #{nprnn_cell_forward.1} parent=1 // pred_fallthru
      _
    // Predicated region
    $region46: #{nprnn_cell_forward.1} parent=1 // pred_check
      _
    $region47: #{nprnn_cell_forward.1} parent=1 // pred_check_branch
      %46 = sbr.rel (0) target = $region49
    $region48: #{nprnn_cell_forward.1} parent=1 // pred_region
      _
    $region49: #{nprnn_cell_forward.1} parent=1 // pred_fallthru
      _
    %v47 = vld [vmem:[%s0] sm:$0xff]
    %v48 = vld [vmem:[%s1] sm:$0xff]
    %v49 = vld [vmem:[%s2] sm:$0xff]
    %v50 = vld [vmem:[%s2 + $0x8] sm:$0xff]
    %v51 = vld [vmem:[%s2 + $0x10] sm:$0xff]
    %v52 = vld [vmem:[%s2 + $0x18] sm:$0xff]
    %v53 = vld [vmem:[%s2 + $0x20] sm:$0xff]
    %v54 = vld [vmem:[%s2 + $0x28] sm:$0xff]
    %v55 = vld [vmem:[%s2 + $0x30] sm:$0xff]
    %v56 = vld [vmem:[%s2 + $0x38] sm:$0xff]
    %v57 = vld [vmem:[%s8] sm:$0xff]
    %v58 = vld [vmem:[%s9] sm:$0xff]
    %v59 = vld [vmem:[%s9 + $0x8] sm:$0xff]
    %v60 = vld [vmem:[%s9 + $0x10] sm:$0xff]
    %v61 = vld [vmem:[%s9 + $0x18] sm:$0xff]
    %v62 = vld [vmem:[%s9 + $0x20] sm:$0xff]
    %v63 = vld [vmem:[%s9 + $0x28] sm:$0xff]
    %v64 = vld [vmem:[%s9 + $0x30] sm:$0xff]
    %v65 = vld [vmem:[%s9 + $0x38] sm:$0xff]
    %v66 = vld [vmem:[%s9 + $0x40] sm:$0xff]
    %v67 = vld [vmem:[%s9 + $0x48] sm:$0xff]
    %v68 = vld [vmem:[%s9 + $0x50] sm:$0xff]
    %v69 = vld [vmem:[%s9 + $0x58] sm:$0xff]
    %v70 = vld [vmem:[%s9 + $0x60] sm:$0xff]
    %v71 = vld [vmem:[%s9 + $0x68] sm:$0xff]
    %v72 = vld [vmem:[%s9 + $0x70] sm:$0xff]
    %v73 = vld [vmem:[%s9 + $0x78] sm:$0xff]
    %v74 = vld [vmem:[%s9 + $0x80] sm:$0xff]
    %v75 = vld [vmem:[%s9 + $0x88] sm:$0xff]
    %v76 = vld [vmem:[%s9 + $0x90] sm:$0xff]
    %v77 = vld [vmem:[%s9 + $0x98] sm:$0xff]
    %v78 = vld [vmem:[%s9 + $0xa0] sm:$0xff]
    %v79 = vld [vmem:[%s9 + $0xa8] sm:$0xff]
    %v80 = vld [vmem:[%s9 + $0xb0] sm:$0xff]
    %v81 = vld [vmem:[%s9 + $0xb8] sm:$0xff]
    %v82 = vld [vmem:[%s9 + $0xc0] sm:$0xff]
    %v83 = vld [vmem:[%s9 + $0xc8] sm:$0xff]
    %v84 = vld [vmem:[%s9 + $0xd0] sm:$0xff]
    %v85 = vld [vmem:[%s9 + $0xd8] sm:$0xff]
    %v86 = vld [vmem:[%s9 + $0xe0] sm:$0xff]
    %v87 = vld [vmem:[%s9 + $0xe8] sm:$0xff]
    %v88 = vld [vmem:[%s9 + $0xf0] sm:$0xff]
    %v89 = vld [vmem:[%s9 + $0xf8] sm:$0xff]
    %vm90 = vcmask 261120
    %v92 = vsel %vm90, %v48, 0
    %v94 = vand.u32 %v59, 4294901760
    %95 = vmatprep.subr.mxu0 %v94
    %v96 = vand.u32 %v58, 4294901760
    %97 = vmatpush1.msra.mxu0 %v96
    %v98 = vand.u32 %v67, 4294901760
    %99 = vmatprep.subr.mxu0 %v98
    %v100 = vand.u32 %v66, 4294901760
    %101 = vmatpush1.msra.mxu0 %v100
    %v102 = vand.u32 %v75, 4294901760
    %103 = vmatprep.subr.mxu0 %v102
    %v104 = vand.u32 %v74, 4294901760
    %105 = vmatpush1.msra.mxu0 %v104
    %v106 = vand.u32 %v83, 4294901760
    %107 = vmatprep.subr.mxu0 %v106
    %v108 = vand.u32 %v82, 4294901760
    %109 = vmatpush1.msra.mxu0 %v108
    %110 = vmatprep.subr.mxu0 0.0
    %111 = vmatpush1.msra.mxu0 0.0
    %112 = vmatprep.subr.mxu0 0.0
    %113 = vmatpush1.msra.mxu0 0.0
    %114 = vmatprep.subr.mxu0 0.0
    %115 = vmatpush1.msra.mxu0 0.0
    %116 = vmatprep.subr.mxu0 0.0
    %117 = vmatpush1.msra.mxu0 0.0
    %118 = vmatprep.subr.mxu0 0.0
    %119 = vmatpush1.msra.mxu0 0.0
    %120 = vmatprep.subr.mxu0 0.0
    %121 = vmatpush1.msra.mxu0 0.0
    %122 = vmatprep.subr.mxu0 0.0
    %123 = vmatpush1.msra.mxu0 0.0
    %124 = vmatprep.subr.mxu0 0.0
    %125 = vmatpush1.msra.mxu0 0.0
    %126 = vmatprep.subr.mxu0 0.0
    %127 = vmatpush1.msra.mxu0 0.0
    %128 = vmatprep.subr.mxu0 0.0
    %129 = vmatpush1.msra.mxu0 0.0
    %130 = vmatprep.subr.mxu0 0.0
    %131 = vmatpush1.msra.mxu0 0.0
    %132 = vmatprep.subr.mxu0 0.0
    %133 = vmatpush1.msra.mxu0 0.0
    %134 = vmatprep.subr.mxu0 0.0
    %135 = vmatpush1.msra.mxu0 0.0
    %136 = vmatprep.subr.mxu0 0.0
    %137 = vmatpush1.msra.mxu0 0.0
    %138 = vmatprep.subr.mxu0 0.0
    %139 = vmatpush1.msra.mxu0 0.0
    %140 = vmatprep.subr.mxu0 0.0
    %141 = vmatpush1.msra.mxu0 0.0
    %142 = vmatprep.subr.mxu0 0.0
    %143 = vmatpush1.msra.mxu0 0.0
    %144 = vmatprep.subr.mxu0 0.0
    %145 = vmatpush1.msra.mxu0 0.0
    %146 = vmatprep.subr.mxu0 0.0
    %147 = vmatpush1.msra.mxu0 0.0
    %148 = vmatprep.subr.mxu0 0.0
    %149 = vmatpush1.msra.mxu0 0.0
    %150 = vmatprep.subr.mxu0 0.0
    %151 = vmatpush1.msra.mxu0 0.0
    %152 = vmatprep.subr.mxu0 0.0
    %153 = vmatpush1.msra.mxu0 0.0
    %154 = vmatprep.subr.mxu0 0.0
    %155 = vmatpush1.msra.mxu0 0.0
    %156 = vmatprep.subr.mxu0 0.0
    %157 = vmatpush1.msra.mxu0 0.0
    %158 = vmatprep.subr.mxu0 0.0
    %159 = vmatpush1.msra.mxu0 0.0
    %160 = vmatprep.subr.mxu0 0.0
    %161 = vmatpush1.msra.mxu0 0.0
    %162 = vmatprep.subr.mxu0 0.0
    %163 = vmatpush1.msra.mxu0 0.0
    %164 = vmatprep.subr.mxu0 0.0
    %165 = vmatpush1.msra.mxu0 0.0
    %166 = vmatprep.mubr.f32.mxu0 0.0
    %v167 = vand.u32 %v92, 4294901760
    %v168 = vsub.f32 %v92, %v167
    %v169 = vand.u32 %v168, 4294901760
    %v170 = vsub.f32 %v168, %v169
    %v171 = vand.u32 %v170, 4294901760
    %172 = vmatmul.mubr.f32.gmra.mrb[0].mxu0 %v171
    %v173 = vpop.f32.mrb[0].mxu0
    %v174 = vadd.f32 0.0, %v173
    %v175 = vpop.f32.mrb[0].mxu0
    %v176 = vadd.f32 0.0, %v175
    %177 = vdwg.mxu0
    %v178 = vand.u32 %v59, 4294901760
    %v179 = vsub.f32 %v59, %v178
    %v180 = vand.u32 %v179, 4294901760
    %v181 = vsub.f32 %v179, %v180
    %v182 = vand.u32 %v181, 4294901760
    %183 = vmatprep.subr.mxu0 %v182
    %v184 = vand.u32 %v58, 4294901760
    %v185 = vsub.f32 %v58, %v184
    %v186 = vand.u32 %v185, 4294901760
    %v187 = vsub.f32 %v185, %v186
    %v188 = vand.u32 %v187, 4294901760
    %189 = vmatpush1.msra.mxu0 %v188
    %v190 = vand.u32 %v67, 4294901760
    %v191 = vsub.f32 %v67, %v190
    %v192 = vand.u32 %v191, 4294901760
    %v193 = vsub.f32 %v191, %v192
    %v194 = vand.u32 %v193, 4294901760
    %195 = vmatprep.subr.mxu0 %v194
    %v196 = vand.u32 %v66, 4294901760
    %v197 = vsub.f32 %v66, %v196
    %v198 = vand.u32 %v197, 4294901760
    %v199 = vsub.f32 %v197, %v198
    %v200 = vand.u32 %v199, 4294901760
    %201 = vmatpush1.msra.mxu0 %v200
    %v202 = vand.u32 %v75, 4294901760
    %v203 = vsub.f32 %v75, %v202
    %v204 = vand.u32 %v203, 4294901760
    %v205 = vsub.f32 %v203, %v204
    %v206 = vand.u32 %v205, 4294901760
    %207 = vmatprep.subr.mxu0 %v206
    %v208 = vand.u32 %v74, 4294901760
    %v209 = vsub.f32 %v74, %v208
    %v210 = vand.u32 %v209, 4294901760
    %v211 = vsub.f32 %v209, %v210
    %v212 = vand.u32 %v211, 4294901760
    %213 = vmatpush1.msra.mxu0 %v212
    %v214 = vand.u32 %v83, 4294901760
    %v215 = vsub.f32 %v83, %v214
    %v216 = vand.u32 %v215, 4294901760
    %v217 = vsub.f32 %v215, %v216
    %v218 = vand.u32 %v217, 4294901760
    %219 = vmatprep.subr.mxu0 %v218
    %v220 = vand.u32 %v82, 4294901760
    %v221 = vsub.f32 %v82, %v220
    %v222 = vand.u32 %v221, 4294901760
    %v223 = vsub.f32 %v221, %v222
    %v224 = vand.u32 %v223, 4294901760
    %225 = vmatpush1.msra.mxu0 %v224
    %226 = vmatprep.subr.mxu0 0.0
    %227 = vmatpush1.msra.mxu0 0.0
    %228 = vmatprep.subr.mxu0 0.0
    %229 = vmatpush1.msra.mxu0 0.0
    %230 = vmatprep.subr.mxu0 0.0
    %231 = vmatpush1.msra.mxu0 0.0
    %232 = vmatprep.subr.mxu0 0.0
    %233 = vmatpush1.msra.mxu0 0.0
    %234 = vmatprep.subr.mxu0 0.0
    %235 = vmatpush1.msra.mxu0 0.0
    %236 = vmatprep.subr.mxu0 0.0
    %237 = vmatpush1.msra.mxu0 0.0
    %238 = vmatprep.subr.mxu0 0.0
    %239 = vmatpush1.msra.mxu0 0.0
    %240 = vmatprep.subr.mxu0 0.0
    %241 = vmatpush1.msra.mxu0 0.0
    %242 = vmatprep.subr.mxu0 0.0
    %243 = vmatpush1.msra.mxu0 0.0
    %244 = vmatprep.subr.mxu0 0.0
    %245 = vmatpush1.msra.mxu0 0.0
    %246 = vmatprep.subr.mxu0 0.0
    %247 = vmatpush1.msra.mxu0 0.0
    %248 = vmatprep.subr.mxu0 0.0
    %249 = vmatpush1.msra.mxu0 0.0
    %250 = vmatprep.subr.mxu0 0.0
    %251 = vmatpush1.msra.mxu0 0.0
    %252 = vmatprep.subr.mxu0 0.0
    %253 = vmatpush1.msra.mxu0 0.0
    %254 = vmatprep.subr.mxu0 0.0
    %255 = vmatpush1.msra.mxu0 0.0
    %256 = vmatprep.subr.mxu0 0.0
    %257 = vmatpush1.msra.mxu0 0.0
    %258 = vmatprep.subr.mxu0 0.0
    %259 = vmatpush1.msra.mxu0 0.0
    %260 = vmatprep.subr.mxu0 0.0
    %261 = vmatpush1.msra.mxu0 0.0
    %262 = vmatprep.subr.mxu0 0.0
    %263 = vmatpush1.msra.mxu0 0.0
    %264 = vmatprep.subr.mxu0 0.0
    %265 = vmatpush1.msra.mxu0 0.0
    %266 = vmatprep.subr.mxu0 0.0
    %267 = vmatpush1.msra.mxu0 0.0
    %268 = vmatprep.subr.mxu0 0.0
    %269 = vmatpush1.msra.mxu0 0.0
    %270 = vmatprep.subr.mxu0 0.0
    %271 = vmatpush1.msra.mxu0 0.0
    %272 = vmatprep.subr.mxu0 0.0
    %273 = vmatpush1.msra.mxu0 0.0
    %274 = vmatprep.subr.mxu0 0.0
    %275 = vmatpush1.msra.mxu0 0.0
    %276 = vmatprep.subr.mxu0 0.0
    %277 = vmatpush1.msra.mxu0 0.0
    %278 = vmatprep.subr.mxu0 0.0
    %279 = vmatpush1.msra.mxu0 0.0
    %280 = vmatprep.subr.mxu0 0.0
    %281 = vmatpush1.msra.mxu0 0.0
    %282 = vmatprep.mubr.f32.mxu0 0.0
    %v283 = vand.u32 %v92, 4294901760
    %284 = vmatmul.mubr.f32.gmra.mrb[0].mxu0 %v283
    %v285 = vpop.f32.mrb[0].mxu0
    %v286 = vadd.f32 %v174, %v285
    %v287 = vpop.f32.mrb[0].mxu0
    %v288 = vadd.f32 %v176, %v287
    %289 = vdwg.mxu0
    %v290 = vand.u32 %v59, 4294901760
    %v291 = vsub.f32 %v59, %v290
    %292 = vmatprep.subr.mxu0 %v291
    %v293 = vand.u32 %v58, 4294901760
    %v294 = vsub.f32 %v58, %v293
    %295 = vmatpush1.msra.mxu0 %v294
    %v296 = vand.u32 %v67, 4294901760
    %v297 = vsub.f32 %v67, %v296
    %298 = vmatprep.subr.mxu0 %v297
    %v299 = vand.u32 %v66, 4294901760
    %v300 = vsub.f32 %v66, %v299
    %301 = vmatpush1.msra.mxu0 %v300
    %v302 = vand.u32 %v75, 4294901760
    %v303 = vsub.f32 %v75, %v302
    %304 = vmatprep.subr.mxu0 %v303
    %v305 = vand.u32 %v74, 4294901760
    %v306 = vsub.f32 %v74, %v305
    %307 = vmatpush1.msra.mxu0 %v306
    %v308 = vand.u32 %v83, 4294901760
    %v309 = vsub.f32 %v83, %v308
    %310 = vmatprep.subr.mxu0 %v309
    %v311 = vand.u32 %v82, 4294901760
    %v312 = vsub.f32 %v82, %v311
    %313 = vmatpush1.msra.mxu0 %v312
    %314 = vmatprep.subr.mxu0 0.0
    %315 = vmatpush1.msra.mxu0 0.0
    %316 = vmatprep.subr.mxu0 0.0
    %317 = vmatpush1.msra.mxu0 0.0
    %318 = vmatprep.subr.mxu0 0.0
    %319 = vmatpush1.msra.mxu0 0.0
    %320 = vmatprep.subr.mxu0 0.0
    %321 = vmatpush1.msra.mxu0 0.0
    %322 = vmatprep.subr.mxu0 0.0
    %323 = vmatpush1.msra.mxu0 0.0
    %324 = vmatprep.subr.mxu0 0.0
    %325 = vmatpush1.msra.mxu0 0.0
    %326 = vmatprep.subr.mxu0 0.0
    %327 = vmatpush1.msra.mxu0 0.0
    %328 = vmatprep.subr.mxu0 0.0
    %329 = vmatpush1.msra.mxu0 0.0
    %330 = vmatprep.subr.mxu0 0.0
    %331 = vmatpush1.msra.mxu0 0.0
    %332 = vmatprep.subr.mxu0 0.0
    %333 = vmatpush1.msra.mxu0 0.0
    %334 = vmatprep.subr.mxu0 0.0
    %335 = vmatpush1.msra.mxu0 0.0
    %336 = vmatprep.subr.mxu0 0.0
    %337 = vmatpush1.msra.mxu0 0.0
    %338 = vmatprep.subr.mxu0 0.0
    %339 = vmatpush1.msra.mxu0 0.0
    %340 = vmatprep.subr.mxu0 0.0
    %341 = vmatpush1.msra.mxu0 0.0
    %342 = vmatprep.subr.mxu0 0.0
    %343 = vmatpush1.msra.mxu0 0.0
    %344 = vmatprep.subr.mxu0 0.0
    %345 = vmatpush1.msra.mxu0 0.0
    %346 = vmatprep.subr.mxu0 0.0
    %347 = vmatpush1.msra.mxu0 0.0
    %348 = vmatprep.subr.mxu0 0.0
    %349 = vmatpush1.msra.mxu0 0.0
    %350 = vmatprep.subr.mxu0 0.0
    %351 = vmatpush1.msra.mxu0 0.0
    %352 = vmatprep.subr.mxu0 0.0
    %353 = vmatpush1.msra.mxu0 0.0
    %354 = vmatprep.subr.mxu0 0.0
    %355 = vmatpush1.msra.mxu0 0.0
    %356 = vmatprep.subr.mxu0 0.0
    %357 = vmatpush1.msra.mxu0 0.0
    %358 = vmatprep.subr.mxu0 0.0
    %359 = vmatpush1.msra.mxu0 0.0
    %360 = vmatprep.subr.mxu0 0.0
    %361 = vmatpush1.msra.mxu0 0.0
    %362 = vmatprep.subr.mxu0 0.0
    %363 = vmatpush1.msra.mxu0 0.0
    %364 = vmatprep.subr.mxu0 0.0
    %365 = vmatpush1.msra.mxu0 0.0
    %366 = vmatprep.subr.mxu0 0.0
    %367 = vmatpush1.msra.mxu0 0.0
    %368 = vmatprep.subr.mxu0 0.0
    %369 = vmatpush1.msra.mxu0 0.0
    %370 = vmatprep.mubr.f32.mxu0 0.0
    %v371 = vand.u32 %v92, 4294901760
    %v372 = vsub.f32 %v92, %v371
    %373 = vmatmul.mubr.f32.gmra.mrb[0].mxu0 %v372
    %v374 = vpop.f32.mrb[0].mxu0
    %v375 = vadd.f32 %v286, %v374
    %v376 = vpop.f32.mrb[0].mxu0
    %v377 = vadd.f32 %v288, %v376
    %378 = vdwg.mxu0
    %v379 = vand.u32 %v59, 4294901760
    %380 = vmatprep.subr.mxu0 %v379
    %v381 = vand.u32 %v58, 4294901760
    %382 = vmatpush1.msra.mxu0 %v381
    %v383 = vand.u32 %v67, 4294901760
    %384 = vmatprep.subr.mxu0 %v383
    %v385 = vand.u32 %v66, 4294901760
    %386 = vmatpush1.msra.mxu0 %v385
    %v387 = vand.u32 %v75, 4294901760
    %388 = vmatprep.subr.mxu0 %v387
    %v389 = vand.u32 %v74, 4294901760
    %390 = vmatpush1.msra.mxu0 %v389
    %v391 = vand.u32 %v83, 4294901760
    %392 = vmatprep.subr.mxu0 %v391
    %v393 = vand.u32 %v82, 4294901760
    %394 = vmatpush1.msra.mxu0 %v393
    %395 = vmatprep.subr.mxu0 0.0
    %396 = vmatpush1.msra.mxu0 0.0
    %397 = vmatprep.subr.mxu0 0.0
    %398 = vmatpush1.msra.mxu0 0.0
    %399 = vmatprep.subr.mxu0 0.0
    %400 = vmatpush1.msra.mxu0 0.0
    %401 = vmatprep.subr.mxu0 0.0
    %402 = vmatpush1.msra.mxu0 0.0
    %403 = vmatprep.subr.mxu0 0.0
    %404 = vmatpush1.msra.mxu0 0.0
    %405 = vmatprep.subr.mxu0 0.0
    %406 = vmatpush1.msra.mxu0 0.0
    %407 = vmatprep.subr.mxu0 0.0
    %408 = vmatpush1.msra.mxu0 0.0
    %409 = vmatprep.subr.mxu0 0.0
    %410 = vmatpush1.msra.mxu0 0.0
    %411 = vmatprep.subr.mxu0 0.0
    %412 = vmatpush1.msra.mxu0 0.0
    %413 = vmatprep.subr.mxu0 0.0
    %414 = vmatpush1.msra.mxu0 0.0
    %415 = vmatprep.subr.mxu0 0.0
    %416 = vmatpush1.msra.mxu0 0.0
    %417 = vmatprep.subr.mxu0 0.0
    %418 = vmatpush1.msra.mxu0 0.0
    %419 = vmatprep.subr.mxu0 0.0
    %420 = vmatpush1.msra.mxu0 0.0
    %421 = vmatprep.subr.mxu0 0.0
    %422 = vmatpush1.msra.mxu0 0.0
    %423 = vmatprep.subr.mxu0 0.0
    %424 = vmatpush1.msra.mxu0 0.0
    %425 = vmatprep.subr.mxu0 0.0
    %426 = vmatpush1.msra.mxu0 0.0
    %427 = vmatprep.subr.mxu0 0.0
    %428 = vmatpush1.msra.mxu0 0.0
    %429 = vmatprep.subr.mxu0 0.0
    %430 = vmatpush1.msra.mxu0 0.0
    %431 = vmatprep.subr.mxu0 0.0
    %432 = vmatpush1.msra.mxu0 0.0
    %433 = vmatprep.subr.mxu0 0.0
    %434 = vmatpush1.msra.mxu0 0.0
    %435 = vmatprep.subr.mxu0 0.0
    %436 = vmatpush1.msra.mxu0 0.0
    %437 = vmatprep.subr.mxu0 0.0
    %438 = vmatpush1.msra.mxu0 0.0
    %439 = vmatprep.subr.mxu0 0.0
    %440 = vmatpush1.msra.mxu0 0.0
    %441 = vmatprep.subr.mxu0 0.0
    %442 = vmatpush1.msra.mxu0 0.0
    %443 = vmatprep.subr.mxu0 0.0
    %444 = vmatpush1.msra.mxu0 0.0
    %445 = vmatprep.subr.mxu0 0.0
    %446 = vmatpush1.msra.mxu0 0.0
    %447 = vmatprep.subr.mxu0 0.0
    %448 = vmatpush1.msra.mxu0 0.0
    %449 = vmatprep.subr.mxu0 0.0
    %450 = vmatpush1.msra.mxu0 0.0
    %451 = vmatprep.mubr.f32.mxu0 0.0
    %v452 = vand.u32 %v92, 4294901760
    %v453 = vsub.f32 %v92, %v452
    %v454 = vand.u32 %v453, 4294901760
    %455 = vmatmul.mubr.f32.gmra.mrb[0].mxu0 %v454
    %v456 = vpop.f32.mrb[0].mxu0
    %v457 = vadd.f32 %v375, %v456
    %v458 = vpop.f32.mrb[0].mxu0
    %v459 = vadd.f32 %v377, %v458
    %460 = vdwg.mxu0
    %v461 = vand.u32 %v59, 4294901760
    %v462 = vsub.f32 %v59, %v461
    %v463 = vand.u32 %v462, 4294901760
    %464 = vmatprep.subr.mxu0 %v463
    %v465 = vand.u32 %v58, 4294901760
    %v466 = vsub.f32 %v58, %v465
    %v467 = vand.u32 %v466, 4294901760
    %468 = vmatpush1.msra.mxu0 %v467
    %v469 = vand.u32 %v67, 4294901760
    %v470 = vsub.f32 %v67, %v469
    %v471 = vand.u32 %v470, 4294901760
    %472 = vmatprep.subr.mxu0 %v471
    %v473 = vand.u32 %v66, 4294901760
    %v474 = vsub.f32 %v66, %v473
    %v475 = vand.u32 %v474, 4294901760
    %476 = vmatpush1.msra.mxu0 %v475
    %v477 = vand.u32 %v75, 4294901760
    %v478 = vsub.f32 %v75, %v477
    %v479 = vand.u32 %v478, 4294901760
    %480 = vmatprep.subr.mxu0 %v479
    %v481 = vand.u32 %v74, 4294901760
    %v482 = vsub.f32 %v74, %v481
    %v483 = vand.u32 %v482, 4294901760
    %484 = vmatpush1.msra.mxu0 %v483
    %v485 = vand.u32 %v83, 4294901760
    %v486 = vsub.f32 %v83, %v485
    %v487 = vand.u32 %v486, 4294901760
    %488 = vmatprep.subr.mxu0 %v487
    %v489 = vand.u32 %v82, 4294901760
    %v490 = vsub.f32 %v82, %v489
    %v491 = vand.u32 %v490, 4294901760
    %492 = vmatpush1.msra.mxu0 %v491
    %493 = vmatprep.subr.mxu0 0.0
    %494 = vmatpush1.msra.mxu0 0.0
    %495 = vmatprep.subr.mxu0 0.0
    %496 = vmatpush1.msra.mxu0 0.0
    %497 = vmatprep.subr.mxu0 0.0
    %498 = vmatpush1.msra.mxu0 0.0
    %499 = vmatprep.subr.mxu0 0.0
    %500 = vmatpush1.msra.mxu0 0.0
    %501 = vmatprep.subr.mxu0 0.0
    %502 = vmatpush1.msra.mxu0 0.0
    %503 = vmatprep.subr.mxu0 0.0
    %504 = vmatpush1.msra.mxu0 0.0
    %505 = vmatprep.subr.mxu0 0.0
    %506 = vmatpush1.msra.mxu0 0.0
    %507 = vmatprep.subr.mxu0 0.0
    %508 = vmatpush1.msra.mxu0 0.0
    %509 = vmatprep.subr.mxu0 0.0
    %510 = vmatpush1.msra.mxu0 0.0
    %511 = vmatprep.subr.mxu0 0.0
    %512 = vmatpush1.msra.mxu0 0.0
    %513 = vmatprep.subr.mxu0 0.0
    %514 = vmatpush1.msra.mxu0 0.0
    %515 = vmatprep.subr.mxu0 0.0
    %516 = vmatpush1.msra.mxu0 0.0
    %517 = vmatprep.subr.mxu0 0.0
    %518 = vmatpush1.msra.mxu0 0.0
    %519 = vmatprep.subr.mxu0 0.0
    %520 = vmatpush1.msra.mxu0 0.0
    %521 = vmatprep.subr.mxu0 0.0
    %522 = vmatpush1.msra.mxu0 0.0
    %523 = vmatprep.subr.mxu0 0.0
    %524 = vmatpush1.msra.mxu0 0.0
    %525 = vmatprep.subr.mxu0 0.0
    %526 = vmatpush1.msra.mxu0 0.0
    %527 = vmatprep.subr.mxu0 0.0
    %528 = vmatpush1.msra.mxu0 0.0
    %529 = vmatprep.subr.mxu0 0.0
    %530 = vmatpush1.msra.mxu0 0.0
    %531 = vmatprep.subr.mxu0 0.0
    %532 = vmatpush1.msra.mxu0 0.0
    %533 = vmatprep.subr.mxu0 0.0
    %534 = vmatpush1.msra.mxu0 0.0
    %535 = vmatprep.subr.mxu0 0.0
    %536 = vmatpush1.msra.mxu0 0.0
    %537 = vmatprep.subr.mxu0 0.0
    %538 = vmatpush1.msra.mxu0 0.0
    %539 = vmatprep.subr.mxu0 0.0
    %540 = vmatpush1.msra.mxu0 0.0
    %541 = vmatprep.subr.mxu0 0.0
    %542 = vmatpush1.msra.mxu0 0.0
    %543 = vmatprep.subr.mxu0 0.0
    %544 = vmatpush1.msra.mxu0 0.0
    %545 = vmatprep.subr.mxu0 0.0
    %546 = vmatpush1.msra.mxu0 0.0
    %547 = vmatprep.subr.mxu0 0.0
    %548 = vmatpush1.msra.mxu0 0.0
    %549 = vmatprep.mubr.f32.mxu0 0.0
    %v550 = vand.u32 %v92, 4294901760
    %551 = vmatmul.mubr.f32.gmra.mrb[0].mxu0 %v550
    %v552 = vpop.f32.mrb[0].mxu0
    %v553 = vadd.f32 %v457, %v552
    %v554 = vpop.f32.mrb[0].mxu0
    %v555 = vadd.f32 %v459, %v554
    %556 = vdwg.mxu0
    %v557 = vand.u32 %v59, 4294901760
    %558 = vmatprep.subr.mxu0 %v557
    %v559 = vand.u32 %v58, 4294901760
    %560 = vmatpush1.msra.mxu0 %v559
    %v561 = vand.u32 %v67, 4294901760
    %562 = vmatprep.subr.mxu0 %v561
    %v563 = vand.u32 %v66, 4294901760
    %564 = vmatpush1.msra.mxu0 %v563
    %v565 = vand.u32 %v75, 4294901760
    %566 = vmatprep.subr.mxu0 %v565
    %v567 = vand.u32 %v74, 4294901760
    %568 = vmatpush1.msra.mxu0 %v567
    %v569 = vand.u32 %v83, 4294901760
    %570 = vmatprep.subr.mxu0 %v569
    %v571 = vand.u32 %v82, 4294901760
    %572 = vmatpush1.msra.mxu0 %v571
    %573 = vmatprep.subr.mxu0 0.0
    %574 = vmatpush1.msra.mxu0 0.0
    %575 = vmatprep.subr.mxu0 0.0
    %576 = vmatpush1.msra.mxu0 0.0
    %577 = vmatprep.subr.mxu0 0.0
    %578 = vmatpush1.msra.mxu0 0.0
    %579 = vmatprep.subr.mxu0 0.0
    %580 = vmatpush1.msra.mxu0 0.0
    %581 = vmatprep.subr.mxu0 0.0
    %582 = vmatpush1.msra.mxu0 0.0
    %583 = vmatprep.subr.mxu0 0.0
    %584 = vmatpush1.msra.mxu0 0.0
    %585 = vmatprep.subr.mxu0 0.0
    %586 = vmatpush1.msra.mxu0 0.0
    %587 = vmatprep.subr.mxu0 0.0
    %588 = vmatpush1.msra.mxu0 0.0
    %589 = vmatprep.subr.mxu0 0.0
    %590 = vmatpush1.msra.mxu0 0.0
    %591 = vmatprep.subr.mxu0 0.0
    %592 = vmatpush1.msra.mxu0 0.0
    %593 = vmatprep.subr.mxu0 0.0
    %594 = vmatpush1.msra.mxu0 0.0
    %595 = vmatprep.subr.mxu0 0.0
    %596 = vmatpush1.msra.mxu0 0.0
    %597 = vmatprep.subr.mxu0 0.0
    %598 = vmatpush1.msra.mxu0 0.0
    %599 = vmatprep.subr.mxu0 0.0
    %600 = vmatpush1.msra.mxu0 0.0
    %601 = vmatprep.subr.mxu0 0.0
    %602 = vmatpush1.msra.mxu0 0.0
    %603 = vmatprep.subr.mxu0 0.0
    %604 = vmatpush1.msra.mxu0 0.0
    %605 = vmatprep.subr.mxu0 0.0
    %606 = vmatpush1.msra.mxu0 0.0
    %607 = vmatprep.subr.mxu0 0.0
    %608 = vmatpush1.msra.mxu0 0.0
    %609 = vmatprep.subr.mxu0 0.0
    %610 = vmatpush1.msra.mxu0 0.0
    %611 = vmatprep.subr.mxu0 0.0
    %612 = vmatpush1.msra.mxu0 0.0
    %613 = vmatprep.subr.mxu0 0.0
    %614 = vmatpush1.msra.mxu0 0.0
    %615 = vmatprep.subr.mxu0 0.0
    %616 = vmatpush1.msra.mxu0 0.0
    %617 = vmatprep.subr.mxu0 0.0
    %618 = vmatpush1.msra.mxu0 0.0
    %619 = vmatprep.subr.mxu0 0.0
    %620 = vmatpush1.msra.mxu0 0.0
    %621 = vmatprep.subr.mxu0 0.0
    %622 = vmatpush1.msra.mxu0 0.0
    %623 = vmatprep.subr.mxu0 0.0
    %624 = vmatpush1.msra.mxu0 0.0
    %625 = vmatprep.subr.mxu0 0.0
    %626 = vmatpush1.msra.mxu0 0.0
    %627 = vmatprep.subr.mxu0 0.0
    %628 = vmatpush1.msra.mxu0 0.0
    %629 = vmatprep.mubr.f32.mxu0 0.0
    %v630 = vand.u32 %v92, 4294901760
    %631 = vmatmul.mubr.f32.gmra.mrb[0].mxu0 %v630
    %v632 = vpop.f32.mrb[0].mxu0
    %v633 = vadd.f32 %v553, %v632
    %v634 = vpop.f32.mrb[0].mxu0
    %v635 = vadd.f32 %v555, %v634
    %636 = vdwg.mxu0
    %v637 = vand.u32 %v61, 4294901760
    %638 = vmatprep.subr.mxu0 %v637
    %v639 = vand.u32 %v60, 4294901760
    %640 = vmatpush1.msra.mxu0 %v639
    %v641 = vand.u32 %v69, 4294901760
    %642 = vmatprep.subr.mxu0 %v641
    %v643 = vand.u32 %v68, 4294901760
    %644 = vmatpush1.msra.mxu0 %v643
    %v645 = vand.u32 %v77, 4294901760
    %646 = vmatprep.subr.mxu0 %v645
    %v647 = vand.u32 %v76, 4294901760
    %648 = vmatpush1.msra.mxu0 %v647
    %v649 = vand.u32 %v85, 4294901760
    %650 = vmatprep.subr.mxu0 %v649
    %v651 = vand.u32 %v84, 4294901760
    %652 = vmatpush1.msra.mxu0 %v651
    %653 = vmatprep.subr.mxu0 0.0
    %654 = vmatpush1.msra.mxu0 0.0
    %655 = vmatprep.subr.mxu0 0.0
    %656 = vmatpush1.msra.mxu0 0.0
    %657 = vmatprep.subr.mxu0 0.0
    %658 = vmatpush1.msra.mxu0 0.0
    %659 = vmatprep.subr.mxu0 0.0
    %660 = vmatpush1.msra.mxu0 0.0
    %661 = vmatprep.subr.mxu0 0.0
    %662 = vmatpush1.msra.mxu0 0.0
    %663 = vmatprep.subr.mxu0 0.0
    %664 = vmatpush1.msra.mxu0 0.0
    %665 = vmatprep.subr.mxu0 0.0
    %666 = vmatpush1.msra.mxu0 0.0
    %667 = vmatprep.subr.mxu0 0.0
    %668 = vmatpush1.msra.mxu0 0.0
    %669 = vmatprep.subr.mxu0 0.0
    %670 = vmatpush1.msra.mxu0 0.0
    %671 = vmatprep.subr.mxu0 0.0
    %672 = vmatpush1.msra.mxu0 0.0
    %673 = vmatprep.subr.mxu0 0.0
    %674 = vmatpush1.msra.mxu0 0.0
    %675 = vmatprep.subr.mxu0 0.0
    %676 = vmatpush1.msra.mxu0 0.0
    %677 = vmatprep.subr.mxu0 0.0
    %678 = vmatpush1.msra.mxu0 0.0
    %679 = vmatprep.subr.mxu0 0.0
    %680 = vmatpush1.msra.mxu0 0.0
    %681 = vmatprep.subr.mxu0 0.0
    %682 = vmatpush1.msra.mxu0 0.0
    %683 = vmatprep.subr.mxu0 0.0
    %684 = vmatpush1.msra.mxu0 0.0
    %685 = vmatprep.subr.mxu0 0.0
    %686 = vmatpush1.msra.mxu0 0.0
    %687 = vmatprep.subr.mxu0 0.0
    %688 = vmatpush1.msra.mxu0 0.0
    %689 = vmatprep.subr.mxu0 0.0
    %690 = vmatpush1.msra.mxu0 0.0
    %691 = vmatprep.subr.mxu0 0.0
    %692 = vmatpush1.msra.mxu0 0.0
    %693 = vmatprep.subr.mxu0 0.0
    %694 = vmatpush1.msra.mxu0 0.0
    %695 = vmatprep.subr.mxu0 0.0
    %696 = vmatpush1.msra.mxu0 0.0
    %697 = vmatprep.subr.mxu0 0.0
    %698 = vmatpush1.msra.mxu0 0.0
    %699 = vmatprep.subr.mxu0 0.0
    %700 = vmatpush1.msra.mxu0 0.0
    %701 = vmatprep.subr.mxu0 0.0
    %702 = vmatpush1.msra.mxu0 0.0
    %703 = vmatprep.subr.mxu0 0.0
    %704 = vmatpush1.msra.mxu0 0.0
    %705 = vmatprep.subr.mxu0 0.0
    %706 = vmatpush1.msra.mxu0 0.0
    %707 = vmatprep.subr.mxu0 0.0
    %708 = vmatpush1.msra.mxu0 0.0
    %709 = vmatprep.mubr.f32.mxu0 0.0
    %v710 = vand.u32 %v92, 4294901760
    %v711 = vsub.f32 %v92, %v710
    %v712 = vand.u32 %v711, 4294901760
    %v713 = vsub.f32 %v711, %v712
    %v714 = vand.u32 %v713, 4294901760
    %715 = vmatmul.mubr.f32.gmra.mrb[0].mxu0 %v714
    %v716 = vpop.f32.mrb[0].mxu0
    %v717 = vadd.f32 0.0, %v716
    %v718 = vpop.f32.mrb[0].mxu0
    %v719 = vadd.f32 0.0, %v718
    %720 = vdwg.mxu0
    %v721 = vand.u32 %v61, 4294901760
    %v722 = vsub.f32 %v61, %v721
    %v723 = vand.u32 %v722, 4294901760
    %v724 = vsub.f32 %v722, %v723
    %v725 = vand.u32 %v724, 4294901760
    %726 = vmatprep.subr.mxu0 %v725
    %v727 = vand.u32 %v60, 4294901760
    %v728 = vsub.f32 %v60, %v727
    %v729 = vand.u32 %v728, 4294901760
    %v730 = vsub.f32 %v728, %v729
    %v731 = vand.u32 %v730, 4294901760
    %732 = vmatpush1.msra.mxu0 %v731
    %v733 = vand.u32 %v69, 4294901760
    %v734 = vsub.f32 %v69, %v733
    %v735 = vand.u32 %v734, 4294901760
    %v736 = vsub.f32 %v734, %v735
    %v737 = vand.u32 %v736, 4294901760
    %738 = vmatprep.subr.mxu0 %v737
    %v739 = vand.u32 %v68, 4294901760
    %v740 = vsub.f32 %v68, %v739
    %v741 = vand.u32 %v740, 4294901760
    %v742 = vsub.f32 %v740, %v741
    %v743 = vand.u32 %v742, 4294901760
    %744 = vmatpush1.msra.mxu0 %v743
    %v745 = vand.u32 %v77, 4294901760
    %v746 = vsub.f32 %v77, %v745
    %v747 = vand.u32 %v746, 4294901760
    %v748 = vsub.f32 %v746, %v747
    %v749 = vand.u32 %v748, 4294901760
    %750 = vmatprep.subr.mxu0 %v749
    %v751 = vand.u32 %v76, 4294901760
    %v752 = vsub.f32 %v76, %v751
    %v753 = vand.u32 %v752, 4294901760
    %v754 = vsub.f32 %v752, %v753
    %v755 = vand.u32 %v754, 4294901760
    %756 = vmatpush1.msra.mxu0 %v755
    %v757 = vand.u32 %v85, 4294901760
    %v758 = vsub.f32 %v85, %v757
    %v759 = vand.u32 %v758, 4294901760
    %v760 = vsub.f32 %v758, %v759
    %v761 = vand.u32 %v760, 4294901760
    %762 = vmatprep.subr.mxu0 %v761
    %v763 = vand.u32 %v84, 4294901760
    %v764 = vsub.f32 %v84, %v763
    %v765 = vand.u32 %v764, 4294901760
    %v766 = vsub.f32 %v764, %v765
    %v767 = vand.u32 %v766, 4294901760
    %768 = vmatpush1.msra.mxu0 %v767
    %769 = vmatprep.subr.mxu0 0.0
    %770 = vmatpush1.msra.mxu0 0.0
    %771 = vmatprep.subr.mxu0 0.0
    %772 = vmatpush1.msra.mxu0 0.0
    %773 = vmatprep.subr.mxu0 0.0
    %774 = vmatpush1.msra.mxu0 0.0
    %775 = vmatprep.subr.mxu0 0.0
    %776 = vmatpush1.msra.mxu0 0.0
    %777 = vmatprep.subr.mxu0 0.0
    %778 = vmatpush1.msra.mxu0 0.0
    %779 = vmatprep.subr.mxu0 0.0
    %780 = vmatpush1.msra.mxu0 0.0
    %781 = vmatprep.subr.mxu0 0.0
    %782 = vmatpush1.msra.mxu0 0.0
    %783 = vmatprep.subr.mxu0 0.0
    %784 = vmatpush1.msra.mxu0 0.0
    %785 = vmatprep.subr.mxu0 0.0
    %786 = vmatpush1.msra.mxu0 0.0
    %787 = vmatprep.subr.mxu0 0.0
    %788 = vmatpush1.msra.mxu0 0.0
    %789 = vmatprep.subr.mxu0 0.0
    %790 = vmatpush1.msra.mxu0 0.0
    %791 = vmatprep.subr.mxu0 0.0
    %792 = vmatpush1.msra.mxu0 0.0
    %793 = vmatprep.subr.mxu0 0.0
    %794 = vmatpush1.msra.mxu0 0.0
    %795 = vmatprep.subr.mxu0 0.0
    %796 = vmatpush1.msra.mxu0 0.0
    %797 = vmatprep.subr.mxu0 0.0
    %798 = vmatpush1.msra.mxu0 0.0
    %799 = vmatprep.subr.mxu0 0.0
    %800 = vmatpush1.msra.mxu0 0.0
    %801 = vmatprep.subr.mxu0 0.0
    %802 = vmatpush1.msra.mxu0 0.0
    %803 = vmatprep.subr.mxu0 0.0
    %804 = vmatpush1.msra.mxu0 0.0
    %805 = vmatprep.subr.mxu0 0.0
    %806 = vmatpush1.msra.mxu0 0.0
    %807 = vmatprep.subr.mxu0 0.0
    %808 = vmatpush1.msra.mxu0 0.0
    %809 = vmatprep.subr.mxu0 0.0
    %810 = vmatpush1.msra.mxu0 0.0
    %811 = vmatprep.subr.mxu0 0.0
    %812 = vmatpush1.msra.mxu0 0.0
    %813 = vmatprep.subr.mxu0 0.0
    %814 = vmatpush1.msra.mxu0 0.0
    %815 = vmatprep.subr.mxu0 0.0
    %816 = vmatpush1.msra.mxu0 0.0
    %817 = vmatprep.subr.mxu0 0.0
    %818 = vmatpush1.msra.mxu0 0.0
    %819 = vmatprep.subr.mxu0 0.0
    %820 = vmatpush1.msra.mxu0 0.0
    %821 = vmatprep.subr.mxu0 0.0
    %822 = vmatpush1.msra.mxu0 0.0
    %823 = vmatprep.subr.mxu0 0.0
    %824 = vmatpush1.msra.mxu0 0.0
    %825 = vmatprep.mubr.f32.mxu0 0.0
    %v826 = vand.u32 %v92, 4294901760
    %827 = vmatmul.mubr.f32.gmra.mrb[0].mxu0 %v826
    %v828 = vpop.f32.mrb[0].mxu0
    %v829 = vadd.f32 %v717, %v828
    %v830 = vpop.f32.mrb[0].mxu0
    %v831 = vadd.f32 %v719, %v830
    %832 = vdwg.mxu0
    %v833 = vand.u32 %v61, 4294901760
    %v834 = vsub.f32 %v61, %v833
    %835 = vmatprep.subr.mxu0 %v834
    %v836 = vand.u32 %v60, 4294901760
    %v837 = vsub.f32 %v60, %v836
    %838 = vmatpush1.msra.mxu0 %v837
    %v839 = vand.u32 %v69, 4294901760
    %v840 = vsub.f32 %v69, %v839
    %841 = vmatprep.subr.mxu0 %v840
    %v842 = vand.u32 %v68, 4294901760
    %v843 = vsub.f32 %v68, %v842
    %844 = vmatpush1.msra.mxu0 %v843
    %v845 = vand.u32 %v77, 4294901760
    %v846 = vsub.f32 %v77, %v845
    %847 = vmatprep.subr.mxu0 %v846
    %v848 = vand.u32 %v76, 4294901760
    %v849 = vsub.f32 %v76, %v848
    %850 = vmatpush1.msra.mxu0 %v849
    %v851 = vand.u32 %v85, 4294901760
    %v852 = vsub.f32 %v85, %v851
    %853 = vmatprep.subr.mxu0 %v852
    %v854 = vand.u32 %v84, 4294901760
    %v855 = vsub.f32 %v84, %v854
    %856 = vmatpush1.msra.mxu0 %v855
    %857 = vmatprep.subr.mxu0 0.0
    %858 = vmatpush1.msra.mxu0 0.0
    %859 = vmatprep.subr.mxu0 0.0
    %860 = vmatpush1.msra.mxu0 0.0
    %861 = vmatprep.subr.mxu0 0.0
    %862 = vmatpush1.msra.mxu0 0.0
    %863 = vmatprep.subr.mxu0 0.0
    %864 = vmatpush1.msra.mxu0 0.0
    %865 = vmatprep.subr.mxu0 0.0
    %866 = vmatpush1.msra.mxu0 0.0
    %867 = vmatprep.subr.mxu0 0.0
    %868 = vmatpush1.msra.mxu0 0.0
    %869 = vmatprep.subr.mxu0 0.0
    %870 = vmatpush1.msra.mxu0 0.0
    %871 = vmatprep.subr.mxu0 0.0
    %872 = vmatpush1.msra.mxu0 0.0
    %873 = vmatprep.subr.mxu0 0.0
    %874 = vmatpush1.msra.mxu0 0.0
    %875 = vmatprep.subr.mxu0 0.0
    %876 = vmatpush1.msra.mxu0 0.0
    %877 = vmatprep.subr.mxu0 0.0
    %878 = vmatpush1.msra.mxu0 0.0
    %879 = vmatprep.subr.mxu0 0.0
    %880 = vmatpush1.msra.mxu0 0.0
    %881 = vmatprep.subr.mxu0 0.0
    %882 = vmatpush1.msra.mxu0 0.0
    %883 = vmatprep.subr.mxu0 0.0
    %884 = vmatpush1.msra.mxu0 0.0
    %885 = vmatprep.subr.mxu0 0.0
    %886 = vmatpush1.msra.mxu0 0.0
    %887 = vmatprep.subr.mxu0 0.0
    %888 = vmatpush1.msra.mxu0 0.0
    %889 = vmatprep.subr.mxu0 0.0
    %890 = vmatpush1.msra.mxu0 0.0
    %891 = vmatprep.subr.mxu0 0.0
    %892 = vmatpush1.msra.mxu0 0.0
    %893 = vmatprep.subr.mxu0 0.0
    %894 = vmatpush1.msra.mxu0 0.0
    %895 = vmatprep.subr.mxu0 0.0
    %896 = vmatpush1.msra.mxu0 0.0
    %897 = vmatprep.subr.mxu0 0.0
    %898 = vmatpush1.msra.mxu0 0.0
    %899 = vmatprep.subr.mxu0 0.0
    %900 = vmatpush1.msra.mxu0 0.0
    %901 = vmatprep.subr.mxu0 0.0
    %902 = vmatpush1.msra.mxu0 0.0
    %903 = vmatprep.subr.mxu0 0.0
    %904 = vmatpush1.msra.mxu0 0.0
    %905 = vmatprep.subr.mxu0 0.0
    %906 = vmatpush1.msra.mxu0 0.0
    %907 = vmatprep.subr.mxu0 0.0
    %908 = vmatpush1.msra.mxu0 0.0
    %909 = vmatprep.subr.mxu0 0.0
    %910 = vmatpush1.msra.mxu0 0.0
    %911 = vmatprep.subr.mxu0 0.0
    %912 = vmatpush1.msra.mxu0 0.0
    %913 = vmatprep.mubr.f32.mxu0 0.0
    %v914 = vand.u32 %v92, 4294901760
    %v915 = vsub.f32 %v92, %v914
    %916 = vmatmul.mubr.f32.gmra.mrb[0].mxu0 %v915
    %v917 = vpop.f32.mrb[0].mxu0
    %v918 = vadd.f32 %v829, %v917
    %v919 = vpop.f32.mrb[0].mxu0
    %v920 = vadd.f32 %v831, %v919
    %921 = vdwg.mxu0
    %v922 = vand.u32 %v61, 4294901760
    %923 = vmatprep.subr.mxu0 %v922
    %v924 = vand.u32 %v60, 4294901760
    %925 = vmatpush1.msra.mxu0 %v924
    %v926 = vand.u32 %v69, 4294901760
    %927 = vmatprep.subr.mxu0 %v926
    %v928 = vand.u32 %v68, 4294901760
    %929 = vmatpush1.msra.mxu0 %v928
    %v930 = vand.u32 %v77, 4294901760
    %931 = vmatprep.subr.mxu0 %v930
    %v932 = vand.u32 %v76, 4294901760
    %933 = vmatpush1.msra.mxu0 %v932
    %v934 = vand.u32 %v85, 4294901760
    %935 = vmatprep.subr.mxu0 %v934
    %v936 = vand.u32 %v84, 4294901760
    %937 = vmatpush1.msra.mxu0 %v936
    %938 = vmatprep.subr.mxu0 0.0
    %939 = vmatpush1.msra.mxu0 0.0
    %940 = vmatprep.subr.mxu0 0.0
    %941 = vmatpush1.msra.mxu0 0.0
    %942 = vmatprep.subr.mxu0 0.0
    %943 = vmatpush1.msra.mxu0 0.0
    %944 = vmatprep.subr.mxu0 0.0
    %945 = vmatpush1.msra.mxu0 0.0
    %946 = vmatprep.subr.mxu0 0.0
    %947 = vmatpush1.msra.mxu0 0.0
    %948 = vmatprep.subr.mxu0 0.0
    %949 = vmatpush1.msra.mxu0 0.0
    %950 = vmatprep.subr.mxu0 0.0
    %951 = vmatpush1.msra.mxu0 0.0
    %952 = vmatprep.subr.mxu0 0.0
    %953 = vmatpush1.msra.mxu0 0.0
    %954 = vmatprep.subr.mxu0 0.0
    %955 = vmatpush1.msra.mxu0 0.0
    %956 = vmatprep.subr.mxu0 0.0
    %957 = vmatpush1.msra.mxu0 0.0
    %958 = vmatprep.subr.mxu0 0.0
    %959 = vmatpush1.msra.mxu0 0.0
    %960 = vmatprep.subr.mxu0 0.0
    %961 = vmatpush1.msra.mxu0 0.0
    %962 = vmatprep.subr.mxu0 0.0
    %963 = vmatpush1.msra.mxu0 0.0
    %964 = vmatprep.subr.mxu0 0.0
    %965 = vmatpush1.msra.mxu0 0.0
    %966 = vmatprep.subr.mxu0 0.0
    %967 = vmatpush1.msra.mxu0 0.0
    %968 = vmatprep.subr.mxu0 0.0
    %969 = vmatpush1.msra.mxu0 0.0
    %970 = vmatprep.subr.mxu0 0.0
    %971 = vmatpush1.msra.mxu0 0.0
    %972 = vmatprep.subr.mxu0 0.0
    %973 = vmatpush1.msra.mxu0 0.0
    %974 = vmatprep.subr.mxu0 0.0
    %975 = vmatpush1.msra.mxu0 0.0
    %976 = vmatprep.subr.mxu0 0.0
    %977 = vmatpush1.msra.mxu0 0.0
    %978 = vmatprep.subr.mxu0 0.0
    %979 = vmatpush1.msra.mxu0 0.0
    %980 = vmatprep.subr.mxu0 0.0
    %981 = vmatpush1.msra.mxu0 0.0
    %982 = vmatprep.subr.mxu0 0.0
    %983 = vmatpush1.msra.mxu0 0.0
    %984 = vmatprep.subr.mxu0 0.0
    %985 = vmatpush1.msra.mxu0 0.0
    %986 = vmatprep.subr.mxu0 0.0
    %987 = vmatpush1.msra.mxu0 0.0
    %988 = vmatprep.subr.mxu0 0.0
    %989 = vmatpush1.msra.mxu0 0.0
    %990 = vmatprep.subr.mxu0 0.0
    %991 = vmatpush1.msra.mxu0 0.0
    %992 = vmatprep.subr.mxu0 0.0
    %993 = vmatpush1.msra.mxu0 0.0
    %994 = vmatprep.mubr.f32.mxu0 0.0
    %v995 = vand.u32 %v92, 4294901760
    %v996 = vsub.f32 %v92, %v995
    %v997 = vand.u32 %v996, 4294901760
    %998 = vmatmul.mubr.f32.gmra.mrb[0].mxu0 %v997
    %v999 = vpop.f32.mrb[0].mxu0
    %v1000 = vadd.f32 %v918, %v999
    %v1001 = vpop.f32.mrb[0].mxu0
    %v1002 = vadd.f32 %v920, %v1001
    %1003 = vdwg.mxu0
    %v1004 = vand.u32 %v61, 4294901760
    %v1005 = vsub.f32 %v61, %v1004
    %v1006 = vand.u32 %v1005, 4294901760
    %1007 = vmatprep.subr.mxu0 %v1006
    %v1008 = vand.u32 %v60, 4294901760
    %v1009 = vsub.f32 %v60, %v1008
    %v1010 = vand.u32 %v1009, 4294901760
    %1011 = vmatpush1.msra.mxu0 %v1010
    %v1012 = vand.u32 %v69, 4294901760
    %v1013 = vsub.f32 %v69, %v1012
    %v1014 = vand.u32 %v1013, 4294901760
    %1015 = vmatprep.subr.mxu0 %v1014
    %v1016 = vand.u32 %v68, 4294901760
    %v1017 = vsub.f32 %v68, %v1016
    %v1018 = vand.u32 %v1017, 4294901760
    %1019 = vmatpush1.msra.mxu0 %v1018
    %v1020 = vand.u32 %v77, 4294901760
    %v1021 = vsub.f32 %v77, %v1020
    %v1022 = vand.u32 %v1021, 4294901760
    %1023 = vmatprep.subr.mxu0 %v1022
    %v1024 = vand.u32 %v76, 4294901760
    %v1025 = vsub.f32 %v76, %v1024
    %v1026 = vand.u32 %v1025, 4294901760
    %1027 = vmatpush1.msra.mxu0 %v1026
    %v1028 = vand.u32 %v85, 4294901760
    %v1029 = vsub.f32 %v85, %v1028
    %v1030 = vand.u32 %v1029, 4294901760
    %1031 = vmatprep.subr.mxu0 %v1030
    %v1032 = vand.u32 %v84, 4294901760
    %v1033 = vsub.f32 %v84, %v1032
    %v1034 = vand.u32 %v1033, 4294901760
    %1035 = vmatpush1.msra.mxu0 %v1034
    %1036 = vmatprep.subr.mxu0 0.0
    %1037 = vmatpush1.msra.mxu0 0.0
    %1038 = vmatprep.subr.mxu0 0.0
    %1039 = vmatpush1.msra.mxu0 0.0
    %1040 = vmatprep.subr.mxu0 0.0
    %1041 = vmatpush1.msra.mxu0 0.0
    %1042 = vmatprep.subr.mxu0 0.0
    %1043 = vmatpush1.msra.mxu0 0.0
    %1044 = vmatprep.subr.mxu0 0.0
    %1045 = vmatpush1.msra.mxu0 0.0
    %1046 = vmatprep.subr.mxu0 0.0
    %1047 = vmatpush1.msra.mxu0 0.0
    %1048 = vmatprep.subr.mxu0 0.0
    %1049 = vmatpush1.msra.mxu0 0.0
    %1050 = vmatprep.subr.mxu0 0.0
    %1051 = vmatpush1.msra.mxu0 0.0
    %1052 = vmatprep.subr.mxu0 0.0
    %1053 = vmatpush1.msra.mxu0 0.0
    %1054 = vmatprep.subr.mxu0 0.0
    %1055 = vmatpush1.msra.mxu0 0.0
    %1056 = vmatprep.subr.mxu0 0.0
    %1057 = vmatpush1.msra.mxu0 0.0
    %1058 = vmatprep.subr.mxu0 0.0
    %1059 = vmatpush1.msra.mxu0 0.0
    %1060 = vmatprep.subr.mxu0 0.0
    %1061 = vmatpush1.msra.mxu0 0.0
    %1062 = vmatprep.subr.mxu0 0.0
    %1063 = vmatpush1.msra.mxu0 0.0
    %1064 = vmatprep.subr.mxu0 0.0
    %1065 = vmatpush1.msra.mxu0 0.0
    %1066 = vmatprep.subr.mxu0 0.0
    %1067 = vmatpush1.msra.mxu0 0.0
    %1068 = vmatprep.subr.mxu0 0.0
    %1069 = vmatpush1.msra.mxu0 0.0
    %1070 = vmatprep.subr.mxu0 0.0
    %1071 = vmatpush1.msra.mxu0 0.0
    %1072 = vmatprep.subr.mxu0 0.0
    %1073 = vmatpush1.msra.mxu0 0.0
    %1074 = vmatprep.subr.mxu0 0.0
    %1075 = vmatpush1.msra.mxu0 0.0
    %1076 = vmatprep.subr.mxu0 0.0
    %1077 = vmatpush1.msra.mxu0 0.0
    %1078 = vmatprep.subr.mxu0 0.0
    %1079 = vmatpush1.msra.mxu0 0.0
    %1080 = vmatprep.subr.mxu0 0.0
    %1081 = vmatpush1.msra.mxu0 0.0
    %1082 = vmatprep.subr.mxu0 0.0
    %1083 = vmatpush1.msra.mxu0 0.0
    %1084 = vmatprep.subr.mxu0 0.0
    %1085 = vmatpush1.msra.mxu0 0.0
    %1086 = vmatprep.subr.mxu0 0.0
    %1087 = vmatpush1.msra.mxu0 0.0
    %1088 = vmatprep.subr.mxu0 0.0
    %1089 = vmatpush1.msra.mxu0 0.0
    %1090 = vmatprep.subr.mxu0 0.0
    %1091 = vmatpush1.msra.mxu0 0.0
    %1092 = vmatprep.mubr.f32.mxu0 0.0
    %v1093 = vand.u32 %v92, 4294901760
    %1094 = vmatmul.mubr.f32.gmra.mrb[0].mxu0 %v1093
    %v1095 = vpop.f32.mrb[0].mxu0
    %v1096 = vadd.f32 %v1000, %v1095
    %v1097 = vpop.f32.mrb[0].mxu0
    %v1098 = vadd.f32 %v1002, %v1097
    %1099 = vdwg.mxu0
    %v1100 = vand.u32 %v61, 4294901760
    %1101 = vmatprep.subr.mxu0 %v1100
    %v1102 = vand.u32 %v60, 4294901760
    %1103 = vmatpush1.msra.mxu0 %v1102
    %v1104 = vand.u32 %v69, 4294901760
    %1105 = vmatprep.subr.mxu0 %v1104
    %v1106 = vand.u32 %v68, 4294901760
    %1107 = vmatpush1.msra.mxu0 %v1106
    %v1108 = vand.u32 %v77, 4294901760
    %1109 = vmatprep.subr.mxu0 %v1108
    %v1110 = vand.u32 %v76, 4294901760
    %1111 = vmatpush1.msra.mxu0 %v1110
    %v1112 = vand.u32 %v85, 4294901760
    %1113 = vmatprep.subr.mxu0 %v1112
    %v1114 = vand.u32 %v84, 4294901760
    %1115 = vmatpush1.msra.mxu0 %v1114
    %1116 = vmatprep.subr.mxu0 0.0
    %1117 = vmatpush1.msra.mxu0 0.0
    %1118 = vmatprep.subr.mxu0 0.0
    %1119 = vmatpush1.msra.mxu0 0.0
    %1120 = vmatprep.subr.mxu0 0.0
    %1121 = vmatpush1.msra.mxu0 0.0
    %1122 = vmatprep.subr.mxu0 0.0
    %1123 = vmatpush1.msra.mxu0 0.0
    %1124 = vmatprep.subr.mxu0 0.0
    %1125 = vmatpush1.msra.mxu0 0.0
    %1126 = vmatprep.subr.mxu0 0.0
    %1127 = vmatpush1.msra.mxu0 0.0
    %1128 = vmatprep.subr.mxu0 0.0
    %1129 = vmatpush1.msra.mxu0 0.0
    %1130 = vmatprep.subr.mxu0 0.0
    %1131 = vmatpush1.msra.mxu0 0.0
    %1132 = vmatprep.subr.mxu0 0.0
    %1133 = vmatpush1.msra.mxu0 0.0
    %1134 = vmatprep.subr.mxu0 0.0
    %1135 = vmatpush1.msra.mxu0 0.0
    %1136 = vmatprep.subr.mxu0 0.0
    %1137 = vmatpush1.msra.mxu0 0.0
    %1138 = vmatprep.subr.mxu0 0.0
    %1139 = vmatpush1.msra.mxu0 0.0
    %1140 = vmatprep.subr.mxu0 0.0
    %1141 = vmatpush1.msra.mxu0 0.0
    %1142 = vmatprep.subr.mxu0 0.0
    %1143 = vmatpush1.msra.mxu0 0.0
    %1144 = vmatprep.subr.mxu0 0.0
    %1145 = vmatpush1.msra.mxu0 0.0
    %1146 = vmatprep.subr.mxu0 0.0
    %1147 = vmatpush1.msra.mxu0 0.0
    %1148 = vmatprep.subr.mxu0 0.0
    %1149 = vmatpush1.msra.mxu0 0.0
    %1150 = vmatprep.subr.mxu0 0.0
    %1151 = vmatpush1.msra.mxu0 0.0
    %1152 = vmatprep.subr.mxu0 0.0
    %1153 = vmatpush1.msra.mxu0 0.0
    %1154 = vmatprep.subr.mxu0 0.0
    %1155 = vmatpush1.msra.mxu0 0.0
    %1156 = vmatprep.subr.mxu0 0.0
    %1157 = vmatpush1.msra.mxu0 0.0
    %1158 = vmatprep.subr.mxu0 0.0
    %1159 = vmatpush1.msra.mxu0 0.0
    %1160 = vmatprep.subr.mxu0 0.0
    %1161 = vmatpush1.msra.mxu0 0.0
    %1162 = vmatprep.subr.mxu0 0.0
    %1163 = vmatpush1.msra.mxu0 0.0
    %1164 = vmatprep.subr.mxu0 0.0
    %1165 = vmatpush1.msra.mxu0 0.0
    %1166 = vmatprep.subr.mxu0 0.0
    %1167 = vmatpush1.msra.mxu0 0.0
    %1168 = vmatprep.subr.mxu0 0.0
    %1169 = vmatpush1.msra.mxu0 0.0
    %1170 = vmatprep.subr.mxu0 0.0
    %1171 = vmatpush1.msra.mxu0 0.0
    %1172 = vmatprep.mubr.f32.mxu0 0.0
    %v1173 = vand.u32 %v92, 4294901760
    %1174 = vmatmul.mubr.f32.gmra.mrb[0].mxu0 %v1173
    %v1175 = vpop.f32.mrb[0].mxu0
    %v1176 = vadd.f32 %v1096, %v1175
    %v1177 = vpop.f32.mrb[0].mxu0
    %v1178 = vadd.f32 %v1098, %v1177
    %1179 = vdwg.mxu0
    %v1180 = vand.u32 %v63, 4294901760
    %1181 = vmatprep.subr.mxu0 %v1180
    %v1182 = vand.u32 %v62, 4294901760
    %1183 = vmatpush1.msra.mxu0 %v1182
    %v1184 = vand.u32 %v71, 4294901760
    %1185 = vmatprep.subr.mxu0 %v1184
    %v1186 = vand.u32 %v70, 4294901760
    %1187 = vmatpush1.msra.mxu0 %v1186
    %v1188 = vand.u32 %v79, 4294901760
    %1189 = vmatprep.subr.mxu0 %v1188
    %v1190 = vand.u32 %v78, 4294901760
    %1191 = vmatpush1.msra.mxu0 %v1190
    %v1192 = vand.u32 %v87, 4294901760
    %1193 = vmatprep.subr.mxu0 %v1192
    %v1194 = vand.u32 %v86, 4294901760
    %1195 = vmatpush1.msra.mxu0 %v1194
    %1196 = vmatprep.subr.mxu0 0.0
    %1197 = vmatpush1.msra.mxu0 0.0
    %1198 = vmatprep.subr.mxu0 0.0
    %1199 = vmatpush1.msra.mxu0 0.0
    %1200 = vmatprep.subr.mxu0 0.0
    %1201 = vmatpush1.msra.mxu0 0.0
    %1202 = vmatprep.subr.mxu0 0.0
    %1203 = vmatpush1.msra.mxu0 0.0
    %1204 = vmatprep.subr.mxu0 0.0
    %1205 = vmatpush1.msra.mxu0 0.0
    %1206 = vmatprep.subr.mxu0 0.0
    %1207 = vmatpush1.msra.mxu0 0.0
    %1208 = vmatprep.subr.mxu0 0.0
    %1209 = vmatpush1.msra.mxu0 0.0
    %1210 = vmatprep.subr.mxu0 0.0
    %1211 = vmatpush1.msra.mxu0 0.0
    %1212 = vmatprep.subr.mxu0 0.0
    %1213 = vmatpush1.msra.mxu0 0.0
    %1214 = vmatprep.subr.mxu0 0.0
    %1215 = vmatpush1.msra.mxu0 0.0
    %1216 = vmatprep.subr.mxu0 0.0
    %1217 = vmatpush1.msra.mxu0 0.0
    %1218 = vmatprep.subr.mxu0 0.0
    %1219 = vmatpush1.msra.mxu0 0.0
    %1220 = vmatprep.subr.mxu0 0.0
    %1221 = vmatpush1.msra.mxu0 0.0
    %1222 = vmatprep.subr.mxu0 0.0
    %1223 = vmatpush1.msra.mxu0 0.0
    %1224 = vmatprep.subr.mxu0 0.0
    %1225 = vmatpush1.msra.mxu0 0.0
    %1226 = vmatprep.subr.mxu0 0.0
    %1227 = vmatpush1.msra.mxu0 0.0
    %1228 = vmatprep.subr.mxu0 0.0
    %1229 = vmatpush1.msra.mxu0 0.0
    %1230 = vmatprep.subr.mxu0 0.0
    %1231 = vmatpush1.msra.mxu0 0.0
    %1232 = vmatprep.subr.mxu0 0.0
    %1233 = vmatpush1.msra.mxu0 0.0
    %1234 = vmatprep.subr.mxu0 0.0
    %1235 = vmatpush1.msra.mxu0 0.0
    %1236 = vmatprep.subr.mxu0 0.0
    %1237 = vmatpush1.msra.mxu0 0.0
    %1238 = vmatprep.subr.mxu0 0.0
    %1239 = vmatpush1.msra.mxu0 0.0
    %1240 = vmatprep.subr.mxu0 0.0
    %1241 = vmatpush1.msra.mxu0 0.0
    %1242 = vmatprep.subr.mxu0 0.0
    %1243 = vmatpush1.msra.mxu0 0.0
    %1244 = vmatprep.subr.mxu0 0.0
    %1245 = vmatpush1.msra.mxu0 0.0
    %1246 = vmatprep.subr.mxu0 0.0
    %1247 = vmatpush1.msra.mxu0 0.0
    %1248 = vmatprep.subr.mxu0 0.0
    %1249 = vmatpush1.msra.mxu0 0.0
    %1250 = vmatprep.subr.mxu0 0.0
    %1251 = vmatpush1.msra.mxu0 0.0
    %1252 = vmatprep.mubr.f32.mxu0 0.0
    %v1253 = vand.u32 %v92, 4294901760
    %v1254 = vsub.f32 %v92, %v1253
    %v1255 = vand.u32 %v1254, 4294901760
    %v1256 = vsub.f32 %v1254, %v1255
    %v1257 = vand.u32 %v1256, 4294901760
    %1258 = vmatmul.mubr.f32.gmra.mrb[0].mxu0 %v1257
    %v1259 = vpop.f32.mrb[0].mxu0
    %v1260 = vadd.f32 0.0, %v1259
    %v1261 = vpop.f32.mrb[0].mxu0
    %v1262 = vadd.f32 0.0, %v1261
    %1263 = vdwg.mxu0
    %v1264 = vand.u32 %v63, 4294901760
    %v1265 = vsub.f32 %v63, %v1264
    %v1266 = vand.u32 %v1265, 4294901760
    %v1267 = vsub.f32 %v1265, %v1266
    %v1268 = vand.u32 %v1267, 4294901760
    %1269 = vmatprep.subr.mxu0 %v1268
    %v1270 = vand.u32 %v62, 4294901760
    %v1271 = vsub.f32 %v62, %v1270
    %v1272 = vand.u32 %v1271, 4294901760
    %v1273 = vsub.f32 %v1271, %v1272
    %v1274 = vand.u32 %v1273, 4294901760
    %1275 = vmatpush1.msra.mxu0 %v1274
    %v1276 = vand.u32 %v71, 4294901760
    %v1277 = vsub.f32 %v71, %v1276
    %v1278 = vand.u32 %v1277, 4294901760
    %v1279 = vsub.f32 %v1277, %v1278
    %v1280 = vand.u32 %v1279, 4294901760
    %1281 = vmatprep.subr.mxu0 %v1280
    %v1282 = vand.u32 %v70, 4294901760
    %v1283 = vsub.f32 %v70, %v1282
    %v1284 = vand.u32 %v1283, 4294901760
    %v1285 = vsub.f32 %v1283, %v1284
    %v1286 = vand.u32 %v1285, 4294901760
    %1287 = vmatpush1.msra.mxu0 %v1286
    %v1288 = vand.u32 %v79, 4294901760
    %v1289 = vsub.f32 %v79, %v1288
    %v1290 = vand.u32 %v1289, 4294901760
    %v1291 = vsub.f32 %v1289, %v1290
    %v1292 = vand.u32 %v1291, 4294901760
    %1293 = vmatprep.subr.mxu0 %v1292
    %v1294 = vand.u32 %v78, 4294901760
    %v1295 = vsub.f32 %v78, %v1294
    %v1296 = vand.u32 %v1295, 4294901760
    %v1297 = vsub.f32 %v1295, %v1296
    %v1298 = vand.u32 %v1297, 4294901760
    %1299 = vmatpush1.msra.mxu0 %v1298
    %v1300 = vand.u32 %v87, 4294901760
    %v1301 = vsub.f32 %v87, %v1300
    %v1302 = vand.u32 %v1301, 4294901760
    %v1303 = vsub.f32 %v1301, %v1302
    %v1304 = vand.u32 %v1303, 4294901760
    %1305 = vmatprep.subr.mxu0 %v1304
    %v1306 = vand.u32 %v86, 4294901760
    %v1307 = vsub.f32 %v86, %v1306
    %v1308 = vand.u32 %v1307, 4294901760
    %v1309 = vsub.f32 %v1307, %v1308
    %v1310 = vand.u32 %v1309, 4294901760
    %1311 = vmatpush1.msra.mxu0 %v1310
    %1312 = vmatprep.subr.mxu0 0.0
    %1313 = vmatpush1.msra.mxu0 0.0
    %1314 = vmatprep.subr.mxu0 0.0
    %1315 = vmatpush1.msra.mxu0 0.0
    %1316 = vmatprep.subr.mxu0 0.0
    %1317 = vmatpush1.msra.mxu0 0.0
    %1318 = vmatprep.subr.mxu0 0.0
    %1319 = vmatpush1.msra.mxu0 0.0
    %1320 = vmatprep.subr.mxu0 0.0
    %1321 = vmatpush1.msra.mxu0 0.0
    %1322 = vmatprep.subr.mxu0 0.0
    %1323 = vmatpush1.msra.mxu0 0.0
    %1324 = vmatprep.subr.mxu0 0.0
    %1325 = vmatpush1.msra.mxu0 0.0
    %1326 = vmatprep.subr.mxu0 0.0
    %1327 = vmatpush1.msra.mxu0 0.0
    %1328 = vmatprep.subr.mxu0 0.0
    %1329 = vmatpush1.msra.mxu0 0.0
    %1330 = vmatprep.subr.mxu0 0.0
    %1331 = vmatpush1.msra.mxu0 0.0
    %1332 = vmatprep.subr.mxu0 0.0
    %1333 = vmatpush1.msra.mxu0 0.0
    %1334 = vmatprep.subr.mxu0 0.0
    %1335 = vmatpush1.msra.mxu0 0.0
    %1336 = vmatprep.subr.mxu0 0.0
    %1337 = vmatpush1.msra.mxu0 0.0
    %1338 = vmatprep.subr.mxu0 0.0
    %1339 = vmatpush1.msra.mxu0 0.0
    %1340 = vmatprep.subr.mxu0 0.0
    %1341 = vmatpush1.msra.mxu0 0.0
    %1342 = vmatprep.subr.mxu0 0.0
    %1343 = vmatpush1.msra.mxu0 0.0
    %1344 = vmatprep.subr.mxu0 0.0
    %1345 = vmatpush1.msra.mxu0 0.0
    %1346 = vmatprep.subr.mxu0 0.0
    %1347 = vmatpush1.msra.mxu0 0.0
    %1348 = vmatprep.subr.mxu0 0.0
    %1349 = vmatpush1.msra.mxu0 0.0
    %1350 = vmatprep.subr.mxu0 0.0
    %1351 = vmatpush1.msra.mxu0 0.0
    %1352 = vmatprep.subr.mxu0 0.0
    %1353 = vmatpush1.msra.mxu0 0.0
    %1354 = vmatprep.subr.mxu0 0.0
    %1355 = vmatpush1.msra.mxu0 0.0
    %1356 = vmatprep.subr.mxu0 0.0
    %1357 = vmatpush1.msra.mxu0 0.0
    %1358 = vmatprep.subr.mxu0 0.0
    %1359 = vmatpush1.msra.mxu0 0.0
    %1360 = vmatprep.subr.mxu0 0.0
    %1361 = vmatpush1.msra.mxu0 0.0
    %1362 = vmatprep.subr.mxu0 0.0
    %1363 = vmatpush1.msra.mxu0 0.0
    %1364 = vmatprep.subr.mxu0 0.0
    %1365 = vmatpush1.msra.mxu0 0.0
    %1366 = vmatprep.subr.mxu0 0.0
    %1367 = vmatpush1.msra.mxu0 0.0
    %1368 = vmatprep.mubr.f32.mxu0 0.0
    %v1369 = vand.u32 %v92, 4294901760
    %1370 = vmatmul.mubr.f32.gmra.mrb[0].mxu0 %v1369
    %v1371 = vpop.f32.mrb[0].mxu0
    %v1372 = vadd.f32 %v1260, %v1371
    %v1373 = vpop.f32.mrb[0].mxu0
    %v1374 = vadd.f32 %v1262, %v1373
    %1375 = vdwg.mxu0
    %v1376 = vand.u32 %v63, 4294901760
    %v1377 = vsub.f32 %v63, %v1376
    %1378 = vmatprep.subr.mxu0 %v1377
    %v1379 = vand.u32 %v62, 4294901760
    %v1380 = vsub.f32 %v62, %v1379
    %1381 = vmatpush1.msra.mxu0 %v1380
    %v1382 = vand.u32 %v71, 4294901760
    %v1383 = vsub.f32 %v71, %v1382
    %1384 = vmatprep.subr.mxu0 %v1383
    %v1385 = vand.u32 %v70, 4294901760
    %v1386 = vsub.f32 %v70, %v1385
    %1387 = vmatpush1.msra.mxu0 %v1386
    %v1388 = vand.u32 %v79, 4294901760
    %v1389 = vsub.f32 %v79, %v1388
    %1390 = vmatprep.subr.mxu0 %v1389
    %v1391 = vand.u32 %v78, 4294901760
    %v1392 = vsub.f32 %v78, %v1391
    %1393 = vmatpush1.msra.mxu0 %v1392
    %v1394 = vand.u32 %v87, 4294901760
    %v1395 = vsub.f32 %v87, %v1394
    %1396 = vmatprep.subr.mxu0 %v1395
    %v1397 = vand.u32 %v86, 4294901760
    %v1398 = vsub.f32 %v86, %v1397
    %1399 = vmatpush1.msra.mxu0 %v1398
    %1400 = vmatprep.subr.mxu0 0.0
    %1401 = vmatpush1.msra.mxu0 0.0
    %1402 = vmatprep.subr.mxu0 0.0
    %1403 = vmatpush1.msra.mxu0 0.0
    %1404 = vmatprep.subr.mxu0 0.0
    %1405 = vmatpush1.msra.mxu0 0.0
    %1406 = vmatprep.subr.mxu0 0.0
    %1407 = vmatpush1.msra.mxu0 0.0
    %1408 = vmatprep.subr.mxu0 0.0
    %1409 = vmatpush1.msra.mxu0 0.0
    %1410 = vmatprep.subr.mxu0 0.0
    %1411 = vmatpush1.msra.mxu0 0.0
    %1412 = vmatprep.subr.mxu0 0.0
    %1413 = vmatpush1.msra.mxu0 0.0
    %1414 = vmatprep.subr.mxu0 0.0
    %1415 = vmatpush1.msra.mxu0 0.0
    %1416 = vmatprep.subr.mxu0 0.0
    %1417 = vmatpush1.msra.mxu0 0.0
    %1418 = vmatprep.subr.mxu0 0.0
    %1419 = vmatpush1.msra.mxu0 0.0
    %1420 = vmatprep.subr.mxu0 0.0
    %1421 = vmatpush1.msra.mxu0 0.0
    %1422 = vmatprep.subr.mxu0 0.0
    %1423 = vmatpush1.msra.mxu0 0.0
    %1424 = vmatprep.subr.mxu0 0.0
    %1425 = vmatpush1.msra.mxu0 0.0
    %1426 = vmatprep.subr.mxu0 0.0
    %1427 = vmatpush1.msra.mxu0 0.0
    %1428 = vmatprep.subr.mxu0 0.0
    %1429 = vmatpush1.msra.mxu0 0.0
    %1430 = vmatprep.subr.mxu0 0.0
    %1431 = vmatpush1.msra.mxu0 0.0
    %1432 = vmatprep.subr.mxu0 0.0
    %1433 = vmatpush1.msra.mxu0 0.0
    %1434 = vmatprep.subr.mxu0 0.0
    %1435 = vmatpush1.msra.mxu0 0.0
    %1436 = vmatprep.subr.mxu0 0.0
    %1437 = vmatpush1.msra.mxu0 0.0
    %1438 = vmatprep.subr.mxu0 0.0
    %1439 = vmatpush1.msra.mxu0 0.0
    %1440 = vmatprep.subr.mxu0 0.0
    %1441 = vmatpush1.msra.mxu0 0.0
    %1442 = vmatprep.subr.mxu0 0.0
    %1443 = vmatpush1.msra.mxu0 0.0
    %1444 = vmatprep.subr.mxu0 0.0
    %1445 = vmatpush1.msra.mxu0 0.0
    %1446 = vmatprep.subr.mxu0 0.0
    %1447 = vmatpush1.msra.mxu0 0.0
    %1448 = vmatprep.subr.mxu0 0.0
    %1449 = vmatpush1.msra.mxu0 0.0
    %1450 = vmatprep.subr.mxu0 0.0
    %1451 = vmatpush1.msra.mxu0 0.0
    %1452 = vmatprep.subr.mxu0 0.0
    %1453 = vmatpush1.msra.mxu0 0.0
    %1454 = vmatprep.subr.mxu0 0.0
    %1455 = vmatpush1.msra.mxu0 0.0
    %1456 = vmatprep.mubr.f32.mxu0 0.0
    %v1457 = vand.u32 %v92, 4294901760
    %v1458 = vsub.f32 %v92, %v1457
    %1459 = vmatmul.mubr.f32.gmra.mrb[0].mxu0 %v1458
    %v1460 = vpop.f32.mrb[0].mxu0
    %v1461 = vadd.f32 %v1372, %v1460
    %v1462 = vpop.f32.mrb[0].mxu0
    %v1463 = vadd.f32 %v1374, %v1462
    %1464 = vdwg.mxu0
    %v1465 = vand.u32 %v63, 4294901760
    %1466 = vmatprep.subr.mxu0 %v1465
    %v1467 = vand.u32 %v62, 4294901760
    %1468 = vmatpush1.msra.mxu0 %v1467
    %v1469 = vand.u32 %v71, 4294901760
    %1470 = vmatprep.subr.mxu0 %v1469
    %v1471 = vand.u32 %v70, 4294901760
    %1472 = vmatpush1.msra.mxu0 %v1471
    %v1473 = vand.u32 %v79, 4294901760
    %1474 = vmatprep.subr.mxu0 %v1473
    %v1475 = vand.u32 %v78, 4294901760
    %1476 = vmatpush1.msra.mxu0 %v1475
    %v1477 = vand.u32 %v87, 4294901760
    %1478 = vmatprep.subr.mxu0 %v1477
    %v1479 = vand.u32 %v86, 4294901760
    %1480 = vmatpush1.msra.mxu0 %v1479
    %1481 = vmatprep.subr.mxu0 0.0
    %1482 = vmatpush1.msra.mxu0 0.0
    %1483 = vmatprep.subr.mxu0 0.0
    %1484 = vmatpush1.msra.mxu0 0.0
    %1485 = vmatprep.subr.mxu0 0.0
    %1486 = vmatpush1.msra.mxu0 0.0
    %1487 = vmatprep.subr.mxu0 0.0
    %1488 = vmatpush1.msra.mxu0 0.0
    %1489 = vmatprep.subr.mxu0 0.0
    %1490 = vmatpush1.msra.mxu0 0.0
    %1491 = vmatprep.subr.mxu0 0.0
    %1492 = vmatpush1.msra.mxu0 0.0
    %1493 = vmatprep.subr.mxu0 0.0
    %1494 = vmatpush1.msra.mxu0 0.0
    %1495 = vmatprep.subr.mxu0 0.0
    %1496 = vmatpush1.msra.mxu0 0.0
    %1497 = vmatprep.subr.mxu0 0.0
    %1498 = vmatpush1.msra.mxu0 0.0
    %1499 = vmatprep.subr.mxu0 0.0
    %1500 = vmatpush1.msra.mxu0 0.0
    %1501 = vmatprep.subr.mxu0 0.0
    %1502 = vmatpush1.msra.mxu0 0.0
    %1503 = vmatprep.subr.mxu0 0.0
    %1504 = vmatpush1.msra.mxu0 0.0
    %1505 = vmatprep.subr.mxu0 0.0
    %1506 = vmatpush1.msra.mxu0 0.0
    %1507 = vmatprep.subr.mxu0 0.0
    %1508 = vmatpush1.msra.mxu0 0.0
    %1509 = vmatprep.subr.mxu0 0.0
    %1510 = vmatpush1.msra.mxu0 0.0
    %1511 = vmatprep.subr.mxu0 0.0
    %1512 = vmatpush1.msra.mxu0 0.0
    %1513 = vmatprep.subr.mxu0 0.0
    %1514 = vmatpush1.msra.mxu0 0.0
    %1515 = vmatprep.subr.mxu0 0.0
    %1516 = vmatpush1.msra.mxu0 0.0
    %1517 = vmatprep.subr.mxu0 0.0
    %1518 = vmatpush1.msra.mxu0 0.0
    %1519 = vmatprep.subr.mxu0 0.0
    %1520 = vmatpush1.msra.mxu0 0.0
    %1521 = vmatprep.subr.mxu0 0.0
    %1522 = vmatpush1.msra.mxu0 0.0
    %1523 = vmatprep.subr.mxu0 0.0
    %1524 = vmatpush1.msra.mxu0 0.0
    %1525 = vmatprep.subr.mxu0 0.0
    %1526 = vmatpush1.msra.mxu0 0.0
    %1527 = vmatprep.subr.mxu0 0.0
    %1528 = vmatpush1.msra.mxu0 0.0
    %1529 = vmatprep.subr.mxu0 0.0
    %1530 = vmatpush1.msra.mxu0 0.0
    %1531 = vmatprep.subr.mxu0 0.0
    %1532 = vmatpush1.msra.mxu0 0.0
    %1533 = vmatprep.subr.mxu0 0.0
    %1534 = vmatpush1.msra.mxu0 0.0
    %1535 = vmatprep.subr.mxu0 0.0
    %1536 = vmatpush1.msra.mxu0 0.0
    %1537 = vmatprep.mubr.f32.mxu0 0.0
    %v1538 = vand.u32 %v92, 4294901760
    %v1539 = vsub.f32 %v92, %v1538
    %v1540 = vand.u32 %v1539, 4294901760
    %1541 = vmatmul.mubr.f32.gmra.mrb[0].mxu0 %v1540
    %v1542 = vpop.f32.mrb[0].mxu0
    %v1543 = vadd.f32 %v1461, %v1542
    %v1544 = vpop.f32.mrb[0].mxu0
    %v1545 = vadd.f32 %v1463, %v1544
    %1546 = vdwg.mxu0
    %v1547 = vand.u32 %v63, 4294901760
    %v1548 = vsub.f32 %v63, %v1547
    %v1549 = vand.u32 %v1548, 4294901760
    %1550 = vmatprep.subr.mxu0 %v1549
    %v1551 = vand.u32 %v62, 4294901760
    %v1552 = vsub.f32 %v62, %v1551
    %v1553 = vand.u32 %v1552, 4294901760
    %1554 = vmatpush1.msra.mxu0 %v1553
    %v1555 = vand.u32 %v71, 4294901760
    %v1556 = vsub.f32 %v71, %v1555
    %v1557 = vand.u32 %v1556, 4294901760
    %1558 = vmatprep.subr.mxu0 %v1557
    %v1559 = vand.u32 %v70, 4294901760
    %v1560 = vsub.f32 %v70, %v1559
    %v1561 = vand.u32 %v1560, 4294901760
    %1562 = vmatpush1.msra.mxu0 %v1561
    %v1563 = vand.u32 %v79, 4294901760
    %v1564 = vsub.f32 %v79, %v1563
    %v1565 = vand.u32 %v1564, 4294901760
    %1566 = vmatprep.subr.mxu0 %v1565
    %v1567 = vand.u32 %v78, 4294901760
    %v1568 = vsub.f32 %v78, %v1567
    %v1569 = vand.u32 %v1568, 4294901760
    %1570 = vmatpush1.msra.mxu0 %v1569
    %v1571 = vand.u32 %v87, 4294901760
    %v1572 = vsub.f32 %v87, %v1571
    %v1573 = vand.u32 %v1572, 4294901760
    %1574 = vmatprep.subr.mxu0 %v1573
    %v1575 = vand.u32 %v86, 4294901760
    %v1576 = vsub.f32 %v86, %v1575
    %v1577 = vand.u32 %v1576, 4294901760
    %1578 = vmatpush1.msra.mxu0 %v1577
    %1579 = vmatprep.subr.mxu0 0.0
    %1580 = vmatpush1.msra.mxu0 0.0
    %1581 = vmatprep.subr.mxu0 0.0
    %1582 = vmatpush1.msra.mxu0 0.0
    %1583 = vmatprep.subr.mxu0 0.0
    %1584 = vmatpush1.msra.mxu0 0.0
    %1585 = vmatprep.subr.mxu0 0.0
    %1586 = vmatpush1.msra.mxu0 0.0
    %1587 = vmatprep.subr.mxu0 0.0
    %1588 = vmatpush1.msra.mxu0 0.0
    %1589 = vmatprep.subr.mxu0 0.0
    %1590 = vmatpush1.msra.mxu0 0.0
    %1591 = vmatprep.subr.mxu0 0.0
    %1592 = vmatpush1.msra.mxu0 0.0
    %1593 = vmatprep.subr.mxu0 0.0
    %1594 = vmatpush1.msra.mxu0 0.0
    %1595 = vmatprep.subr.mxu0 0.0
    %1596 = vmatpush1.msra.mxu0 0.0
    %1597 = vmatprep.subr.mxu0 0.0
    %1598 = vmatpush1.msra.mxu0 0.0
    %1599 = vmatprep.subr.mxu0 0.0
    %1600 = vmatpush1.msra.mxu0 0.0
    %1601 = vmatprep.subr.mxu0 0.0
    %1602 = vmatpush1.msra.mxu0 0.0
    %1603 = vmatprep.subr.mxu0 0.0
    %1604 = vmatpush1.msra.mxu0 0.0
    %1605 = vmatprep.subr.mxu0 0.0
    %1606 = vmatpush1.msra.mxu0 0.0
    %1607 = vmatprep.subr.mxu0 0.0
    %1608 = vmatpush1.msra.mxu0 0.0
    %1609 = vmatprep.subr.mxu0 0.0
    %1610 = vmatpush1.msra.mxu0 0.0
    %1611 = vmatprep.subr.mxu0 0.0
    %1612 = vmatpush1.msra.mxu0 0.0
    %1613 = vmatprep.subr.mxu0 0.0
    %1614 = vmatpush1.msra.mxu0 0.0
    %1615 = vmatprep.subr.mxu0 0.0
    %1616 = vmatpush1.msra.mxu0 0.0
    %1617 = vmatprep.subr.mxu0 0.0
    %1618 = vmatpush1.msra.mxu0 0.0
    %1619 = vmatprep.subr.mxu0 0.0
    %1620 = vmatpush1.msra.mxu0 0.0
    %1621 = vmatprep.subr.mxu0 0.0
    %1622 = vmatpush1.msra.mxu0 0.0
    %1623 = vmatprep.subr.mxu0 0.0
    %1624 = vmatpush1.msra.mxu0 0.0
    %1625 = vmatprep.subr.mxu0 0.0
    %1626 = vmatpush1.msra.mxu0 0.0
    %1627 = vmatprep.subr.mxu0 0.0
    %1628 = vmatpush1.msra.mxu0 0.0
    %1629 = vmatprep.subr.mxu0 0.0
    %1630 = vmatpush1.msra.mxu0 0.0
    %1631 = vmatprep.subr.mxu0 0.0
    %1632 = vmatpush1.msra.mxu0 0.0
    %1633 = vmatprep.subr.mxu0 0.0
    %1634 = vmatpush1.msra.mxu0 0.0
    %1635 = vmatprep.mubr.f32.mxu0 0.0
    %v1636 = vand.u32 %v92, 4294901760
    %1637 = vmatmul.mubr.f32.gmra.mrb[0].mxu0 %v1636
    %v1638 = vpop.f32.mrb[0].mxu0
    %v1639 = vadd.f32 %v1543, %v1638
    %v1640 = vpop.f32.mrb[0].mxu0
    %v1641 = vadd.f32 %v1545, %v1640
    %1642 = vdwg.mxu0
    %v1643 = vand.u32 %v63, 4294901760
    %1644 = vmatprep.subr.mxu0 %v1643
    %v1645 = vand.u32 %v62, 4294901760
    %1646 = vmatpush1.msra.mxu0 %v1645
    %v1647 = vand.u32 %v71, 4294901760
    %1648 = vmatprep.subr.mxu0 %v1647
    %v1649 = vand.u32 %v70, 4294901760
    %1650 = vmatpush1.msra.mxu0 %v1649
    %v1651 = vand.u32 %v79, 4294901760
    %1652 = vmatprep.subr.mxu0 %v1651
    %v1653 = vand.u32 %v78, 4294901760
    %1654 = vmatpush1.msra.mxu0 %v1653
    %v1655 = vand.u32 %v87, 4294901760
    %1656 = vmatprep.subr.mxu0 %v1655
    %v1657 = vand.u32 %v86, 4294901760
    %1658 = vmatpush1.msra.mxu0 %v1657
    %1659 = vmatprep.subr.mxu0 0.0
    %1660 = vmatpush1.msra.mxu0 0.0
    %1661 = vmatprep.subr.mxu0 0.0
    %1662 = vmatpush1.msra.mxu0 0.0
    %1663 = vmatprep.subr.mxu0 0.0
    %1664 = vmatpush1.msra.mxu0 0.0
    %1665 = vmatprep.subr.mxu0 0.0
    %1666 = vmatpush1.msra.mxu0 0.0
    %1667 = vmatprep.subr.mxu0 0.0
    %1668 = vmatpush1.msra.mxu0 0.0
    %1669 = vmatprep.subr.mxu0 0.0
    %1670 = vmatpush1.msra.mxu0 0.0
    %1671 = vmatprep.subr.mxu0 0.0
    %1672 = vmatpush1.msra.mxu0 0.0
    %1673 = vmatprep.subr.mxu0 0.0
    %1674 = vmatpush1.msra.mxu0 0.0
    %1675 = vmatprep.subr.mxu0 0.0
    %1676 = vmatpush1.msra.mxu0 0.0
    %1677 = vmatprep.subr.mxu0 0.0
    %1678 = vmatpush1.msra.mxu0 0.0
    %1679 = vmatprep.subr.mxu0 0.0
    %1680 = vmatpush1.msra.mxu0 0.0
    %1681 = vmatprep.subr.mxu0 0.0
    %1682 = vmatpush1.msra.mxu0 0.0
    %1683 = vmatprep.subr.mxu0 0.0
    %1684 = vmatpush1.msra.mxu0 0.0
    %1685 = vmatprep.subr.mxu0 0.0
    %1686 = vmatpush1.msra.mxu0 0.0
    %1687 = vmatprep.subr.mxu0 0.0
    %1688 = vmatpush1.msra.mxu0 0.0
    %1689 = vmatprep.subr.mxu0 0.0
    %1690 = vmatpush1.msra.mxu0 0.0
    %1691 = vmatprep.subr.mxu0 0.0
    %1692 = vmatpush1.msra.mxu0 0.0
    %1693 = vmatprep.subr.mxu0 0.0
    %1694 = vmatpush1.msra.mxu0 0.0
    %1695 = vmatprep.subr.mxu0 0.0
    %1696 = vmatpush1.msra.mxu0 0.0
    %1697 = vmatprep.subr.mxu0 0.0
    %1698 = vmatpush1.msra.mxu0 0.0
    %1699 = vmatprep.subr.mxu0 0.0
    %1700 = vmatpush1.msra.mxu0 0.0
    %1701 = vmatprep.subr.mxu0 0.0
    %1702 = vmatpush1.msra.mxu0 0.0
    %1703 = vmatprep.subr.mxu0 0.0
    %1704 = vmatpush1.msra.mxu0 0.0
    %1705 = vmatprep.subr.mxu0 0.0
    %1706 = vmatpush1.msra.mxu0 0.0
    %1707 = vmatprep.subr.mxu0 0.0
    %1708 = vmatpush1.msra.mxu0 0.0
    %1709 = vmatprep.subr.mxu0 0.0
    %1710 = vmatpush1.msra.mxu0 0.0
    %1711 = vmatprep.subr.mxu0 0.0
    %1712 = vmatpush1.msra.mxu0 0.0
    %1713 = vmatprep.subr.mxu0 0.0
    %1714 = vmatpush1.msra.mxu0 0.0
    %1715 = vmatprep.mubr.f32.mxu0 0.0
    %v1716 = vand.u32 %v92, 4294901760
    %1717 = vmatmul.mubr.f32.gmra.mrb[0].mxu0 %v1716
    %v1718 = vpop.f32.mrb[0].mxu0
    %v1719 = vadd.f32 %v1639, %v1718
    %v1720 = vpop.f32.mrb[0].mxu0
    %v1721 = vadd.f32 %v1641, %v1720
    %1722 = vdwg.mxu0
    %v1723 = vand.u32 %v65, 4294901760
    %1724 = vmatprep.subr.mxu0 %v1723
    %v1725 = vand.u32 %v64, 4294901760
    %1726 = vmatpush1.msra.mxu0 %v1725
    %v1727 = vand.u32 %v73, 4294901760
    %1728 = vmatprep.subr.mxu0 %v1727
    %v1729 = vand.u32 %v72, 4294901760
    %1730 = vmatpush1.msra.mxu0 %v1729
    %v1731 = vand.u32 %v81, 4294901760
    %1732 = vmatprep.subr.mxu0 %v1731
    %v1733 = vand.u32 %v80, 4294901760
    %1734 = vmatpush1.msra.mxu0 %v1733
    %v1735 = vand.u32 %v89, 4294901760
    %1736 = vmatprep.subr.mxu0 %v1735
    %v1737 = vand.u32 %v88, 4294901760
    %1738 = vmatpush1.msra.mxu0 %v1737
    %1739 = vmatprep.subr.mxu0 0.0
    %1740 = vmatpush1.msra.mxu0 0.0
    %1741 = vmatprep.subr.mxu0 0.0
    %1742 = vmatpush1.msra.mxu0 0.0
    %1743 = vmatprep.subr.mxu0 0.0
    %1744 = vmatpush1.msra.mxu0 0.0
    %1745 = vmatprep.subr.mxu0 0.0
    %1746 = vmatpush1.msra.mxu0 0.0
    %1747 = vmatprep.subr.mxu0 0.0
    %1748 = vmatpush1.msra.mxu0 0.0
    %1749 = vmatprep.subr.mxu0 0.0
    %1750 = vmatpush1.msra.mxu0 0.0
    %1751 = vmatprep.subr.mxu0 0.0
    %1752 = vmatpush1.msra.mxu0 0.0
    %1753 = vmatprep.subr.mxu0 0.0
    %1754 = vmatpush1.msra.mxu0 0.0
    %1755 = vmatprep.subr.mxu0 0.0
    %1756 = vmatpush1.msra.mxu0 0.0
    %1757 = vmatprep.subr.mxu0 0.0
    %1758 = vmatpush1.msra.mxu0 0.0
    %1759 = vmatprep.subr.mxu0 0.0
    %1760 = vmatpush1.msra.mxu0 0.0
    %1761 = vmatprep.subr.mxu0 0.0
    %1762 = vmatpush1.msra.mxu0 0.0
    %1763 = vmatprep.subr.mxu0 0.0
    %1764 = vmatpush1.msra.mxu0 0.0
    %1765 = vmatprep.subr.mxu0 0.0
    %1766 = vmatpush1.msra.mxu0 0.0
    %1767 = vmatprep.subr.mxu0 0.0
    %1768 = vmatpush1.msra.mxu0 0.0
    %1769 = vmatprep.subr.mxu0 0.0
    %1770 = vmatpush1.msra.mxu0 0.0
    %1771 = vmatprep.subr.mxu0 0.0
    %1772 = vmatpush1.msra.mxu0 0.0
    %1773 = vmatprep.subr.mxu0 0.0
    %1774 = vmatpush1.msra.mxu0 0.0
    %1775 = vmatprep.subr.mxu0 0.0
    %1776 = vmatpush1.msra.mxu0 0.0
    %1777 = vmatprep.subr.mxu0 0.0
    %1778 = vmatpush1.msra.mxu0 0.0
    %1779 = vmatprep.subr.mxu0 0.0
    %1780 = vmatpush1.msra.mxu0 0.0
    %1781 = vmatprep.subr.mxu0 0.0
    %1782 = vmatpush1.msra.mxu0 0.0
    %1783 = vmatprep.subr.mxu0 0.0
    %1784 = vmatpush1.msra.mxu0 0.0
    %1785 = vmatprep.subr.mxu0 0.0
    %1786 = vmatpush1.msra.mxu0 0.0
    %1787 = vmatprep.subr.mxu0 0.0
    %1788 = vmatpush1.msra.mxu0 0.0
    %1789 = vmatprep.subr.mxu0 0.0
    %1790 = vmatpush1.msra.mxu0 0.0
    %1791 = vmatprep.subr.mxu0 0.0
    %1792 = vmatpush1.msra.mxu0 0.0
    %1793 = vmatprep.subr.mxu0 0.0
    %1794 = vmatpush1.msra.mxu0 0.0
    %1795 = vmatprep.mubr.f32.mxu0 0.0
    %v1796 = vand.u32 %v92, 4294901760
    %v1797 = vsub.f32 %v92, %v1796
    %v1798 = vand.u32 %v1797, 4294901760
    %v1799 = vsub.f32 %v1797, %v1798
    %v1800 = vand.u32 %v1799, 4294901760
    %1801 = vmatmul.mubr.f32.gmra.mrb[0].mxu0 %v1800
    %v1802 = vpop.f32.mrb[0].mxu0
    %v1803 = vadd.f32 0.0, %v1802
    %v1804 = vpop.f32.mrb[0].mxu0
    %v1805 = vadd.f32 0.0, %v1804
    %1806 = vdwg.mxu0
    %v1807 = vand.u32 %v65, 4294901760
    %v1808 = vsub.f32 %v65, %v1807
    %v1809 = vand.u32 %v1808, 4294901760
    %v1810 = vsub.f32 %v1808, %v1809
    %v1811 = vand.u32 %v1810, 4294901760
    %1812 = vmatprep.subr.mxu0 %v1811
    %v1813 = vand.u32 %v64, 4294901760
    %v1814 = vsub.f32 %v64, %v1813
    %v1815 = vand.u32 %v1814, 4294901760
    %v1816 = vsub.f32 %v1814, %v1815
    %v1817 = vand.u32 %v1816, 4294901760
    %1818 = vmatpush1.msra.mxu0 %v1817
    %v1819 = vand.u32 %v73, 4294901760
    %v1820 = vsub.f32 %v73, %v1819
    %v1821 = vand.u32 %v1820, 4294901760
    %v1822 = vsub.f32 %v1820, %v1821
    %v1823 = vand.u32 %v1822, 4294901760
    %1824 = vmatprep.subr.mxu0 %v1823
    %v1825 = vand.u32 %v72, 4294901760
    %v1826 = vsub.f32 %v72, %v1825
    %v1827 = vand.u32 %v1826, 4294901760
    %v1828 = vsub.f32 %v1826, %v1827
    %v1829 = vand.u32 %v1828, 4294901760
    %1830 = vmatpush1.msra.mxu0 %v1829
    %v1831 = vand.u32 %v81, 4294901760
    %v1832 = vsub.f32 %v81, %v1831
    %v1833 = vand.u32 %v1832, 4294901760
    %v1834 = vsub.f32 %v1832, %v1833
    %v1835 = vand.u32 %v1834, 4294901760
    %1836 = vmatprep.subr.mxu0 %v1835
    %v1837 = vand.u32 %v80, 4294901760
    %v1838 = vsub.f32 %v80, %v1837
    %v1839 = vand.u32 %v1838, 4294901760
    %v1840 = vsub.f32 %v1838, %v1839
    %v1841 = vand.u32 %v1840, 4294901760
    %1842 = vmatpush1.msra.mxu0 %v1841
    %v1843 = vand.u32 %v89, 4294901760
    %v1844 = vsub.f32 %v89, %v1843
    %v1845 = vand.u32 %v1844, 4294901760
    %v1846 = vsub.f32 %v1844, %v1845
    %v1847 = vand.u32 %v1846, 4294901760
    %1848 = vmatprep.subr.mxu0 %v1847
    %v1849 = vand.u32 %v88, 4294901760
    %v1850 = vsub.f32 %v88, %v1849
    %v1851 = vand.u32 %v1850, 4294901760
    %v1852 = vsub.f32 %v1850, %v1851
    %v1853 = vand.u32 %v1852, 4294901760
    %1854 = vmatpush1.msra.mxu0 %v1853
    %1855 = vmatprep.subr.mxu0 0.0
    %1856 = vmatpush1.msra.mxu0 0.0
    %1857 = vmatprep.subr.mxu0 0.0
    %1858 = vmatpush1.msra.mxu0 0.0
    %1859 = vmatprep.subr.mxu0 0.0
    %1860 = vmatpush1.msra.mxu0 0.0
    %1861 = vmatprep.subr.mxu0 0.0
    %1862 = vmatpush1.msra.mxu0 0.0
    %1863 = vmatprep.subr.mxu0 0.0
    %1864 = vmatpush1.msra.mxu0 0.0
    %1865 = vmatprep.subr.mxu0 0.0
    %1866 = vmatpush1.msra.mxu0 0.0
    %1867 = vmatprep.subr.mxu0 0.0
    %1868 = vmatpush1.msra.mxu0 0.0
    %1869 = vmatprep.subr.mxu0 0.0
    %1870 = vmatpush1.msra.mxu0 0.0
    %1871 = vmatprep.subr.mxu0 0.0
    %1872 = vmatpush1.msra.mxu0 0.0
    %1873 = vmatprep.subr.mxu0 0.0
    %1874 = vmatpush1.msra.mxu0 0.0
    %1875 = vmatprep.subr.mxu0 0.0
    %1876 = vmatpush1.msra.mxu0 0.0
    %1877 = vmatprep.subr.mxu0 0.0
    %1878 = vmatpush1.msra.mxu0 0.0
    %1879 = vmatprep.subr.mxu0 0.0
    %1880 = vmatpush1.msra.mxu0 0.0
    %1881 = vmatprep.subr.mxu0 0.0
    %1882 = vmatpush1.msra.mxu0 0.0
    %1883 = vmatprep.subr.mxu0 0.0
    %1884 = vmatpush1.msra.mxu0 0.0
    %1885 = vmatprep.subr.mxu0 0.0
    %1886 = vmatpush1.msra.mxu0 0.0
    %1887 = vmatprep.subr.mxu0 0.0
    %1888 = vmatpush1.msra.mxu0 0.0
    %1889 = vmatprep.subr.mxu0 0.0
    %1890 = vmatpush1.msra.mxu0 0.0
    %1891 = vmatprep.subr.mxu0 0.0
    %1892 = vmatpush1.msra.mxu0 0.0
    %1893 = vmatprep.subr.mxu0 0.0
    %1894 = vmatpush1.msra.mxu0 0.0
    %1895 = vmatprep.subr.mxu0 0.0
    %1896 = vmatpush1.msra.mxu0 0.0
    %1897 = vmatprep.subr.mxu0 0.0
    %1898 = vmatpush1.msra.mxu0 0.0
    %1899 = vmatprep.subr.mxu0 0.0
    %1900 = vmatpush1.msra.mxu0 0.0
    %1901 = vmatprep.subr.mxu0 0.0
    %1902 = vmatpush1.msra.mxu0 0.0
    %1903 = vmatprep.subr.mxu0 0.0
    %1904 = vmatpush1.msra.mxu0 0.0
    %1905 = vmatprep.subr.mxu0 0.0
    %1906 = vmatpush1.msra.mxu0 0.0
    %1907 = vmatprep.subr.mxu0 0.0
    %1908 = vmatpush1.msra.mxu0 0.0
    %1909 = vmatprep.subr.mxu0 0.0
    %1910 = vmatpush1.msra.mxu0 0.0
    %1911 = vmatprep.mubr.f32.mxu0 0.0
    %v1912 = vand.u32 %v92, 4294901760
    %1913 = vmatmul.mubr.f32.gmra.mrb[0].mxu0 %v1912
    %v1914 = vpop.f32.mrb[0].mxu0
    %v1915 = vadd.f32 %v1803, %v1914
    %v1916 = vpop.f32.mrb[0].mxu0
    %v1917 = vadd.f32 %v1805, %v1916
    %1918 = vdwg.mxu0
    %v1919 = vand.u32 %v65, 4294901760
    %v1920 = vsub.f32 %v65, %v1919
    %1921 = vmatprep.subr.mxu0 %v1920
    %v1922 = vand.u32 %v64, 4294901760
    %v1923 = vsub.f32 %v64, %v1922
    %1924 = vmatpush1.msra.mxu0 %v1923
    %v1925 = vand.u32 %v73, 4294901760
    %v1926 = vsub.f32 %v73, %v1925
    %1927 = vmatprep.subr.mxu0 %v1926
    %v1928 = vand.u32 %v72, 4294901760
    %v1929 = vsub.f32 %v72, %v1928
    %1930 = vmatpush1.msra.mxu0 %v1929
    %v1931 = vand.u32 %v81, 4294901760
    %v1932 = vsub.f32 %v81, %v1931
    %1933 = vmatprep.subr.mxu0 %v1932
    %v1934 = vand.u32 %v80, 4294901760
    %v1935 = vsub.f32 %v80, %v1934
    %1936 = vmatpush1.msra.mxu0 %v1935
    %v1937 = vand.u32 %v89, 4294901760
    %v1938 = vsub.f32 %v89, %v1937
    %1939 = vmatprep.subr.mxu0 %v1938
    %v1940 = vand.u32 %v88, 4294901760
    %v1941 = vsub.f32 %v88, %v1940
    %1942 = vmatpush1.msra.mxu0 %v1941
    %1943 = vmatprep.subr.mxu0 0.0
    %1944 = vmatpush1.msra.mxu0 0.0
    %1945 = vmatprep.subr.mxu0 0.0
    %1946 = vmatpush1.msra.mxu0 0.0
    %1947 = vmatprep.subr.mxu0 0.0
    %1948 = vmatpush1.msra.mxu0 0.0
    %1949 = vmatprep.subr.mxu0 0.0
    %1950 = vmatpush1.msra.mxu0 0.0
    %1951 = vmatprep.subr.mxu0 0.0
    %1952 = vmatpush1.msra.mxu0 0.0
    %1953 = vmatprep.subr.mxu0 0.0
    %1954 = vmatpush1.msra.mxu0 0.0
    %1955 = vmatprep.subr.mxu0 0.0
    %1956 = vmatpush1.msra.mxu0 0.0
    %1957 = vmatprep.subr.mxu0 0.0
    %1958 = vmatpush1.msra.mxu0 0.0
    %1959 = vmatprep.subr.mxu0 0.0
    %1960 = vmatpush1.msra.mxu0 0.0
    %1961 = vmatprep.subr.mxu0 0.0
    %1962 = vmatpush1.msra.mxu0 0.0
    %1963 = vmatprep.subr.mxu0 0.0
    %1964 = vmatpush1.msra.mxu0 0.0
    %1965 = vmatprep.subr.mxu0 0.0
    %1966 = vmatpush1.msra.mxu0 0.0
    %1967 = vmatprep.subr.mxu0 0.0
    %1968 = vmatpush1.msra.mxu0 0.0
    %1969 = vmatprep.subr.mxu0 0.0
    %1970 = vmatpush1.msra.mxu0 0.0
    %1971 = vmatprep.subr.mxu0 0.0
    %1972 = vmatpush1.msra.mxu0 0.0
    %1973 = vmatprep.subr.mxu0 0.0
    %1974 = vmatpush1.msra.mxu0 0.0
    %1975 = vmatprep.subr.mxu0 0.0
    %1976 = vmatpush1.msra.mxu0 0.0
    %1977 = vmatprep.subr.mxu0 0.0
    %1978 = vmatpush1.msra.mxu0 0.0
    %1979 = vmatprep.subr.mxu0 0.0
    %1980 = vmatpush1.msra.mxu0 0.0
    %1981 = vmatprep.subr.mxu0 0.0
    %1982 = vmatpush1.msra.mxu0 0.0
    %1983 = vmatprep.subr.mxu0 0.0
    %1984 = vmatpush1.msra.mxu0 0.0
    %1985 = vmatprep.subr.mxu0 0.0
    %1986 = vmatpush1.msra.mxu0 0.0
    %1987 = vmatprep.subr.mxu0 0.0
    %1988 = vmatpush1.msra.mxu0 0.0
    %1989 = vmatprep.subr.mxu0 0.0
    %1990 = vmatpush1.msra.mxu0 0.0
    %1991 = vmatprep.subr.mxu0 0.0
    %1992 = vmatpush1.msra.mxu0 0.0
    %1993 = vmatprep.subr.mxu0 0.0
    %1994 = vmatpush1.msra.mxu0 0.0
    %1995 = vmatprep.subr.mxu0 0.0
    %1996 = vmatpush1.msra.mxu0 0.0
    %1997 = vmatprep.subr.mxu0 0.0
    %1998 = vmatpush1.msra.mxu0 0.0
    %1999 = vmatprep.mubr.f32.mxu0 0.0
    %v2000 = vand.u32 %v92, 4294901760
    %v2001 = vsub.f32 %v92, %v2000
    %2002 = vmatmul.mubr.f32.gmra.mrb[0].mxu0 %v2001
    %v2003 = vpop.f32.mrb[0].mxu0
    %v2004 = vadd.f32 %v1915, %v2003
    %v2005 = vpop.f32.mrb[0].mxu0
    %v2006 = vadd.f32 %v1917, %v2005
    %2007 = vdwg.mxu0
    %v2008 = vand.u32 %v65, 4294901760
    %2009 = vmatprep.subr.mxu0 %v2008
    %v2010 = vand.u32 %v64, 4294901760
    %2011 = vmatpush1.msra.mxu0 %v2010
    %v2012 = vand.u32 %v73, 4294901760
    %2013 = vmatprep.subr.mxu0 %v2012
    %v2014 = vand.u32 %v72, 4294901760
    %2015 = vmatpush1.msra.mxu0 %v2014
    %v2016 = vand.u32 %v81, 4294901760
    %2017 = vmatprep.subr.mxu0 %v2016
    %v2018 = vand.u32 %v80, 4294901760
    %2019 = vmatpush1.msra.mxu0 %v2018
    %v2020 = vand.u32 %v89, 4294901760
    %2021 = vmatprep.subr.mxu0 %v2020
    %v2022 = vand.u32 %v88, 4294901760
    %2023 = vmatpush1.msra.mxu0 %v2022
    %2024 = vmatprep.subr.mxu0 0.0
    %2025 = vmatpush1.msra.mxu0 0.0
    %2026 = vmatprep.subr.mxu0 0.0
    %2027 = vmatpush1.msra.mxu0 0.0
    %2028 = vmatprep.subr.mxu0 0.0
    %2029 = vmatpush1.msra.mxu0 0.0
    %2030 = vmatprep.subr.mxu0 0.0
    %2031 = vmatpush1.msra.mxu0 0.0
    %2032 = vmatprep.subr.mxu0 0.0
    %2033 = vmatpush1.msra.mxu0 0.0
    %2034 = vmatprep.subr.mxu0 0.0
    %2035 = vmatpush1.msra.mxu0 0.0
    %2036 = vmatprep.subr.mxu0 0.0
    %2037 = vmatpush1.msra.mxu0 0.0
    %2038 = vmatprep.subr.mxu0 0.0
    %2039 = vmatpush1.msra.mxu0 0.0
    %2040 = vmatprep.subr.mxu0 0.0
    %2041 = vmatpush1.msra.mxu0 0.0
    %2042 = vmatprep.subr.mxu0 0.0
    %2043 = vmatpush1.msra.mxu0 0.0
    %2044 = vmatprep.subr.mxu0 0.0
    %2045 = vmatpush1.msra.mxu0 0.0
    %2046 = vmatprep.subr.mxu0 0.0
    %2047 = vmatpush1.msra.mxu0 0.0
    %2048 = vmatprep.subr.mxu0 0.0
    %2049 = vmatpush1.msra.mxu0 0.0
    %2050 = vmatprep.subr.mxu0 0.0
    %2051 = vmatpush1.msra.mxu0 0.0
    %2052 = vmatprep.subr.mxu0 0.0
    %2053 = vmatpush1.msra.mxu0 0.0
    %2054 = vmatprep.subr.mxu0 0.0
    %2055 = vmatpush1.msra.mxu0 0.0
    %2056 = vmatprep.subr.mxu0 0.0
    %2057 = vmatpush1.msra.mxu0 0.0
    %2058 = vmatprep.subr.mxu0 0.0
    %2059 = vmatpush1.msra.mxu0 0.0
    %2060 = vmatprep.subr.mxu0 0.0
    %2061 = vmatpush1.msra.mxu0 0.0
    %2062 = vmatprep.subr.mxu0 0.0
    %2063 = vmatpush1.msra.mxu0 0.0
    %2064 = vmatprep.subr.mxu0 0.0
    %2065 = vmatpush1.msra.mxu0 0.0
    %2066 = vmatprep.subr.mxu0 0.0
    %2067 = vmatpush1.msra.mxu0 0.0
    %2068 = vmatprep.subr.mxu0 0.0
    %2069 = vmatpush1.msra.mxu0 0.0
    %2070 = vmatprep.subr.mxu0 0.0
    %2071 = vmatpush1.msra.mxu0 0.0
    %2072 = vmatprep.subr.mxu0 0.0
    %2073 = vmatpush1.msra.mxu0 0.0
    %2074 = vmatprep.subr.mxu0 0.0
    %2075 = vmatpush1.msra.mxu0 0.0
    %2076 = vmatprep.subr.mxu0 0.0
    %2077 = vmatpush1.msra.mxu0 0.0
    %2078 = vmatprep.subr.mxu0 0.0
    %2079 = vmatpush1.msra.mxu0 0.0
    %2080 = vmatprep.mubr.f32.mxu0 0.0
    %v2081 = vand.u32 %v92, 4294901760
    %v2082 = vsub.f32 %v92, %v2081
    %v2083 = vand.u32 %v2082, 4294901760
    %2084 = vmatmul.mubr.f32.gmra.mrb[0].mxu0 %v2083
    %v2085 = vpop.f32.mrb[0].mxu0
    %v2086 = vadd.f32 %v2004, %v2085
    %v2087 = vpop.f32.mrb[0].mxu0
    %v2088 = vadd.f32 %v2006, %v2087
    %2089 = vdwg.mxu0
    %v2090 = vand.u32 %v65, 4294901760
    %v2091 = vsub.f32 %v65, %v2090
    %v2092 = vand.u32 %v2091, 4294901760
    %2093 = vmatprep.subr.mxu0 %v2092
    %v2094 = vand.u32 %v64, 4294901760
    %v2095 = vsub.f32 %v64, %v2094
    %v2096 = vand.u32 %v2095, 4294901760
    %2097 = vmatpush1.msra.mxu0 %v2096
    %v2098 = vand.u32 %v73, 4294901760
    %v2099 = vsub.f32 %v73, %v2098
    %v2100 = vand.u32 %v2099, 4294901760
    %2101 = vmatprep.subr.mxu0 %v2100
    %v2102 = vand.u32 %v72, 4294901760
    %v2103 = vsub.f32 %v72, %v2102
    %v2104 = vand.u32 %v2103, 4294901760
    %2105 = vmatpush1.msra.mxu0 %v2104
    %v2106 = vand.u32 %v81, 4294901760
    %v2107 = vsub.f32 %v81, %v2106
    %v2108 = vand.u32 %v2107, 4294901760
    %2109 = vmatprep.subr.mxu0 %v2108
    %v2110 = vand.u32 %v80, 4294901760
    %v2111 = vsub.f32 %v80, %v2110
    %v2112 = vand.u32 %v2111, 4294901760
    %2113 = vmatpush1.msra.mxu0 %v2112
    %v2114 = vand.u32 %v89, 4294901760
    %v2115 = vsub.f32 %v89, %v2114
    %v2116 = vand.u32 %v2115, 4294901760
    %2117 = vmatprep.subr.mxu0 %v2116
    %v2118 = vand.u32 %v88, 4294901760
    %v2119 = vsub.f32 %v88, %v2118
    %v2120 = vand.u32 %v2119, 4294901760
    %2121 = vmatpush1.msra.mxu0 %v2120
    %2122 = vmatprep.subr.mxu0 0.0
    %2123 = vmatpush1.msra.mxu0 0.0
    %2124 = vmatprep.subr.mxu0 0.0
    %2125 = vmatpush1.msra.mxu0 0.0
    %2126 = vmatprep.subr.mxu0 0.0
    %2127 = vmatpush1.msra.mxu0 0.0
    %2128 = vmatprep.subr.mxu0 0.0
    %2129 = vmatpush1.msra.mxu0 0.0
    %2130 = vmatprep.subr.mxu0 0.0
    %2131 = vmatpush1.msra.mxu0 0.0
    %2132 = vmatprep.subr.mxu0 0.0
    %2133 = vmatpush1.msra.mxu0 0.0
    %2134 = vmatprep.subr.mxu0 0.0
    %2135 = vmatpush1.msra.mxu0 0.0
    %2136 = vmatprep.subr.mxu0 0.0
    %2137 = vmatpush1.msra.mxu0 0.0
    %2138 = vmatprep.subr.mxu0 0.0
    %2139 = vmatpush1.msra.mxu0 0.0
    %2140 = vmatprep.subr.mxu0 0.0
    %2141 = vmatpush1.msra.mxu0 0.0
    %2142 = vmatprep.subr.mxu0 0.0
    %2143 = vmatpush1.msra.mxu0 0.0
    %2144 = vmatprep.subr.mxu0 0.0
    %2145 = vmatpush1.msra.mxu0 0.0
    %2146 = vmatprep.subr.mxu0 0.0
    %2147 = vmatpush1.msra.mxu0 0.0
    %2148 = vmatprep.subr.mxu0 0.0
    %2149 = vmatpush1.msra.mxu0 0.0
    %2150 = vmatprep.subr.mxu0 0.0
    %2151 = vmatpush1.msra.mxu0 0.0
    %2152 = vmatprep.subr.mxu0 0.0
    %2153 = vmatpush1.msra.mxu0 0.0
    %2154 = vmatprep.subr.mxu0 0.0
    %2155 = vmatpush1.msra.mxu0 0.0
    %2156 = vmatprep.subr.mxu0 0.0
    %2157 = vmatpush1.msra.mxu0 0.0
    %2158 = vmatprep.subr.mxu0 0.0
    %2159 = vmatpush1.msra.mxu0 0.0
    %2160 = vmatprep.subr.mxu0 0.0
    %2161 = vmatpush1.msra.mxu0 0.0
    %2162 = vmatprep.subr.mxu0 0.0
    %2163 = vmatpush1.msra.mxu0 0.0
    %2164 = vmatprep.subr.mxu0 0.0
    %2165 = vmatpush1.msra.mxu0 0.0
    %2166 = vmatprep.subr.mxu0 0.0
    %2167 = vmatpush1.msra.mxu0 0.0
    %2168 = vmatprep.subr.mxu0 0.0
    %2169 = vmatpush1.msra.mxu0 0.0
    %2170 = vmatprep.subr.mxu0 0.0
    %2171 = vmatpush1.msra.mxu0 0.0
    %2172 = vmatprep.subr.mxu0 0.0
    %2173 = vmatpush1.msra.mxu0 0.0
    %2174 = vmatprep.subr.mxu0 0.0
    %2175 = vmatpush1.msra.mxu0 0.0
    %2176 = vmatprep.subr.mxu0 0.0
    %2177 = vmatpush1.msra.mxu0 0.0
    %2178 = vmatprep.mubr.f32.mxu0 0.0
    %v2179 = vand.u32 %v92, 4294901760
    %2180 = vmatmul.mubr.f32.gmra.mrb[0].mxu0 %v2179
    %v2181 = vpop.f32.mrb[0].mxu0
    %v2182 = vadd.f32 %v2086, %v2181
    %v2183 = vpop.f32.mrb[0].mxu0
    %v2184 = vadd.f32 %v2088, %v2183
    %2185 = vdwg.mxu0
    %v2186 = vand.u32 %v65, 4294901760
    %2187 = vmatprep.subr.mxu0 %v2186
    %v2188 = vand.u32 %v64, 4294901760
    %2189 = vmatpush1.msra.mxu0 %v2188
    %v2190 = vand.u32 %v73, 4294901760
    %2191 = vmatprep.subr.mxu0 %v2190
    %v2192 = vand.u32 %v72, 4294901760
    %2193 = vmatpush1.msra.mxu0 %v2192
    %v2194 = vand.u32 %v81, 4294901760
    %2195 = vmatprep.subr.mxu0 %v2194
    %v2196 = vand.u32 %v80, 4294901760
    %2197 = vmatpush1.msra.mxu0 %v2196
    %v2198 = vand.u32 %v89, 4294901760
    %2199 = vmatprep.subr.mxu0 %v2198
    %v2200 = vand.u32 %v88, 4294901760
    %2201 = vmatpush1.msra.mxu0 %v2200
    %2202 = vmatprep.subr.mxu0 0.0
    %2203 = vmatpush1.msra.mxu0 0.0
    %2204 = vmatprep.subr.mxu0 0.0
    %2205 = vmatpush1.msra.mxu0 0.0
    %2206 = vmatprep.subr.mxu0 0.0
    %2207 = vmatpush1.msra.mxu0 0.0
    %2208 = vmatprep.subr.mxu0 0.0
    %2209 = vmatpush1.msra.mxu0 0.0
    %2210 = vmatprep.subr.mxu0 0.0
    %2211 = vmatpush1.msra.mxu0 0.0
    %2212 = vmatprep.subr.mxu0 0.0
    %2213 = vmatpush1.msra.mxu0 0.0
    %2214 = vmatprep.subr.mxu0 0.0
    %2215 = vmatpush1.msra.mxu0 0.0
    %2216 = vmatprep.subr.mxu0 0.0
    %2217 = vmatpush1.msra.mxu0 0.0
    %2218 = vmatprep.subr.mxu0 0.0
    %2219 = vmatpush1.msra.mxu0 0.0
    %2220 = vmatprep.subr.mxu0 0.0
    %2221 = vmatpush1.msra.mxu0 0.0
    %2222 = vmatprep.subr.mxu0 0.0
    %2223 = vmatpush1.msra.mxu0 0.0
    %2224 = vmatprep.subr.mxu0 0.0
    %2225 = vmatpush1.msra.mxu0 0.0
    %2226 = vmatprep.subr.mxu0 0.0
    %2227 = vmatpush1.msra.mxu0 0.0
    %2228 = vmatprep.subr.mxu0 0.0
    %2229 = vmatpush1.msra.mxu0 0.0
    %2230 = vmatprep.subr.mxu0 0.0
    %2231 = vmatpush1.msra.mxu0 0.0
    %2232 = vmatprep.subr.mxu0 0.0
    %2233 = vmatpush1.msra.mxu0 0.0
    %2234 = vmatprep.subr.mxu0 0.0
    %2235 = vmatpush1.msra.mxu0 0.0
    %2236 = vmatprep.subr.mxu0 0.0
    %2237 = vmatpush1.msra.mxu0 0.0
    %2238 = vmatprep.subr.mxu0 0.0
    %2239 = vmatpush1.msra.mxu0 0.0
    %2240 = vmatprep.subr.mxu0 0.0
    %2241 = vmatpush1.msra.mxu0 0.0
    %2242 = vmatprep.subr.mxu0 0.0
    %2243 = vmatpush1.msra.mxu0 0.0
    %2244 = vmatprep.subr.mxu0 0.0
    %2245 = vmatpush1.msra.mxu0 0.0
    %2246 = vmatprep.subr.mxu0 0.0
    %2247 = vmatpush1.msra.mxu0 0.0
    %2248 = vmatprep.subr.mxu0 0.0
    %2249 = vmatpush1.msra.mxu0 0.0
    %2250 = vmatprep.subr.mxu0 0.0
    %2251 = vmatpush1.msra.mxu0 0.0
    %2252 = vmatprep.subr.mxu0 0.0
    %2253 = vmatpush1.msra.mxu0 0.0
    %2254 = vmatprep.subr.mxu0 0.0
    %2255 = vmatpush1.msra.mxu0 0.0
    %2256 = vmatprep.subr.mxu0 0.0
    %2257 = vmatpush1.msra.mxu0 0.0
    %2258 = vmatprep.mubr.f32.mxu0 0.0
    %v2259 = vand.u32 %v92, 4294901760
    %2260 = vmatmul.mubr.f32.gmra.mrb[0].mxu0 %v2259
    %v2261 = vpop.f32.mrb[0].mxu0
    %v2262 = vadd.f32 %v2182, %v2261
    %v2263 = vpop.f32.mrb[0].mxu0
    %v2264 = vadd.f32 %v2184, %v2263
    %2265 = vdwg.mxu0
    %v2266 = vld [vmem:[%s4] sm:$0xff]
    %v2267 = vld [vmem:[%s4 + $0x8] sm:$0xff]
    %v2268 = vld [vmem:[%s4 + $0x10] sm:$0xff]
    %v2269 = vld [vmem:[%s4 + $0x18] sm:$0xff]
    %2270 = vmatprep.subr.mxu0 0.0
    %v2271 = vand.u32 %v2266, 4294901760
    %2272 = vmatpush1.msra.mxu0 %v2271
    %2273 = vmatprep.subr.mxu0 0.0
    %v2274 = vand.u32 %v2267, 4294901760
    %2275 = vmatpush1.msra.mxu0 %v2274
    %2276 = vmatprep.subr.mxu0 0.0
    %v2277 = vand.u32 %v2268, 4294901760
    %2278 = vmatpush1.msra.mxu0 %v2277
    %2279 = vmatprep.subr.mxu0 0.0
    %v2280 = vand.u32 %v2269, 4294901760
    %2281 = vmatpush1.msra.mxu0 %v2280
    %2282 = vmatprep.subr.mxu0 0.0
    %2283 = vmatpush1.msra.mxu0 0.0
    %2284 = vmatprep.subr.mxu0 0.0
    %2285 = vmatpush1.msra.mxu0 0.0
    %2286 = vmatprep.subr.mxu0 0.0
    %2287 = vmatpush1.msra.mxu0 0.0
    %2288 = vmatprep.subr.mxu0 0.0
    %2289 = vmatpush1.msra.mxu0 0.0
    %2290 = vmatprep.subr.mxu0 0.0
    %2291 = vmatpush1.msra.mxu0 0.0
    %2292 = vmatprep.subr.mxu0 0.0
    %2293 = vmatpush1.msra.mxu0 0.0
    %2294 = vmatprep.subr.mxu0 0.0
    %2295 = vmatpush1.msra.mxu0 0.0
    %2296 = vmatprep.subr.mxu0 0.0
    %2297 = vmatpush1.msra.mxu0 0.0
    %2298 = vmatprep.subr.mxu0 0.0
    %2299 = vmatpush1.msra.mxu0 0.0
    %2300 = vmatprep.subr.mxu0 0.0
    %2301 = vmatpush1.msra.mxu0 0.0
    %2302 = vmatprep.subr.mxu0 0.0
    %2303 = vmatpush1.msra.mxu0 0.0
    %2304 = vmatprep.subr.mxu0 0.0
    %2305 = vmatpush1.msra.mxu0 0.0
    %2306 = vmatprep.subr.mxu0 0.0
    %2307 = vmatpush1.msra.mxu0 0.0
    %2308 = vmatprep.subr.mxu0 0.0
    %2309 = vmatpush1.msra.mxu0 0.0
    %2310 = vmatprep.subr.mxu0 0.0
    %2311 = vmatpush1.msra.mxu0 0.0
    %2312 = vmatprep.subr.mxu0 0.0
    %2313 = vmatpush1.msra.mxu0 0.0
    %2314 = vmatprep.subr.mxu0 0.0
    %2315 = vmatpush1.msra.mxu0 0.0
    %2316 = vmatprep.subr.mxu0 0.0
    %2317 = vmatpush1.msra.mxu0 0.0
    %2318 = vmatprep.subr.mxu0 0.0
    %2319 = vmatpush1.msra.mxu0 0.0
    %2320 = vmatprep.subr.mxu0 0.0
    %2321 = vmatpush1.msra.mxu0 0.0
    %2322 = vmatprep.subr.mxu0 0.0
    %2323 = vmatpush1.msra.mxu0 0.0
    %2324 = vmatprep.subr.mxu0 0.0
    %2325 = vmatpush1.msra.mxu0 0.0
    %2326 = vmatprep.subr.mxu0 0.0
    %2327 = vmatpush1.msra.mxu0 0.0
    %2328 = vmatprep.subr.mxu0 0.0
    %2329 = vmatpush1.msra.mxu0 0.0
    %2330 = vmatprep.subr.mxu0 0.0
    %2331 = vmatpush1.msra.mxu0 0.0
    %2332 = vmatprep.subr.mxu0 0.0
    %2333 = vmatpush1.msra.mxu0 0.0
    %2334 = vmatprep.subr.mxu0 0.0
    %2335 = vmatpush1.msra.mxu0 0.0
    %2336 = vmatprep.subr.mxu0 0.0
    %2337 = vmatpush1.msra.mxu0 0.0
    %2338 = vmatprep.mubr.f32.mxu0 0.0
    %v2339 = vand.u32 %v92, 4294901760
    %v2340 = vsub.f32 %v92, %v2339
    %v2341 = vand.u32 %v2340, 4294901760
    %v2342 = vsub.f32 %v2340, %v2341
    %v2343 = vand.u32 %v2342, 4294901760
    %2344 = vmatmul.mubr.f32.gmra.mrb[0].mxu0 %v2343
    %v2345 = vpop.f32.mrb[0].mxu0
    %v2346 = vadd.f32 0.0, %v2345
    %v2347 = vpop.f32.mrb[0].mxu0
    %2348 = vdwg.mxu0
    %2349 = vmatprep.subr.mxu0 0.0
    %v2350 = vand.u32 %v2266, 4294901760
    %v2351 = vsub.f32 %v2266, %v2350
    %v2352 = vand.u32 %v2351, 4294901760
    %v2353 = vsub.f32 %v2351, %v2352
    %v2354 = vand.u32 %v2353, 4294901760
    %2355 = vmatpush1.msra.mxu0 %v2354
    %2356 = vmatprep.subr.mxu0 0.0
    %v2357 = vand.u32 %v2267, 4294901760
    %v2358 = vsub.f32 %v2267, %v2357
    %v2359 = vand.u32 %v2358, 4294901760
    %v2360 = vsub.f32 %v2358, %v2359
    %v2361 = vand.u32 %v2360, 4294901760
    %2362 = vmatpush1.msra.mxu0 %v2361
    %2363 = vmatprep.subr.mxu0 0.0
    %v2364 = vand.u32 %v2268, 4294901760
    %v2365 = vsub.f32 %v2268, %v2364
    %v2366 = vand.u32 %v2365, 4294901760
    %v2367 = vsub.f32 %v2365, %v2366
    %v2368 = vand.u32 %v2367, 4294901760
    %2369 = vmatpush1.msra.mxu0 %v2368
    %2370 = vmatprep.subr.mxu0 0.0
    %v2371 = vand.u32 %v2269, 4294901760
    %v2372 = vsub.f32 %v2269, %v2371
    %v2373 = vand.u32 %v2372, 4294901760
    %v2374 = vsub.f32 %v2372, %v2373
    %v2375 = vand.u32 %v2374, 4294901760
    %2376 = vmatpush1.msra.mxu0 %v2375
    %2377 = vmatprep.subr.mxu0 0.0
    %2378 = vmatpush1.msra.mxu0 0.0
    %2379 = vmatprep.subr.mxu0 0.0
    %2380 = vmatpush1.msra.mxu0 0.0
    %2381 = vmatprep.subr.mxu0 0.0
    %2382 = vmatpush1.msra.mxu0 0.0
    %2383 = vmatprep.subr.mxu0 0.0
    %2384 = vmatpush1.msra.mxu0 0.0
    %2385 = vmatprep.subr.mxu0 0.0
    %2386 = vmatpush1.msra.mxu0 0.0
    %2387 = vmatprep.subr.mxu0 0.0
    %2388 = vmatpush1.msra.mxu0 0.0
    %2389 = vmatprep.subr.mxu0 0.0
    %2390 = vmatpush1.msra.mxu0 0.0
    %2391 = vmatprep.subr.mxu0 0.0
    %2392 = vmatpush1.msra.mxu0 0.0
    %2393 = vmatprep.subr.mxu0 0.0
    %2394 = vmatpush1.msra.mxu0 0.0
    %2395 = vmatprep.subr.mxu0 0.0
    %2396 = vmatpush1.msra.mxu0 0.0
    %2397 = vmatprep.subr.mxu0 0.0
    %2398 = vmatpush1.msra.mxu0 0.0
    %2399 = vmatprep.subr.mxu0 0.0
    %2400 = vmatpush1.msra.mxu0 0.0
    %2401 = vmatprep.subr.mxu0 0.0
    %2402 = vmatpush1.msra.mxu0 0.0
    %2403 = vmatprep.subr.mxu0 0.0
    %2404 = vmatpush1.msra.mxu0 0.0
    %2405 = vmatprep.subr.mxu0 0.0
    %2406 = vmatpush1.msra.mxu0 0.0
    %2407 = vmatprep.subr.mxu0 0.0
    %2408 = vmatpush1.msra.mxu0 0.0
    %2409 = vmatprep.subr.mxu0 0.0
    %2410 = vmatpush1.msra.mxu0 0.0
    %2411 = vmatprep.subr.mxu0 0.0
    %2412 = vmatpush1.msra.mxu0 0.0
    %2413 = vmatprep.subr.mxu0 0.0
    %2414 = vmatpush1.msra.mxu0 0.0
    %2415 = vmatprep.subr.mxu0 0.0
    %2416 = vmatpush1.msra.mxu0 0.0
    %2417 = vmatprep.subr.mxu0 0.0
    %2418 = vmatpush1.msra.mxu0 0.0
    %2419 = vmatprep.subr.mxu0 0.0
    %2420 = vmatpush1.msra.mxu0 0.0
    %2421 = vmatprep.subr.mxu0 0.0
    %2422 = vmatpush1.msra.mxu0 0.0
    %2423 = vmatprep.subr.mxu0 0.0
    %2424 = vmatpush1.msra.mxu0 0.0
    %2425 = vmatprep.subr.mxu0 0.0
    %2426 = vmatpush1.msra.mxu0 0.0
    %2427 = vmatprep.subr.mxu0 0.0
    %2428 = vmatpush1.msra.mxu0 0.0
    %2429 = vmatprep.subr.mxu0 0.0
    %2430 = vmatpush1.msra.mxu0 0.0
    %2431 = vmatprep.subr.mxu0 0.0
    %2432 = vmatpush1.msra.mxu0 0.0
    %2433 = vmatprep.mubr.f32.mxu0 0.0
    %v2434 = vand.u32 %v92, 4294901760
    %2435 = vmatmul.mubr.f32.gmra.mrb[0].mxu0 %v2434
    %v2436 = vpop.f32.mrb[0].mxu0
    %v2437 = vadd.f32 %v2346, %v2436
    %v2438 = vpop.f32.mrb[0].mxu0
    %2439 = vdwg.mxu0
    %2440 = vmatprep.subr.mxu0 0.0
    %v2441 = vand.u32 %v2266, 4294901760
    %v2442 = vsub.f32 %v2266, %v2441
    %2443 = vmatpush1.msra.mxu0 %v2442
    %2444 = vmatprep.subr.mxu0 0.0
    %v2445 = vand.u32 %v2267, 4294901760
    %v2446 = vsub.f32 %v2267, %v2445
    %2447 = vmatpush1.msra.mxu0 %v2446
    %2448 = vmatprep.subr.mxu0 0.0
    %v2449 = vand.u32 %v2268, 4294901760
    %v2450 = vsub.f32 %v2268, %v2449
    %2451 = vmatpush1.msra.mxu0 %v2450
    %2452 = vmatprep.subr.mxu0 0.0
    %v2453 = vand.u32 %v2269, 4294901760
    %v2454 = vsub.f32 %v2269, %v2453
    %2455 = vmatpush1.msra.mxu0 %v2454
    %2456 = vmatprep.subr.mxu0 0.0
    %2457 = vmatpush1.msra.mxu0 0.0
    %2458 = vmatprep.subr.mxu0 0.0
    %2459 = vmatpush1.msra.mxu0 0.0
    %2460 = vmatprep.subr.mxu0 0.0
    %2461 = vmatpush1.msra.mxu0 0.0
    %2462 = vmatprep.subr.mxu0 0.0
    %2463 = vmatpush1.msra.mxu0 0.0
    %2464 = vmatprep.subr.mxu0 0.0
    %2465 = vmatpush1.msra.mxu0 0.0
    %2466 = vmatprep.subr.mxu0 0.0
    %2467 = vmatpush1.msra.mxu0 0.0
    %2468 = vmatprep.subr.mxu0 0.0
    %2469 = vmatpush1.msra.mxu0 0.0
    %2470 = vmatprep.subr.mxu0 0.0
    %2471 = vmatpush1.msra.mxu0 0.0
    %2472 = vmatprep.subr.mxu0 0.0
    %2473 = vmatpush1.msra.mxu0 0.0
    %2474 = vmatprep.subr.mxu0 0.0
    %2475 = vmatpush1.msra.mxu0 0.0
    %2476 = vmatprep.subr.mxu0 0.0
    %2477 = vmatpush1.msra.mxu0 0.0
    %2478 = vmatprep.subr.mxu0 0.0
    %2479 = vmatpush1.msra.mxu0 0.0
    %2480 = vmatprep.subr.mxu0 0.0
    %2481 = vmatpush1.msra.mxu0 0.0
    %2482 = vmatprep.subr.mxu0 0.0
    %2483 = vmatpush1.msra.mxu0 0.0
    %2484 = vmatprep.subr.mxu0 0.0
    %2485 = vmatpush1.msra.mxu0 0.0
    %2486 = vmatprep.subr.mxu0 0.0
    %2487 = vmatpush1.msra.mxu0 0.0
    %2488 = vmatprep.subr.mxu0 0.0
    %2489 = vmatpush1.msra.mxu0 0.0
    %2490 = vmatprep.subr.mxu0 0.0
    %2491 = vmatpush1.msra.mxu0 0.0
    %2492 = vmatprep.subr.mxu0 0.0
    %2493 = vmatpush1.msra.mxu0 0.0
    %2494 = vmatprep.subr.mxu0 0.0
    %2495 = vmatpush1.msra.mxu0 0.0
    %2496 = vmatprep.subr.mxu0 0.0
    %2497 = vmatpush1.msra.mxu0 0.0
    %2498 = vmatprep.subr.mxu0 0.0
    %2499 = vmatpush1.msra.mxu0 0.0
    %2500 = vmatprep.subr.mxu0 0.0
    %2501 = vmatpush1.msra.mxu0 0.0
    %2502 = vmatprep.subr.mxu0 0.0
    %2503 = vmatpush1.msra.mxu0 0.0
    %2504 = vmatprep.subr.mxu0 0.0
    %2505 = vmatpush1.msra.mxu0 0.0
    %2506 = vmatprep.subr.mxu0 0.0
    %2507 = vmatpush1.msra.mxu0 0.0
    %2508 = vmatprep.subr.mxu0 0.0
    %2509 = vmatpush1.msra.mxu0 0.0
    %2510 = vmatprep.subr.mxu0 0.0
    %2511 = vmatpush1.msra.mxu0 0.0
    %2512 = vmatprep.mubr.f32.mxu0 0.0
    %v2513 = vand.u32 %v92, 4294901760
    %v2514 = vsub.f32 %v92, %v2513
    %2515 = vmatmul.mubr.f32.gmra.mrb[0].mxu0 %v2514
    %v2516 = vpop.f32.mrb[0].mxu0
    %v2517 = vadd.f32 %v2437, %v2516
    %v2518 = vpop.f32.mrb[0].mxu0
    %2519 = vdwg.mxu0
    %2520 = vmatprep.subr.mxu0 0.0
    %v2521 = vand.u32 %v2266, 4294901760
    %2522 = vmatpush1.msra.mxu0 %v2521
    %2523 = vmatprep.subr.mxu0 0.0
    %v2524 = vand.u32 %v2267, 4294901760
    %2525 = vmatpush1.msra.mxu0 %v2524
    %2526 = vmatprep.subr.mxu0 0.0
    %v2527 = vand.u32 %v2268, 4294901760
    %2528 = vmatpush1.msra.mxu0 %v2527
    %2529 = vmatprep.subr.mxu0 0.0
    %v2530 = vand.u32 %v2269, 4294901760
    %2531 = vmatpush1.msra.mxu0 %v2530
    %2532 = vmatprep.subr.mxu0 0.0
    %2533 = vmatpush1.msra.mxu0 0.0
    %2534 = vmatprep.subr.mxu0 0.0
    %2535 = vmatpush1.msra.mxu0 0.0
    %2536 = vmatprep.subr.mxu0 0.0
    %2537 = vmatpush1.msra.mxu0 0.0
    %2538 = vmatprep.subr.mxu0 0.0
    %2539 = vmatpush1.msra.mxu0 0.0
    %2540 = vmatprep.subr.mxu0 0.0
    %2541 = vmatpush1.msra.mxu0 0.0
    %2542 = vmatprep.subr.mxu0 0.0
    %2543 = vmatpush1.msra.mxu0 0.0
    %2544 = vmatprep.subr.mxu0 0.0
    %2545 = vmatpush1.msra.mxu0 0.0
    %2546 = vmatprep.subr.mxu0 0.0
    %2547 = vmatpush1.msra.mxu0 0.0
    %2548 = vmatprep.subr.mxu0 0.0
    %2549 = vmatpush1.msra.mxu0 0.0
    %2550 = vmatprep.subr.mxu0 0.0
    %2551 = vmatpush1.msra.mxu0 0.0
    %2552 = vmatprep.subr.mxu0 0.0
    %2553 = vmatpush1.msra.mxu0 0.0
    %2554 = vmatprep.subr.mxu0 0.0
    %2555 = vmatpush1.msra.mxu0 0.0
    %2556 = vmatprep.subr.mxu0 0.0
    %2557 = vmatpush1.msra.mxu0 0.0
    %2558 = vmatprep.subr.mxu0 0.0
    %2559 = vmatpush1.msra.mxu0 0.0
    %2560 = vmatprep.subr.mxu0 0.0
    %2561 = vmatpush1.msra.mxu0 0.0
    %2562 = vmatprep.subr.mxu0 0.0
    %2563 = vmatpush1.msra.mxu0 0.0
    %2564 = vmatprep.subr.mxu0 0.0
    %2565 = vmatpush1.msra.mxu0 0.0
    %2566 = vmatprep.subr.mxu0 0.0
    %2567 = vmatpush1.msra.mxu0 0.0
    %2568 = vmatprep.subr.mxu0 0.0
    %2569 = vmatpush1.msra.mxu0 0.0
    %2570 = vmatprep.subr.mxu0 0.0
    %2571 = vmatpush1.msra.mxu0 0.0
    %2572 = vmatprep.subr.mxu0 0.0
    %2573 = vmatpush1.msra.mxu0 0.0
    %2574 = vmatprep.subr.mxu0 0.0
    %2575 = vmatpush1.msra.mxu0 0.0
    %2576 = vmatprep.subr.mxu0 0.0
    %2577 = vmatpush1.msra.mxu0 0.0
    %2578 = vmatprep.subr.mxu0 0.0
    %2579 = vmatpush1.msra.mxu0 0.0
    %2580 = vmatprep.subr.mxu0 0.0
    %2581 = vmatpush1.msra.mxu0 0.0
    %2582 = vmatprep.subr.mxu0 0.0
    %2583 = vmatpush1.msra.mxu0 0.0
    %2584 = vmatprep.subr.mxu0 0.0
    %2585 = vmatpush1.msra.mxu0 0.0
    %2586 = vmatprep.subr.mxu0 0.0
    %2587 = vmatpush1.msra.mxu0 0.0
    %2588 = vmatprep.mubr.f32.mxu0 0.0
    %v2589 = vand.u32 %v92, 4294901760
    %v2590 = vsub.f32 %v92, %v2589
    %v2591 = vand.u32 %v2590, 4294901760
    %2592 = vmatmul.mubr.f32.gmra.mrb[0].mxu0 %v2591
    %v2593 = vpop.f32.mrb[0].mxu0
    %v2594 = vadd.f32 %v2517, %v2593
    %v2595 = vpop.f32.mrb[0].mxu0
    %2596 = vdwg.mxu0
    %2597 = vmatprep.subr.mxu0 0.0
    %v2598 = vand.u32 %v2266, 4294901760
    %v2599 = vsub.f32 %v2266, %v2598
    %v2600 = vand.u32 %v2599, 4294901760
    %2601 = vmatpush1.msra.mxu0 %v2600
    %2602 = vmatprep.subr.mxu0 0.0
    %v2603 = vand.u32 %v2267, 4294901760
    %v2604 = vsub.f32 %v2267, %v2603
    %v2605 = vand.u32 %v2604, 4294901760
    %2606 = vmatpush1.msra.mxu0 %v2605
    %2607 = vmatprep.subr.mxu0 0.0
    %v2608 = vand.u32 %v2268, 4294901760
    %v2609 = vsub.f32 %v2268, %v2608
    %v2610 = vand.u32 %v2609, 4294901760
    %2611 = vmatpush1.msra.mxu0 %v2610
    %2612 = vmatprep.subr.mxu0 0.0
    %v2613 = vand.u32 %v2269, 4294901760
    %v2614 = vsub.f32 %v2269, %v2613
    %v2615 = vand.u32 %v2614, 4294901760
    %2616 = vmatpush1.msra.mxu0 %v2615
    %2617 = vmatprep.subr.mxu0 0.0
    %2618 = vmatpush1.msra.mxu0 0.0
    %2619 = vmatprep.subr.mxu0 0.0
    %2620 = vmatpush1.msra.mxu0 0.0
    %2621 = vmatprep.subr.mxu0 0.0
    %2622 = vmatpush1.msra.mxu0 0.0
    %2623 = vmatprep.subr.mxu0 0.0
    %2624 = vmatpush1.msra.mxu0 0.0
    %2625 = vmatprep.subr.mxu0 0.0
    %2626 = vmatpush1.msra.mxu0 0.0
    %2627 = vmatprep.subr.mxu0 0.0
    %2628 = vmatpush1.msra.mxu0 0.0
    %2629 = vmatprep.subr.mxu0 0.0
    %2630 = vmatpush1.msra.mxu0 0.0
    %2631 = vmatprep.subr.mxu0 0.0
    %2632 = vmatpush1.msra.mxu0 0.0
    %2633 = vmatprep.subr.mxu0 0.0
    %2634 = vmatpush1.msra.mxu0 0.0
    %2635 = vmatprep.subr.mxu0 0.0
    %2636 = vmatpush1.msra.mxu0 0.0
    %2637 = vmatprep.subr.mxu0 0.0
    %2638 = vmatpush1.msra.mxu0 0.0
    %2639 = vmatprep.subr.mxu0 0.0
    %2640 = vmatpush1.msra.mxu0 0.0
    %2641 = vmatprep.subr.mxu0 0.0
    %2642 = vmatpush1.msra.mxu0 0.0
    %2643 = vmatprep.subr.mxu0 0.0
    %2644 = vmatpush1.msra.mxu0 0.0
    %2645 = vmatprep.subr.mxu0 0.0
    %2646 = vmatpush1.msra.mxu0 0.0
    %2647 = vmatprep.subr.mxu0 0.0
    %2648 = vmatpush1.msra.mxu0 0.0
    %2649 = vmatprep.subr.mxu0 0.0
    %2650 = vmatpush1.msra.mxu0 0.0
    %2651 = vmatprep.subr.mxu0 0.0
    %2652 = vmatpush1.msra.mxu0 0.0
    %2653 = vmatprep.subr.mxu0 0.0
    %2654 = vmatpush1.msra.mxu0 0.0
    %2655 = vmatprep.subr.mxu0 0.0
    %2656 = vmatpush1.msra.mxu0 0.0
    %2657 = vmatprep.subr.mxu0 0.0
    %2658 = vmatpush1.msra.mxu0 0.0
    %2659 = vmatprep.subr.mxu0 0.0
    %2660 = vmatpush1.msra.mxu0 0.0
    %2661 = vmatprep.subr.mxu0 0.0
    %2662 = vmatpush1.msra.mxu0 0.0
    %2663 = vmatprep.subr.mxu0 0.0
    %2664 = vmatpush1.msra.mxu0 0.0
    %2665 = vmatprep.subr.mxu0 0.0
    %2666 = vmatpush1.msra.mxu0 0.0
    %2667 = vmatprep.subr.mxu0 0.0
    %2668 = vmatpush1.msra.mxu0 0.0
    %2669 = vmatprep.subr.mxu0 0.0
    %2670 = vmatpush1.msra.mxu0 0.0
    %2671 = vmatprep.subr.mxu0 0.0
    %2672 = vmatpush1.msra.mxu0 0.0
    %2673 = vmatprep.mubr.f32.mxu0 0.0
    %v2674 = vand.u32 %v92, 4294901760
    %2675 = vmatmul.mubr.f32.gmra.mrb[0].mxu0 %v2674
    %v2676 = vpop.f32.mrb[0].mxu0
    %v2677 = vadd.f32 %v2594, %v2676
    %v2678 = vpop.f32.mrb[0].mxu0
    %2679 = vdwg.mxu0
    %2680 = vmatprep.subr.mxu0 0.0
    %v2681 = vand.u32 %v2266, 4294901760
    %2682 = vmatpush1.msra.mxu0 %v2681
    %2683 = vmatprep.subr.mxu0 0.0
    %v2684 = vand.u32 %v2267, 4294901760
    %2685 = vmatpush1.msra.mxu0 %v2684
    %2686 = vmatprep.subr.mxu0 0.0
    %v2687 = vand.u32 %v2268, 4294901760
    %2688 = vmatpush1.msra.mxu0 %v2687
    %2689 = vmatprep.subr.mxu0 0.0
    %v2690 = vand.u32 %v2269, 4294901760
    %2691 = vmatpush1.msra.mxu0 %v2690
    %2692 = vmatprep.subr.mxu0 0.0
    %2693 = vmatpush1.msra.mxu0 0.0
    %2694 = vmatprep.subr.mxu0 0.0
    %2695 = vmatpush1.msra.mxu0 0.0
    %2696 = vmatprep.subr.mxu0 0.0
    %2697 = vmatpush1.msra.mxu0 0.0
    %2698 = vmatprep.subr.mxu0 0.0
    %2699 = vmatpush1.msra.mxu0 0.0
    %2700 = vmatprep.subr.mxu0 0.0
    %2701 = vmatpush1.msra.mxu0 0.0
    %2702 = vmatprep.subr.mxu0 0.0
    %2703 = vmatpush1.msra.mxu0 0.0
    %2704 = vmatprep.subr.mxu0 0.0
    %2705 = vmatpush1.msra.mxu0 0.0
    %2706 = vmatprep.subr.mxu0 0.0
    %2707 = vmatpush1.msra.mxu0 0.0
    %2708 = vmatprep.subr.mxu0 0.0
    %2709 = vmatpush1.msra.mxu0 0.0
    %2710 = vmatprep.subr.mxu0 0.0
    %2711 = vmatpush1.msra.mxu0 0.0
    %2712 = vmatprep.subr.mxu0 0.0
    %2713 = vmatpush1.msra.mxu0 0.0
    %2714 = vmatprep.subr.mxu0 0.0
    %2715 = vmatpush1.msra.mxu0 0.0
    %2716 = vmatprep.subr.mxu0 0.0
    %2717 = vmatpush1.msra.mxu0 0.0
    %2718 = vmatprep.subr.mxu0 0.0
    %2719 = vmatpush1.msra.mxu0 0.0
    %2720 = vmatprep.subr.mxu0 0.0
    %2721 = vmatpush1.msra.mxu0 0.0
    %2722 = vmatprep.subr.mxu0 0.0
    %2723 = vmatpush1.msra.mxu0 0.0
    %2724 = vmatprep.subr.mxu0 0.0
    %2725 = vmatpush1.msra.mxu0 0.0
    %2726 = vmatprep.subr.mxu0 0.0
    %2727 = vmatpush1.msra.mxu0 0.0
    %2728 = vmatprep.subr.mxu0 0.0
    %2729 = vmatpush1.msra.mxu0 0.0
    %2730 = vmatprep.subr.mxu0 0.0
    %2731 = vmatpush1.msra.mxu0 0.0
    %2732 = vmatprep.subr.mxu0 0.0
    %2733 = vmatpush1.msra.mxu0 0.0
    %2734 = vmatprep.subr.mxu0 0.0
    %2735 = vmatpush1.msra.mxu0 0.0
    %2736 = vmatprep.subr.mxu0 0.0
    %2737 = vmatpush1.msra.mxu0 0.0
    %2738 = vmatprep.subr.mxu0 0.0
    %2739 = vmatpush1.msra.mxu0 0.0
    %2740 = vmatprep.subr.mxu0 0.0
    %2741 = vmatpush1.msra.mxu0 0.0
    %2742 = vmatprep.subr.mxu0 0.0
    %2743 = vmatpush1.msra.mxu0 0.0
    %2744 = vmatprep.subr.mxu0 0.0
    %2745 = vmatpush1.msra.mxu0 0.0
    %2746 = vmatprep.subr.mxu0 0.0
    %2747 = vmatpush1.msra.mxu0 0.0
    %2748 = vmatprep.mubr.f32.mxu0 0.0
    %v2749 = vand.u32 %v92, 4294901760
    %2750 = vmatmul.mubr.f32.gmra.mrb[0].mxu0 %v2749
    %v2751 = vpop.f32.mrb[0].mxu0
    %v2752 = vadd.f32 %v2677, %v2751
    %v2753 = vpop.f32.mrb[0].mxu0
    %2754 = vdwg.mxu0
    %v2755 = vld [vmem:[%s5] sm:$0xff]
    %v2757 = vlaneseq
    %v2758 = vshrl.u32 %v2757, 7
    %v2759 = vsub.s32 0, %v2758
    %v2760 = vrot.slane %v2755, %v2759
    %v2761 = vlaneseq
    %v2762 = vshrl.u32 %v2761, 7
    %v2763 = vsub.s32 1, %v2762
    %v2764 = vrot.slane %v2755, %v2763
    %v2765 = vlaneseq
    %v2766 = vshrl.u32 %v2765, 7
    %v2767 = vsub.s32 2, %v2766
    %v2768 = vrot.slane %v2755, %v2767
    %v2769 = vlaneseq
    %v2770 = vshrl.u32 %v2769, 7
    %v2771 = vsub.s32 3, %v2770
    %v2772 = vrot.slane %v2755, %v2771
    %v2773 = vlaneseq
    %v2774 = vshrl.u32 %v2773, 7
    %v2775 = vsub.s32 4, %v2774
    %v2776 = vrot.slane %v2755, %v2775
    %v2777 = vlaneseq
    %v2778 = vshrl.u32 %v2777, 7
    %v2779 = vsub.s32 5, %v2778
    %v2780 = vrot.slane %v2755, %v2779
    %v2781 = vlaneseq
    %v2782 = vshrl.u32 %v2781, 7
    %v2783 = vsub.s32 6, %v2782
    %v2784 = vrot.slane %v2755, %v2783
    %v2785 = vlaneseq
    %v2786 = vshrl.u32 %v2785, 7
    %v2787 = vsub.s32 7, %v2786
    %v2788 = vrot.slane %v2755, %v2787
    %v2797 = vmul.f32 %v2760, %v49
    %v2798 = vmul.f32 %v2764, %v50
    %v2799 = vmul.f32 %v2768, %v51
    %v2800 = vmul.f32 %v2772, %v52
    %v2801 = vmul.f32 %v2776, %v53
    %v2802 = vmul.f32 %v2780, %v54
    %v2803 = vmul.f32 %v2784, %v55
    %v2804 = vmul.f32 %v2788, %v56
    %v2805 = vmul.f32 %v633, %v2797
    %v2806 = vmul.f32 %v635, %v2798
    %v2807 = vmul.f32 %v1176, %v2799
    %v2808 = vmul.f32 %v1178, %v2800
    %v2809 = vmul.f32 %v1719, %v2801
    %v2810 = vmul.f32 %v1721, %v2802
    %v2811 = vmul.f32 %v2262, %v2803
    %v2812 = vmul.f32 %v2264, %v2804
    %v2813 = vld [vmem:[%s11] sm:$0xff]
    %v2814 = vld [vmem:[%s11 + $0x8] sm:$0xff]
    %v2815 = vld [vmem:[%s11 + $0x10] sm:$0xff]
    %v2816 = vld [vmem:[%s11 + $0x18] sm:$0xff]
    %v2817 = vld [vmem:[%s11 + $0x20] sm:$0xff]
    %v2818 = vld [vmem:[%s11 + $0x28] sm:$0xff]
    %v2819 = vld [vmem:[%s11 + $0x30] sm:$0xff]
    %v2820 = vld [vmem:[%s11 + $0x38] sm:$0xff]
    %v2821 = vld [vmem:[%s11 + $0x40] sm:$0xff]
    %v2822 = vld [vmem:[%s11 + $0x48] sm:$0xff]
    %v2823 = vld [vmem:[%s11 + $0x50] sm:$0xff]
    %v2824 = vld [vmem:[%s11 + $0x58] sm:$0xff]
    %v2825 = vld [vmem:[%s11 + $0x60] sm:$0xff]
    %v2826 = vld [vmem:[%s11 + $0x68] sm:$0xff]
    %v2827 = vld [vmem:[%s11 + $0x70] sm:$0xff]
    %v2828 = vld [vmem:[%s11 + $0x78] sm:$0xff]
    %v2829 = vld [vmem:[%s11 + $0x80] sm:$0xff]
    %v2830 = vld [vmem:[%s11 + $0x88] sm:$0xff]
    %v2831 = vld [vmem:[%s11 + $0x90] sm:$0xff]
    %v2832 = vld [vmem:[%s11 + $0x98] sm:$0xff]
    %v2833 = vld [vmem:[%s11 + $0xa0] sm:$0xff]
    %v2834 = vld [vmem:[%s11 + $0xa8] sm:$0xff]
    %v2835 = vld [vmem:[%s11 + $0xb0] sm:$0xff]
    %v2836 = vld [vmem:[%s11 + $0xb8] sm:$0xff]
    %v2837 = vld [vmem:[%s11 + $0xc0] sm:$0xff]
    %v2838 = vld [vmem:[%s11 + $0xc8] sm:$0xff]
    %v2839 = vld [vmem:[%s11 + $0xd0] sm:$0xff]
    %v2840 = vld [vmem:[%s11 + $0xd8] sm:$0xff]
    %v2841 = vld [vmem:[%s11 + $0xe0] sm:$0xff]
    %v2842 = vld [vmem:[%s11 + $0xe8] sm:$0xff]
    %v2843 = vld [vmem:[%s11 + $0xf0] sm:$0xff]
    %v2844 = vld [vmem:[%s11 + $0xf8] sm:$0xff]
    %v2845 = vld [vmem:[%s11 + $0x100] sm:$0xff]
    %v2846 = vld [vmem:[%s11 + $0x108] sm:$0xff]
    %v2847 = vld [vmem:[%s11 + $0x110] sm:$0xff]
    %v2848 = vld [vmem:[%s11 + $0x118] sm:$0xff]
    %v2849 = vld [vmem:[%s11 + $0x120] sm:$0xff]
    %v2850 = vld [vmem:[%s11 + $0x128] sm:$0xff]
    %v2851 = vld [vmem:[%s11 + $0x130] sm:$0xff]
    %v2852 = vld [vmem:[%s11 + $0x138] sm:$0xff]
    %v2853 = vld [vmem:[%s11 + $0x140] sm:$0xff]
    %v2854 = vld [vmem:[%s11 + $0x148] sm:$0xff]
    %v2855 = vld [vmem:[%s11 + $0x150] sm:$0xff]
    %v2856 = vld [vmem:[%s11 + $0x158] sm:$0xff]
    %v2857 = vld [vmem:[%s11 + $0x160] sm:$0xff]
    %v2858 = vld [vmem:[%s11 + $0x168] sm:$0xff]
    %v2859 = vld [vmem:[%s11 + $0x170] sm:$0xff]
    %v2860 = vld [vmem:[%s11 + $0x178] sm:$0xff]
    %v2861 = vld [vmem:[%s11 + $0x180] sm:$0xff]
    %v2862 = vld [vmem:[%s11 + $0x188] sm:$0xff]
    %v2863 = vld [vmem:[%s11 + $0x190] sm:$0xff]
    %v2864 = vld [vmem:[%s11 + $0x198] sm:$0xff]
    %v2865 = vld [vmem:[%s11 + $0x1a0] sm:$0xff]
    %v2866 = vld [vmem:[%s11 + $0x1a8] sm:$0xff]
    %v2867 = vld [vmem:[%s11 + $0x1b0] sm:$0xff]
    %v2868 = vld [vmem:[%s11 + $0x1b8] sm:$0xff]
    %v2869 = vld [vmem:[%s11 + $0x1c0] sm:$0xff]
    %v2870 = vld [vmem:[%s11 + $0x1c8] sm:$0xff]
    %v2871 = vld [vmem:[%s11 + $0x1d0] sm:$0xff]
    %v2872 = vld [vmem:[%s11 + $0x1d8] sm:$0xff]
    %v2873 = vld [vmem:[%s11 + $0x1e0] sm:$0xff]
    %v2874 = vld [vmem:[%s11 + $0x1e8] sm:$0xff]
    %v2875 = vld [vmem:[%s11 + $0x1f0] sm:$0xff]
    %v2876 = vld [vmem:[%s11 + $0x1f8] sm:$0xff]
    %v2877 = vld [vmem:[%s11 + $0x200] sm:$0xff]
    %v2878 = vld [vmem:[%s11 + $0x208] sm:$0xff]
    %v2879 = vld [vmem:[%s11 + $0x210] sm:$0xff]
    %v2880 = vld [vmem:[%s11 + $0x218] sm:$0xff]
    %v2881 = vld [vmem:[%s11 + $0x220] sm:$0xff]
    %v2882 = vld [vmem:[%s11 + $0x228] sm:$0xff]
    %v2883 = vld [vmem:[%s11 + $0x230] sm:$0xff]
    %v2884 = vld [vmem:[%s11 + $0x238] sm:$0xff]
    %v2885 = vld [vmem:[%s11 + $0x240] sm:$0xff]
    %v2886 = vld [vmem:[%s11 + $0x248] sm:$0xff]
    %v2887 = vld [vmem:[%s11 + $0x250] sm:$0xff]
    %v2888 = vld [vmem:[%s11 + $0x258] sm:$0xff]
    %v2889 = vld [vmem:[%s11 + $0x260] sm:$0xff]
    %v2890 = vld [vmem:[%s11 + $0x268] sm:$0xff]
    %v2891 = vld [vmem:[%s11 + $0x270] sm:$0xff]
    %v2892 = vld [vmem:[%s11 + $0x278] sm:$0xff]
    %v2893 = vld [vmem:[%s11 + $0x280] sm:$0xff]
    %v2894 = vld [vmem:[%s11 + $0x288] sm:$0xff]
    %v2895 = vld [vmem:[%s11 + $0x290] sm:$0xff]
    %v2896 = vld [vmem:[%s11 + $0x298] sm:$0xff]
    %v2897 = vld [vmem:[%s11 + $0x2a0] sm:$0xff]
    %v2898 = vld [vmem:[%s11 + $0x2a8] sm:$0xff]
    %v2899 = vld [vmem:[%s11 + $0x2b0] sm:$0xff]
    %v2900 = vld [vmem:[%s11 + $0x2b8] sm:$0xff]
    %v2901 = vld [vmem:[%s11 + $0x2c0] sm:$0xff]
    %v2902 = vld [vmem:[%s11 + $0x2c8] sm:$0xff]
    %v2903 = vld [vmem:[%s11 + $0x2d0] sm:$0xff]
    %v2904 = vld [vmem:[%s11 + $0x2d8] sm:$0xff]
    %v2905 = vld [vmem:[%s11 + $0x2e0] sm:$0xff]
    %v2906 = vld [vmem:[%s11 + $0x2e8] sm:$0xff]
    %v2907 = vld [vmem:[%s11 + $0x2f0] sm:$0xff]
    %v2908 = vld [vmem:[%s11 + $0x2f8] sm:$0xff]
    %v2909 = vld [vmem:[%s11 + $0x300] sm:$0xff]
    %v2910 = vld [vmem:[%s11 + $0x308] sm:$0xff]
    %v2911 = vld [vmem:[%s11 + $0x310] sm:$0xff]
    %v2912 = vld [vmem:[%s11 + $0x318] sm:$0xff]
    %v2913 = vld [vmem:[%s11 + $0x320] sm:$0xff]
    %v2914 = vld [vmem:[%s11 + $0x328] sm:$0xff]
    %v2915 = vld [vmem:[%s11 + $0x330] sm:$0xff]
    %v2916 = vld [vmem:[%s11 + $0x338] sm:$0xff]
    %v2917 = vld [vmem:[%s11 + $0x340] sm:$0xff]
    %v2918 = vld [vmem:[%s11 + $0x348] sm:$0xff]
    %v2919 = vld [vmem:[%s11 + $0x350] sm:$0xff]
    %v2920 = vld [vmem:[%s11 + $0x358] sm:$0xff]
    %v2921 = vld [vmem:[%s11 + $0x360] sm:$0xff]
    %v2922 = vld [vmem:[%s11 + $0x368] sm:$0xff]
    %v2923 = vld [vmem:[%s11 + $0x370] sm:$0xff]
    %v2924 = vld [vmem:[%s11 + $0x378] sm:$0xff]
    %v2925 = vld [vmem:[%s11 + $0x380] sm:$0xff]
    %v2926 = vld [vmem:[%s11 + $0x388] sm:$0xff]
    %v2927 = vld [vmem:[%s11 + $0x390] sm:$0xff]
    %v2928 = vld [vmem:[%s11 + $0x398] sm:$0xff]
    %v2929 = vld [vmem:[%s11 + $0x3a0] sm:$0xff]
    %v2930 = vld [vmem:[%s11 + $0x3a8] sm:$0xff]
    %v2931 = vld [vmem:[%s11 + $0x3b0] sm:$0xff]
    %v2932 = vld [vmem:[%s11 + $0x3b8] sm:$0xff]
    %v2933 = vld [vmem:[%s11 + $0x3c0] sm:$0xff]
    %v2934 = vld [vmem:[%s11 + $0x3c8] sm:$0xff]
    %v2935 = vld [vmem:[%s11 + $0x3d0] sm:$0xff]
    %v2936 = vld [vmem:[%s11 + $0x3d8] sm:$0xff]
    %v2937 = vld [vmem:[%s11 + $0x3e0] sm:$0xff]
    %v2938 = vld [vmem:[%s11 + $0x3e8] sm:$0xff]
    %v2939 = vld [vmem:[%s11 + $0x3f0] sm:$0xff]
    %v2940 = vld [vmem:[%s11 + $0x3f8] sm:$0xff]
    %2941 = vmatprep.subr.mxu0 0.0
    %v2942 = vand.u32 %v2813, 4294901760
    %2943 = vmatpush1.msra.mxu0 %v2942
    %2944 = vmatprep.subr.mxu0 0.0
    %v2945 = vand.u32 %v2814, 4294901760
    %2946 = vmatpush1.msra.mxu0 %v2945
    %2947 = vmatprep.subr.mxu0 0.0
    %v2948 = vand.u32 %v2815, 4294901760
    %2949 = vmatpush1.msra.mxu0 %v2948
    %2950 = vmatprep.subr.mxu0 0.0
    %v2951 = vand.u32 %v2816, 4294901760
    %2952 = vmatpush1.msra.mxu0 %v2951
    %2953 = vmatprep.subr.mxu0 0.0
    %v2954 = vand.u32 %v2817, 4294901760
    %2955 = vmatpush1.msra.mxu0 %v2954
    %2956 = vmatprep.subr.mxu0 0.0
    %v2957 = vand.u32 %v2818, 4294901760
    %2958 = vmatpush1.msra.mxu0 %v2957
    %2959 = vmatprep.subr.mxu0 0.0
    %v2960 = vand.u32 %v2819, 4294901760
    %2961 = vmatpush1.msra.mxu0 %v2960
    %2962 = vmatprep.subr.mxu0 0.0
    %v2963 = vand.u32 %v2820, 4294901760
    %2964 = vmatpush1.msra.mxu0 %v2963
    %2965 = vmatprep.subr.mxu0 0.0
    %v2966 = vand.u32 %v2821, 4294901760
    %2967 = vmatpush1.msra.mxu0 %v2966
    %2968 = vmatprep.subr.mxu0 0.0
    %v2969 = vand.u32 %v2822, 4294901760
    %2970 = vmatpush1.msra.mxu0 %v2969
    %2971 = vmatprep.subr.mxu0 0.0
    %v2972 = vand.u32 %v2823, 4294901760
    %2973 = vmatpush1.msra.mxu0 %v2972
    %2974 = vmatprep.subr.mxu0 0.0
    %v2975 = vand.u32 %v2824, 4294901760
    %2976 = vmatpush1.msra.mxu0 %v2975
    %2977 = vmatprep.subr.mxu0 0.0
    %v2978 = vand.u32 %v2825, 4294901760
    %2979 = vmatpush1.msra.mxu0 %v2978
    %2980 = vmatprep.subr.mxu0 0.0
    %v2981 = vand.u32 %v2826, 4294901760
    %2982 = vmatpush1.msra.mxu0 %v2981
    %2983 = vmatprep.subr.mxu0 0.0
    %v2984 = vand.u32 %v2827, 4294901760
    %2985 = vmatpush1.msra.mxu0 %v2984
    %2986 = vmatprep.subr.mxu0 0.0
    %v2987 = vand.u32 %v2828, 4294901760
    %2988 = vmatpush1.msra.mxu0 %v2987
    %2989 = vmatprep.subr.mxu0 0.0
    %v2990 = vand.u32 %v2829, 4294901760
    %2991 = vmatpush1.msra.mxu0 %v2990
    %2992 = vmatprep.subr.mxu0 0.0
    %v2993 = vand.u32 %v2830, 4294901760
    %2994 = vmatpush1.msra.mxu0 %v2993
    %2995 = vmatprep.subr.mxu0 0.0
    %v2996 = vand.u32 %v2831, 4294901760
    %2997 = vmatpush1.msra.mxu0 %v2996
    %2998 = vmatprep.subr.mxu0 0.0
    %v2999 = vand.u32 %v2832, 4294901760
    %3000 = vmatpush1.msra.mxu0 %v2999
    %3001 = vmatprep.subr.mxu0 0.0
    %v3002 = vand.u32 %v2833, 4294901760
    %3003 = vmatpush1.msra.mxu0 %v3002
    %3004 = vmatprep.subr.mxu0 0.0
    %v3005 = vand.u32 %v2834, 4294901760
    %3006 = vmatpush1.msra.mxu0 %v3005
    %3007 = vmatprep.subr.mxu0 0.0
    %v3008 = vand.u32 %v2835, 4294901760
    %3009 = vmatpush1.msra.mxu0 %v3008
    %3010 = vmatprep.subr.mxu0 0.0
    %v3011 = vand.u32 %v2836, 4294901760
    %3012 = vmatpush1.msra.mxu0 %v3011
    %3013 = vmatprep.subr.mxu0 0.0
    %v3014 = vand.u32 %v2837, 4294901760
    %3015 = vmatpush1.msra.mxu0 %v3014
    %3016 = vmatprep.subr.mxu0 0.0
    %v3017 = vand.u32 %v2838, 4294901760
    %3018 = vmatpush1.msra.mxu0 %v3017
    %3019 = vmatprep.subr.mxu0 0.0
    %v3020 = vand.u32 %v2839, 4294901760
    %3021 = vmatpush1.msra.mxu0 %v3020
    %3022 = vmatprep.subr.mxu0 0.0
    %v3023 = vand.u32 %v2840, 4294901760
    %3024 = vmatpush1.msra.mxu0 %v3023
    %3025 = vmatprep.subr.mxu0 0.0
    %v3026 = vand.u32 %v2841, 4294901760
    %3027 = vmatpush1.msra.mxu0 %v3026
    %3028 = vmatprep.subr.mxu0 0.0
    %v3029 = vand.u32 %v2842, 4294901760
    %3030 = vmatpush1.msra.mxu0 %v3029
    %3031 = vmatprep.subr.mxu0 0.0
    %v3032 = vand.u32 %v2843, 4294901760
    %3033 = vmatpush1.msra.mxu0 %v3032
    %3034 = vmatprep.subr.mxu0 0.0
    %v3035 = vand.u32 %v2844, 4294901760
    %3036 = vmatpush1.msra.mxu0 %v3035
    %v3037 = vand.u32 %v2806, 4294901760
    %v3038 = vsub.f32 %v2806, %v3037
    %v3039 = vand.u32 %v3038, 4294901760
    %v3040 = vsub.f32 %v3038, %v3039
    %v3041 = vand.u32 %v3040, 4294901760
    %3042 = vmatprep.mubr.f32.mxu0 %v3041
    %v3043 = vand.u32 %v2805, 4294901760
    %v3044 = vsub.f32 %v2805, %v3043
    %v3045 = vand.u32 %v3044, 4294901760
    %v3046 = vsub.f32 %v3044, %v3045
    %v3047 = vand.u32 %v3046, 4294901760
    %3048 = vmatmul.mubr.f32.gmra.mrb[0].mxu0 %v3047
    %v3049 = vpop.f32.mrb[0].mxu0
    %v3050 = vadd.f32 0.0, %v3049
    %v3051 = vpop.f32.mrb[0].mxu0
    %3052 = vdwg.mxu0
    %3053 = vmatprep.subr.mxu0 0.0
    %v3054 = vand.u32 %v2813, 4294901760
    %v3055 = vsub.f32 %v2813, %v3054
    %v3056 = vand.u32 %v3055, 4294901760
    %v3057 = vsub.f32 %v3055, %v3056
    %v3058 = vand.u32 %v3057, 4294901760
    %3059 = vmatpush1.msra.mxu0 %v3058
    %3060 = vmatprep.subr.mxu0 0.0
    %v3061 = vand.u32 %v2814, 4294901760
    %v3062 = vsub.f32 %v2814, %v3061
    %v3063 = vand.u32 %v3062, 4294901760
    %v3064 = vsub.f32 %v3062, %v3063
    %v3065 = vand.u32 %v3064, 4294901760
    %3066 = vmatpush1.msra.mxu0 %v3065
    %3067 = vmatprep.subr.mxu0 0.0
    %v3068 = vand.u32 %v2815, 4294901760
    %v3069 = vsub.f32 %v2815, %v3068
    %v3070 = vand.u32 %v3069, 4294901760
    %v3071 = vsub.f32 %v3069, %v3070
    %v3072 = vand.u32 %v3071, 4294901760
    %3073 = vmatpush1.msra.mxu0 %v3072
    %3074 = vmatprep.subr.mxu0 0.0
    %v3075 = vand.u32 %v2816, 4294901760
    %v3076 = vsub.f32 %v2816, %v3075
    %v3077 = vand.u32 %v3076, 4294901760
    %v3078 = vsub.f32 %v3076, %v3077
    %v3079 = vand.u32 %v3078, 4294901760
    %3080 = vmatpush1.msra.mxu0 %v3079
    %3081 = vmatprep.subr.mxu0 0.0
    %v3082 = vand.u32 %v2817, 4294901760
    %v3083 = vsub.f32 %v2817, %v3082
    %v3084 = vand.u32 %v3083, 4294901760
    %v3085 = vsub.f32 %v3083, %v3084
    %v3086 = vand.u32 %v3085, 4294901760
    %3087 = vmatpush1.msra.mxu0 %v3086
    %3088 = vmatprep.subr.mxu0 0.0
    %v3089 = vand.u32 %v2818, 4294901760
    %v3090 = vsub.f32 %v2818, %v3089
    %v3091 = vand.u32 %v3090, 4294901760
    %v3092 = vsub.f32 %v3090, %v3091
    %v3093 = vand.u32 %v3092, 4294901760
    %3094 = vmatpush1.msra.mxu0 %v3093
    %3095 = vmatprep.subr.mxu0 0.0
    %v3096 = vand.u32 %v2819, 4294901760
    %v3097 = vsub.f32 %v2819, %v3096
    %v3098 = vand.u32 %v3097, 4294901760
    %v3099 = vsub.f32 %v3097, %v3098
    %v3100 = vand.u32 %v3099, 4294901760
    %3101 = vmatpush1.msra.mxu0 %v3100
    %3102 = vmatprep.subr.mxu0 0.0
    %v3103 = vand.u32 %v2820, 4294901760
    %v3104 = vsub.f32 %v2820, %v3103
    %v3105 = vand.u32 %v3104, 4294901760
    %v3106 = vsub.f32 %v3104, %v3105
    %v3107 = vand.u32 %v3106, 4294901760
    %3108 = vmatpush1.msra.mxu0 %v3107
    %3109 = vmatprep.subr.mxu0 0.0
    %v3110 = vand.u32 %v2821, 4294901760
    %v3111 = vsub.f32 %v2821, %v3110
    %v3112 = vand.u32 %v3111, 4294901760
    %v3113 = vsub.f32 %v3111, %v3112
    %v3114 = vand.u32 %v3113, 4294901760
    %3115 = vmatpush1.msra.mxu0 %v3114
    %3116 = vmatprep.subr.mxu0 0.0
    %v3117 = vand.u32 %v2822, 4294901760
    %v3118 = vsub.f32 %v2822, %v3117
    %v3119 = vand.u32 %v3118, 4294901760
    %v3120 = vsub.f32 %v3118, %v3119
    %v3121 = vand.u32 %v3120, 4294901760
    %3122 = vmatpush1.msra.mxu0 %v3121
    %3123 = vmatprep.subr.mxu0 0.0
    %v3124 = vand.u32 %v2823, 4294901760
    %v3125 = vsub.f32 %v2823, %v3124
    %v3126 = vand.u32 %v3125, 4294901760
    %v3127 = vsub.f32 %v3125, %v3126
    %v3128 = vand.u32 %v3127, 4294901760
    %3129 = vmatpush1.msra.mxu0 %v3128
    %3130 = vmatprep.subr.mxu0 0.0
    %v3131 = vand.u32 %v2824, 4294901760
    %v3132 = vsub.f32 %v2824, %v3131
    %v3133 = vand.u32 %v3132, 4294901760
    %v3134 = vsub.f32 %v3132, %v3133
    %v3135 = vand.u32 %v3134, 4294901760
    %3136 = vmatpush1.msra.mxu0 %v3135
    %3137 = vmatprep.subr.mxu0 0.0
    %v3138 = vand.u32 %v2825, 4294901760
    %v3139 = vsub.f32 %v2825, %v3138
    %v3140 = vand.u32 %v3139, 4294901760
    %v3141 = vsub.f32 %v3139, %v3140
    %v3142 = vand.u32 %v3141, 4294901760
    %3143 = vmatpush1.msra.mxu0 %v3142
    %3144 = vmatprep.subr.mxu0 0.0
    %v3145 = vand.u32 %v2826, 4294901760
    %v3146 = vsub.f32 %v2826, %v3145
    %v3147 = vand.u32 %v3146, 4294901760
    %v3148 = vsub.f32 %v3146, %v3147
    %v3149 = vand.u32 %v3148, 4294901760
    %3150 = vmatpush1.msra.mxu0 %v3149
    %3151 = vmatprep.subr.mxu0 0.0
    %v3152 = vand.u32 %v2827, 4294901760
    %v3153 = vsub.f32 %v2827, %v3152
    %v3154 = vand.u32 %v3153, 4294901760
    %v3155 = vsub.f32 %v3153, %v3154
    %v3156 = vand.u32 %v3155, 4294901760
    %3157 = vmatpush1.msra.mxu0 %v3156
    %3158 = vmatprep.subr.mxu0 0.0
    %v3159 = vand.u32 %v2828, 4294901760
    %v3160 = vsub.f32 %v2828, %v3159
    %v3161 = vand.u32 %v3160, 4294901760
    %v3162 = vsub.f32 %v3160, %v3161
    %v3163 = vand.u32 %v3162, 4294901760
    %3164 = vmatpush1.msra.mxu0 %v3163
    %3165 = vmatprep.subr.mxu0 0.0
    %v3166 = vand.u32 %v2829, 4294901760
    %v3167 = vsub.f32 %v2829, %v3166
    %v3168 = vand.u32 %v3167, 4294901760
    %v3169 = vsub.f32 %v3167, %v3168
    %v3170 = vand.u32 %v3169, 4294901760
    %3171 = vmatpush1.msra.mxu0 %v3170
    %3172 = vmatprep.subr.mxu0 0.0
    %v3173 = vand.u32 %v2830, 4294901760
    %v3174 = vsub.f32 %v2830, %v3173
    %v3175 = vand.u32 %v3174, 4294901760
    %v3176 = vsub.f32 %v3174, %v3175
    %v3177 = vand.u32 %v3176, 4294901760
    %3178 = vmatpush1.msra.mxu0 %v3177
    %3179 = vmatprep.subr.mxu0 0.0
    %v3180 = vand.u32 %v2831, 4294901760
    %v3181 = vsub.f32 %v2831, %v3180
    %v3182 = vand.u32 %v3181, 4294901760
    %v3183 = vsub.f32 %v3181, %v3182
    %v3184 = vand.u32 %v3183, 4294901760
    %3185 = vmatpush1.msra.mxu0 %v3184
    %3186 = vmatprep.subr.mxu0 0.0
    %v3187 = vand.u32 %v2832, 4294901760
    %v3188 = vsub.f32 %v2832, %v3187
    %v3189 = vand.u32 %v3188, 4294901760
    %v3190 = vsub.f32 %v3188, %v3189
    %v3191 = vand.u32 %v3190, 4294901760
    %3192 = vmatpush1.msra.mxu0 %v3191
    %3193 = vmatprep.subr.mxu0 0.0
    %v3194 = vand.u32 %v2833, 4294901760
    %v3195 = vsub.f32 %v2833, %v3194
    %v3196 = vand.u32 %v3195, 4294901760
    %v3197 = vsub.f32 %v3195, %v3196
    %v3198 = vand.u32 %v3197, 4294901760
    %3199 = vmatpush1.msra.mxu0 %v3198
    %3200 = vmatprep.subr.mxu0 0.0
    %v3201 = vand.u32 %v2834, 4294901760
    %v3202 = vsub.f32 %v2834, %v3201
    %v3203 = vand.u32 %v3202, 4294901760
    %v3204 = vsub.f32 %v3202, %v3203
    %v3205 = vand.u32 %v3204, 4294901760
    %3206 = vmatpush1.msra.mxu0 %v3205
    %3207 = vmatprep.subr.mxu0 0.0
    %v3208 = vand.u32 %v2835, 4294901760
    %v3209 = vsub.f32 %v2835, %v3208
    %v3210 = vand.u32 %v3209, 4294901760
    %v3211 = vsub.f32 %v3209, %v3210
    %v3212 = vand.u32 %v3211, 4294901760
    %3213 = vmatpush1.msra.mxu0 %v3212
    %3214 = vmatprep.subr.mxu0 0.0
    %v3215 = vand.u32 %v2836, 4294901760
    %v3216 = vsub.f32 %v2836, %v3215
    %v3217 = vand.u32 %v3216, 4294901760
    %v3218 = vsub.f32 %v3216, %v3217
    %v3219 = vand.u32 %v3218, 4294901760
    %3220 = vmatpush1.msra.mxu0 %v3219
    %3221 = vmatprep.subr.mxu0 0.0
    %v3222 = vand.u32 %v2837, 4294901760
    %v3223 = vsub.f32 %v2837, %v3222
    %v3224 = vand.u32 %v3223, 4294901760
    %v3225 = vsub.f32 %v3223, %v3224
    %v3226 = vand.u32 %v3225, 4294901760
    %3227 = vmatpush1.msra.mxu0 %v3226
    %3228 = vmatprep.subr.mxu0 0.0
    %v3229 = vand.u32 %v2838, 4294901760
    %v3230 = vsub.f32 %v2838, %v3229
    %v3231 = vand.u32 %v3230, 4294901760
    %v3232 = vsub.f32 %v3230, %v3231
    %v3233 = vand.u32 %v3232, 4294901760
    %3234 = vmatpush1.msra.mxu0 %v3233
    %3235 = vmatprep.subr.mxu0 0.0
    %v3236 = vand.u32 %v2839, 4294901760
    %v3237 = vsub.f32 %v2839, %v3236
    %v3238 = vand.u32 %v3237, 4294901760
    %v3239 = vsub.f32 %v3237, %v3238
    %v3240 = vand.u32 %v3239, 4294901760
    %3241 = vmatpush1.msra.mxu0 %v3240
    %3242 = vmatprep.subr.mxu0 0.0
    %v3243 = vand.u32 %v2840, 4294901760
    %v3244 = vsub.f32 %v2840, %v3243
    %v3245 = vand.u32 %v3244, 4294901760
    %v3246 = vsub.f32 %v3244, %v3245
    %v3247 = vand.u32 %v3246, 4294901760
    %3248 = vmatpush1.msra.mxu0 %v3247
    %3249 = vmatprep.subr.mxu0 0.0
    %v3250 = vand.u32 %v2841, 4294901760
    %v3251 = vsub.f32 %v2841, %v3250
    %v3252 = vand.u32 %v3251, 4294901760
    %v3253 = vsub.f32 %v3251, %v3252
    %v3254 = vand.u32 %v3253, 4294901760
    %3255 = vmatpush1.msra.mxu0 %v3254
    %3256 = vmatprep.subr.mxu0 0.0
    %v3257 = vand.u32 %v2842, 4294901760
    %v3258 = vsub.f32 %v2842, %v3257
    %v3259 = vand.u32 %v3258, 4294901760
    %v3260 = vsub.f32 %v3258, %v3259
    %v3261 = vand.u32 %v3260, 4294901760
    %3262 = vmatpush1.msra.mxu0 %v3261
    %3263 = vmatprep.subr.mxu0 0.0
    %v3264 = vand.u32 %v2843, 4294901760
    %v3265 = vsub.f32 %v2843, %v3264
    %v3266 = vand.u32 %v3265, 4294901760
    %v3267 = vsub.f32 %v3265, %v3266
    %v3268 = vand.u32 %v3267, 4294901760
    %3269 = vmatpush1.msra.mxu0 %v3268
    %3270 = vmatprep.subr.mxu0 0.0
    %v3271 = vand.u32 %v2844, 4294901760
    %v3272 = vsub.f32 %v2844, %v3271
    %v3273 = vand.u32 %v3272, 4294901760
    %v3274 = vsub.f32 %v3272, %v3273
    %v3275 = vand.u32 %v3274, 4294901760
    %3276 = vmatpush1.msra.mxu0 %v3275
    %v3277 = vand.u32 %v2806, 4294901760
    %3278 = vmatprep.mubr.f32.mxu0 %v3277
    %v3279 = vand.u32 %v2805, 4294901760
    %3280 = vmatmul.mubr.f32.gmra.mrb[0].mxu0 %v3279
    %v3281 = vpop.f32.mrb[0].mxu0
    %v3282 = vadd.f32 %v3050, %v3281
    %v3283 = vpop.f32.mrb[0].mxu0
    %3284 = vdwg.mxu0
    %3285 = vmatprep.subr.mxu0 0.0
    %v3286 = vand.u32 %v2813, 4294901760
    %v3287 = vsub.f32 %v2813, %v3286
    %3288 = vmatpush1.msra.mxu0 %v3287
    %3289 = vmatprep.subr.mxu0 0.0
    %v3290 = vand.u32 %v2814, 4294901760
    %v3291 = vsub.f32 %v2814, %v3290
    %3292 = vmatpush1.msra.mxu0 %v3291
    %3293 = vmatprep.subr.mxu0 0.0
    %v3294 = vand.u32 %v2815, 4294901760
    %v3295 = vsub.f32 %v2815, %v3294
    %3296 = vmatpush1.msra.mxu0 %v3295
    %3297 = vmatprep.subr.mxu0 0.0
    %v3298 = vand.u32 %v2816, 4294901760
    %v3299 = vsub.f32 %v2816, %v3298
    %3300 = vmatpush1.msra.mxu0 %v3299
    %3301 = vmatprep.subr.mxu0 0.0
    %v3302 = vand.u32 %v2817, 4294901760
    %v3303 = vsub.f32 %v2817, %v3302
    %3304 = vmatpush1.msra.mxu0 %v3303
    %3305 = vmatprep.subr.mxu0 0.0
    %v3306 = vand.u32 %v2818, 4294901760
    %v3307 = vsub.f32 %v2818, %v3306
    %3308 = vmatpush1.msra.mxu0 %v3307
    %3309 = vmatprep.subr.mxu0 0.0
    %v3310 = vand.u32 %v2819, 4294901760
    %v3311 = vsub.f32 %v2819, %v3310
    %3312 = vmatpush1.msra.mxu0 %v3311
    %3313 = vmatprep.subr.mxu0 0.0
    %v3314 = vand.u32 %v2820, 4294901760
    %v3315 = vsub.f32 %v2820, %v3314
    %3316 = vmatpush1.msra.mxu0 %v3315
    %3317 = vmatprep.subr.mxu0 0.0
    %v3318 = vand.u32 %v2821, 4294901760
    %v3319 = vsub.f32 %v2821, %v3318
    %3320 = vmatpush1.msra.mxu0 %v3319
    %3321 = vmatprep.subr.mxu0 0.0
    %v3322 = vand.u32 %v2822, 4294901760
    %v3323 = vsub.f32 %v2822, %v3322
    %3324 = vmatpush1.msra.mxu0 %v3323
    %3325 = vmatprep.subr.mxu0 0.0
    %v3326 = vand.u32 %v2823, 4294901760
    %v3327 = vsub.f32 %v2823, %v3326
    %3328 = vmatpush1.msra.mxu0 %v3327
    %3329 = vmatprep.subr.mxu0 0.0
    %v3330 = vand.u32 %v2824, 4294901760
    %v3331 = vsub.f32 %v2824, %v3330
    %3332 = vmatpush1.msra.mxu0 %v3331
    %3333 = vmatprep.subr.mxu0 0.0
    %v3334 = vand.u32 %v2825, 4294901760
    %v3335 = vsub.f32 %v2825, %v3334
    %3336 = vmatpush1.msra.mxu0 %v3335
    %3337 = vmatprep.subr.mxu0 0.0
    %v3338 = vand.u32 %v2826, 4294901760
    %v3339 = vsub.f32 %v2826, %v3338
    %3340 = vmatpush1.msra.mxu0 %v3339
    %3341 = vmatprep.subr.mxu0 0.0
    %v3342 = vand.u32 %v2827, 4294901760
    %v3343 = vsub.f32 %v2827, %v3342
    %3344 = vmatpush1.msra.mxu0 %v3343
    %3345 = vmatprep.subr.mxu0 0.0
    %v3346 = vand.u32 %v2828, 4294901760
    %v3347 = vsub.f32 %v2828, %v3346
    %3348 = vmatpush1.msra.mxu0 %v3347
    %3349 = vmatprep.subr.mxu0 0.0
    %v3350 = vand.u32 %v2829, 4294901760
    %v3351 = vsub.f32 %v2829, %v3350
    %3352 = vmatpush1.msra.mxu0 %v3351
    %3353 = vmatprep.subr.mxu0 0.0
    %v3354 = vand.u32 %v2830, 4294901760
    %v3355 = vsub.f32 %v2830, %v3354
    %3356 = vmatpush1.msra.mxu0 %v3355
    %3357 = vmatprep.subr.mxu0 0.0
    %v3358 = vand.u32 %v2831, 4294901760
    %v3359 = vsub.f32 %v2831, %v3358
    %3360 = vmatpush1.msra.mxu0 %v3359
    %3361 = vmatprep.subr.mxu0 0.0
    %v3362 = vand.u32 %v2832, 4294901760
    %v3363 = vsub.f32 %v2832, %v3362
    %3364 = vmatpush1.msra.mxu0 %v3363
    %3365 = vmatprep.subr.mxu0 0.0
    %v3366 = vand.u32 %v2833, 4294901760
    %v3367 = vsub.f32 %v2833, %v3366
    %3368 = vmatpush1.msra.mxu0 %v3367
    %3369 = vmatprep.subr.mxu0 0.0
    %v3370 = vand.u32 %v2834, 4294901760
    %v3371 = vsub.f32 %v2834, %v3370
    %3372 = vmatpush1.msra.mxu0 %v3371
    %3373 = vmatprep.subr.mxu0 0.0
    %v3374 = vand.u32 %v2835, 4294901760
    %v3375 = vsub.f32 %v2835, %v3374
    %3376 = vmatpush1.msra.mxu0 %v3375
    %3377 = vmatprep.subr.mxu0 0.0
    %v3378 = vand.u32 %v2836, 4294901760
    %v3379 = vsub.f32 %v2836, %v3378
    %3380 = vmatpush1.msra.mxu0 %v3379
    %3381 = vmatprep.subr.mxu0 0.0
    %v3382 = vand.u32 %v2837, 4294901760
    %v3383 = vsub.f32 %v2837, %v3382
    %3384 = vmatpush1.msra.mxu0 %v3383
    %3385 = vmatprep.subr.mxu0 0.0
    %v3386 = vand.u32 %v2838, 4294901760
    %v3387 = vsub.f32 %v2838, %v3386
    %3388 = vmatpush1.msra.mxu0 %v3387
    %3389 = vmatprep.subr.mxu0 0.0
    %v3390 = vand.u32 %v2839, 4294901760
    %v3391 = vsub.f32 %v2839, %v3390
    %3392 = vmatpush1.msra.mxu0 %v3391
    %3393 = vmatprep.subr.mxu0 0.0
    %v3394 = vand.u32 %v2840, 4294901760
    %v3395 = vsub.f32 %v2840, %v3394
    %3396 = vmatpush1.msra.mxu0 %v3395
    %3397 = vmatprep.subr.mxu0 0.0
    %v3398 = vand.u32 %v2841, 4294901760
    %v3399 = vsub.f32 %v2841, %v3398
    %3400 = vmatpush1.msra.mxu0 %v3399
    %3401 = vmatprep.subr.mxu0 0.0
    %v3402 = vand.u32 %v2842, 4294901760
    %v3403 = vsub.f32 %v2842, %v3402
    %3404 = vmatpush1.msra.mxu0 %v3403
    %3405 = vmatprep.subr.mxu0 0.0
    %v3406 = vand.u32 %v2843, 4294901760
    %v3407 = vsub.f32 %v2843, %v3406
    %3408 = vmatpush1.msra.mxu0 %v3407
    %3409 = vmatprep.subr.mxu0 0.0
    %v3410 = vand.u32 %v2844, 4294901760
    %v3411 = vsub.f32 %v2844, %v3410
    %3412 = vmatpush1.msra.mxu0 %v3411
    %v3413 = vand.u32 %v2806, 4294901760
    %v3414 = vsub.f32 %v2806, %v3413
    %3415 = vmatprep.mubr.f32.mxu0 %v3414
    %v3416 = vand.u32 %v2805, 4294901760
    %v3417 = vsub.f32 %v2805, %v3416
    %3418 = vmatmul.mubr.f32.gmra.mrb[0].mxu0 %v3417
    %v3419 = vpop.f32.mrb[0].mxu0
    %v3420 = vadd.f32 %v3282, %v3419
    %v3421 = vpop.f32.mrb[0].mxu0
    %3422 = vdwg.mxu0
    %3423 = vmatprep.subr.mxu0 0.0
    %v3424 = vand.u32 %v2813, 4294901760
    %3425 = vmatpush1.msra.mxu0 %v3424
    %3426 = vmatprep.subr.mxu0 0.0
    %v3427 = vand.u32 %v2814, 4294901760
    %3428 = vmatpush1.msra.mxu0 %v3427
    %3429 = vmatprep.subr.mxu0 0.0
    %v3430 = vand.u32 %v2815, 4294901760
    %3431 = vmatpush1.msra.mxu0 %v3430
    %3432 = vmatprep.subr.mxu0 0.0
    %v3433 = vand.u32 %v2816, 4294901760
    %3434 = vmatpush1.msra.mxu0 %v3433
    %3435 = vmatprep.subr.mxu0 0.0
    %v3436 = vand.u32 %v2817, 4294901760
    %3437 = vmatpush1.msra.mxu0 %v3436
    %3438 = vmatprep.subr.mxu0 0.0
    %v3439 = vand.u32 %v2818, 4294901760
    %3440 = vmatpush1.msra.mxu0 %v3439
    %3441 = vmatprep.subr.mxu0 0.0
    %v3442 = vand.u32 %v2819, 4294901760
    %3443 = vmatpush1.msra.mxu0 %v3442
    %3444 = vmatprep.subr.mxu0 0.0
    %v3445 = vand.u32 %v2820, 4294901760
    %3446 = vmatpush1.msra.mxu0 %v3445
    %3447 = vmatprep.subr.mxu0 0.0
    %v3448 = vand.u32 %v2821, 4294901760
    %3449 = vmatpush1.msra.mxu0 %v3448
    %3450 = vmatprep.subr.mxu0 0.0
    %v3451 = vand.u32 %v2822, 4294901760
    %3452 = vmatpush1.msra.mxu0 %v3451
    %3453 = vmatprep.subr.mxu0 0.0
    %v3454 = vand.u32 %v2823, 4294901760
    %3455 = vmatpush1.msra.mxu0 %v3454
    %3456 = vmatprep.subr.mxu0 0.0
    %v3457 = vand.u32 %v2824, 4294901760
    %3458 = vmatpush1.msra.mxu0 %v3457
    %3459 = vmatprep.subr.mxu0 0.0
    %v3460 = vand.u32 %v2825, 4294901760
    %3461 = vmatpush1.msra.mxu0 %v3460
    %3462 = vmatprep.subr.mxu0 0.0
    %v3463 = vand.u32 %v2826, 4294901760
    %3464 = vmatpush1.msra.mxu0 %v3463
    %3465 = vmatprep.subr.mxu0 0.0
    %v3466 = vand.u32 %v2827, 4294901760
    %3467 = vmatpush1.msra.mxu0 %v3466
    %3468 = vmatprep.subr.mxu0 0.0
    %v3469 = vand.u32 %v2828, 4294901760
    %3470 = vmatpush1.msra.mxu0 %v3469
    %3471 = vmatprep.subr.mxu0 0.0
    %v3472 = vand.u32 %v2829, 4294901760
    %3473 = vmatpush1.msra.mxu0 %v3472
    %3474 = vmatprep.subr.mxu0 0.0
    %v3475 = vand.u32 %v2830, 4294901760
    %3476 = vmatpush1.msra.mxu0 %v3475
    %3477 = vmatprep.subr.mxu0 0.0
    %v3478 = vand.u32 %v2831, 4294901760
    %3479 = vmatpush1.msra.mxu0 %v3478
    %3480 = vmatprep.subr.mxu0 0.0
    %v3481 = vand.u32 %v2832, 4294901760
    %3482 = vmatpush1.msra.mxu0 %v3481
    %3483 = vmatprep.subr.mxu0 0.0
    %v3484 = vand.u32 %v2833, 4294901760
    %3485 = vmatpush1.msra.mxu0 %v3484
    %3486 = vmatprep.subr.mxu0 0.0
    %v3487 = vand.u32 %v2834, 4294901760
    %3488 = vmatpush1.msra.mxu0 %v3487
    %3489 = vmatprep.subr.mxu0 0.0
    %v3490 = vand.u32 %v2835, 4294901760
    %3491 = vmatpush1.msra.mxu0 %v3490
    %3492 = vmatprep.subr.mxu0 0.0
    %v3493 = vand.u32 %v2836, 4294901760
    %3494 = vmatpush1.msra.mxu0 %v3493
    %3495 = vmatprep.subr.mxu0 0.0
    %v3496 = vand.u32 %v2837, 4294901760
    %3497 = vmatpush1.msra.mxu0 %v3496
    %3498 = vmatprep.subr.mxu0 0.0
    %v3499 = vand.u32 %v2838, 4294901760
    %3500 = vmatpush1.msra.mxu0 %v3499
    %3501 = vmatprep.subr.mxu0 0.0
    %v3502 = vand.u32 %v2839, 4294901760
    %3503 = vmatpush1.msra.mxu0 %v3502
    %3504 = vmatprep.subr.mxu0 0.0
    %v3505 = vand.u32 %v2840, 4294901760
    %3506 = vmatpush1.msra.mxu0 %v3505
    %3507 = vmatprep.subr.mxu0 0.0
    %v3508 = vand.u32 %v2841, 4294901760
    %3509 = vmatpush1.msra.mxu0 %v3508
    %3510 = vmatprep.subr.mxu0 0.0
    %v3511 = vand.u32 %v2842, 4294901760
    %3512 = vmatpush1.msra.mxu0 %v3511
    %3513 = vmatprep.subr.mxu0 0.0
    %v3514 = vand.u32 %v2843, 4294901760
    %3515 = vmatpush1.msra.mxu0 %v3514
    %3516 = vmatprep.subr.mxu0 0.0
    %v3517 = vand.u32 %v2844, 4294901760
    %3518 = vmatpush1.msra.mxu0 %v3517
    %v3519 = vand.u32 %v2806, 4294901760
    %v3520 = vsub.f32 %v2806, %v3519
    %v3521 = vand.u32 %v3520, 4294901760
    %3522 = vmatprep.mubr.f32.mxu0 %v3521
    %v3523 = vand.u32 %v2805, 4294901760
    %v3524 = vsub.f32 %v2805, %v3523
    %v3525 = vand.u32 %v3524, 4294901760
    %3526 = vmatmul.mubr.f32.gmra.mrb[0].mxu0 %v3525
    %v3527 = vpop.f32.mrb[0].mxu0
    %v3528 = vadd.f32 %v3420, %v3527
    %v3529 = vpop.f32.mrb[0].mxu0
    %3530 = vdwg.mxu0
    %3531 = vmatprep.subr.mxu0 0.0
    %v3532 = vand.u32 %v2813, 4294901760
    %v3533 = vsub.f32 %v2813, %v3532
    %v3534 = vand.u32 %v3533, 4294901760
    %3535 = vmatpush1.msra.mxu0 %v3534
    %3536 = vmatprep.subr.mxu0 0.0
    %v3537 = vand.u32 %v2814, 4294901760
    %v3538 = vsub.f32 %v2814, %v3537
    %v3539 = vand.u32 %v3538, 4294901760
    %3540 = vmatpush1.msra.mxu0 %v3539
    %3541 = vmatprep.subr.mxu0 0.0
    %v3542 = vand.u32 %v2815, 4294901760
    %v3543 = vsub.f32 %v2815, %v3542
    %v3544 = vand.u32 %v3543, 4294901760
    %3545 = vmatpush1.msra.mxu0 %v3544
    %3546 = vmatprep.subr.mxu0 0.0
    %v3547 = vand.u32 %v2816, 4294901760
    %v3548 = vsub.f32 %v2816, %v3547
    %v3549 = vand.u32 %v3548, 4294901760
    %3550 = vmatpush1.msra.mxu0 %v3549
    %3551 = vmatprep.subr.mxu0 0.0
    %v3552 = vand.u32 %v2817, 4294901760
    %v3553 = vsub.f32 %v2817, %v3552
    %v3554 = vand.u32 %v3553, 4294901760
    %3555 = vmatpush1.msra.mxu0 %v3554
    %3556 = vmatprep.subr.mxu0 0.0
    %v3557 = vand.u32 %v2818, 4294901760
    %v3558 = vsub.f32 %v2818, %v3557
    %v3559 = vand.u32 %v3558, 4294901760
    %3560 = vmatpush1.msra.mxu0 %v3559
    %3561 = vmatprep.subr.mxu0 0.0
    %v3562 = vand.u32 %v2819, 4294901760
    %v3563 = vsub.f32 %v2819, %v3562
    %v3564 = vand.u32 %v3563, 4294901760
    %3565 = vmatpush1.msra.mxu0 %v3564
    %3566 = vmatprep.subr.mxu0 0.0
    %v3567 = vand.u32 %v2820, 4294901760
    %v3568 = vsub.f32 %v2820, %v3567
    %v3569 = vand.u32 %v3568, 4294901760
    %3570 = vmatpush1.msra.mxu0 %v3569
    %3571 = vmatprep.subr.mxu0 0.0
    %v3572 = vand.u32 %v2821, 4294901760
    %v3573 = vsub.f32 %v2821, %v3572
    %v3574 = vand.u32 %v3573, 4294901760
    %3575 = vmatpush1.msra.mxu0 %v3574
    %3576 = vmatprep.subr.mxu0 0.0
    %v3577 = vand.u32 %v2822, 4294901760
    %v3578 = vsub.f32 %v2822, %v3577
    %v3579 = vand.u32 %v3578, 4294901760
    %3580 = vmatpush1.msra.mxu0 %v3579
    %3581 = vmatprep.subr.mxu0 0.0
    %v3582 = vand.u32 %v2823, 4294901760
    %v3583 = vsub.f32 %v2823, %v3582
    %v3584 = vand.u32 %v3583, 4294901760
    %3585 = vmatpush1.msra.mxu0 %v3584
    %3586 = vmatprep.subr.mxu0 0.0
    %v3587 = vand.u32 %v2824, 4294901760
    %v3588 = vsub.f32 %v2824, %v3587
    %v3589 = vand.u32 %v3588, 4294901760
    %3590 = vmatpush1.msra.mxu0 %v3589
    %3591 = vmatprep.subr.mxu0 0.0
    %v3592 = vand.u32 %v2825, 4294901760
    %v3593 = vsub.f32 %v2825, %v3592
    %v3594 = vand.u32 %v3593, 4294901760
    %3595 = vmatpush1.msra.mxu0 %v3594
    %3596 = vmatprep.subr.mxu0 0.0
    %v3597 = vand.u32 %v2826, 4294901760
    %v3598 = vsub.f32 %v2826, %v3597
    %v3599 = vand.u32 %v3598, 4294901760
    %3600 = vmatpush1.msra.mxu0 %v3599
    %3601 = vmatprep.subr.mxu0 0.0
    %v3602 = vand.u32 %v2827, 4294901760
    %v3603 = vsub.f32 %v2827, %v3602
    %v3604 = vand.u32 %v3603, 4294901760
    %3605 = vmatpush1.msra.mxu0 %v3604
    %3606 = vmatprep.subr.mxu0 0.0
    %v3607 = vand.u32 %v2828, 4294901760
    %v3608 = vsub.f32 %v2828, %v3607
    %v3609 = vand.u32 %v3608, 4294901760
    %3610 = vmatpush1.msra.mxu0 %v3609
    %3611 = vmatprep.subr.mxu0 0.0
    %v3612 = vand.u32 %v2829, 4294901760
    %v3613 = vsub.f32 %v2829, %v3612
    %v3614 = vand.u32 %v3613, 4294901760
    %3615 = vmatpush1.msra.mxu0 %v3614
    %3616 = vmatprep.subr.mxu0 0.0
    %v3617 = vand.u32 %v2830, 4294901760
    %v3618 = vsub.f32 %v2830, %v3617
    %v3619 = vand.u32 %v3618, 4294901760
    %3620 = vmatpush1.msra.mxu0 %v3619
    %3621 = vmatprep.subr.mxu0 0.0
    %v3622 = vand.u32 %v2831, 4294901760
    %v3623 = vsub.f32 %v2831, %v3622
    %v3624 = vand.u32 %v3623, 4294901760
    %3625 = vmatpush1.msra.mxu0 %v3624
    %3626 = vmatprep.subr.mxu0 0.0
    %v3627 = vand.u32 %v2832, 4294901760
    %v3628 = vsub.f32 %v2832, %v3627
    %v3629 = vand.u32 %v3628, 4294901760
    %3630 = vmatpush1.msra.mxu0 %v3629
    %3631 = vmatprep.subr.mxu0 0.0
    %v3632 = vand.u32 %v2833, 4294901760
    %v3633 = vsub.f32 %v2833, %v3632
    %v3634 = vand.u32 %v3633, 4294901760
    %3635 = vmatpush1.msra.mxu0 %v3634
    %3636 = vmatprep.subr.mxu0 0.0
    %v3637 = vand.u32 %v2834, 4294901760
    %v3638 = vsub.f32 %v2834, %v3637
    %v3639 = vand.u32 %v3638, 4294901760
    %3640 = vmatpush1.msra.mxu0 %v3639
    %3641 = vmatprep.subr.mxu0 0.0
    %v3642 = vand.u32 %v2835, 4294901760
    %v3643 = vsub.f32 %v2835, %v3642
    %v3644 = vand.u32 %v3643, 4294901760
    %3645 = vmatpush1.msra.mxu0 %v3644
    %3646 = vmatprep.subr.mxu0 0.0
    %v3647 = vand.u32 %v2836, 4294901760
    %v3648 = vsub.f32 %v2836, %v3647
    %v3649 = vand.u32 %v3648, 4294901760
    %3650 = vmatpush1.msra.mxu0 %v3649
    %3651 = vmatprep.subr.mxu0 0.0
    %v3652 = vand.u32 %v2837, 4294901760
    %v3653 = vsub.f32 %v2837, %v3652
    %v3654 = vand.u32 %v3653, 4294901760
    %3655 = vmatpush1.msra.mxu0 %v3654
    %3656 = vmatprep.subr.mxu0 0.0
    %v3657 = vand.u32 %v2838, 4294901760
    %v3658 = vsub.f32 %v2838, %v3657
    %v3659 = vand.u32 %v3658, 4294901760
    %3660 = vmatpush1.msra.mxu0 %v3659
    %3661 = vmatprep.subr.mxu0 0.0
    %v3662 = vand.u32 %v2839, 4294901760
    %v3663 = vsub.f32 %v2839, %v3662
    %v3664 = vand.u32 %v3663, 4294901760
    %3665 = vmatpush1.msra.mxu0 %v3664
    %3666 = vmatprep.subr.mxu0 0.0
    %v3667 = vand.u32 %v2840, 4294901760
    %v3668 = vsub.f32 %v2840, %v3667
    %v3669 = vand.u32 %v3668, 4294901760
    %3670 = vmatpush1.msra.mxu0 %v3669
    %3671 = vmatprep.subr.mxu0 0.0
    %v3672 = vand.u32 %v2841, 4294901760
    %v3673 = vsub.f32 %v2841, %v3672
    %v3674 = vand.u32 %v3673, 4294901760
    %3675 = vmatpush1.msra.mxu0 %v3674
    %3676 = vmatprep.subr.mxu0 0.0
    %v3677 = vand.u32 %v2842, 4294901760
    %v3678 = vsub.f32 %v2842, %v3677
    %v3679 = vand.u32 %v3678, 4294901760
    %3680 = vmatpush1.msra.mxu0 %v3679
    %3681 = vmatprep.subr.mxu0 0.0
    %v3682 = vand.u32 %v2843, 4294901760
    %v3683 = vsub.f32 %v2843, %v3682
    %v3684 = vand.u32 %v3683, 4294901760
    %3685 = vmatpush1.msra.mxu0 %v3684
    %3686 = vmatprep.subr.mxu0 0.0
    %v3687 = vand.u32 %v2844, 4294901760
    %v3688 = vsub.f32 %v2844, %v3687
    %v3689 = vand.u32 %v3688, 4294901760
    %3690 = vmatpush1.msra.mxu0 %v3689
    %v3691 = vand.u32 %v2806, 4294901760
    %3692 = vmatprep.mubr.f32.mxu0 %v3691
    %v3693 = vand.u32 %v2805, 4294901760
    %3694 = vmatmul.mubr.f32.gmra.mrb[0].mxu0 %v3693
    %v3695 = vpop.f32.mrb[0].mxu0
    %v3696 = vadd.f32 %v3528, %v3695
    %v3697 = vpop.f32.mrb[0].mxu0
    %3698 = vdwg.mxu0
    %3699 = vmatprep.subr.mxu0 0.0
    %v3700 = vand.u32 %v2813, 4294901760
    %3701 = vmatpush1.msra.mxu0 %v3700
    %3702 = vmatprep.subr.mxu0 0.0
    %v3703 = vand.u32 %v2814, 4294901760
    %3704 = vmatpush1.msra.mxu0 %v3703
    %3705 = vmatprep.subr.mxu0 0.0
    %v3706 = vand.u32 %v2815, 4294901760
    %3707 = vmatpush1.msra.mxu0 %v3706
    %3708 = vmatprep.subr.mxu0 0.0
    %v3709 = vand.u32 %v2816, 4294901760
    %3710 = vmatpush1.msra.mxu0 %v3709
    %3711 = vmatprep.subr.mxu0 0.0
    %v3712 = vand.u32 %v2817, 4294901760
    %3713 = vmatpush1.msra.mxu0 %v3712
    %3714 = vmatprep.subr.mxu0 0.0
    %v3715 = vand.u32 %v2818, 4294901760
    %3716 = vmatpush1.msra.mxu0 %v3715
    %3717 = vmatprep.subr.mxu0 0.0
    %v3718 = vand.u32 %v2819, 4294901760
    %3719 = vmatpush1.msra.mxu0 %v3718
    %3720 = vmatprep.subr.mxu0 0.0
    %v3721 = vand.u32 %v2820, 4294901760
    %3722 = vmatpush1.msra.mxu0 %v3721
    %3723 = vmatprep.subr.mxu0 0.0
    %v3724 = vand.u32 %v2821, 4294901760
    %3725 = vmatpush1.msra.mxu0 %v3724
    %3726 = vmatprep.subr.mxu0 0.0
    %v3727 = vand.u32 %v2822, 4294901760
    %3728 = vmatpush1.msra.mxu0 %v3727
    %3729 = vmatprep.subr.mxu0 0.0
    %v3730 = vand.u32 %v2823, 4294901760
    %3731 = vmatpush1.msra.mxu0 %v3730
    %3732 = vmatprep.subr.mxu0 0.0
    %v3733 = vand.u32 %v2824, 4294901760
    %3734 = vmatpush1.msra.mxu0 %v3733
    %3735 = vmatprep.subr.mxu0 0.0
    %v3736 = vand.u32 %v2825, 4294901760
    %3737 = vmatpush1.msra.mxu0 %v3736
    %3738 = vmatprep.subr.mxu0 0.0
    %v3739 = vand.u32 %v2826, 4294901760
    %3740 = vmatpush1.msra.mxu0 %v3739
    %3741 = vmatprep.subr.mxu0 0.0
    %v3742 = vand.u32 %v2827, 4294901760
    %3743 = vmatpush1.msra.mxu0 %v3742
    %3744 = vmatprep.subr.mxu0 0.0
    %v3745 = vand.u32 %v2828, 4294901760
    %3746 = vmatpush1.msra.mxu0 %v3745
    %3747 = vmatprep.subr.mxu0 0.0
    %v3748 = vand.u32 %v2829, 4294901760
    %3749 = vmatpush1.msra.mxu0 %v3748
    %3750 = vmatprep.subr.mxu0 0.0
    %v3751 = vand.u32 %v2830, 4294901760
    %3752 = vmatpush1.msra.mxu0 %v3751
    %3753 = vmatprep.subr.mxu0 0.0
    %v3754 = vand.u32 %v2831, 4294901760
    %3755 = vmatpush1.msra.mxu0 %v3754
    %3756 = vmatprep.subr.mxu0 0.0
    %v3757 = vand.u32 %v2832, 4294901760
    %3758 = vmatpush1.msra.mxu0 %v3757
    %3759 = vmatprep.subr.mxu0 0.0
    %v3760 = vand.u32 %v2833, 4294901760
    %3761 = vmatpush1.msra.mxu0 %v3760
    %3762 = vmatprep.subr.mxu0 0.0
    %v3763 = vand.u32 %v2834, 4294901760
    %3764 = vmatpush1.msra.mxu0 %v3763
    %3765 = vmatprep.subr.mxu0 0.0
    %v3766 = vand.u32 %v2835, 4294901760
    %3767 = vmatpush1.msra.mxu0 %v3766
    %3768 = vmatprep.subr.mxu0 0.0
    %v3769 = vand.u32 %v2836, 4294901760
    %3770 = vmatpush1.msra.mxu0 %v3769
    %3771 = vmatprep.subr.mxu0 0.0
    %v3772 = vand.u32 %v2837, 4294901760
    %3773 = vmatpush1.msra.mxu0 %v3772
    %3774 = vmatprep.subr.mxu0 0.0
    %v3775 = vand.u32 %v2838, 4294901760
    %3776 = vmatpush1.msra.mxu0 %v3775
    %3777 = vmatprep.subr.mxu0 0.0
    %v3778 = vand.u32 %v2839, 4294901760
    %3779 = vmatpush1.msra.mxu0 %v3778
    %3780 = vmatprep.subr.mxu0 0.0
    %v3781 = vand.u32 %v2840, 4294901760
    %3782 = vmatpush1.msra.mxu0 %v3781
    %3783 = vmatprep.subr.mxu0 0.0
    %v3784 = vand.u32 %v2841, 4294901760
    %3785 = vmatpush1.msra.mxu0 %v3784
    %3786 = vmatprep.subr.mxu0 0.0
    %v3787 = vand.u32 %v2842, 4294901760
    %3788 = vmatpush1.msra.mxu0 %v3787
    %3789 = vmatprep.subr.mxu0 0.0
    %v3790 = vand.u32 %v2843, 4294901760
    %3791 = vmatpush1.msra.mxu0 %v3790
    %3792 = vmatprep.subr.mxu0 0.0
    %v3793 = vand.u32 %v2844, 4294901760
    %3794 = vmatpush1.msra.mxu0 %v3793
    %v3795 = vand.u32 %v2806, 4294901760
    %3796 = vmatprep.mubr.f32.mxu0 %v3795
    %v3797 = vand.u32 %v2805, 4294901760
    %3798 = vmatmul.mubr.f32.gmra.mrb[0].mxu0 %v3797
    %v3799 = vpop.f32.mrb[0].mxu0
    %v3800 = vadd.f32 %v3696, %v3799
    %v3801 = vpop.f32.mrb[0].mxu0
    %3802 = vdwg.mxu0
    %3803 = vmatprep.subr.mxu0 0.0
    %v3804 = vand.u32 %v2845, 4294901760
    %3805 = vmatpush1.msra.mxu0 %v3804
    %3806 = vmatprep.subr.mxu0 0.0
    %v3807 = vand.u32 %v2846, 4294901760
    %3808 = vmatpush1.msra.mxu0 %v3807
    %3809 = vmatprep.subr.mxu0 0.0
    %v3810 = vand.u32 %v2847, 4294901760
    %3811 = vmatpush1.msra.mxu0 %v3810
    %3812 = vmatprep.subr.mxu0 0.0
    %v3813 = vand.u32 %v2848, 4294901760
    %3814 = vmatpush1.msra.mxu0 %v3813
    %3815 = vmatprep.subr.mxu0 0.0
    %v3816 = vand.u32 %v2849, 4294901760
    %3817 = vmatpush1.msra.mxu0 %v3816
    %3818 = vmatprep.subr.mxu0 0.0
    %v3819 = vand.u32 %v2850, 4294901760
    %3820 = vmatpush1.msra.mxu0 %v3819
    %3821 = vmatprep.subr.mxu0 0.0
    %v3822 = vand.u32 %v2851, 4294901760
    %3823 = vmatpush1.msra.mxu0 %v3822
    %3824 = vmatprep.subr.mxu0 0.0
    %v3825 = vand.u32 %v2852, 4294901760
    %3826 = vmatpush1.msra.mxu0 %v3825
    %3827 = vmatprep.subr.mxu0 0.0
    %v3828 = vand.u32 %v2853, 4294901760
    %3829 = vmatpush1.msra.mxu0 %v3828
    %3830 = vmatprep.subr.mxu0 0.0
    %v3831 = vand.u32 %v2854, 4294901760
    %3832 = vmatpush1.msra.mxu0 %v3831
    %3833 = vmatprep.subr.mxu0 0.0
    %v3834 = vand.u32 %v2855, 4294901760
    %3835 = vmatpush1.msra.mxu0 %v3834
    %3836 = vmatprep.subr.mxu0 0.0
    %v3837 = vand.u32 %v2856, 4294901760
    %3838 = vmatpush1.msra.mxu0 %v3837
    %3839 = vmatprep.subr.mxu0 0.0
    %v3840 = vand.u32 %v2857, 4294901760
    %3841 = vmatpush1.msra.mxu0 %v3840
    %3842 = vmatprep.subr.mxu0 0.0
    %v3843 = vand.u32 %v2858, 4294901760
    %3844 = vmatpush1.msra.mxu0 %v3843
    %3845 = vmatprep.subr.mxu0 0.0
    %v3846 = vand.u32 %v2859, 4294901760
    %3847 = vmatpush1.msra.mxu0 %v3846
    %3848 = vmatprep.subr.mxu0 0.0
    %v3849 = vand.u32 %v2860, 4294901760
    %3850 = vmatpush1.msra.mxu0 %v3849
    %3851 = vmatprep.subr.mxu0 0.0
    %v3852 = vand.u32 %v2861, 4294901760
    %3853 = vmatpush1.msra.mxu0 %v3852
    %3854 = vmatprep.subr.mxu0 0.0
    %v3855 = vand.u32 %v2862, 4294901760
    %3856 = vmatpush1.msra.mxu0 %v3855
    %3857 = vmatprep.subr.mxu0 0.0
    %v3858 = vand.u32 %v2863, 4294901760
    %3859 = vmatpush1.msra.mxu0 %v3858
    %3860 = vmatprep.subr.mxu0 0.0
    %v3861 = vand.u32 %v2864, 4294901760
    %3862 = vmatpush1.msra.mxu0 %v3861
    %3863 = vmatprep.subr.mxu0 0.0
    %v3864 = vand.u32 %v2865, 4294901760
    %3865 = vmatpush1.msra.mxu0 %v3864
    %3866 = vmatprep.subr.mxu0 0.0
    %v3867 = vand.u32 %v2866, 4294901760
    %3868 = vmatpush1.msra.mxu0 %v3867
    %3869 = vmatprep.subr.mxu0 0.0
    %v3870 = vand.u32 %v2867, 4294901760
    %3871 = vmatpush1.msra.mxu0 %v3870
    %3872 = vmatprep.subr.mxu0 0.0
    %v3873 = vand.u32 %v2868, 4294901760
    %3874 = vmatpush1.msra.mxu0 %v3873
    %3875 = vmatprep.subr.mxu0 0.0
    %v3876 = vand.u32 %v2869, 4294901760
    %3877 = vmatpush1.msra.mxu0 %v3876
    %3878 = vmatprep.subr.mxu0 0.0
    %v3879 = vand.u32 %v2870, 4294901760
    %3880 = vmatpush1.msra.mxu0 %v3879
    %3881 = vmatprep.subr.mxu0 0.0
    %v3882 = vand.u32 %v2871, 4294901760
    %3883 = vmatpush1.msra.mxu0 %v3882
    %3884 = vmatprep.subr.mxu0 0.0
    %v3885 = vand.u32 %v2872, 4294901760
    %3886 = vmatpush1.msra.mxu0 %v3885
    %3887 = vmatprep.subr.mxu0 0.0
    %v3888 = vand.u32 %v2873, 4294901760
    %3889 = vmatpush1.msra.mxu0 %v3888
    %3890 = vmatprep.subr.mxu0 0.0
    %v3891 = vand.u32 %v2874, 4294901760
    %3892 = vmatpush1.msra.mxu0 %v3891
    %3893 = vmatprep.subr.mxu0 0.0
    %v3894 = vand.u32 %v2875, 4294901760
    %3895 = vmatpush1.msra.mxu0 %v3894
    %3896 = vmatprep.subr.mxu0 0.0
    %v3897 = vand.u32 %v2876, 4294901760
    %3898 = vmatpush1.msra.mxu0 %v3897
    %v3899 = vand.u32 %v2808, 4294901760
    %v3900 = vsub.f32 %v2808, %v3899
    %v3901 = vand.u32 %v3900, 4294901760
    %v3902 = vsub.f32 %v3900, %v3901
    %v3903 = vand.u32 %v3902, 4294901760
    %3904 = vmatprep.mubr.f32.mxu0 %v3903
    %v3905 = vand.u32 %v2807, 4294901760
    %v3906 = vsub.f32 %v2807, %v3905
    %v3907 = vand.u32 %v3906, 4294901760
    %v3908 = vsub.f32 %v3906, %v3907
    %v3909 = vand.u32 %v3908, 4294901760
    %3910 = vmatmul.mubr.f32.gmra.mrb[0].mxu0 %v3909
    %v3911 = vpop.f32.mrb[0].mxu0
    %v3912 = vadd.f32 %v3800, %v3911
    %v3913 = vpop.f32.mrb[0].mxu0
    %3914 = vdwg.mxu0
    %3915 = vmatprep.subr.mxu0 0.0
    %v3916 = vand.u32 %v2845, 4294901760
    %v3917 = vsub.f32 %v2845, %v3916
    %v3918 = vand.u32 %v3917, 4294901760
    %v3919 = vsub.f32 %v3917, %v3918
    %v3920 = vand.u32 %v3919, 4294901760
    %3921 = vmatpush1.msra.mxu0 %v3920
    %3922 = vmatprep.subr.mxu0 0.0
    %v3923 = vand.u32 %v2846, 4294901760
    %v3924 = vsub.f32 %v2846, %v3923
    %v3925 = vand.u32 %v3924, 4294901760
    %v3926 = vsub.f32 %v3924, %v3925
    %v3927 = vand.u32 %v3926, 4294901760
    %3928 = vmatpush1.msra.mxu0 %v3927
    %3929 = vmatprep.subr.mxu0 0.0
    %v3930 = vand.u32 %v2847, 4294901760
    %v3931 = vsub.f32 %v2847, %v3930
    %v3932 = vand.u32 %v3931, 4294901760
    %v3933 = vsub.f32 %v3931, %v3932
    %v3934 = vand.u32 %v3933, 4294901760
    %3935 = vmatpush1.msra.mxu0 %v3934
    %3936 = vmatprep.subr.mxu0 0.0
    %v3937 = vand.u32 %v2848, 4294901760
    %v3938 = vsub.f32 %v2848, %v3937
    %v3939 = vand.u32 %v3938, 4294901760
    %v3940 = vsub.f32 %v3938, %v3939
    %v3941 = vand.u32 %v3940, 4294901760
    %3942 = vmatpush1.msra.mxu0 %v3941
    %3943 = vmatprep.subr.mxu0 0.0
    %v3944 = vand.u32 %v2849, 4294901760
    %v3945 = vsub.f32 %v2849, %v3944
    %v3946 = vand.u32 %v3945, 4294901760
    %v3947 = vsub.f32 %v3945, %v3946
    %v3948 = vand.u32 %v3947, 4294901760
    %3949 = vmatpush1.msra.mxu0 %v3948
    %3950 = vmatprep.subr.mxu0 0.0
    %v3951 = vand.u32 %v2850, 4294901760
    %v3952 = vsub.f32 %v2850, %v3951
    %v3953 = vand.u32 %v3952, 4294901760
    %v3954 = vsub.f32 %v3952, %v3953
    %v3955 = vand.u32 %v3954, 4294901760
    %3956 = vmatpush1.msra.mxu0 %v3955
    %3957 = vmatprep.subr.mxu0 0.0
    %v3958 = vand.u32 %v2851, 4294901760
    %v3959 = vsub.f32 %v2851, %v3958
    %v3960 = vand.u32 %v3959, 4294901760
    %v3961 = vsub.f32 %v3959, %v3960
    %v3962 = vand.u32 %v3961, 4294901760
    %3963 = vmatpush1.msra.mxu0 %v3962
    %3964 = vmatprep.subr.mxu0 0.0
    %v3965 = vand.u32 %v2852, 4294901760
    %v3966 = vsub.f32 %v2852, %v3965
    %v3967 = vand.u32 %v3966, 4294901760
    %v3968 = vsub.f32 %v3966, %v3967
    %v3969 = vand.u32 %v3968, 4294901760
    %3970 = vmatpush1.msra.mxu0 %v3969
    %3971 = vmatprep.subr.mxu0 0.0
    %v3972 = vand.u32 %v2853, 4294901760
    %v3973 = vsub.f32 %v2853, %v3972
    %v3974 = vand.u32 %v3973, 4294901760
    %v3975 = vsub.f32 %v3973, %v3974
    %v3976 = vand.u32 %v3975, 4294901760
    %3977 = vmatpush1.msra.mxu0 %v3976
    %3978 = vmatprep.subr.mxu0 0.0
    %v3979 = vand.u32 %v2854, 4294901760
    %v3980 = vsub.f32 %v2854, %v3979
    %v3981 = vand.u32 %v3980, 4294901760
    %v3982 = vsub.f32 %v3980, %v3981
    %v3983 = vand.u32 %v3982, 4294901760
    %3984 = vmatpush1.msra.mxu0 %v3983
    %3985 = vmatprep.subr.mxu0 0.0
    %v3986 = vand.u32 %v2855, 4294901760
    %v3987 = vsub.f32 %v2855, %v3986
    %v3988 = vand.u32 %v3987, 4294901760
    %v3989 = vsub.f32 %v3987, %v3988
    %v3990 = vand.u32 %v3989, 4294901760
    %3991 = vmatpush1.msra.mxu0 %v3990
    %3992 = vmatprep.subr.mxu0 0.0
    %v3993 = vand.u32 %v2856, 4294901760
    %v3994 = vsub.f32 %v2856, %v3993
    %v3995 = vand.u32 %v3994, 4294901760
    %v3996 = vsub.f32 %v3994, %v3995
    %v3997 = vand.u32 %v3996, 4294901760
    %3998 = vmatpush1.msra.mxu0 %v3997
    %3999 = vmatprep.subr.mxu0 0.0
    %v4000 = vand.u32 %v2857, 4294901760
    %v4001 = vsub.f32 %v2857, %v4000
    %v4002 = vand.u32 %v4001, 4294901760
    %v4003 = vsub.f32 %v4001, %v4002
    %v4004 = vand.u32 %v4003, 4294901760
    %4005 = vmatpush1.msra.mxu0 %v4004
    %4006 = vmatprep.subr.mxu0 0.0
    %v4007 = vand.u32 %v2858, 4294901760
    %v4008 = vsub.f32 %v2858, %v4007
    %v4009 = vand.u32 %v4008, 4294901760
    %v4010 = vsub.f32 %v4008, %v4009
    %v4011 = vand.u32 %v4010, 4294901760
    %4012 = vmatpush1.msra.mxu0 %v4011
    %4013 = vmatprep.subr.mxu0 0.0
    %v4014 = vand.u32 %v2859, 4294901760
    %v4015 = vsub.f32 %v2859, %v4014
    %v4016 = vand.u32 %v4015, 4294901760
    %v4017 = vsub.f32 %v4015, %v4016
    %v4018 = vand.u32 %v4017, 4294901760
    %4019 = vmatpush1.msra.mxu0 %v4018
    %4020 = vmatprep.subr.mxu0 0.0
    %v4021 = vand.u32 %v2860, 4294901760
    %v4022 = vsub.f32 %v2860, %v4021
    %v4023 = vand.u32 %v4022, 4294901760
    %v4024 = vsub.f32 %v4022, %v4023
    %v4025 = vand.u32 %v4024, 4294901760
    %4026 = vmatpush1.msra.mxu0 %v4025
    %4027 = vmatprep.subr.mxu0 0.0
    %v4028 = vand.u32 %v2861, 4294901760
    %v4029 = vsub.f32 %v2861, %v4028
    %v4030 = vand.u32 %v4029, 4294901760
    %v4031 = vsub.f32 %v4029, %v4030
    %v4032 = vand.u32 %v4031, 4294901760
    %4033 = vmatpush1.msra.mxu0 %v4032
    %4034 = vmatprep.subr.mxu0 0.0
    %v4035 = vand.u32 %v2862, 4294901760
    %v4036 = vsub.f32 %v2862, %v4035
    %v4037 = vand.u32 %v4036, 4294901760
    %v4038 = vsub.f32 %v4036, %v4037
    %v4039 = vand.u32 %v4038, 4294901760
    %4040 = vmatpush1.msra.mxu0 %v4039
    %4041 = vmatprep.subr.mxu0 0.0
    %v4042 = vand.u32 %v2863, 4294901760
    %v4043 = vsub.f32 %v2863, %v4042
    %v4044 = vand.u32 %v4043, 4294901760
    %v4045 = vsub.f32 %v4043, %v4044
    %v4046 = vand.u32 %v4045, 4294901760
    %4047 = vmatpush1.msra.mxu0 %v4046
    %4048 = vmatprep.subr.mxu0 0.0
    %v4049 = vand.u32 %v2864, 4294901760
    %v4050 = vsub.f32 %v2864, %v4049
    %v4051 = vand.u32 %v4050, 4294901760
    %v4052 = vsub.f32 %v4050, %v4051
    %v4053 = vand.u32 %v4052, 4294901760
    %4054 = vmatpush1.msra.mxu0 %v4053
    %4055 = vmatprep.subr.mxu0 0.0
    %v4056 = vand.u32 %v2865, 4294901760
    %v4057 = vsub.f32 %v2865, %v4056
    %v4058 = vand.u32 %v4057, 4294901760
    %v4059 = vsub.f32 %v4057, %v4058
    %v4060 = vand.u32 %v4059, 4294901760
    %4061 = vmatpush1.msra.mxu0 %v4060
    %4062 = vmatprep.subr.mxu0 0.0
    %v4063 = vand.u32 %v2866, 4294901760
    %v4064 = vsub.f32 %v2866, %v4063
    %v4065 = vand.u32 %v4064, 4294901760
    %v4066 = vsub.f32 %v4064, %v4065
    %v4067 = vand.u32 %v4066, 4294901760
    %4068 = vmatpush1.msra.mxu0 %v4067
    %4069 = vmatprep.subr.mxu0 0.0
    %v4070 = vand.u32 %v2867, 4294901760
    %v4071 = vsub.f32 %v2867, %v4070
    %v4072 = vand.u32 %v4071, 4294901760
    %v4073 = vsub.f32 %v4071, %v4072
    %v4074 = vand.u32 %v4073, 4294901760
    %4075 = vmatpush1.msra.mxu0 %v4074
    %4076 = vmatprep.subr.mxu0 0.0
    %v4077 = vand.u32 %v2868, 4294901760
    %v4078 = vsub.f32 %v2868, %v4077
    %v4079 = vand.u32 %v4078, 4294901760
    %v4080 = vsub.f32 %v4078, %v4079
    %v4081 = vand.u32 %v4080, 4294901760
    %4082 = vmatpush1.msra.mxu0 %v4081
    %4083 = vmatprep.subr.mxu0 0.0
    %v4084 = vand.u32 %v2869, 4294901760
    %v4085 = vsub.f32 %v2869, %v4084
    %v4086 = vand.u32 %v4085, 4294901760
    %v4087 = vsub.f32 %v4085, %v4086
    %v4088 = vand.u32 %v4087, 4294901760
    %4089 = vmatpush1.msra.mxu0 %v4088
    %4090 = vmatprep.subr.mxu0 0.0
    %v4091 = vand.u32 %v2870, 4294901760
    %v4092 = vsub.f32 %v2870, %v4091
    %v4093 = vand.u32 %v4092, 4294901760
    %v4094 = vsub.f32 %v4092, %v4093
    %v4095 = vand.u32 %v4094, 4294901760
    %4096 = vmatpush1.msra.mxu0 %v4095
    %4097 = vmatprep.subr.mxu0 0.0
    %v4098 = vand.u32 %v2871, 4294901760
    %v4099 = vsub.f32 %v2871, %v4098
    %v4100 = vand.u32 %v4099, 4294901760
    %v4101 = vsub.f32 %v4099, %v4100
    %v4102 = vand.u32 %v4101, 4294901760
    %4103 = vmatpush1.msra.mxu0 %v4102
    %4104 = vmatprep.subr.mxu0 0.0
    %v4105 = vand.u32 %v2872, 4294901760
    %v4106 = vsub.f32 %v2872, %v4105
    %v4107 = vand.u32 %v4106, 4294901760
    %v4108 = vsub.f32 %v4106, %v4107
    %v4109 = vand.u32 %v4108, 4294901760
    %4110 = vmatpush1.msra.mxu0 %v4109
    %4111 = vmatprep.subr.mxu0 0.0
    %v4112 = vand.u32 %v2873, 4294901760
    %v4113 = vsub.f32 %v2873, %v4112
    %v4114 = vand.u32 %v4113, 4294901760
    %v4115 = vsub.f32 %v4113, %v4114
    %v4116 = vand.u32 %v4115, 4294901760
    %4117 = vmatpush1.msra.mxu0 %v4116
    %4118 = vmatprep.subr.mxu0 0.0
    %v4119 = vand.u32 %v2874, 4294901760
    %v4120 = vsub.f32 %v2874, %v4119
    %v4121 = vand.u32 %v4120, 4294901760
    %v4122 = vsub.f32 %v4120, %v4121
    %v4123 = vand.u32 %v4122, 4294901760
    %4124 = vmatpush1.msra.mxu0 %v4123
    %4125 = vmatprep.subr.mxu0 0.0
    %v4126 = vand.u32 %v2875, 4294901760
    %v4127 = vsub.f32 %v2875, %v4126
    %v4128 = vand.u32 %v4127, 4294901760
    %v4129 = vsub.f32 %v4127, %v4128
    %v4130 = vand.u32 %v4129, 4294901760
    %4131 = vmatpush1.msra.mxu0 %v4130
    %4132 = vmatprep.subr.mxu0 0.0
    %v4133 = vand.u32 %v2876, 4294901760
    %v4134 = vsub.f32 %v2876, %v4133
    %v4135 = vand.u32 %v4134, 4294901760
    %v4136 = vsub.f32 %v4134, %v4135
    %v4137 = vand.u32 %v4136, 4294901760
    %4138 = vmatpush1.msra.mxu0 %v4137
    %v4139 = vand.u32 %v2808, 4294901760
    %4140 = vmatprep.mubr.f32.mxu0 %v4139
    %v4141 = vand.u32 %v2807, 4294901760
    %4142 = vmatmul.mubr.f32.gmra.mrb[0].mxu0 %v4141
    %v4143 = vpop.f32.mrb[0].mxu0
    %v4144 = vadd.f32 %v3912, %v4143
    %v4145 = vpop.f32.mrb[0].mxu0
    %4146 = vdwg.mxu0
    %4147 = vmatprep.subr.mxu0 0.0
    %v4148 = vand.u32 %v2845, 4294901760
    %v4149 = vsub.f32 %v2845, %v4148
    %4150 = vmatpush1.msra.mxu0 %v4149
    %4151 = vmatprep.subr.mxu0 0.0
    %v4152 = vand.u32 %v2846, 4294901760
    %v4153 = vsub.f32 %v2846, %v4152
    %4154 = vmatpush1.msra.mxu0 %v4153
    %4155 = vmatprep.subr.mxu0 0.0
    %v4156 = vand.u32 %v2847, 4294901760
    %v4157 = vsub.f32 %v2847, %v4156
    %4158 = vmatpush1.msra.mxu0 %v4157
    %4159 = vmatprep.subr.mxu0 0.0
    %v4160 = vand.u32 %v2848, 4294901760
    %v4161 = vsub.f32 %v2848, %v4160
    %4162 = vmatpush1.msra.mxu0 %v4161
    %4163 = vmatprep.subr.mxu0 0.0
    %v4164 = vand.u32 %v2849, 4294901760
    %v4165 = vsub.f32 %v2849, %v4164
    %4166 = vmatpush1.msra.mxu0 %v4165
    %4167 = vmatprep.subr.mxu0 0.0
    %v4168 = vand.u32 %v2850, 4294901760
    %v4169 = vsub.f32 %v2850, %v4168
    %4170 = vmatpush1.msra.mxu0 %v4169
    %4171 = vmatprep.subr.mxu0 0.0
    %v4172 = vand.u32 %v2851, 4294901760
    %v4173 = vsub.f32 %v2851, %v4172
    %4174 = vmatpush1.msra.mxu0 %v4173
    %4175 = vmatprep.subr.mxu0 0.0
    %v4176 = vand.u32 %v2852, 4294901760
    %v4177 = vsub.f32 %v2852, %v4176
    %4178 = vmatpush1.msra.mxu0 %v4177
    %4179 = vmatprep.subr.mxu0 0.0
    %v4180 = vand.u32 %v2853, 4294901760
    %v4181 = vsub.f32 %v2853, %v4180
    %4182 = vmatpush1.msra.mxu0 %v4181
    %4183 = vmatprep.subr.mxu0 0.0
    %v4184 = vand.u32 %v2854, 4294901760
    %v4185 = vsub.f32 %v2854, %v4184
    %4186 = vmatpush1.msra.mxu0 %v4185
    %4187 = vmatprep.subr.mxu0 0.0
    %v4188 = vand.u32 %v2855, 4294901760
    %v4189 = vsub.f32 %v2855, %v4188
    %4190 = vmatpush1.msra.mxu0 %v4189
    %4191 = vmatprep.subr.mxu0 0.0
    %v4192 = vand.u32 %v2856, 4294901760
    %v4193 = vsub.f32 %v2856, %v4192
    %4194 = vmatpush1.msra.mxu0 %v4193
    %4195 = vmatprep.subr.mxu0 0.0
    %v4196 = vand.u32 %v2857, 4294901760
    %v4197 = vsub.f32 %v2857, %v4196
    %4198 = vmatpush1.msra.mxu0 %v4197
    %4199 = vmatprep.subr.mxu0 0.0
    %v4200 = vand.u32 %v2858, 4294901760
    %v4201 = vsub.f32 %v2858, %v4200
    %4202 = vmatpush1.msra.mxu0 %v4201
    %4203 = vmatprep.subr.mxu0 0.0
    %v4204 = vand.u32 %v2859, 4294901760
    %v4205 = vsub.f32 %v2859, %v4204
    %4206 = vmatpush1.msra.mxu0 %v4205
    %4207 = vmatprep.subr.mxu0 0.0
    %v4208 = vand.u32 %v2860, 4294901760
    %v4209 = vsub.f32 %v2860, %v4208
    %4210 = vmatpush1.msra.mxu0 %v4209
    %4211 = vmatprep.subr.mxu0 0.0
    %v4212 = vand.u32 %v2861, 4294901760
    %v4213 = vsub.f32 %v2861, %v4212
    %4214 = vmatpush1.msra.mxu0 %v4213
    %4215 = vmatprep.subr.mxu0 0.0
    %v4216 = vand.u32 %v2862, 4294901760
    %v4217 = vsub.f32 %v2862, %v4216
    %4218 = vmatpush1.msra.mxu0 %v4217
    %4219 = vmatprep.subr.mxu0 0.0
    %v4220 = vand.u32 %v2863, 4294901760
    %v4221 = vsub.f32 %v2863, %v4220
    %4222 = vmatpush1.msra.mxu0 %v4221
    %4223 = vmatprep.subr.mxu0 0.0
    %v4224 = vand.u32 %v2864, 4294901760
    %v4225 = vsub.f32 %v2864, %v4224
    %4226 = vmatpush1.msra.mxu0 %v4225
    %4227 = vmatprep.subr.mxu0 0.0
    %v4228 = vand.u32 %v2865, 4294901760
    %v4229 = vsub.f32 %v2865, %v4228
    %4230 = vmatpush1.msra.mxu0 %v4229
    %4231 = vmatprep.subr.mxu0 0.0
    %v4232 = vand.u32 %v2866, 4294901760
    %v4233 = vsub.f32 %v2866, %v4232
    %4234 = vmatpush1.msra.mxu0 %v4233
    %4235 = vmatprep.subr.mxu0 0.0
    %v4236 = vand.u32 %v2867, 4294901760
    %v4237 = vsub.f32 %v2867, %v4236
    %4238 = vmatpush1.msra.mxu0 %v4237
    %4239 = vmatprep.subr.mxu0 0.0
    %v4240 = vand.u32 %v2868, 4294901760
    %v4241 = vsub.f32 %v2868, %v4240
    %4242 = vmatpush1.msra.mxu0 %v4241
    %4243 = vmatprep.subr.mxu0 0.0
    %v4244 = vand.u32 %v2869, 4294901760
    %v4245 = vsub.f32 %v2869, %v4244
    %4246 = vmatpush1.msra.mxu0 %v4245
    %4247 = vmatprep.subr.mxu0 0.0
    %v4248 = vand.u32 %v2870, 4294901760
    %v4249 = vsub.f32 %v2870, %v4248
    %4250 = vmatpush1.msra.mxu0 %v4249
    %4251 = vmatprep.subr.mxu0 0.0
    %v4252 = vand.u32 %v2871, 4294901760
    %v4253 = vsub.f32 %v2871, %v4252
    %4254 = vmatpush1.msra.mxu0 %v4253
    %4255 = vmatprep.subr.mxu0 0.0
    %v4256 = vand.u32 %v2872, 4294901760
    %v4257 = vsub.f32 %v2872, %v4256
    %4258 = vmatpush1.msra.mxu0 %v4257
    %4259 = vmatprep.subr.mxu0 0.0
    %v4260 = vand.u32 %v2873, 4294901760
    %v4261 = vsub.f32 %v2873, %v4260
    %4262 = vmatpush1.msra.mxu0 %v4261
    %4263 = vmatprep.subr.mxu0 0.0
    %v4264 = vand.u32 %v2874, 4294901760
    %v4265 = vsub.f32 %v2874, %v4264
    %4266 = vmatpush1.msra.mxu0 %v4265
    %4267 = vmatprep.subr.mxu0 0.0
    %v4268 = vand.u32 %v2875, 4294901760
    %v4269 = vsub.f32 %v2875, %v4268
    %4270 = vmatpush1.msra.mxu0 %v4269
    %4271 = vmatprep.subr.mxu0 0.0
    %v4272 = vand.u32 %v2876, 4294901760
    %v4273 = vsub.f32 %v2876, %v4272
    %4274 = vmatpush1.msra.mxu0 %v4273
    %v4275 = vand.u32 %v2808, 4294901760
    %v4276 = vsub.f32 %v2808, %v4275
    %4277 = vmatprep.mubr.f32.mxu0 %v4276
    %v4278 = vand.u32 %v2807, 4294901760
    %v4279 = vsub.f32 %v2807, %v4278
    %4280 = vmatmul.mubr.f32.gmra.mrb[0].mxu0 %v4279
    %v4281 = vpop.f32.mrb[0].mxu0
    %v4282 = vadd.f32 %v4144, %v4281
    %v4283 = vpop.f32.mrb[0].mxu0
    %4284 = vdwg.mxu0
    %4285 = vmatprep.subr.mxu0 0.0
    %v4286 = vand.u32 %v2845, 4294901760
    %4287 = vmatpush1.msra.mxu0 %v4286
    %4288 = vmatprep.subr.mxu0 0.0
    %v4289 = vand.u32 %v2846, 4294901760
    %4290 = vmatpush1.msra.mxu0 %v4289
    %4291 = vmatprep.subr.mxu0 0.0
    %v4292 = vand.u32 %v2847, 4294901760
    %4293 = vmatpush1.msra.mxu0 %v4292
    %4294 = vmatprep.subr.mxu0 0.0
    %v4295 = vand.u32 %v2848, 4294901760
    %4296 = vmatpush1.msra.mxu0 %v4295
    %4297 = vmatprep.subr.mxu0 0.0
    %v4298 = vand.u32 %v2849, 4294901760
    %4299 = vmatpush1.msra.mxu0 %v4298
    %4300 = vmatprep.subr.mxu0 0.0
    %v4301 = vand.u32 %v2850, 4294901760
    %4302 = vmatpush1.msra.mxu0 %v4301
    %4303 = vmatprep.subr.mxu0 0.0
    %v4304 = vand.u32 %v2851, 4294901760
    %4305 = vmatpush1.msra.mxu0 %v4304
    %4306 = vmatprep.subr.mxu0 0.0
    %v4307 = vand.u32 %v2852, 4294901760
    %4308 = vmatpush1.msra.mxu0 %v4307
    %4309 = vmatprep.subr.mxu0 0.0
    %v4310 = vand.u32 %v2853, 4294901760
    %4311 = vmatpush1.msra.mxu0 %v4310
    %4312 = vmatprep.subr.mxu0 0.0
    %v4313 = vand.u32 %v2854, 4294901760
    %4314 = vmatpush1.msra.mxu0 %v4313
    %4315 = vmatprep.subr.mxu0 0.0
    %v4316 = vand.u32 %v2855, 4294901760
    %4317 = vmatpush1.msra.mxu0 %v4316
    %4318 = vmatprep.subr.mxu0 0.0
    %v4319 = vand.u32 %v2856, 4294901760
    %4320 = vmatpush1.msra.mxu0 %v4319
    %4321 = vmatprep.subr.mxu0 0.0
    %v4322 = vand.u32 %v2857, 4294901760
    %4323 = vmatpush1.msra.mxu0 %v4322
    %4324 = vmatprep.subr.mxu0 0.0
    %v4325 = vand.u32 %v2858, 4294901760
    %4326 = vmatpush1.msra.mxu0 %v4325
    %4327 = vmatprep.subr.mxu0 0.0
    %v4328 = vand.u32 %v2859, 4294901760
    %4329 = vmatpush1.msra.mxu0 %v4328
    %4330 = vmatprep.subr.mxu0 0.0
    %v4331 = vand.u32 %v2860, 4294901760
    %4332 = vmatpush1.msra.mxu0 %v4331
    %4333 = vmatprep.subr.mxu0 0.0
    %v4334 = vand.u32 %v2861, 4294901760
    %4335 = vmatpush1.msra.mxu0 %v4334
    %4336 = vmatprep.subr.mxu0 0.0
    %v4337 = vand.u32 %v2862, 4294901760
    %4338 = vmatpush1.msra.mxu0 %v4337
    %4339 = vmatprep.subr.mxu0 0.0
    %v4340 = vand.u32 %v2863, 4294901760
    %4341 = vmatpush1.msra.mxu0 %v4340
    %4342 = vmatprep.subr.mxu0 0.0
    %v4343 = vand.u32 %v2864, 4294901760
    %4344 = vmatpush1.msra.mxu0 %v4343
    %4345 = vmatprep.subr.mxu0 0.0
    %v4346 = vand.u32 %v2865, 4294901760
    %4347 = vmatpush1.msra.mxu0 %v4346
    %4348 = vmatprep.subr.mxu0 0.0
    %v4349 = vand.u32 %v2866, 4294901760
    %4350 = vmatpush1.msra.mxu0 %v4349
    %4351 = vmatprep.subr.mxu0 0.0
    %v4352 = vand.u32 %v2867, 4294901760
    %4353 = vmatpush1.msra.mxu0 %v4352
    %4354 = vmatprep.subr.mxu0 0.0
    %v4355 = vand.u32 %v2868, 4294901760
    %4356 = vmatpush1.msra.mxu0 %v4355
    %4357 = vmatprep.subr.mxu0 0.0
    %v4358 = vand.u32 %v2869, 4294901760
    %4359 = vmatpush1.msra.mxu0 %v4358
    %4360 = vmatprep.subr.mxu0 0.0
    %v4361 = vand.u32 %v2870, 4294901760
    %4362 = vmatpush1.msra.mxu0 %v4361
    %4363 = vmatprep.subr.mxu0 0.0
    %v4364 = vand.u32 %v2871, 4294901760
    %4365 = vmatpush1.msra.mxu0 %v4364
    %4366 = vmatprep.subr.mxu0 0.0
    %v4367 = vand.u32 %v2872, 4294901760
    %4368 = vmatpush1.msra.mxu0 %v4367
    %4369 = vmatprep.subr.mxu0 0.0
    %v4370 = vand.u32 %v2873, 4294901760
    %4371 = vmatpush1.msra.mxu0 %v4370
    %4372 = vmatprep.subr.mxu0 0.0
    %v4373 = vand.u32 %v2874, 4294901760
    %4374 = vmatpush1.msra.mxu0 %v4373
    %4375 = vmatprep.subr.mxu0 0.0
    %v4376 = vand.u32 %v2875, 4294901760
    %4377 = vmatpush1.msra.mxu0 %v4376
    %4378 = vmatprep.subr.mxu0 0.0
    %v4379 = vand.u32 %v2876, 4294901760
    %4380 = vmatpush1.msra.mxu0 %v4379
    %v4381 = vand.u32 %v2808, 4294901760
    %v4382 = vsub.f32 %v2808, %v4381
    %v4383 = vand.u32 %v4382, 4294901760
    %4384 = vmatprep.mubr.f32.mxu0 %v4383
    %v4385 = vand.u32 %v2807, 4294901760
    %v4386 = vsub.f32 %v2807, %v4385
    %v4387 = vand.u32 %v4386, 4294901760
    %4388 = vmatmul.mubr.f32.gmra.mrb[0].mxu0 %v4387
    %v4389 = vpop.f32.mrb[0].mxu0
    %v4390 = vadd.f32 %v4282, %v4389
    %v4391 = vpop.f32.mrb[0].mxu0
    %4392 = vdwg.mxu0
    %4393 = vmatprep.subr.mxu0 0.0
    %v4394 = vand.u32 %v2845, 4294901760
    %v4395 = vsub.f32 %v2845, %v4394
    %v4396 = vand.u32 %v4395, 4294901760
    %4397 = vmatpush1.msra.mxu0 %v4396
    %4398 = vmatprep.subr.mxu0 0.0
    %v4399 = vand.u32 %v2846, 4294901760
    %v4400 = vsub.f32 %v2846, %v4399
    %v4401 = vand.u32 %v4400, 4294901760
    %4402 = vmatpush1.msra.mxu0 %v4401
    %4403 = vmatprep.subr.mxu0 0.0
    %v4404 = vand.u32 %v2847, 4294901760
    %v4405 = vsub.f32 %v2847, %v4404
    %v4406 = vand.u32 %v4405, 4294901760
    %4407 = vmatpush1.msra.mxu0 %v4406
    %4408 = vmatprep.subr.mxu0 0.0
    %v4409 = vand.u32 %v2848, 4294901760
    %v4410 = vsub.f32 %v2848, %v4409
    %v4411 = vand.u32 %v4410, 4294901760
    %4412 = vmatpush1.msra.mxu0 %v4411
    %4413 = vmatprep.subr.mxu0 0.0
    %v4414 = vand.u32 %v2849, 4294901760
    %v4415 = vsub.f32 %v2849, %v4414
    %v4416 = vand.u32 %v4415, 4294901760
    %4417 = vmatpush1.msra.mxu0 %v4416
    %4418 = vmatprep.subr.mxu0 0.0
    %v4419 = vand.u32 %v2850, 4294901760
    %v4420 = vsub.f32 %v2850, %v4419
    %v4421 = vand.u32 %v4420, 4294901760
    %4422 = vmatpush1.msra.mxu0 %v4421
    %4423 = vmatprep.subr.mxu0 0.0
    %v4424 = vand.u32 %v2851, 4294901760
    %v4425 = vsub.f32 %v2851, %v4424
    %v4426 = vand.u32 %v4425, 4294901760
    %4427 = vmatpush1.msra.mxu0 %v4426
    %4428 = vmatprep.subr.mxu0 0.0
    %v4429 = vand.u32 %v2852, 4294901760
    %v4430 = vsub.f32 %v2852, %v4429
    %v4431 = vand.u32 %v4430, 4294901760
    %4432 = vmatpush1.msra.mxu0 %v4431
    %4433 = vmatprep.subr.mxu0 0.0
    %v4434 = vand.u32 %v2853, 4294901760
    %v4435 = vsub.f32 %v2853, %v4434
    %v4436 = vand.u32 %v4435, 4294901760
    %4437 = vmatpush1.msra.mxu0 %v4436
    %4438 = vmatprep.subr.mxu0 0.0
    %v4439 = vand.u32 %v2854, 4294901760
    %v4440 = vsub.f32 %v2854, %v4439
    %v4441 = vand.u32 %v4440, 4294901760
    %4442 = vmatpush1.msra.mxu0 %v4441
    %4443 = vmatprep.subr.mxu0 0.0
    %v4444 = vand.u32 %v2855, 4294901760
    %v4445 = vsub.f32 %v2855, %v4444
    %v4446 = vand.u32 %v4445, 4294901760
    %4447 = vmatpush1.msra.mxu0 %v4446
    %4448 = vmatprep.subr.mxu0 0.0
    %v4449 = vand.u32 %v2856, 4294901760
    %v4450 = vsub.f32 %v2856, %v4449
    %v4451 = vand.u32 %v4450, 4294901760
    %4452 = vmatpush1.msra.mxu0 %v4451
    %4453 = vmatprep.subr.mxu0 0.0
    %v4454 = vand.u32 %v2857, 4294901760
    %v4455 = vsub.f32 %v2857, %v4454
    %v4456 = vand.u32 %v4455, 4294901760
    %4457 = vmatpush1.msra.mxu0 %v4456
    %4458 = vmatprep.subr.mxu0 0.0
    %v4459 = vand.u32 %v2858, 4294901760
    %v4460 = vsub.f32 %v2858, %v4459
    %v4461 = vand.u32 %v4460, 4294901760
    %4462 = vmatpush1.msra.mxu0 %v4461
    %4463 = vmatprep.subr.mxu0 0.0
    %v4464 = vand.u32 %v2859, 4294901760
    %v4465 = vsub.f32 %v2859, %v4464
    %v4466 = vand.u32 %v4465, 4294901760
    %4467 = vmatpush1.msra.mxu0 %v4466
    %4468 = vmatprep.subr.mxu0 0.0
    %v4469 = vand.u32 %v2860, 4294901760
    %v4470 = vsub.f32 %v2860, %v4469
    %v4471 = vand.u32 %v4470, 4294901760
    %4472 = vmatpush1.msra.mxu0 %v4471
    %4473 = vmatprep.subr.mxu0 0.0
    %v4474 = vand.u32 %v2861, 4294901760
    %v4475 = vsub.f32 %v2861, %v4474
    %v4476 = vand.u32 %v4475, 4294901760
    %4477 = vmatpush1.msra.mxu0 %v4476
    %4478 = vmatprep.subr.mxu0 0.0
    %v4479 = vand.u32 %v2862, 4294901760
    %v4480 = vsub.f32 %v2862, %v4479
    %v4481 = vand.u32 %v4480, 4294901760
    %4482 = vmatpush1.msra.mxu0 %v4481
    %4483 = vmatprep.subr.mxu0 0.0
    %v4484 = vand.u32 %v2863, 4294901760
    %v4485 = vsub.f32 %v2863, %v4484
    %v4486 = vand.u32 %v4485, 4294901760
    %4487 = vmatpush1.msra.mxu0 %v4486
    %4488 = vmatprep.subr.mxu0 0.0
    %v4489 = vand.u32 %v2864, 4294901760
    %v4490 = vsub.f32 %v2864, %v4489
    %v4491 = vand.u32 %v4490, 4294901760
    %4492 = vmatpush1.msra.mxu0 %v4491
    %4493 = vmatprep.subr.mxu0 0.0
    %v4494 = vand.u32 %v2865, 4294901760
    %v4495 = vsub.f32 %v2865, %v4494
    %v4496 = vand.u32 %v4495, 4294901760
    %4497 = vmatpush1.msra.mxu0 %v4496
    %4498 = vmatprep.subr.mxu0 0.0
    %v4499 = vand.u32 %v2866, 4294901760
    %v4500 = vsub.f32 %v2866, %v4499
    %v4501 = vand.u32 %v4500, 4294901760
    %4502 = vmatpush1.msra.mxu0 %v4501
    %4503 = vmatprep.subr.mxu0 0.0
    %v4504 = vand.u32 %v2867, 4294901760
    %v4505 = vsub.f32 %v2867, %v4504
    %v4506 = vand.u32 %v4505, 4294901760
    %4507 = vmatpush1.msra.mxu0 %v4506
    %4508 = vmatprep.subr.mxu0 0.0
    %v4509 = vand.u32 %v2868, 4294901760
    %v4510 = vsub.f32 %v2868, %v4509
    %v4511 = vand.u32 %v4510, 4294901760
    %4512 = vmatpush1.msra.mxu0 %v4511
    %4513 = vmatprep.subr.mxu0 0.0
    %v4514 = vand.u32 %v2869, 4294901760
    %v4515 = vsub.f32 %v2869, %v4514
    %v4516 = vand.u32 %v4515, 4294901760
    %4517 = vmatpush1.msra.mxu0 %v4516
    %4518 = vmatprep.subr.mxu0 0.0
    %v4519 = vand.u32 %v2870, 4294901760
    %v4520 = vsub.f32 %v2870, %v4519
    %v4521 = vand.u32 %v4520, 4294901760
    %4522 = vmatpush1.msra.mxu0 %v4521
    %4523 = vmatprep.subr.mxu0 0.0
    %v4524 = vand.u32 %v2871, 4294901760
    %v4525 = vsub.f32 %v2871, %v4524
    %v4526 = vand.u32 %v4525, 4294901760
    %4527 = vmatpush1.msra.mxu0 %v4526
    %4528 = vmatprep.subr.mxu0 0.0
    %v4529 = vand.u32 %v2872, 4294901760
    %v4530 = vsub.f32 %v2872, %v4529
    %v4531 = vand.u32 %v4530, 4294901760
    %4532 = vmatpush1.msra.mxu0 %v4531
    %4533 = vmatprep.subr.mxu0 0.0
    %v4534 = vand.u32 %v2873, 4294901760
    %v4535 = vsub.f32 %v2873, %v4534
    %v4536 = vand.u32 %v4535, 4294901760
    %4537 = vmatpush1.msra.mxu0 %v4536
    %4538 = vmatprep.subr.mxu0 0.0
    %v4539 = vand.u32 %v2874, 4294901760
    %v4540 = vsub.f32 %v2874, %v4539
    %v4541 = vand.u32 %v4540, 4294901760
    %4542 = vmatpush1.msra.mxu0 %v4541
    %4543 = vmatprep.subr.mxu0 0.0
    %v4544 = vand.u32 %v2875, 4294901760
    %v4545 = vsub.f32 %v2875, %v4544
    %v4546 = vand.u32 %v4545, 4294901760
    %4547 = vmatpush1.msra.mxu0 %v4546
    %4548 = vmatprep.subr.mxu0 0.0
    %v4549 = vand.u32 %v2876, 4294901760
    %v4550 = vsub.f32 %v2876, %v4549
    %v4551 = vand.u32 %v4550, 4294901760
    %4552 = vmatpush1.msra.mxu0 %v4551
    %v4553 = vand.u32 %v2808, 4294901760
    %4554 = vmatprep.mubr.f32.mxu0 %v4553
    %v4555 = vand.u32 %v2807, 4294901760
    %4556 = vmatmul.mubr.f32.gmra.mrb[0].mxu0 %v4555
    %v4557 = vpop.f32.mrb[0].mxu0
    %v4558 = vadd.f32 %v4390, %v4557
    %v4559 = vpop.f32.mrb[0].mxu0
    %4560 = vdwg.mxu0
    %4561 = vmatprep.subr.mxu0 0.0
    %v4562 = vand.u32 %v2845, 4294901760
    %4563 = vmatpush1.msra.mxu0 %v4562
    %4564 = vmatprep.subr.mxu0 0.0
    %v4565 = vand.u32 %v2846, 4294901760
    %4566 = vmatpush1.msra.mxu0 %v4565
    %4567 = vmatprep.subr.mxu0 0.0
    %v4568 = vand.u32 %v2847, 4294901760
    %4569 = vmatpush1.msra.mxu0 %v4568
    %4570 = vmatprep.subr.mxu0 0.0
    %v4571 = vand.u32 %v2848, 4294901760
    %4572 = vmatpush1.msra.mxu0 %v4571
    %4573 = vmatprep.subr.mxu0 0.0
    %v4574 = vand.u32 %v2849, 4294901760
    %4575 = vmatpush1.msra.mxu0 %v4574
    %4576 = vmatprep.subr.mxu0 0.0
    %v4577 = vand.u32 %v2850, 4294901760
    %4578 = vmatpush1.msra.mxu0 %v4577
    %4579 = vmatprep.subr.mxu0 0.0
    %v4580 = vand.u32 %v2851, 4294901760
    %4581 = vmatpush1.msra.mxu0 %v4580
    %4582 = vmatprep.subr.mxu0 0.0
    %v4583 = vand.u32 %v2852, 4294901760
    %4584 = vmatpush1.msra.mxu0 %v4583
    %4585 = vmatprep.subr.mxu0 0.0
    %v4586 = vand.u32 %v2853, 4294901760
    %4587 = vmatpush1.msra.mxu0 %v4586
    %4588 = vmatprep.subr.mxu0 0.0
    %v4589 = vand.u32 %v2854, 4294901760
    %4590 = vmatpush1.msra.mxu0 %v4589
    %4591 = vmatprep.subr.mxu0 0.0
    %v4592 = vand.u32 %v2855, 4294901760
    %4593 = vmatpush1.msra.mxu0 %v4592
    %4594 = vmatprep.subr.mxu0 0.0
    %v4595 = vand.u32 %v2856, 4294901760
    %4596 = vmatpush1.msra.mxu0 %v4595
    %4597 = vmatprep.subr.mxu0 0.0
    %v4598 = vand.u32 %v2857, 4294901760
    %4599 = vmatpush1.msra.mxu0 %v4598
    %4600 = vmatprep.subr.mxu0 0.0
    %v4601 = vand.u32 %v2858, 4294901760
    %4602 = vmatpush1.msra.mxu0 %v4601
    %4603 = vmatprep.subr.mxu0 0.0
    %v4604 = vand.u32 %v2859, 4294901760
    %4605 = vmatpush1.msra.mxu0 %v4604
    %4606 = vmatprep.subr.mxu0 0.0
    %v4607 = vand.u32 %v2860, 4294901760
    %4608 = vmatpush1.msra.mxu0 %v4607
    %4609 = vmatprep.subr.mxu0 0.0
    %v4610 = vand.u32 %v2861, 4294901760
    %4611 = vmatpush1.msra.mxu0 %v4610
    %4612 = vmatprep.subr.mxu0 0.0
    %v4613 = vand.u32 %v2862, 4294901760
    %4614 = vmatpush1.msra.mxu0 %v4613
    %4615 = vmatprep.subr.mxu0 0.0
    %v4616 = vand.u32 %v2863, 4294901760
    %4617 = vmatpush1.msra.mxu0 %v4616
    %4618 = vmatprep.subr.mxu0 0.0
    %v4619 = vand.u32 %v2864, 4294901760
    %4620 = vmatpush1.msra.mxu0 %v4619
    %4621 = vmatprep.subr.mxu0 0.0
    %v4622 = vand.u32 %v2865, 4294901760
    %4623 = vmatpush1.msra.mxu0 %v4622
    %4624 = vmatprep.subr.mxu0 0.0
    %v4625 = vand.u32 %v2866, 4294901760
    %4626 = vmatpush1.msra.mxu0 %v4625
    %4627 = vmatprep.subr.mxu0 0.0
    %v4628 = vand.u32 %v2867, 4294901760
    %4629 = vmatpush1.msra.mxu0 %v4628
    %4630 = vmatprep.subr.mxu0 0.0
    %v4631 = vand.u32 %v2868, 4294901760
    %4632 = vmatpush1.msra.mxu0 %v4631
    %4633 = vmatprep.subr.mxu0 0.0
    %v4634 = vand.u32 %v2869, 4294901760
    %4635 = vmatpush1.msra.mxu0 %v4634
    %4636 = vmatprep.subr.mxu0 0.0
    %v4637 = vand.u32 %v2870, 4294901760
    %4638 = vmatpush1.msra.mxu0 %v4637
    %4639 = vmatprep.subr.mxu0 0.0
    %v4640 = vand.u32 %v2871, 4294901760
    %4641 = vmatpush1.msra.mxu0 %v4640
    %4642 = vmatprep.subr.mxu0 0.0
    %v4643 = vand.u32 %v2872, 4294901760
    %4644 = vmatpush1.msra.mxu0 %v4643
    %4645 = vmatprep.subr.mxu0 0.0
    %v4646 = vand.u32 %v2873, 4294901760
    %4647 = vmatpush1.msra.mxu0 %v4646
    %4648 = vmatprep.subr.mxu0 0.0
    %v4649 = vand.u32 %v2874, 4294901760
    %4650 = vmatpush1.msra.mxu0 %v4649
    %4651 = vmatprep.subr.mxu0 0.0
    %v4652 = vand.u32 %v2875, 4294901760
    %4653 = vmatpush1.msra.mxu0 %v4652
    %4654 = vmatprep.subr.mxu0 0.0
    %v4655 = vand.u32 %v2876, 4294901760
    %4656 = vmatpush1.msra.mxu0 %v4655
    %v4657 = vand.u32 %v2808, 4294901760
    %4658 = vmatprep.mubr.f32.mxu0 %v4657
    %v4659 = vand.u32 %v2807, 4294901760
    %4660 = vmatmul.mubr.f32.gmra.mrb[0].mxu0 %v4659
    %v4661 = vpop.f32.mrb[0].mxu0
    %v4662 = vadd.f32 %v4558, %v4661
    %v4663 = vpop.f32.mrb[0].mxu0
    %4664 = vdwg.mxu0
    %4665 = vmatprep.subr.mxu0 0.0
    %v4666 = vand.u32 %v2877, 4294901760
    %4667 = vmatpush1.msra.mxu0 %v4666
    %4668 = vmatprep.subr.mxu0 0.0
    %v4669 = vand.u32 %v2878, 4294901760
    %4670 = vmatpush1.msra.mxu0 %v4669
    %4671 = vmatprep.subr.mxu0 0.0
    %v4672 = vand.u32 %v2879, 4294901760
    %4673 = vmatpush1.msra.mxu0 %v4672
    %4674 = vmatprep.subr.mxu0 0.0
    %v4675 = vand.u32 %v2880, 4294901760
    %4676 = vmatpush1.msra.mxu0 %v4675
    %4677 = vmatprep.subr.mxu0 0.0
    %v4678 = vand.u32 %v2881, 4294901760
    %4679 = vmatpush1.msra.mxu0 %v4678
    %4680 = vmatprep.subr.mxu0 0.0
    %v4681 = vand.u32 %v2882, 4294901760
    %4682 = vmatpush1.msra.mxu0 %v4681
    %4683 = vmatprep.subr.mxu0 0.0
    %v4684 = vand.u32 %v2883, 4294901760
    %4685 = vmatpush1.msra.mxu0 %v4684
    %4686 = vmatprep.subr.mxu0 0.0
    %v4687 = vand.u32 %v2884, 4294901760
    %4688 = vmatpush1.msra.mxu0 %v4687
    %4689 = vmatprep.subr.mxu0 0.0
    %v4690 = vand.u32 %v2885, 4294901760
    %4691 = vmatpush1.msra.mxu0 %v4690
    %4692 = vmatprep.subr.mxu0 0.0
    %v4693 = vand.u32 %v2886, 4294901760
    %4694 = vmatpush1.msra.mxu0 %v4693
    %4695 = vmatprep.subr.mxu0 0.0
    %v4696 = vand.u32 %v2887, 4294901760
    %4697 = vmatpush1.msra.mxu0 %v4696
    %4698 = vmatprep.subr.mxu0 0.0
    %v4699 = vand.u32 %v2888, 4294901760
    %4700 = vmatpush1.msra.mxu0 %v4699
    %4701 = vmatprep.subr.mxu0 0.0
    %v4702 = vand.u32 %v2889, 4294901760
    %4703 = vmatpush1.msra.mxu0 %v4702
    %4704 = vmatprep.subr.mxu0 0.0
    %v4705 = vand.u32 %v2890, 4294901760
    %4706 = vmatpush1.msra.mxu0 %v4705
    %4707 = vmatprep.subr.mxu0 0.0
    %v4708 = vand.u32 %v2891, 4294901760
    %4709 = vmatpush1.msra.mxu0 %v4708
    %4710 = vmatprep.subr.mxu0 0.0
    %v4711 = vand.u32 %v2892, 4294901760
    %4712 = vmatpush1.msra.mxu0 %v4711
    %4713 = vmatprep.subr.mxu0 0.0
    %v4714 = vand.u32 %v2893, 4294901760
    %4715 = vmatpush1.msra.mxu0 %v4714
    %4716 = vmatprep.subr.mxu0 0.0
    %v4717 = vand.u32 %v2894, 4294901760
    %4718 = vmatpush1.msra.mxu0 %v4717
    %4719 = vmatprep.subr.mxu0 0.0
    %v4720 = vand.u32 %v2895, 4294901760
    %4721 = vmatpush1.msra.mxu0 %v4720
    %4722 = vmatprep.subr.mxu0 0.0
    %v4723 = vand.u32 %v2896, 4294901760
    %4724 = vmatpush1.msra.mxu0 %v4723
    %4725 = vmatprep.subr.mxu0 0.0
    %v4726 = vand.u32 %v2897, 4294901760
    %4727 = vmatpush1.msra.mxu0 %v4726
    %4728 = vmatprep.subr.mxu0 0.0
    %v4729 = vand.u32 %v2898, 4294901760
    %4730 = vmatpush1.msra.mxu0 %v4729
    %4731 = vmatprep.subr.mxu0 0.0
    %v4732 = vand.u32 %v2899, 4294901760
    %4733 = vmatpush1.msra.mxu0 %v4732
    %4734 = vmatprep.subr.mxu0 0.0
    %v4735 = vand.u32 %v2900, 4294901760
    %4736 = vmatpush1.msra.mxu0 %v4735
    %4737 = vmatprep.subr.mxu0 0.0
    %v4738 = vand.u32 %v2901, 4294901760
    %4739 = vmatpush1.msra.mxu0 %v4738
    %4740 = vmatprep.subr.mxu0 0.0
    %v4741 = vand.u32 %v2902, 4294901760
    %4742 = vmatpush1.msra.mxu0 %v4741
    %4743 = vmatprep.subr.mxu0 0.0
    %v4744 = vand.u32 %v2903, 4294901760
    %4745 = vmatpush1.msra.mxu0 %v4744
    %4746 = vmatprep.subr.mxu0 0.0
    %v4747 = vand.u32 %v2904, 4294901760
    %4748 = vmatpush1.msra.mxu0 %v4747
    %4749 = vmatprep.subr.mxu0 0.0
    %v4750 = vand.u32 %v2905, 4294901760
    %4751 = vmatpush1.msra.mxu0 %v4750
    %4752 = vmatprep.subr.mxu0 0.0
    %v4753 = vand.u32 %v2906, 4294901760
    %4754 = vmatpush1.msra.mxu0 %v4753
    %4755 = vmatprep.subr.mxu0 0.0
    %v4756 = vand.u32 %v2907, 4294901760
    %4757 = vmatpush1.msra.mxu0 %v4756
    %4758 = vmatprep.subr.mxu0 0.0
    %v4759 = vand.u32 %v2908, 4294901760
    %4760 = vmatpush1.msra.mxu0 %v4759
    %v4761 = vand.u32 %v2810, 4294901760
    %v4762 = vsub.f32 %v2810, %v4761
    %v4763 = vand.u32 %v4762, 4294901760
    %v4764 = vsub.f32 %v4762, %v4763
    %v4765 = vand.u32 %v4764, 4294901760
    %4766 = vmatprep.mubr.f32.mxu0 %v4765
    %v4767 = vand.u32 %v2809, 4294901760
    %v4768 = vsub.f32 %v2809, %v4767
    %v4769 = vand.u32 %v4768, 4294901760
    %v4770 = vsub.f32 %v4768, %v4769
    %v4771 = vand.u32 %v4770, 4294901760
    %4772 = vmatmul.mubr.f32.gmra.mrb[0].mxu0 %v4771
    %v4773 = vpop.f32.mrb[0].mxu0
    %v4774 = vadd.f32 %v4662, %v4773
    %v4775 = vpop.f32.mrb[0].mxu0
    %4776 = vdwg.mxu0
    %4777 = vmatprep.subr.mxu0 0.0
    %v4778 = vand.u32 %v2877, 4294901760
    %v4779 = vsub.f32 %v2877, %v4778
    %v4780 = vand.u32 %v4779, 4294901760
    %v4781 = vsub.f32 %v4779, %v4780
    %v4782 = vand.u32 %v4781, 4294901760
    %4783 = vmatpush1.msra.mxu0 %v4782
    %4784 = vmatprep.subr.mxu0 0.0
    %v4785 = vand.u32 %v2878, 4294901760
    %v4786 = vsub.f32 %v2878, %v4785
    %v4787 = vand.u32 %v4786, 4294901760
    %v4788 = vsub.f32 %v4786, %v4787
    %v4789 = vand.u32 %v4788, 4294901760
    %4790 = vmatpush1.msra.mxu0 %v4789
    %4791 = vmatprep.subr.mxu0 0.0
    %v4792 = vand.u32 %v2879, 4294901760
    %v4793 = vsub.f32 %v2879, %v4792
    %v4794 = vand.u32 %v4793, 4294901760
    %v4795 = vsub.f32 %v4793, %v4794
    %v4796 = vand.u32 %v4795, 4294901760
    %4797 = vmatpush1.msra.mxu0 %v4796
    %4798 = vmatprep.subr.mxu0 0.0
    %v4799 = vand.u32 %v2880, 4294901760
    %v4800 = vsub.f32 %v2880, %v4799
    %v4801 = vand.u32 %v4800, 4294901760
    %v4802 = vsub.f32 %v4800, %v4801
    %v4803 = vand.u32 %v4802, 4294901760
    %4804 = vmatpush1.msra.mxu0 %v4803
    %4805 = vmatprep.subr.mxu0 0.0
    %v4806 = vand.u32 %v2881, 4294901760
    %v4807 = vsub.f32 %v2881, %v4806
    %v4808 = vand.u32 %v4807, 4294901760
    %v4809 = vsub.f32 %v4807, %v4808
    %v4810 = vand.u32 %v4809, 4294901760
    %4811 = vmatpush1.msra.mxu0 %v4810
    %4812 = vmatprep.subr.mxu0 0.0
    %v4813 = vand.u32 %v2882, 4294901760
    %v4814 = vsub.f32 %v2882, %v4813
    %v4815 = vand.u32 %v4814, 4294901760
    %v4816 = vsub.f32 %v4814, %v4815
    %v4817 = vand.u32 %v4816, 4294901760
    %4818 = vmatpush1.msra.mxu0 %v4817
    %4819 = vmatprep.subr.mxu0 0.0
    %v4820 = vand.u32 %v2883, 4294901760
    %v4821 = vsub.f32 %v2883, %v4820
    %v4822 = vand.u32 %v4821, 4294901760
    %v4823 = vsub.f32 %v4821, %v4822
    %v4824 = vand.u32 %v4823, 4294901760
    %4825 = vmatpush1.msra.mxu0 %v4824
    %4826 = vmatprep.subr.mxu0 0.0
    %v4827 = vand.u32 %v2884, 4294901760
    %v4828 = vsub.f32 %v2884, %v4827
    %v4829 = vand.u32 %v4828, 4294901760
    %v4830 = vsub.f32 %v4828, %v4829
    %v4831 = vand.u32 %v4830, 4294901760
    %4832 = vmatpush1.msra.mxu0 %v4831
    %4833 = vmatprep.subr.mxu0 0.0
    %v4834 = vand.u32 %v2885, 4294901760
    %v4835 = vsub.f32 %v2885, %v4834
    %v4836 = vand.u32 %v4835, 4294901760
    %v4837 = vsub.f32 %v4835, %v4836
    %v4838 = vand.u32 %v4837, 4294901760
    %4839 = vmatpush1.msra.mxu0 %v4838
    %4840 = vmatprep.subr.mxu0 0.0
    %v4841 = vand.u32 %v2886, 4294901760
    %v4842 = vsub.f32 %v2886, %v4841
    %v4843 = vand.u32 %v4842, 4294901760
    %v4844 = vsub.f32 %v4842, %v4843
    %v4845 = vand.u32 %v4844, 4294901760
    %4846 = vmatpush1.msra.mxu0 %v4845
    %4847 = vmatprep.subr.mxu0 0.0
    %v4848 = vand.u32 %v2887, 4294901760
    %v4849 = vsub.f32 %v2887, %v4848
    %v4850 = vand.u32 %v4849, 4294901760
    %v4851 = vsub.f32 %v4849, %v4850
    %v4852 = vand.u32 %v4851, 4294901760
    %4853 = vmatpush1.msra.mxu0 %v4852
    %4854 = vmatprep.subr.mxu0 0.0
    %v4855 = vand.u32 %v2888, 4294901760
    %v4856 = vsub.f32 %v2888, %v4855
    %v4857 = vand.u32 %v4856, 4294901760
    %v4858 = vsub.f32 %v4856, %v4857
    %v4859 = vand.u32 %v4858, 4294901760
    %4860 = vmatpush1.msra.mxu0 %v4859
    %4861 = vmatprep.subr.mxu0 0.0
    %v4862 = vand.u32 %v2889, 4294901760
    %v4863 = vsub.f32 %v2889, %v4862
    %v4864 = vand.u32 %v4863, 4294901760
    %v4865 = vsub.f32 %v4863, %v4864
    %v4866 = vand.u32 %v4865, 4294901760
    %4867 = vmatpush1.msra.mxu0 %v4866
    %4868 = vmatprep.subr.mxu0 0.0
    %v4869 = vand.u32 %v2890, 4294901760
    %v4870 = vsub.f32 %v2890, %v4869
    %v4871 = vand.u32 %v4870, 4294901760
    %v4872 = vsub.f32 %v4870, %v4871
    %v4873 = vand.u32 %v4872, 4294901760
    %4874 = vmatpush1.msra.mxu0 %v4873
    %4875 = vmatprep.subr.mxu0 0.0
    %v4876 = vand.u32 %v2891, 4294901760
    %v4877 = vsub.f32 %v2891, %v4876
    %v4878 = vand.u32 %v4877, 4294901760
    %v4879 = vsub.f32 %v4877, %v4878
    %v4880 = vand.u32 %v4879, 4294901760
    %4881 = vmatpush1.msra.mxu0 %v4880
    %4882 = vmatprep.subr.mxu0 0.0
    %v4883 = vand.u32 %v2892, 4294901760
    %v4884 = vsub.f32 %v2892, %v4883
    %v4885 = vand.u32 %v4884, 4294901760
    %v4886 = vsub.f32 %v4884, %v4885
    %v4887 = vand.u32 %v4886, 4294901760
    %4888 = vmatpush1.msra.mxu0 %v4887
    %4889 = vmatprep.subr.mxu0 0.0
    %v4890 = vand.u32 %v2893, 4294901760
    %v4891 = vsub.f32 %v2893, %v4890
    %v4892 = vand.u32 %v4891, 4294901760
    %v4893 = vsub.f32 %v4891, %v4892
    %v4894 = vand.u32 %v4893, 4294901760
    %4895 = vmatpush1.msra.mxu0 %v4894
    %4896 = vmatprep.subr.mxu0 0.0
    %v4897 = vand.u32 %v2894, 4294901760
    %v4898 = vsub.f32 %v2894, %v4897
    %v4899 = vand.u32 %v4898, 4294901760
    %v4900 = vsub.f32 %v4898, %v4899
    %v4901 = vand.u32 %v4900, 4294901760
    %4902 = vmatpush1.msra.mxu0 %v4901
    %4903 = vmatprep.subr.mxu0 0.0
    %v4904 = vand.u32 %v2895, 4294901760
    %v4905 = vsub.f32 %v2895, %v4904
    %v4906 = vand.u32 %v4905, 4294901760
    %v4907 = vsub.f32 %v4905, %v4906
    %v4908 = vand.u32 %v4907, 4294901760
    %4909 = vmatpush1.msra.mxu0 %v4908
    %4910 = vmatprep.subr.mxu0 0.0
    %v4911 = vand.u32 %v2896, 4294901760
    %v4912 = vsub.f32 %v2896, %v4911
    %v4913 = vand.u32 %v4912, 4294901760
    %v4914 = vsub.f32 %v4912, %v4913
    %v4915 = vand.u32 %v4914, 4294901760
    %4916 = vmatpush1.msra.mxu0 %v4915
    %4917 = vmatprep.subr.mxu0 0.0
    %v4918 = vand.u32 %v2897, 4294901760
    %v4919 = vsub.f32 %v2897, %v4918
    %v4920 = vand.u32 %v4919, 4294901760
    %v4921 = vsub.f32 %v4919, %v4920
    %v4922 = vand.u32 %v4921, 4294901760
    %4923 = vmatpush1.msra.mxu0 %v4922
    %4924 = vmatprep.subr.mxu0 0.0
    %v4925 = vand.u32 %v2898, 4294901760
    %v4926 = vsub.f32 %v2898, %v4925
    %v4927 = vand.u32 %v4926, 4294901760
    %v4928 = vsub.f32 %v4926, %v4927
    %v4929 = vand.u32 %v4928, 4294901760
    %4930 = vmatpush1.msra.mxu0 %v4929
    %4931 = vmatprep.subr.mxu0 0.0
    %v4932 = vand.u32 %v2899, 4294901760
    %v4933 = vsub.f32 %v2899, %v4932
    %v4934 = vand.u32 %v4933, 4294901760
    %v4935 = vsub.f32 %v4933, %v4934
    %v4936 = vand.u32 %v4935, 4294901760
    %4937 = vmatpush1.msra.mxu0 %v4936
    %4938 = vmatprep.subr.mxu0 0.0
    %v4939 = vand.u32 %v2900, 4294901760
    %v4940 = vsub.f32 %v2900, %v4939
    %v4941 = vand.u32 %v4940, 4294901760
    %v4942 = vsub.f32 %v4940, %v4941
    %v4943 = vand.u32 %v4942, 4294901760
    %4944 = vmatpush1.msra.mxu0 %v4943
    %4945 = vmatprep.subr.mxu0 0.0
    %v4946 = vand.u32 %v2901, 4294901760
    %v4947 = vsub.f32 %v2901, %v4946
    %v4948 = vand.u32 %v4947, 4294901760
    %v4949 = vsub.f32 %v4947, %v4948
    %v4950 = vand.u32 %v4949, 4294901760
    %4951 = vmatpush1.msra.mxu0 %v4950
    %4952 = vmatprep.subr.mxu0 0.0
    %v4953 = vand.u32 %v2902, 4294901760
    %v4954 = vsub.f32 %v2902, %v4953
    %v4955 = vand.u32 %v4954, 4294901760
    %v4956 = vsub.f32 %v4954, %v4955
    %v4957 = vand.u32 %v4956, 4294901760
    %4958 = vmatpush1.msra.mxu0 %v4957
    %4959 = vmatprep.subr.mxu0 0.0
    %v4960 = vand.u32 %v2903, 4294901760
    %v4961 = vsub.f32 %v2903, %v4960
    %v4962 = vand.u32 %v4961, 4294901760
    %v4963 = vsub.f32 %v4961, %v4962
    %v4964 = vand.u32 %v4963, 4294901760
    %4965 = vmatpush1.msra.mxu0 %v4964
    %4966 = vmatprep.subr.mxu0 0.0
    %v4967 = vand.u32 %v2904, 4294901760
    %v4968 = vsub.f32 %v2904, %v4967
    %v4969 = vand.u32 %v4968, 4294901760
    %v4970 = vsub.f32 %v4968, %v4969
    %v4971 = vand.u32 %v4970, 4294901760
    %4972 = vmatpush1.msra.mxu0 %v4971
    %4973 = vmatprep.subr.mxu0 0.0
    %v4974 = vand.u32 %v2905, 4294901760
    %v4975 = vsub.f32 %v2905, %v4974
    %v4976 = vand.u32 %v4975, 4294901760
    %v4977 = vsub.f32 %v4975, %v4976
    %v4978 = vand.u32 %v4977, 4294901760
    %4979 = vmatpush1.msra.mxu0 %v4978
    %4980 = vmatprep.subr.mxu0 0.0
    %v4981 = vand.u32 %v2906, 4294901760
    %v4982 = vsub.f32 %v2906, %v4981
    %v4983 = vand.u32 %v4982, 4294901760
    %v4984 = vsub.f32 %v4982, %v4983
    %v4985 = vand.u32 %v4984, 4294901760
    %4986 = vmatpush1.msra.mxu0 %v4985
    %4987 = vmatprep.subr.mxu0 0.0
    %v4988 = vand.u32 %v2907, 4294901760
    %v4989 = vsub.f32 %v2907, %v4988
    %v4990 = vand.u32 %v4989, 4294901760
    %v4991 = vsub.f32 %v4989, %v4990
    %v4992 = vand.u32 %v4991, 4294901760
    %4993 = vmatpush1.msra.mxu0 %v4992
    %4994 = vmatprep.subr.mxu0 0.0
    %v4995 = vand.u32 %v2908, 4294901760
    %v4996 = vsub.f32 %v2908, %v4995
    %v4997 = vand.u32 %v4996, 4294901760
    %v4998 = vsub.f32 %v4996, %v4997
    %v4999 = vand.u32 %v4998, 4294901760
    %5000 = vmatpush1.msra.mxu0 %v4999
    %v5001 = vand.u32 %v2810, 4294901760
    %5002 = vmatprep.mubr.f32.mxu0 %v5001
    %v5003 = vand.u32 %v2809, 4294901760
    %5004 = vmatmul.mubr.f32.gmra.mrb[0].mxu0 %v5003
    %v5005 = vpop.f32.mrb[0].mxu0
    %v5006 = vadd.f32 %v4774, %v5005
    %v5007 = vpop.f32.mrb[0].mxu0
    %5008 = vdwg.mxu0
    %5009 = vmatprep.subr.mxu0 0.0
    %v5010 = vand.u32 %v2877, 4294901760
    %v5011 = vsub.f32 %v2877, %v5010
    %5012 = vmatpush1.msra.mxu0 %v5011
    %5013 = vmatprep.subr.mxu0 0.0
    %v5014 = vand.u32 %v2878, 4294901760
    %v5015 = vsub.f32 %v2878, %v5014
    %5016 = vmatpush1.msra.mxu0 %v5015
    %5017 = vmatprep.subr.mxu0 0.0
    %v5018 = vand.u32 %v2879, 4294901760
    %v5019 = vsub.f32 %v2879, %v5018
    %5020 = vmatpush1.msra.mxu0 %v5019
    %5021 = vmatprep.subr.mxu0 0.0
    %v5022 = vand.u32 %v2880, 4294901760
    %v5023 = vsub.f32 %v2880, %v5022
    %5024 = vmatpush1.msra.mxu0 %v5023
    %5025 = vmatprep.subr.mxu0 0.0
    %v5026 = vand.u32 %v2881, 4294901760
    %v5027 = vsub.f32 %v2881, %v5026
    %5028 = vmatpush1.msra.mxu0 %v5027
    %5029 = vmatprep.subr.mxu0 0.0
    %v5030 = vand.u32 %v2882, 4294901760
    %v5031 = vsub.f32 %v2882, %v5030
    %5032 = vmatpush1.msra.mxu0 %v5031
    %5033 = vmatprep.subr.mxu0 0.0
    %v5034 = vand.u32 %v2883, 4294901760
    %v5035 = vsub.f32 %v2883, %v5034
    %5036 = vmatpush1.msra.mxu0 %v5035
    %5037 = vmatprep.subr.mxu0 0.0
    %v5038 = vand.u32 %v2884, 4294901760
    %v5039 = vsub.f32 %v2884, %v5038
    %5040 = vmatpush1.msra.mxu0 %v5039
    %5041 = vmatprep.subr.mxu0 0.0
    %v5042 = vand.u32 %v2885, 4294901760
    %v5043 = vsub.f32 %v2885, %v5042
    %5044 = vmatpush1.msra.mxu0 %v5043
    %5045 = vmatprep.subr.mxu0 0.0
    %v5046 = vand.u32 %v2886, 4294901760
    %v5047 = vsub.f32 %v2886, %v5046
    %5048 = vmatpush1.msra.mxu0 %v5047
    %5049 = vmatprep.subr.mxu0 0.0
    %v5050 = vand.u32 %v2887, 4294901760
    %v5051 = vsub.f32 %v2887, %v5050
    %5052 = vmatpush1.msra.mxu0 %v5051
    %5053 = vmatprep.subr.mxu0 0.0
    %v5054 = vand.u32 %v2888, 4294901760
    %v5055 = vsub.f32 %v2888, %v5054
    %5056 = vmatpush1.msra.mxu0 %v5055
    %5057 = vmatprep.subr.mxu0 0.0
    %v5058 = vand.u32 %v2889, 4294901760
    %v5059 = vsub.f32 %v2889, %v5058
    %5060 = vmatpush1.msra.mxu0 %v5059
    %5061 = vmatprep.subr.mxu0 0.0
    %v5062 = vand.u32 %v2890, 4294901760
    %v5063 = vsub.f32 %v2890, %v5062
    %5064 = vmatpush1.msra.mxu0 %v5063
    %5065 = vmatprep.subr.mxu0 0.0
    %v5066 = vand.u32 %v2891, 4294901760
    %v5067 = vsub.f32 %v2891, %v5066
    %5068 = vmatpush1.msra.mxu0 %v5067
    %5069 = vmatprep.subr.mxu0 0.0
    %v5070 = vand.u32 %v2892, 4294901760
    %v5071 = vsub.f32 %v2892, %v5070
    %5072 = vmatpush1.msra.mxu0 %v5071
    %5073 = vmatprep.subr.mxu0 0.0
    %v5074 = vand.u32 %v2893, 4294901760
    %v5075 = vsub.f32 %v2893, %v5074
    %5076 = vmatpush1.msra.mxu0 %v5075
    %5077 = vmatprep.subr.mxu0 0.0
    %v5078 = vand.u32 %v2894, 4294901760
    %v5079 = vsub.f32 %v2894, %v5078
    %5080 = vmatpush1.msra.mxu0 %v5079
    %5081 = vmatprep.subr.mxu0 0.0
    %v5082 = vand.u32 %v2895, 4294901760
    %v5083 = vsub.f32 %v2895, %v5082
    %5084 = vmatpush1.msra.mxu0 %v5083
    %5085 = vmatprep.subr.mxu0 0.0
    %v5086 = vand.u32 %v2896, 4294901760
    %v5087 = vsub.f32 %v2896, %v5086
    %5088 = vmatpush1.msra.mxu0 %v5087
    %5089 = vmatprep.subr.mxu0 0.0
    %v5090 = vand.u32 %v2897, 4294901760
    %v5091 = vsub.f32 %v2897, %v5090
    %5092 = vmatpush1.msra.mxu0 %v5091
    %5093 = vmatprep.subr.mxu0 0.0
    %v5094 = vand.u32 %v2898, 4294901760
    %v5095 = vsub.f32 %v2898, %v5094
    %5096 = vmatpush1.msra.mxu0 %v5095
    %5097 = vmatprep.subr.mxu0 0.0
    %v5098 = vand.u32 %v2899, 4294901760
    %v5099 = vsub.f32 %v2899, %v5098
    %5100 = vmatpush1.msra.mxu0 %v5099
    %5101 = vmatprep.subr.mxu0 0.0
    %v5102 = vand.u32 %v2900, 4294901760
    %v5103 = vsub.f32 %v2900, %v5102
    %5104 = vmatpush1.msra.mxu0 %v5103
    %5105 = vmatprep.subr.mxu0 0.0
    %v5106 = vand.u32 %v2901, 4294901760
    %v5107 = vsub.f32 %v2901, %v5106
    %5108 = vmatpush1.msra.mxu0 %v5107
    %5109 = vmatprep.subr.mxu0 0.0
    %v5110 = vand.u32 %v2902, 4294901760
    %v5111 = vsub.f32 %v2902, %v5110
    %5112 = vmatpush1.msra.mxu0 %v5111
    %5113 = vmatprep.subr.mxu0 0.0
    %v5114 = vand.u32 %v2903, 4294901760
    %v5115 = vsub.f32 %v2903, %v5114
    %5116 = vmatpush1.msra.mxu0 %v5115
    %5117 = vmatprep.subr.mxu0 0.0
    %v5118 = vand.u32 %v2904, 4294901760
    %v5119 = vsub.f32 %v2904, %v5118
    %5120 = vmatpush1.msra.mxu0 %v5119
    %5121 = vmatprep.subr.mxu0 0.0
    %v5122 = vand.u32 %v2905, 4294901760
    %v5123 = vsub.f32 %v2905, %v5122
    %5124 = vmatpush1.msra.mxu0 %v5123
    %5125 = vmatprep.subr.mxu0 0.0
    %v5126 = vand.u32 %v2906, 4294901760
    %v5127 = vsub.f32 %v2906, %v5126
    %5128 = vmatpush1.msra.mxu0 %v5127
    %5129 = vmatprep.subr.mxu0 0.0
    %v5130 = vand.u32 %v2907, 4294901760
    %v5131 = vsub.f32 %v2907, %v5130
    %5132 = vmatpush1.msra.mxu0 %v5131
    %5133 = vmatprep.subr.mxu0 0.0
    %v5134 = vand.u32 %v2908, 4294901760
    %v5135 = vsub.f32 %v2908, %v5134
    %5136 = vmatpush1.msra.mxu0 %v5135
    %v5137 = vand.u32 %v2810, 4294901760
    %v5138 = vsub.f32 %v2810, %v5137
    %5139 = vmatprep.mubr.f32.mxu0 %v5138
    %v5140 = vand.u32 %v2809, 4294901760
    %v5141 = vsub.f32 %v2809, %v5140
    %5142 = vmatmul.mubr.f32.gmra.mrb[0].mxu0 %v5141
    %v5143 = vpop.f32.mrb[0].mxu0
    %v5144 = vadd.f32 %v5006, %v5143
    %v5145 = vpop.f32.mrb[0].mxu0
    %5146 = vdwg.mxu0
    %5147 = vmatprep.subr.mxu0 0.0
    %v5148 = vand.u32 %v2877, 4294901760
    %5149 = vmatpush1.msra.mxu0 %v5148
    %5150 = vmatprep.subr.mxu0 0.0
    %v5151 = vand.u32 %v2878, 4294901760
    %5152 = vmatpush1.msra.mxu0 %v5151
    %5153 = vmatprep.subr.mxu0 0.0
    %v5154 = vand.u32 %v2879, 4294901760
    %5155 = vmatpush1.msra.mxu0 %v5154
    %5156 = vmatprep.subr.mxu0 0.0
    %v5157 = vand.u32 %v2880, 4294901760
    %5158 = vmatpush1.msra.mxu0 %v5157
    %5159 = vmatprep.subr.mxu0 0.0
    %v5160 = vand.u32 %v2881, 4294901760
    %5161 = vmatpush1.msra.mxu0 %v5160
    %5162 = vmatprep.subr.mxu0 0.0
    %v5163 = vand.u32 %v2882, 4294901760
    %5164 = vmatpush1.msra.mxu0 %v5163
    %5165 = vmatprep.subr.mxu0 0.0
    %v5166 = vand.u32 %v2883, 4294901760
    %5167 = vmatpush1.msra.mxu0 %v5166
    %5168 = vmatprep.subr.mxu0 0.0
    %v5169 = vand.u32 %v2884, 4294901760
    %5170 = vmatpush1.msra.mxu0 %v5169
    %5171 = vmatprep.subr.mxu0 0.0
    %v5172 = vand.u32 %v2885, 4294901760
    %5173 = vmatpush1.msra.mxu0 %v5172
    %5174 = vmatprep.subr.mxu0 0.0
    %v5175 = vand.u32 %v2886, 4294901760
    %5176 = vmatpush1.msra.mxu0 %v5175
    %5177 = vmatprep.subr.mxu0 0.0
    %v5178 = vand.u32 %v2887, 4294901760
    %5179 = vmatpush1.msra.mxu0 %v5178
    %5180 = vmatprep.subr.mxu0 0.0
    %v5181 = vand.u32 %v2888, 4294901760
    %5182 = vmatpush1.msra.mxu0 %v5181
    %5183 = vmatprep.subr.mxu0 0.0
    %v5184 = vand.u32 %v2889, 4294901760
    %5185 = vmatpush1.msra.mxu0 %v5184
    %5186 = vmatprep.subr.mxu0 0.0
    %v5187 = vand.u32 %v2890, 4294901760
    %5188 = vmatpush1.msra.mxu0 %v5187
    %5189 = vmatprep.subr.mxu0 0.0
    %v5190 = vand.u32 %v2891, 4294901760
    %5191 = vmatpush1.msra.mxu0 %v5190
    %5192 = vmatprep.subr.mxu0 0.0
    %v5193 = vand.u32 %v2892, 4294901760
    %5194 = vmatpush1.msra.mxu0 %v5193
    %5195 = vmatprep.subr.mxu0 0.0
    %v5196 = vand.u32 %v2893, 4294901760
    %5197 = vmatpush1.msra.mxu0 %v5196
    %5198 = vmatprep.subr.mxu0 0.0
    %v5199 = vand.u32 %v2894, 4294901760
    %5200 = vmatpush1.msra.mxu0 %v5199
    %5201 = vmatprep.subr.mxu0 0.0
    %v5202 = vand.u32 %v2895, 4294901760
    %5203 = vmatpush1.msra.mxu0 %v5202
    %5204 = vmatprep.subr.mxu0 0.0
    %v5205 = vand.u32 %v2896, 4294901760
    %5206 = vmatpush1.msra.mxu0 %v5205
    %5207 = vmatprep.subr.mxu0 0.0
    %v5208 = vand.u32 %v2897, 4294901760
    %5209 = vmatpush1.msra.mxu0 %v5208
    %5210 = vmatprep.subr.mxu0 0.0
    %v5211 = vand.u32 %v2898, 4294901760
    %5212 = vmatpush1.msra.mxu0 %v5211
    %5213 = vmatprep.subr.mxu0 0.0
    %v5214 = vand.u32 %v2899, 4294901760
    %5215 = vmatpush1.msra.mxu0 %v5214
    %5216 = vmatprep.subr.mxu0 0.0
    %v5217 = vand.u32 %v2900, 4294901760
    %5218 = vmatpush1.msra.mxu0 %v5217
    %5219 = vmatprep.subr.mxu0 0.0
    %v5220 = vand.u32 %v2901, 4294901760
    %5221 = vmatpush1.msra.mxu0 %v5220
    %5222 = vmatprep.subr.mxu0 0.0
    %v5223 = vand.u32 %v2902, 4294901760
    %5224 = vmatpush1.msra.mxu0 %v5223
    %5225 = vmatprep.subr.mxu0 0.0
    %v5226 = vand.u32 %v2903, 4294901760
    %5227 = vmatpush1.msra.mxu0 %v5226
    %5228 = vmatprep.subr.mxu0 0.0
    %v5229 = vand.u32 %v2904, 4294901760
    %5230 = vmatpush1.msra.mxu0 %v5229
    %5231 = vmatprep.subr.mxu0 0.0
    %v5232 = vand.u32 %v2905, 4294901760
    %5233 = vmatpush1.msra.mxu0 %v5232
    %5234 = vmatprep.subr.mxu0 0.0
    %v5235 = vand.u32 %v2906, 4294901760
    %5236 = vmatpush1.msra.mxu0 %v5235
    %5237 = vmatprep.subr.mxu0 0.0
    %v5238 = vand.u32 %v2907, 4294901760
    %5239 = vmatpush1.msra.mxu0 %v5238
    %5240 = vmatprep.subr.mxu0 0.0
    %v5241 = vand.u32 %v2908, 4294901760
    %5242 = vmatpush1.msra.mxu0 %v5241
    %v5243 = vand.u32 %v2810, 4294901760
    %v5244 = vsub.f32 %v2810, %v5243
    %v5245 = vand.u32 %v5244, 4294901760
    %5246 = vmatprep.mubr.f32.mxu0 %v5245
    %v5247 = vand.u32 %v2809, 4294901760
    %v5248 = vsub.f32 %v2809, %v5247
    %v5249 = vand.u32 %v5248, 4294901760
    %5250 = vmatmul.mubr.f32.gmra.mrb[0].mxu0 %v5249
    %v5251 = vpop.f32.mrb[0].mxu0
    %v5252 = vadd.f32 %v5144, %v5251
    %v5253 = vpop.f32.mrb[0].mxu0
    %5254 = vdwg.mxu0
    %5255 = vmatprep.subr.mxu0 0.0
    %v5256 = vand.u32 %v2877, 4294901760
    %v5257 = vsub.f32 %v2877, %v5256
    %v5258 = vand.u32 %v5257, 4294901760
    %5259 = vmatpush1.msra.mxu0 %v5258
    %5260 = vmatprep.subr.mxu0 0.0
    %v5261 = vand.u32 %v2878, 4294901760
    %v5262 = vsub.f32 %v2878, %v5261
    %v5263 = vand.u32 %v5262, 4294901760
    %5264 = vmatpush1.msra.mxu0 %v5263
    %5265 = vmatprep.subr.mxu0 0.0
    %v5266 = vand.u32 %v2879, 4294901760
    %v5267 = vsub.f32 %v2879, %v5266
    %v5268 = vand.u32 %v5267, 4294901760
    %5269 = vmatpush1.msra.mxu0 %v5268
    %5270 = vmatprep.subr.mxu0 0.0
    %v5271 = vand.u32 %v2880, 4294901760
    %v5272 = vsub.f32 %v2880, %v5271
    %v5273 = vand.u32 %v5272, 4294901760
    %5274 = vmatpush1.msra.mxu0 %v5273
    %5275 = vmatprep.subr.mxu0 0.0
    %v5276 = vand.u32 %v2881, 4294901760
    %v5277 = vsub.f32 %v2881, %v5276
    %v5278 = vand.u32 %v5277, 4294901760
    %5279 = vmatpush1.msra.mxu0 %v5278
    %5280 = vmatprep.subr.mxu0 0.0
    %v5281 = vand.u32 %v2882, 4294901760
    %v5282 = vsub.f32 %v2882, %v5281
    %v5283 = vand.u32 %v5282, 4294901760
    %5284 = vmatpush1.msra.mxu0 %v5283
    %5285 = vmatprep.subr.mxu0 0.0
    %v5286 = vand.u32 %v2883, 4294901760
    %v5287 = vsub.f32 %v2883, %v5286
    %v5288 = vand.u32 %v5287, 4294901760
    %5289 = vmatpush1.msra.mxu0 %v5288
    %5290 = vmatprep.subr.mxu0 0.0
    %v5291 = vand.u32 %v2884, 4294901760
    %v5292 = vsub.f32 %v2884, %v5291
    %v5293 = vand.u32 %v5292, 4294901760
    %5294 = vmatpush1.msra.mxu0 %v5293
    %5295 = vmatprep.subr.mxu0 0.0
    %v5296 = vand.u32 %v2885, 4294901760
    %v5297 = vsub.f32 %v2885, %v5296
    %v5298 = vand.u32 %v5297, 4294901760
    %5299 = vmatpush1.msra.mxu0 %v5298
    %5300 = vmatprep.subr.mxu0 0.0
    %v5301 = vand.u32 %v2886, 4294901760
    %v5302 = vsub.f32 %v2886, %v5301
    %v5303 = vand.u32 %v5302, 4294901760
    %5304 = vmatpush1.msra.mxu0 %v5303
    %5305 = vmatprep.subr.mxu0 0.0
    %v5306 = vand.u32 %v2887, 4294901760
    %v5307 = vsub.f32 %v2887, %v5306
    %v5308 = vand.u32 %v5307, 4294901760
    %5309 = vmatpush1.msra.mxu0 %v5308
    %5310 = vmatprep.subr.mxu0 0.0
    %v5311 = vand.u32 %v2888, 4294901760
    %v5312 = vsub.f32 %v2888, %v5311
    %v5313 = vand.u32 %v5312, 4294901760
    %5314 = vmatpush1.msra.mxu0 %v5313
    %5315 = vmatprep.subr.mxu0 0.0
    %v5316 = vand.u32 %v2889, 4294901760
    %v5317 = vsub.f32 %v2889, %v5316
    %v5318 = vand.u32 %v5317, 4294901760
    %5319 = vmatpush1.msra.mxu0 %v5318
    %5320 = vmatprep.subr.mxu0 0.0
    %v5321 = vand.u32 %v2890, 4294901760
    %v5322 = vsub.f32 %v2890, %v5321
    %v5323 = vand.u32 %v5322, 4294901760
    %5324 = vmatpush1.msra.mxu0 %v5323
    %5325 = vmatprep.subr.mxu0 0.0
    %v5326 = vand.u32 %v2891, 4294901760
    %v5327 = vsub.f32 %v2891, %v5326
    %v5328 = vand.u32 %v5327, 4294901760
    %5329 = vmatpush1.msra.mxu0 %v5328
    %5330 = vmatprep.subr.mxu0 0.0
    %v5331 = vand.u32 %v2892, 4294901760
    %v5332 = vsub.f32 %v2892, %v5331
    %v5333 = vand.u32 %v5332, 4294901760
    %5334 = vmatpush1.msra.mxu0 %v5333
    %5335 = vmatprep.subr.mxu0 0.0
    %v5336 = vand.u32 %v2893, 4294901760
    %v5337 = vsub.f32 %v2893, %v5336
    %v5338 = vand.u32 %v5337, 4294901760
    %5339 = vmatpush1.msra.mxu0 %v5338
    %5340 = vmatprep.subr.mxu0 0.0
    %v5341 = vand.u32 %v2894, 4294901760
    %v5342 = vsub.f32 %v2894, %v5341
    %v5343 = vand.u32 %v5342, 4294901760
    %5344 = vmatpush1.msra.mxu0 %v5343
    %5345 = vmatprep.subr.mxu0 0.0
    %v5346 = vand.u32 %v2895, 4294901760
    %v5347 = vsub.f32 %v2895, %v5346
    %v5348 = vand.u32 %v5347, 4294901760
    %5349 = vmatpush1.msra.mxu0 %v5348
    %5350 = vmatprep.subr.mxu0 0.0
    %v5351 = vand.u32 %v2896, 4294901760
    %v5352 = vsub.f32 %v2896, %v5351
    %v5353 = vand.u32 %v5352, 4294901760
    %5354 = vmatpush1.msra.mxu0 %v5353
    %5355 = vmatprep.subr.mxu0 0.0
    %v5356 = vand.u32 %v2897, 4294901760
    %v5357 = vsub.f32 %v2897, %v5356
    %v5358 = vand.u32 %v5357, 4294901760
    %5359 = vmatpush1.msra.mxu0 %v5358
    %5360 = vmatprep.subr.mxu0 0.0
    %v5361 = vand.u32 %v2898, 4294901760
    %v5362 = vsub.f32 %v2898, %v5361
    %v5363 = vand.u32 %v5362, 4294901760
    %5364 = vmatpush1.msra.mxu0 %v5363
    %5365 = vmatprep.subr.mxu0 0.0
    %v5366 = vand.u32 %v2899, 4294901760
    %v5367 = vsub.f32 %v2899, %v5366
    %v5368 = vand.u32 %v5367, 4294901760
    %5369 = vmatpush1.msra.mxu0 %v5368
    %5370 = vmatprep.subr.mxu0 0.0
    %v5371 = vand.u32 %v2900, 4294901760
    %v5372 = vsub.f32 %v2900, %v5371
    %v5373 = vand.u32 %v5372, 4294901760
    %5374 = vmatpush1.msra.mxu0 %v5373
    %5375 = vmatprep.subr.mxu0 0.0
    %v5376 = vand.u32 %v2901, 4294901760
    %v5377 = vsub.f32 %v2901, %v5376
    %v5378 = vand.u32 %v5377, 4294901760
    %5379 = vmatpush1.msra.mxu0 %v5378
    %5380 = vmatprep.subr.mxu0 0.0
    %v5381 = vand.u32 %v2902, 4294901760
    %v5382 = vsub.f32 %v2902, %v5381
    %v5383 = vand.u32 %v5382, 4294901760
    %5384 = vmatpush1.msra.mxu0 %v5383
    %5385 = vmatprep.subr.mxu0 0.0
    %v5386 = vand.u32 %v2903, 4294901760
    %v5387 = vsub.f32 %v2903, %v5386
    %v5388 = vand.u32 %v5387, 4294901760
    %5389 = vmatpush1.msra.mxu0 %v5388
    %5390 = vmatprep.subr.mxu0 0.0
    %v5391 = vand.u32 %v2904, 4294901760
    %v5392 = vsub.f32 %v2904, %v5391
    %v5393 = vand.u32 %v5392, 4294901760
    %5394 = vmatpush1.msra.mxu0 %v5393
    %5395 = vmatprep.subr.mxu0 0.0
    %v5396 = vand.u32 %v2905, 4294901760
    %v5397 = vsub.f32 %v2905, %v5396
    %v5398 = vand.u32 %v5397, 4294901760
    %5399 = vmatpush1.msra.mxu0 %v5398
    %5400 = vmatprep.subr.mxu0 0.0
    %v5401 = vand.u32 %v2906, 4294901760
    %v5402 = vsub.f32 %v2906, %v5401
    %v5403 = vand.u32 %v5402, 4294901760
    %5404 = vmatpush1.msra.mxu0 %v5403
    %5405 = vmatprep.subr.mxu0 0.0
    %v5406 = vand.u32 %v2907, 4294901760
    %v5407 = vsub.f32 %v2907, %v5406
    %v5408 = vand.u32 %v5407, 4294901760
    %5409 = vmatpush1.msra.mxu0 %v5408
    %5410 = vmatprep.subr.mxu0 0.0
    %v5411 = vand.u32 %v2908, 4294901760
    %v5412 = vsub.f32 %v2908, %v5411
    %v5413 = vand.u32 %v5412, 4294901760
    %5414 = vmatpush1.msra.mxu0 %v5413
    %v5415 = vand.u32 %v2810, 4294901760
    %5416 = vmatprep.mubr.f32.mxu0 %v5415
    %v5417 = vand.u32 %v2809, 4294901760
    %5418 = vmatmul.mubr.f32.gmra.mrb[0].mxu0 %v5417
    %v5419 = vpop.f32.mrb[0].mxu0
    %v5420 = vadd.f32 %v5252, %v5419
    %v5421 = vpop.f32.mrb[0].mxu0
    %5422 = vdwg.mxu0
    %5423 = vmatprep.subr.mxu0 0.0
    %v5424 = vand.u32 %v2877, 4294901760
    %5425 = vmatpush1.msra.mxu0 %v5424
    %5426 = vmatprep.subr.mxu0 0.0
    %v5427 = vand.u32 %v2878, 4294901760
    %5428 = vmatpush1.msra.mxu0 %v5427
    %5429 = vmatprep.subr.mxu0 0.0
    %v5430 = vand.u32 %v2879, 4294901760
    %5431 = vmatpush1.msra.mxu0 %v5430
    %5432 = vmatprep.subr.mxu0 0.0
    %v5433 = vand.u32 %v2880, 4294901760
    %5434 = vmatpush1.msra.mxu0 %v5433
    %5435 = vmatprep.subr.mxu0 0.0
    %v5436 = vand.u32 %v2881, 4294901760
    %5437 = vmatpush1.msra.mxu0 %v5436
    %5438 = vmatprep.subr.mxu0 0.0
    %v5439 = vand.u32 %v2882, 4294901760
    %5440 = vmatpush1.msra.mxu0 %v5439
    %5441 = vmatprep.subr.mxu0 0.0
    %v5442 = vand.u32 %v2883, 4294901760
    %5443 = vmatpush1.msra.mxu0 %v5442
    %5444 = vmatprep.subr.mxu0 0.0
    %v5445 = vand.u32 %v2884, 4294901760
    %5446 = vmatpush1.msra.mxu0 %v5445
    %5447 = vmatprep.subr.mxu0 0.0
    %v5448 = vand.u32 %v2885, 4294901760
    %5449 = vmatpush1.msra.mxu0 %v5448
    %5450 = vmatprep.subr.mxu0 0.0
    %v5451 = vand.u32 %v2886, 4294901760
    %5452 = vmatpush1.msra.mxu0 %v5451
    %5453 = vmatprep.subr.mxu0 0.0
    %v5454 = vand.u32 %v2887, 4294901760
    %5455 = vmatpush1.msra.mxu0 %v5454
    %5456 = vmatprep.subr.mxu0 0.0
    %v5457 = vand.u32 %v2888, 4294901760
    %5458 = vmatpush1.msra.mxu0 %v5457
    %5459 = vmatprep.subr.mxu0 0.0
    %v5460 = vand.u32 %v2889, 4294901760
    %5461 = vmatpush1.msra.mxu0 %v5460
    %5462 = vmatprep.subr.mxu0 0.0
    %v5463 = vand.u32 %v2890, 4294901760
    %5464 = vmatpush1.msra.mxu0 %v5463
    %5465 = vmatprep.subr.mxu0 0.0
    %v5466 = vand.u32 %v2891, 4294901760
    %5467 = vmatpush1.msra.mxu0 %v5466
    %5468 = vmatprep.subr.mxu0 0.0
    %v5469 = vand.u32 %v2892, 4294901760
    %5470 = vmatpush1.msra.mxu0 %v5469
    %5471 = vmatprep.subr.mxu0 0.0
    %v5472 = vand.u32 %v2893, 4294901760
    %5473 = vmatpush1.msra.mxu0 %v5472
    %5474 = vmatprep.subr.mxu0 0.0
    %v5475 = vand.u32 %v2894, 4294901760
    %5476 = vmatpush1.msra.mxu0 %v5475
    %5477 = vmatprep.subr.mxu0 0.0
    %v5478 = vand.u32 %v2895, 4294901760
    %5479 = vmatpush1.msra.mxu0 %v5478
    %5480 = vmatprep.subr.mxu0 0.0
    %v5481 = vand.u32 %v2896, 4294901760
    %5482 = vmatpush1.msra.mxu0 %v5481
    %5483 = vmatprep.subr.mxu0 0.0
    %v5484 = vand.u32 %v2897, 4294901760
    %5485 = vmatpush1.msra.mxu0 %v5484
    %5486 = vmatprep.subr.mxu0 0.0
    %v5487 = vand.u32 %v2898, 4294901760
    %5488 = vmatpush1.msra.mxu0 %v5487
    %5489 = vmatprep.subr.mxu0 0.0
    %v5490 = vand.u32 %v2899, 4294901760
    %5491 = vmatpush1.msra.mxu0 %v5490
    %5492 = vmatprep.subr.mxu0 0.0
    %v5493 = vand.u32 %v2900, 4294901760
    %5494 = vmatpush1.msra.mxu0 %v5493
    %5495 = vmatprep.subr.mxu0 0.0
    %v5496 = vand.u32 %v2901, 4294901760
    %5497 = vmatpush1.msra.mxu0 %v5496
    %5498 = vmatprep.subr.mxu0 0.0
    %v5499 = vand.u32 %v2902, 4294901760
    %5500 = vmatpush1.msra.mxu0 %v5499
    %5501 = vmatprep.subr.mxu0 0.0
    %v5502 = vand.u32 %v2903, 4294901760
    %5503 = vmatpush1.msra.mxu0 %v5502
    %5504 = vmatprep.subr.mxu0 0.0
    %v5505 = vand.u32 %v2904, 4294901760
    %5506 = vmatpush1.msra.mxu0 %v5505
    %5507 = vmatprep.subr.mxu0 0.0
    %v5508 = vand.u32 %v2905, 4294901760
    %5509 = vmatpush1.msra.mxu0 %v5508
    %5510 = vmatprep.subr.mxu0 0.0
    %v5511 = vand.u32 %v2906, 4294901760
    %5512 = vmatpush1.msra.mxu0 %v5511
    %5513 = vmatprep.subr.mxu0 0.0
    %v5514 = vand.u32 %v2907, 4294901760
    %5515 = vmatpush1.msra.mxu0 %v5514
    %5516 = vmatprep.subr.mxu0 0.0
    %v5517 = vand.u32 %v2908, 4294901760
    %5518 = vmatpush1.msra.mxu0 %v5517
    %v5519 = vand.u32 %v2810, 4294901760
    %5520 = vmatprep.mubr.f32.mxu0 %v5519
    %v5521 = vand.u32 %v2809, 4294901760
    %5522 = vmatmul.mubr.f32.gmra.mrb[0].mxu0 %v5521
    %v5523 = vpop.f32.mrb[0].mxu0
    %v5524 = vadd.f32 %v5420, %v5523
    %v5525 = vpop.f32.mrb[0].mxu0
    %5526 = vdwg.mxu0
    %5527 = vmatprep.subr.mxu0 0.0
    %v5528 = vand.u32 %v2909, 4294901760
    %5529 = vmatpush1.msra.mxu0 %v5528
    %5530 = vmatprep.subr.mxu0 0.0
    %v5531 = vand.u32 %v2910, 4294901760
    %5532 = vmatpush1.msra.mxu0 %v5531
    %5533 = vmatprep.subr.mxu0 0.0
    %v5534 = vand.u32 %v2911, 4294901760
    %5535 = vmatpush1.msra.mxu0 %v5534
    %5536 = vmatprep.subr.mxu0 0.0
    %v5537 = vand.u32 %v2912, 4294901760
    %5538 = vmatpush1.msra.mxu0 %v5537
    %5539 = vmatprep.subr.mxu0 0.0
    %v5540 = vand.u32 %v2913, 4294901760
    %5541 = vmatpush1.msra.mxu0 %v5540
    %5542 = vmatprep.subr.mxu0 0.0
    %v5543 = vand.u32 %v2914, 4294901760
    %5544 = vmatpush1.msra.mxu0 %v5543
    %5545 = vmatprep.subr.mxu0 0.0
    %v5546 = vand.u32 %v2915, 4294901760
    %5547 = vmatpush1.msra.mxu0 %v5546
    %5548 = vmatprep.subr.mxu0 0.0
    %v5549 = vand.u32 %v2916, 4294901760
    %5550 = vmatpush1.msra.mxu0 %v5549
    %5551 = vmatprep.subr.mxu0 0.0
    %v5552 = vand.u32 %v2917, 4294901760
    %5553 = vmatpush1.msra.mxu0 %v5552
    %5554 = vmatprep.subr.mxu0 0.0
    %v5555 = vand.u32 %v2918, 4294901760
    %5556 = vmatpush1.msra.mxu0 %v5555
    %5557 = vmatprep.subr.mxu0 0.0
    %v5558 = vand.u32 %v2919, 4294901760
    %5559 = vmatpush1.msra.mxu0 %v5558
    %5560 = vmatprep.subr.mxu0 0.0
    %v5561 = vand.u32 %v2920, 4294901760
    %5562 = vmatpush1.msra.mxu0 %v5561
    %5563 = vmatprep.subr.mxu0 0.0
    %v5564 = vand.u32 %v2921, 4294901760
    %5565 = vmatpush1.msra.mxu0 %v5564
    %5566 = vmatprep.subr.mxu0 0.0
    %v5567 = vand.u32 %v2922, 4294901760
    %5568 = vmatpush1.msra.mxu0 %v5567
    %5569 = vmatprep.subr.mxu0 0.0
    %v5570 = vand.u32 %v2923, 4294901760
    %5571 = vmatpush1.msra.mxu0 %v5570
    %5572 = vmatprep.subr.mxu0 0.0
    %v5573 = vand.u32 %v2924, 4294901760
    %5574 = vmatpush1.msra.mxu0 %v5573
    %5575 = vmatprep.subr.mxu0 0.0
    %v5576 = vand.u32 %v2925, 4294901760
    %5577 = vmatpush1.msra.mxu0 %v5576
    %5578 = vmatprep.subr.mxu0 0.0
    %v5579 = vand.u32 %v2926, 4294901760
    %5580 = vmatpush1.msra.mxu0 %v5579
    %5581 = vmatprep.subr.mxu0 0.0
    %v5582 = vand.u32 %v2927, 4294901760
    %5583 = vmatpush1.msra.mxu0 %v5582
    %5584 = vmatprep.subr.mxu0 0.0
    %v5585 = vand.u32 %v2928, 4294901760
    %5586 = vmatpush1.msra.mxu0 %v5585
    %5587 = vmatprep.subr.mxu0 0.0
    %v5588 = vand.u32 %v2929, 4294901760
    %5589 = vmatpush1.msra.mxu0 %v5588
    %5590 = vmatprep.subr.mxu0 0.0
    %v5591 = vand.u32 %v2930, 4294901760
    %5592 = vmatpush1.msra.mxu0 %v5591
    %5593 = vmatprep.subr.mxu0 0.0
    %v5594 = vand.u32 %v2931, 4294901760
    %5595 = vmatpush1.msra.mxu0 %v5594
    %5596 = vmatprep.subr.mxu0 0.0
    %v5597 = vand.u32 %v2932, 4294901760
    %5598 = vmatpush1.msra.mxu0 %v5597
    %5599 = vmatprep.subr.mxu0 0.0
    %v5600 = vand.u32 %v2933, 4294901760
    %5601 = vmatpush1.msra.mxu0 %v5600
    %5602 = vmatprep.subr.mxu0 0.0
    %v5603 = vand.u32 %v2934, 4294901760
    %5604 = vmatpush1.msra.mxu0 %v5603
    %5605 = vmatprep.subr.mxu0 0.0
    %v5606 = vand.u32 %v2935, 4294901760
    %5607 = vmatpush1.msra.mxu0 %v5606
    %5608 = vmatprep.subr.mxu0 0.0
    %v5609 = vand.u32 %v2936, 4294901760
    %5610 = vmatpush1.msra.mxu0 %v5609
    %5611 = vmatprep.subr.mxu0 0.0
    %v5612 = vand.u32 %v2937, 4294901760
    %5613 = vmatpush1.msra.mxu0 %v5612
    %5614 = vmatprep.subr.mxu0 0.0
    %v5615 = vand.u32 %v2938, 4294901760
    %5616 = vmatpush1.msra.mxu0 %v5615
    %5617 = vmatprep.subr.mxu0 0.0
    %v5618 = vand.u32 %v2939, 4294901760
    %5619 = vmatpush1.msra.mxu0 %v5618
    %5620 = vmatprep.subr.mxu0 0.0
    %v5621 = vand.u32 %v2940, 4294901760
    %5622 = vmatpush1.msra.mxu0 %v5621
    %v5623 = vand.u32 %v2812, 4294901760
    %v5624 = vsub.f32 %v2812, %v5623
    %v5625 = vand.u32 %v5624, 4294901760
    %v5626 = vsub.f32 %v5624, %v5625
    %v5627 = vand.u32 %v5626, 4294901760
    %5628 = vmatprep.mubr.f32.mxu0 %v5627
    %v5629 = vand.u32 %v2811, 4294901760
    %v5630 = vsub.f32 %v2811, %v5629
    %v5631 = vand.u32 %v5630, 4294901760
    %v5632 = vsub.f32 %v5630, %v5631
    %v5633 = vand.u32 %v5632, 4294901760
    %5634 = vmatmul.mubr.f32.gmra.mrb[0].mxu0 %v5633
    %v5635 = vpop.f32.mrb[0].mxu0
    %v5636 = vadd.f32 %v5524, %v5635
    %v5637 = vpop.f32.mrb[0].mxu0
    %5638 = vdwg.mxu0
    %5639 = vmatprep.subr.mxu0 0.0
    %v5640 = vand.u32 %v2909, 4294901760
    %v5641 = vsub.f32 %v2909, %v5640
    %v5642 = vand.u32 %v5641, 4294901760
    %v5643 = vsub.f32 %v5641, %v5642
    %v5644 = vand.u32 %v5643, 4294901760
    %5645 = vmatpush1.msra.mxu0 %v5644
    %5646 = vmatprep.subr.mxu0 0.0
    %v5647 = vand.u32 %v2910, 4294901760
    %v5648 = vsub.f32 %v2910, %v5647
    %v5649 = vand.u32 %v5648, 4294901760
    %v5650 = vsub.f32 %v5648, %v5649
    %v5651 = vand.u32 %v5650, 4294901760
    %5652 = vmatpush1.msra.mxu0 %v5651
    %5653 = vmatprep.subr.mxu0 0.0
    %v5654 = vand.u32 %v2911, 4294901760
    %v5655 = vsub.f32 %v2911, %v5654
    %v5656 = vand.u32 %v5655, 4294901760
    %v5657 = vsub.f32 %v5655, %v5656
    %v5658 = vand.u32 %v5657, 4294901760
    %5659 = vmatpush1.msra.mxu0 %v5658
    %5660 = vmatprep.subr.mxu0 0.0
    %v5661 = vand.u32 %v2912, 4294901760
    %v5662 = vsub.f32 %v2912, %v5661
    %v5663 = vand.u32 %v5662, 4294901760
    %v5664 = vsub.f32 %v5662, %v5663
    %v5665 = vand.u32 %v5664, 4294901760
    %5666 = vmatpush1.msra.mxu0 %v5665
    %5667 = vmatprep.subr.mxu0 0.0
    %v5668 = vand.u32 %v2913, 4294901760
    %v5669 = vsub.f32 %v2913, %v5668
    %v5670 = vand.u32 %v5669, 4294901760
    %v5671 = vsub.f32 %v5669, %v5670
    %v5672 = vand.u32 %v5671, 4294901760
    %5673 = vmatpush1.msra.mxu0 %v5672
    %5674 = vmatprep.subr.mxu0 0.0
    %v5675 = vand.u32 %v2914, 4294901760
    %v5676 = vsub.f32 %v2914, %v5675
    %v5677 = vand.u32 %v5676, 4294901760
    %v5678 = vsub.f32 %v5676, %v5677
    %v5679 = vand.u32 %v5678, 4294901760
    %5680 = vmatpush1.msra.mxu0 %v5679
    %5681 = vmatprep.subr.mxu0 0.0
    %v5682 = vand.u32 %v2915, 4294901760
    %v5683 = vsub.f32 %v2915, %v5682
    %v5684 = vand.u32 %v5683, 4294901760
    %v5685 = vsub.f32 %v5683, %v5684
    %v5686 = vand.u32 %v5685, 4294901760
    %5687 = vmatpush1.msra.mxu0 %v5686
    %5688 = vmatprep.subr.mxu0 0.0
    %v5689 = vand.u32 %v2916, 4294901760
    %v5690 = vsub.f32 %v2916, %v5689
    %v5691 = vand.u32 %v5690, 4294901760
    %v5692 = vsub.f32 %v5690, %v5691
    %v5693 = vand.u32 %v5692, 4294901760
    %5694 = vmatpush1.msra.mxu0 %v5693
    %5695 = vmatprep.subr.mxu0 0.0
    %v5696 = vand.u32 %v2917, 4294901760
    %v5697 = vsub.f32 %v2917, %v5696
    %v5698 = vand.u32 %v5697, 4294901760
    %v5699 = vsub.f32 %v5697, %v5698
    %v5700 = vand.u32 %v5699, 4294901760
    %5701 = vmatpush1.msra.mxu0 %v5700
    %5702 = vmatprep.subr.mxu0 0.0
    %v5703 = vand.u32 %v2918, 4294901760
    %v5704 = vsub.f32 %v2918, %v5703
    %v5705 = vand.u32 %v5704, 4294901760
    %v5706 = vsub.f32 %v5704, %v5705
    %v5707 = vand.u32 %v5706, 4294901760
    %5708 = vmatpush1.msra.mxu0 %v5707
    %5709 = vmatprep.subr.mxu0 0.0
    %v5710 = vand.u32 %v2919, 4294901760
    %v5711 = vsub.f32 %v2919, %v5710
    %v5712 = vand.u32 %v5711, 4294901760
    %v5713 = vsub.f32 %v5711, %v5712
    %v5714 = vand.u32 %v5713, 4294901760
    %5715 = vmatpush1.msra.mxu0 %v5714
    %5716 = vmatprep.subr.mxu0 0.0
    %v5717 = vand.u32 %v2920, 4294901760
    %v5718 = vsub.f32 %v2920, %v5717
    %v5719 = vand.u32 %v5718, 4294901760
    %v5720 = vsub.f32 %v5718, %v5719
    %v5721 = vand.u32 %v5720, 4294901760
    %5722 = vmatpush1.msra.mxu0 %v5721
    %5723 = vmatprep.subr.mxu0 0.0
    %v5724 = vand.u32 %v2921, 4294901760
    %v5725 = vsub.f32 %v2921, %v5724
    %v5726 = vand.u32 %v5725, 4294901760
    %v5727 = vsub.f32 %v5725, %v5726
    %v5728 = vand.u32 %v5727, 4294901760
    %5729 = vmatpush1.msra.mxu0 %v5728
    %5730 = vmatprep.subr.mxu0 0.0
    %v5731 = vand.u32 %v2922, 4294901760
    %v5732 = vsub.f32 %v2922, %v5731
    %v5733 = vand.u32 %v5732, 4294901760
    %v5734 = vsub.f32 %v5732, %v5733
    %v5735 = vand.u32 %v5734, 4294901760
    %5736 = vmatpush1.msra.mxu0 %v5735
    %5737 = vmatprep.subr.mxu0 0.0
    %v5738 = vand.u32 %v2923, 4294901760
    %v5739 = vsub.f32 %v2923, %v5738
    %v5740 = vand.u32 %v5739, 4294901760
    %v5741 = vsub.f32 %v5739, %v5740
    %v5742 = vand.u32 %v5741, 4294901760
    %5743 = vmatpush1.msra.mxu0 %v5742
    %5744 = vmatprep.subr.mxu0 0.0
    %v5745 = vand.u32 %v2924, 4294901760
    %v5746 = vsub.f32 %v2924, %v5745
    %v5747 = vand.u32 %v5746, 4294901760
    %v5748 = vsub.f32 %v5746, %v5747
    %v5749 = vand.u32 %v5748, 4294901760
    %5750 = vmatpush1.msra.mxu0 %v5749
    %5751 = vmatprep.subr.mxu0 0.0
    %v5752 = vand.u32 %v2925, 4294901760
    %v5753 = vsub.f32 %v2925, %v5752
    %v5754 = vand.u32 %v5753, 4294901760
    %v5755 = vsub.f32 %v5753, %v5754
    %v5756 = vand.u32 %v5755, 4294901760
    %5757 = vmatpush1.msra.mxu0 %v5756
    %5758 = vmatprep.subr.mxu0 0.0
    %v5759 = vand.u32 %v2926, 4294901760
    %v5760 = vsub.f32 %v2926, %v5759
    %v5761 = vand.u32 %v5760, 4294901760
    %v5762 = vsub.f32 %v5760, %v5761
    %v5763 = vand.u32 %v5762, 4294901760
    %5764 = vmatpush1.msra.mxu0 %v5763
    %5765 = vmatprep.subr.mxu0 0.0
    %v5766 = vand.u32 %v2927, 4294901760
    %v5767 = vsub.f32 %v2927, %v5766
    %v5768 = vand.u32 %v5767, 4294901760
    %v5769 = vsub.f32 %v5767, %v5768
    %v5770 = vand.u32 %v5769, 4294901760
    %5771 = vmatpush1.msra.mxu0 %v5770
    %5772 = vmatprep.subr.mxu0 0.0
    %v5773 = vand.u32 %v2928, 4294901760
    %v5774 = vsub.f32 %v2928, %v5773
    %v5775 = vand.u32 %v5774, 4294901760
    %v5776 = vsub.f32 %v5774, %v5775
    %v5777 = vand.u32 %v5776, 4294901760
    %5778 = vmatpush1.msra.mxu0 %v5777
    %5779 = vmatprep.subr.mxu0 0.0
    %v5780 = vand.u32 %v2929, 4294901760
    %v5781 = vsub.f32 %v2929, %v5780
    %v5782 = vand.u32 %v5781, 4294901760
    %v5783 = vsub.f32 %v5781, %v5782
    %v5784 = vand.u32 %v5783, 4294901760
    %5785 = vmatpush1.msra.mxu0 %v5784
    %5786 = vmatprep.subr.mxu0 0.0
    %v5787 = vand.u32 %v2930, 4294901760
    %v5788 = vsub.f32 %v2930, %v5787
    %v5789 = vand.u32 %v5788, 4294901760
    %v5790 = vsub.f32 %v5788, %v5789
    %v5791 = vand.u32 %v5790, 4294901760
    %5792 = vmatpush1.msra.mxu0 %v5791
    %5793 = vmatprep.subr.mxu0 0.0
    %v5794 = vand.u32 %v2931, 4294901760
    %v5795 = vsub.f32 %v2931, %v5794
    %v5796 = vand.u32 %v5795, 4294901760
    %v5797 = vsub.f32 %v5795, %v5796
    %v5798 = vand.u32 %v5797, 4294901760
    %5799 = vmatpush1.msra.mxu0 %v5798
    %5800 = vmatprep.subr.mxu0 0.0
    %v5801 = vand.u32 %v2932, 4294901760
    %v5802 = vsub.f32 %v2932, %v5801
    %v5803 = vand.u32 %v5802, 4294901760
    %v5804 = vsub.f32 %v5802, %v5803
    %v5805 = vand.u32 %v5804, 4294901760
    %5806 = vmatpush1.msra.mxu0 %v5805
    %5807 = vmatprep.subr.mxu0 0.0
    %v5808 = vand.u32 %v2933, 4294901760
    %v5809 = vsub.f32 %v2933, %v5808
    %v5810 = vand.u32 %v5809, 4294901760
    %v5811 = vsub.f32 %v5809, %v5810
    %v5812 = vand.u32 %v5811, 4294901760
    %5813 = vmatpush1.msra.mxu0 %v5812
    %5814 = vmatprep.subr.mxu0 0.0
    %v5815 = vand.u32 %v2934, 4294901760
    %v5816 = vsub.f32 %v2934, %v5815
    %v5817 = vand.u32 %v5816, 4294901760
    %v5818 = vsub.f32 %v5816, %v5817
    %v5819 = vand.u32 %v5818, 4294901760
    %5820 = vmatpush1.msra.mxu0 %v5819
    %5821 = vmatprep.subr.mxu0 0.0
    %v5822 = vand.u32 %v2935, 4294901760
    %v5823 = vsub.f32 %v2935, %v5822
    %v5824 = vand.u32 %v5823, 4294901760
    %v5825 = vsub.f32 %v5823, %v5824
    %v5826 = vand.u32 %v5825, 4294901760
    %5827 = vmatpush1.msra.mxu0 %v5826
    %5828 = vmatprep.subr.mxu0 0.0
    %v5829 = vand.u32 %v2936, 4294901760
    %v5830 = vsub.f32 %v2936, %v5829
    %v5831 = vand.u32 %v5830, 4294901760
    %v5832 = vsub.f32 %v5830, %v5831
    %v5833 = vand.u32 %v5832, 4294901760
    %5834 = vmatpush1.msra.mxu0 %v5833
    %5835 = vmatprep.subr.mxu0 0.0
    %v5836 = vand.u32 %v2937, 4294901760
    %v5837 = vsub.f32 %v2937, %v5836
    %v5838 = vand.u32 %v5837, 4294901760
    %v5839 = vsub.f32 %v5837, %v5838
    %v5840 = vand.u32 %v5839, 4294901760
    %5841 = vmatpush1.msra.mxu0 %v5840
    %5842 = vmatprep.subr.mxu0 0.0
    %v5843 = vand.u32 %v2938, 4294901760
    %v5844 = vsub.f32 %v2938, %v5843
    %v5845 = vand.u32 %v5844, 4294901760
    %v5846 = vsub.f32 %v5844, %v5845
    %v5847 = vand.u32 %v5846, 4294901760
    %5848 = vmatpush1.msra.mxu0 %v5847
    %5849 = vmatprep.subr.mxu0 0.0
    %v5850 = vand.u32 %v2939, 4294901760
    %v5851 = vsub.f32 %v2939, %v5850
    %v5852 = vand.u32 %v5851, 4294901760
    %v5853 = vsub.f32 %v5851, %v5852
    %v5854 = vand.u32 %v5853, 4294901760
    %5855 = vmatpush1.msra.mxu0 %v5854
    %5856 = vmatprep.subr.mxu0 0.0
    %v5857 = vand.u32 %v2940, 4294901760
    %v5858 = vsub.f32 %v2940, %v5857
    %v5859 = vand.u32 %v5858, 4294901760
    %v5860 = vsub.f32 %v5858, %v5859
    %v5861 = vand.u32 %v5860, 4294901760
    %5862 = vmatpush1.msra.mxu0 %v5861
    %v5863 = vand.u32 %v2812, 4294901760
    %5864 = vmatprep.mubr.f32.mxu0 %v5863
    %v5865 = vand.u32 %v2811, 4294901760
    %5866 = vmatmul.mubr.f32.gmra.mrb[0].mxu0 %v5865
    %v5867 = vpop.f32.mrb[0].mxu0
    %v5868 = vadd.f32 %v5636, %v5867
    %v5869 = vpop.f32.mrb[0].mxu0
    %5870 = vdwg.mxu0
    %5871 = vmatprep.subr.mxu0 0.0
    %v5872 = vand.u32 %v2909, 4294901760
    %v5873 = vsub.f32 %v2909, %v5872
    %5874 = vmatpush1.msra.mxu0 %v5873
    %5875 = vmatprep.subr.mxu0 0.0
    %v5876 = vand.u32 %v2910, 4294901760
    %v5877 = vsub.f32 %v2910, %v5876
    %5878 = vmatpush1.msra.mxu0 %v5877
    %5879 = vmatprep.subr.mxu0 0.0
    %v5880 = vand.u32 %v2911, 4294901760
    %v5881 = vsub.f32 %v2911, %v5880
    %5882 = vmatpush1.msra.mxu0 %v5881
    %5883 = vmatprep.subr.mxu0 0.0
    %v5884 = vand.u32 %v2912, 4294901760
    %v5885 = vsub.f32 %v2912, %v5884
    %5886 = vmatpush1.msra.mxu0 %v5885
    %5887 = vmatprep.subr.mxu0 0.0
    %v5888 = vand.u32 %v2913, 4294901760
    %v5889 = vsub.f32 %v2913, %v5888
    %5890 = vmatpush1.msra.mxu0 %v5889
    %5891 = vmatprep.subr.mxu0 0.0
    %v5892 = vand.u32 %v2914, 4294901760
    %v5893 = vsub.f32 %v2914, %v5892
    %5894 = vmatpush1.msra.mxu0 %v5893
    %5895 = vmatprep.subr.mxu0 0.0
    %v5896 = vand.u32 %v2915, 4294901760
    %v5897 = vsub.f32 %v2915, %v5896
    %5898 = vmatpush1.msra.mxu0 %v5897
    %5899 = vmatprep.subr.mxu0 0.0
    %v5900 = vand.u32 %v2916, 4294901760
    %v5901 = vsub.f32 %v2916, %v5900
    %5902 = vmatpush1.msra.mxu0 %v5901
    %5903 = vmatprep.subr.mxu0 0.0
    %v5904 = vand.u32 %v2917, 4294901760
    %v5905 = vsub.f32 %v2917, %v5904
    %5906 = vmatpush1.msra.mxu0 %v5905
    %5907 = vmatprep.subr.mxu0 0.0
    %v5908 = vand.u32 %v2918, 4294901760
    %v5909 = vsub.f32 %v2918, %v5908
    %5910 = vmatpush1.msra.mxu0 %v5909
    %5911 = vmatprep.subr.mxu0 0.0
    %v5912 = vand.u32 %v2919, 4294901760
    %v5913 = vsub.f32 %v2919, %v5912
    %5914 = vmatpush1.msra.mxu0 %v5913
    %5915 = vmatprep.subr.mxu0 0.0
    %v5916 = vand.u32 %v2920, 4294901760
    %v5917 = vsub.f32 %v2920, %v5916
    %5918 = vmatpush1.msra.mxu0 %v5917
    %5919 = vmatprep.subr.mxu0 0.0
    %v5920 = vand.u32 %v2921, 4294901760
    %v5921 = vsub.f32 %v2921, %v5920
    %5922 = vmatpush1.msra.mxu0 %v5921
    %5923 = vmatprep.subr.mxu0 0.0
    %v5924 = vand.u32 %v2922, 4294901760
    %v5925 = vsub.f32 %v2922, %v5924
    %5926 = vmatpush1.msra.mxu0 %v5925
    %5927 = vmatprep.subr.mxu0 0.0
    %v5928 = vand.u32 %v2923, 4294901760
    %v5929 = vsub.f32 %v2923, %v5928
    %5930 = vmatpush1.msra.mxu0 %v5929
    %5931 = vmatprep.subr.mxu0 0.0
    %v5932 = vand.u32 %v2924, 4294901760
    %v5933 = vsub.f32 %v2924, %v5932
    %5934 = vmatpush1.msra.mxu0 %v5933
    %5935 = vmatprep.subr.mxu0 0.0
    %v5936 = vand.u32 %v2925, 4294901760
    %v5937 = vsub.f32 %v2925, %v5936
    %5938 = vmatpush1.msra.mxu0 %v5937
    %5939 = vmatprep.subr.mxu0 0.0
    %v5940 = vand.u32 %v2926, 4294901760
    %v5941 = vsub.f32 %v2926, %v5940
    %5942 = vmatpush1.msra.mxu0 %v5941
    %5943 = vmatprep.subr.mxu0 0.0
    %v5944 = vand.u32 %v2927, 4294901760
    %v5945 = vsub.f32 %v2927, %v5944
    %5946 = vmatpush1.msra.mxu0 %v5945
    %5947 = vmatprep.subr.mxu0 0.0
    %v5948 = vand.u32 %v2928, 4294901760
    %v5949 = vsub.f32 %v2928, %v5948
    %5950 = vmatpush1.msra.mxu0 %v5949
    %5951 = vmatprep.subr.mxu0 0.0
    %v5952 = vand.u32 %v2929, 4294901760
    %v5953 = vsub.f32 %v2929, %v5952
    %5954 = vmatpush1.msra.mxu0 %v5953
    %5955 = vmatprep.subr.mxu0 0.0
    %v5956 = vand.u32 %v2930, 4294901760
    %v5957 = vsub.f32 %v2930, %v5956
    %5958 = vmatpush1.msra.mxu0 %v5957
    %5959 = vmatprep.subr.mxu0 0.0
    %v5960 = vand.u32 %v2931, 4294901760
    %v5961 = vsub.f32 %v2931, %v5960
    %5962 = vmatpush1.msra.mxu0 %v5961
    %5963 = vmatprep.subr.mxu0 0.0
    %v5964 = vand.u32 %v2932, 4294901760
    %v5965 = vsub.f32 %v2932, %v5964
    %5966 = vmatpush1.msra.mxu0 %v5965
    %5967 = vmatprep.subr.mxu0 0.0
    %v5968 = vand.u32 %v2933, 4294901760
    %v5969 = vsub.f32 %v2933, %v5968
    %5970 = vmatpush1.msra.mxu0 %v5969
    %5971 = vmatprep.subr.mxu0 0.0
    %v5972 = vand.u32 %v2934, 4294901760
    %v5973 = vsub.f32 %v2934, %v5972
    %5974 = vmatpush1.msra.mxu0 %v5973
    %5975 = vmatprep.subr.mxu0 0.0
    %v5976 = vand.u32 %v2935, 4294901760
    %v5977 = vsub.f32 %v2935, %v5976
    %5978 = vmatpush1.msra.mxu0 %v5977
    %5979 = vmatprep.subr.mxu0 0.0
    %v5980 = vand.u32 %v2936, 4294901760
    %v5981 = vsub.f32 %v2936, %v5980
    %5982 = vmatpush1.msra.mxu0 %v5981
    %5983 = vmatprep.subr.mxu0 0.0
    %v5984 = vand.u32 %v2937, 4294901760
    %v5985 = vsub.f32 %v2937, %v5984
    %5986 = vmatpush1.msra.mxu0 %v5985
    %5987 = vmatprep.subr.mxu0 0.0
    %v5988 = vand.u32 %v2938, 4294901760
    %v5989 = vsub.f32 %v2938, %v5988
    %5990 = vmatpush1.msra.mxu0 %v5989
    %5991 = vmatprep.subr.mxu0 0.0
    %v5992 = vand.u32 %v2939, 4294901760
    %v5993 = vsub.f32 %v2939, %v5992
    %5994 = vmatpush1.msra.mxu0 %v5993
    %5995 = vmatprep.subr.mxu0 0.0
    %v5996 = vand.u32 %v2940, 4294901760
    %v5997 = vsub.f32 %v2940, %v5996
    %5998 = vmatpush1.msra.mxu0 %v5997
    %v5999 = vand.u32 %v2812, 4294901760
    %v6000 = vsub.f32 %v2812, %v5999
    %6001 = vmatprep.mubr.f32.mxu0 %v6000
    %v6002 = vand.u32 %v2811, 4294901760
    %v6003 = vsub.f32 %v2811, %v6002
    %6004 = vmatmul.mubr.f32.gmra.mrb[0].mxu0 %v6003
    %v6005 = vpop.f32.mrb[0].mxu0
    %v6006 = vadd.f32 %v5868, %v6005
    %v6007 = vpop.f32.mrb[0].mxu0
    %6008 = vdwg.mxu0
    %6009 = vmatprep.subr.mxu0 0.0
    %v6010 = vand.u32 %v2909, 4294901760
    %6011 = vmatpush1.msra.mxu0 %v6010
    %6012 = vmatprep.subr.mxu0 0.0
    %v6013 = vand.u32 %v2910, 4294901760
    %6014 = vmatpush1.msra.mxu0 %v6013
    %6015 = vmatprep.subr.mxu0 0.0
    %v6016 = vand.u32 %v2911, 4294901760
    %6017 = vmatpush1.msra.mxu0 %v6016
    %6018 = vmatprep.subr.mxu0 0.0
    %v6019 = vand.u32 %v2912, 4294901760
    %6020 = vmatpush1.msra.mxu0 %v6019
    %6021 = vmatprep.subr.mxu0 0.0
    %v6022 = vand.u32 %v2913, 4294901760
    %6023 = vmatpush1.msra.mxu0 %v6022
    %6024 = vmatprep.subr.mxu0 0.0
    %v6025 = vand.u32 %v2914, 4294901760
    %6026 = vmatpush1.msra.mxu0 %v6025
    %6027 = vmatprep.subr.mxu0 0.0
    %v6028 = vand.u32 %v2915, 4294901760
    %6029 = vmatpush1.msra.mxu0 %v6028
    %6030 = vmatprep.subr.mxu0 0.0
    %v6031 = vand.u32 %v2916, 4294901760
    %6032 = vmatpush1.msra.mxu0 %v6031
    %6033 = vmatprep.subr.mxu0 0.0
    %v6034 = vand.u32 %v2917, 4294901760
    %6035 = vmatpush1.msra.mxu0 %v6034
    %6036 = vmatprep.subr.mxu0 0.0
    %v6037 = vand.u32 %v2918, 4294901760
    %6038 = vmatpush1.msra.mxu0 %v6037
    %6039 = vmatprep.subr.mxu0 0.0
    %v6040 = vand.u32 %v2919, 4294901760
    %6041 = vmatpush1.msra.mxu0 %v6040
    %6042 = vmatprep.subr.mxu0 0.0
    %v6043 = vand.u32 %v2920, 4294901760
    %6044 = vmatpush1.msra.mxu0 %v6043
    %6045 = vmatprep.subr.mxu0 0.0
    %v6046 = vand.u32 %v2921, 4294901760
    %6047 = vmatpush1.msra.mxu0 %v6046
    %6048 = vmatprep.subr.mxu0 0.0
    %v6049 = vand.u32 %v2922, 4294901760
    %6050 = vmatpush1.msra.mxu0 %v6049
    %6051 = vmatprep.subr.mxu0 0.0
    %v6052 = vand.u32 %v2923, 4294901760
    %6053 = vmatpush1.msra.mxu0 %v6052
    %6054 = vmatprep.subr.mxu0 0.0
    %v6055 = vand.u32 %v2924, 4294901760
    %6056 = vmatpush1.msra.mxu0 %v6055
    %6057 = vmatprep.subr.mxu0 0.0
    %v6058 = vand.u32 %v2925, 4294901760
    %6059 = vmatpush1.msra.mxu0 %v6058
    %6060 = vmatprep.subr.mxu0 0.0
    %v6061 = vand.u32 %v2926, 4294901760
    %6062 = vmatpush1.msra.mxu0 %v6061
    %6063 = vmatprep.subr.mxu0 0.0
    %v6064 = vand.u32 %v2927, 4294901760
    %6065 = vmatpush1.msra.mxu0 %v6064
    %6066 = vmatprep.subr.mxu0 0.0
    %v6067 = vand.u32 %v2928, 4294901760
    %6068 = vmatpush1.msra.mxu0 %v6067
    %6069 = vmatprep.subr.mxu0 0.0
    %v6070 = vand.u32 %v2929, 4294901760
    %6071 = vmatpush1.msra.mxu0 %v6070
    %6072 = vmatprep.subr.mxu0 0.0
    %v6073 = vand.u32 %v2930, 4294901760
    %6074 = vmatpush1.msra.mxu0 %v6073
    %6075 = vmatprep.subr.mxu0 0.0
    %v6076 = vand.u32 %v2931, 4294901760
    %6077 = vmatpush1.msra.mxu0 %v6076
    %6078 = vmatprep.subr.mxu0 0.0
    %v6079 = vand.u32 %v2932, 4294901760
    %6080 = vmatpush1.msra.mxu0 %v6079
    %6081 = vmatprep.subr.mxu0 0.0
    %v6082 = vand.u32 %v2933, 4294901760
    %6083 = vmatpush1.msra.mxu0 %v6082
    %6084 = vmatprep.subr.mxu0 0.0
    %v6085 = vand.u32 %v2934, 4294901760
    %6086 = vmatpush1.msra.mxu0 %v6085
    %6087 = vmatprep.subr.mxu0 0.0
    %v6088 = vand.u32 %v2935, 4294901760
    %6089 = vmatpush1.msra.mxu0 %v6088
    %6090 = vmatprep.subr.mxu0 0.0
    %v6091 = vand.u32 %v2936, 4294901760
    %6092 = vmatpush1.msra.mxu0 %v6091
    %6093 = vmatprep.subr.mxu0 0.0
    %v6094 = vand.u32 %v2937, 4294901760
    %6095 = vmatpush1.msra.mxu0 %v6094
    %6096 = vmatprep.subr.mxu0 0.0
    %v6097 = vand.u32 %v2938, 4294901760
    %6098 = vmatpush1.msra.mxu0 %v6097
    %6099 = vmatprep.subr.mxu0 0.0
    %v6100 = vand.u32 %v2939, 4294901760
    %6101 = vmatpush1.msra.mxu0 %v6100
    %6102 = vmatprep.subr.mxu0 0.0
    %v6103 = vand.u32 %v2940, 4294901760
    %6104 = vmatpush1.msra.mxu0 %v6103
    %v6105 = vand.u32 %v2812, 4294901760
    %v6106 = vsub.f32 %v2812, %v6105
    %v6107 = vand.u32 %v6106, 4294901760
    %6108 = vmatprep.mubr.f32.mxu0 %v6107
    %v6109 = vand.u32 %v2811, 4294901760
    %v6110 = vsub.f32 %v2811, %v6109
    %v6111 = vand.u32 %v6110, 4294901760
    %6112 = vmatmul.mubr.f32.gmra.mrb[0].mxu0 %v6111
    %v6113 = vpop.f32.mrb[0].mxu0
    %v6114 = vadd.f32 %v6006, %v6113
    %v6115 = vpop.f32.mrb[0].mxu0
    %6116 = vdwg.mxu0
    %6117 = vmatprep.subr.mxu0 0.0
    %v6118 = vand.u32 %v2909, 4294901760
    %v6119 = vsub.f32 %v2909, %v6118
    %v6120 = vand.u32 %v6119, 4294901760
    %6121 = vmatpush1.msra.mxu0 %v6120
    %6122 = vmatprep.subr.mxu0 0.0
    %v6123 = vand.u32 %v2910, 4294901760
    %v6124 = vsub.f32 %v2910, %v6123
    %v6125 = vand.u32 %v6124, 4294901760
    %6126 = vmatpush1.msra.mxu0 %v6125
    %6127 = vmatprep.subr.mxu0 0.0
    %v6128 = vand.u32 %v2911, 4294901760
    %v6129 = vsub.f32 %v2911, %v6128
    %v6130 = vand.u32 %v6129, 4294901760
    %6131 = vmatpush1.msra.mxu0 %v6130
    %6132 = vmatprep.subr.mxu0 0.0
    %v6133 = vand.u32 %v2912, 4294901760
    %v6134 = vsub.f32 %v2912, %v6133
    %v6135 = vand.u32 %v6134, 4294901760
    %6136 = vmatpush1.msra.mxu0 %v6135
    %6137 = vmatprep.subr.mxu0 0.0
    %v6138 = vand.u32 %v2913, 4294901760
    %v6139 = vsub.f32 %v2913, %v6138
    %v6140 = vand.u32 %v6139, 4294901760
    %6141 = vmatpush1.msra.mxu0 %v6140
    %6142 = vmatprep.subr.mxu0 0.0
    %v6143 = vand.u32 %v2914, 4294901760
    %v6144 = vsub.f32 %v2914, %v6143
    %v6145 = vand.u32 %v6144, 4294901760
    %6146 = vmatpush1.msra.mxu0 %v6145
    %6147 = vmatprep.subr.mxu0 0.0
    %v6148 = vand.u32 %v2915, 4294901760
    %v6149 = vsub.f32 %v2915, %v6148
    %v6150 = vand.u32 %v6149, 4294901760
    %6151 = vmatpush1.msra.mxu0 %v6150
    %6152 = vmatprep.subr.mxu0 0.0
    %v6153 = vand.u32 %v2916, 4294901760
    %v6154 = vsub.f32 %v2916, %v6153
    %v6155 = vand.u32 %v6154, 4294901760
    %6156 = vmatpush1.msra.mxu0 %v6155
    %6157 = vmatprep.subr.mxu0 0.0
    %v6158 = vand.u32 %v2917, 4294901760
    %v6159 = vsub.f32 %v2917, %v6158
    %v6160 = vand.u32 %v6159, 4294901760
    %6161 = vmatpush1.msra.mxu0 %v6160
    %6162 = vmatprep.subr.mxu0 0.0
    %v6163 = vand.u32 %v2918, 4294901760
    %v6164 = vsub.f32 %v2918, %v6163
    %v6165 = vand.u32 %v6164, 4294901760
    %6166 = vmatpush1.msra.mxu0 %v6165
    %6167 = vmatprep.subr.mxu0 0.0
    %v6168 = vand.u32 %v2919, 4294901760
    %v6169 = vsub.f32 %v2919, %v6168
    %v6170 = vand.u32 %v6169, 4294901760
    %6171 = vmatpush1.msra.mxu0 %v6170
    %6172 = vmatprep.subr.mxu0 0.0
    %v6173 = vand.u32 %v2920, 4294901760
    %v6174 = vsub.f32 %v2920, %v6173
    %v6175 = vand.u32 %v6174, 4294901760
    %6176 = vmatpush1.msra.mxu0 %v6175
    %6177 = vmatprep.subr.mxu0 0.0
    %v6178 = vand.u32 %v2921, 4294901760
    %v6179 = vsub.f32 %v2921, %v6178
    %v6180 = vand.u32 %v6179, 4294901760
    %6181 = vmatpush1.msra.mxu0 %v6180
    %6182 = vmatprep.subr.mxu0 0.0
    %v6183 = vand.u32 %v2922, 4294901760
    %v6184 = vsub.f32 %v2922, %v6183
    %v6185 = vand.u32 %v6184, 4294901760
    %6186 = vmatpush1.msra.mxu0 %v6185
    %6187 = vmatprep.subr.mxu0 0.0
    %v6188 = vand.u32 %v2923, 4294901760
    %v6189 = vsub.f32 %v2923, %v6188
    %v6190 = vand.u32 %v6189, 4294901760
    %6191 = vmatpush1.msra.mxu0 %v6190
    %6192 = vmatprep.subr.mxu0 0.0
    %v6193 = vand.u32 %v2924, 4294901760
    %v6194 = vsub.f32 %v2924, %v6193
    %v6195 = vand.u32 %v6194, 4294901760
    %6196 = vmatpush1.msra.mxu0 %v6195
    %6197 = vmatprep.subr.mxu0 0.0
    %v6198 = vand.u32 %v2925, 4294901760
    %v6199 = vsub.f32 %v2925, %v6198
    %v6200 = vand.u32 %v6199, 4294901760
    %6201 = vmatpush1.msra.mxu0 %v6200
    %6202 = vmatprep.subr.mxu0 0.0
    %v6203 = vand.u32 %v2926, 4294901760
    %v6204 = vsub.f32 %v2926, %v6203
    %v6205 = vand.u32 %v6204, 4294901760
    %6206 = vmatpush1.msra.mxu0 %v6205
    %6207 = vmatprep.subr.mxu0 0.0
    %v6208 = vand.u32 %v2927, 4294901760
    %v6209 = vsub.f32 %v2927, %v6208
    %v6210 = vand.u32 %v6209, 4294901760
    %6211 = vmatpush1.msra.mxu0 %v6210
    %6212 = vmatprep.subr.mxu0 0.0
    %v6213 = vand.u32 %v2928, 4294901760
    %v6214 = vsub.f32 %v2928, %v6213
    %v6215 = vand.u32 %v6214, 4294901760
    %6216 = vmatpush1.msra.mxu0 %v6215
    %6217 = vmatprep.subr.mxu0 0.0
    %v6218 = vand.u32 %v2929, 4294901760
    %v6219 = vsub.f32 %v2929, %v6218
    %v6220 = vand.u32 %v6219, 4294901760
    %6221 = vmatpush1.msra.mxu0 %v6220
    %6222 = vmatprep.subr.mxu0 0.0
    %v6223 = vand.u32 %v2930, 4294901760
    %v6224 = vsub.f32 %v2930, %v6223
    %v6225 = vand.u32 %v6224, 4294901760
    %6226 = vmatpush1.msra.mxu0 %v6225
    %6227 = vmatprep.subr.mxu0 0.0
    %v6228 = vand.u32 %v2931, 4294901760
    %v6229 = vsub.f32 %v2931, %v6228
    %v6230 = vand.u32 %v6229, 4294901760
    %6231 = vmatpush1.msra.mxu0 %v6230
    %6232 = vmatprep.subr.mxu0 0.0
    %v6233 = vand.u32 %v2932, 4294901760
    %v6234 = vsub.f32 %v2932, %v6233
    %v6235 = vand.u32 %v6234, 4294901760
    %6236 = vmatpush1.msra.mxu0 %v6235
    %6237 = vmatprep.subr.mxu0 0.0
    %v6238 = vand.u32 %v2933, 4294901760
    %v6239 = vsub.f32 %v2933, %v6238
    %v6240 = vand.u32 %v6239, 4294901760
    %6241 = vmatpush1.msra.mxu0 %v6240
    %6242 = vmatprep.subr.mxu0 0.0
    %v6243 = vand.u32 %v2934, 4294901760
    %v6244 = vsub.f32 %v2934, %v6243
    %v6245 = vand.u32 %v6244, 4294901760
    %6246 = vmatpush1.msra.mxu0 %v6245
    %6247 = vmatprep.subr.mxu0 0.0
    %v6248 = vand.u32 %v2935, 4294901760
    %v6249 = vsub.f32 %v2935, %v6248
    %v6250 = vand.u32 %v6249, 4294901760
    %6251 = vmatpush1.msra.mxu0 %v6250
    %6252 = vmatprep.subr.mxu0 0.0
    %v6253 = vand.u32 %v2936, 4294901760
    %v6254 = vsub.f32 %v2936, %v6253
    %v6255 = vand.u32 %v6254, 4294901760
    %6256 = vmatpush1.msra.mxu0 %v6255
    %6257 = vmatprep.subr.mxu0 0.0
    %v6258 = vand.u32 %v2937, 4294901760
    %v6259 = vsub.f32 %v2937, %v6258
    %v6260 = vand.u32 %v6259, 4294901760
    %6261 = vmatpush1.msra.mxu0 %v6260
    %6262 = vmatprep.subr.mxu0 0.0
    %v6263 = vand.u32 %v2938, 4294901760
    %v6264 = vsub.f32 %v2938, %v6263
    %v6265 = vand.u32 %v6264, 4294901760
    %6266 = vmatpush1.msra.mxu0 %v6265
    %6267 = vmatprep.subr.mxu0 0.0
    %v6268 = vand.u32 %v2939, 4294901760
    %v6269 = vsub.f32 %v2939, %v6268
    %v6270 = vand.u32 %v6269, 4294901760
    %6271 = vmatpush1.msra.mxu0 %v6270
    %6272 = vmatprep.subr.mxu0 0.0
    %v6273 = vand.u32 %v2940, 4294901760
    %v6274 = vsub.f32 %v2940, %v6273
    %v6275 = vand.u32 %v6274, 4294901760
    %6276 = vmatpush1.msra.mxu0 %v6275
    %v6277 = vand.u32 %v2812, 4294901760
    %6278 = vmatprep.mubr.f32.mxu0 %v6277
    %v6279 = vand.u32 %v2811, 4294901760
    %6280 = vmatmul.mubr.f32.gmra.mrb[0].mxu0 %v6279
    %v6281 = vpop.f32.mrb[0].mxu0
    %v6282 = vadd.f32 %v6114, %v6281
    %v6283 = vpop.f32.mrb[0].mxu0
    %6284 = vdwg.mxu0
    %6285 = vmatprep.subr.mxu0 0.0
    %v6286 = vand.u32 %v2909, 4294901760
    %6287 = vmatpush1.msra.mxu0 %v6286
    %6288 = vmatprep.subr.mxu0 0.0
    %v6289 = vand.u32 %v2910, 4294901760
    %6290 = vmatpush1.msra.mxu0 %v6289
    %6291 = vmatprep.subr.mxu0 0.0
    %v6292 = vand.u32 %v2911, 4294901760
    %6293 = vmatpush1.msra.mxu0 %v6292
    %6294 = vmatprep.subr.mxu0 0.0
    %v6295 = vand.u32 %v2912, 4294901760
    %6296 = vmatpush1.msra.mxu0 %v6295
    %6297 = vmatprep.subr.mxu0 0.0
    %v6298 = vand.u32 %v2913, 4294901760
    %6299 = vmatpush1.msra.mxu0 %v6298
    %6300 = vmatprep.subr.mxu0 0.0
    %v6301 = vand.u32 %v2914, 4294901760
    %6302 = vmatpush1.msra.mxu0 %v6301
    %6303 = vmatprep.subr.mxu0 0.0
    %v6304 = vand.u32 %v2915, 4294901760
    %6305 = vmatpush1.msra.mxu0 %v6304
    %6306 = vmatprep.subr.mxu0 0.0
    %v6307 = vand.u32 %v2916, 4294901760
    %6308 = vmatpush1.msra.mxu0 %v6307
    %6309 = vmatprep.subr.mxu0 0.0
    %v6310 = vand.u32 %v2917, 4294901760
    %6311 = vmatpush1.msra.mxu0 %v6310
    %6312 = vmatprep.subr.mxu0 0.0
    %v6313 = vand.u32 %v2918, 4294901760
    %6314 = vmatpush1.msra.mxu0 %v6313
    %6315 = vmatprep.subr.mxu0 0.0
    %v6316 = vand.u32 %v2919, 4294901760
    %6317 = vmatpush1.msra.mxu0 %v6316
    %6318 = vmatprep.subr.mxu0 0.0
    %v6319 = vand.u32 %v2920, 4294901760
    %6320 = vmatpush1.msra.mxu0 %v6319
    %6321 = vmatprep.subr.mxu0 0.0
    %v6322 = vand.u32 %v2921, 4294901760
    %6323 = vmatpush1.msra.mxu0 %v6322
    %6324 = vmatprep.subr.mxu0 0.0
    %v6325 = vand.u32 %v2922, 4294901760
    %6326 = vmatpush1.msra.mxu0 %v6325
    %6327 = vmatprep.subr.mxu0 0.0
    %v6328 = vand.u32 %v2923, 4294901760
    %6329 = vmatpush1.msra.mxu0 %v6328
    %6330 = vmatprep.subr.mxu0 0.0
    %v6331 = vand.u32 %v2924, 4294901760
    %6332 = vmatpush1.msra.mxu0 %v6331
    %6333 = vmatprep.subr.mxu0 0.0
    %v6334 = vand.u32 %v2925, 4294901760
    %6335 = vmatpush1.msra.mxu0 %v6334
    %6336 = vmatprep.subr.mxu0 0.0
    %v6337 = vand.u32 %v2926, 4294901760
    %6338 = vmatpush1.msra.mxu0 %v6337
    %6339 = vmatprep.subr.mxu0 0.0
    %v6340 = vand.u32 %v2927, 4294901760
    %6341 = vmatpush1.msra.mxu0 %v6340
    %6342 = vmatprep.subr.mxu0 0.0
    %v6343 = vand.u32 %v2928, 4294901760
    %6344 = vmatpush1.msra.mxu0 %v6343
    %6345 = vmatprep.subr.mxu0 0.0
    %v6346 = vand.u32 %v2929, 4294901760
    %6347 = vmatpush1.msra.mxu0 %v6346
    %6348 = vmatprep.subr.mxu0 0.0
    %v6349 = vand.u32 %v2930, 4294901760
    %6350 = vmatpush1.msra.mxu0 %v6349
    %6351 = vmatprep.subr.mxu0 0.0
    %v6352 = vand.u32 %v2931, 4294901760
    %6353 = vmatpush1.msra.mxu0 %v6352
    %6354 = vmatprep.subr.mxu0 0.0
    %v6355 = vand.u32 %v2932, 4294901760
    %6356 = vmatpush1.msra.mxu0 %v6355
    %6357 = vmatprep.subr.mxu0 0.0
    %v6358 = vand.u32 %v2933, 4294901760
    %6359 = vmatpush1.msra.mxu0 %v6358
    %6360 = vmatprep.subr.mxu0 0.0
    %v6361 = vand.u32 %v2934, 4294901760
    %6362 = vmatpush1.msra.mxu0 %v6361
    %6363 = vmatprep.subr.mxu0 0.0
    %v6364 = vand.u32 %v2935, 4294901760
    %6365 = vmatpush1.msra.mxu0 %v6364
    %6366 = vmatprep.subr.mxu0 0.0
    %v6367 = vand.u32 %v2936, 4294901760
    %6368 = vmatpush1.msra.mxu0 %v6367
    %6369 = vmatprep.subr.mxu0 0.0
    %v6370 = vand.u32 %v2937, 4294901760
    %6371 = vmatpush1.msra.mxu0 %v6370
    %6372 = vmatprep.subr.mxu0 0.0
    %v6373 = vand.u32 %v2938, 4294901760
    %6374 = vmatpush1.msra.mxu0 %v6373
    %6375 = vmatprep.subr.mxu0 0.0
    %v6376 = vand.u32 %v2939, 4294901760
    %6377 = vmatpush1.msra.mxu0 %v6376
    %6378 = vmatprep.subr.mxu0 0.0
    %v6379 = vand.u32 %v2940, 4294901760
    %6380 = vmatpush1.msra.mxu0 %v6379
    %v6381 = vand.u32 %v2812, 4294901760
    %6382 = vmatprep.mubr.f32.mxu0 %v6381
    %v6383 = vand.u32 %v2811, 4294901760
    %6384 = vmatmul.mubr.f32.gmra.mrb[0].mxu0 %v6383
    %v6385 = vpop.f32.mrb[0].mxu0
    %v6386 = vadd.f32 %v6282, %v6385
    %v6387 = vpop.f32.mrb[0].mxu0
    %6388 = vdwg.mxu0
    %v6389 = vld [vmem:[%s3] sm:$0xff]
    %v6390 = vld [vmem:[%s3 + $0x8] sm:$0xff]
    %v6391 = vlaneseq
    %v6392 = vshrl.u32 %v6391, 7
    %v6393 = vsub.s32 0, %v6392
    %v6394 = vrot.slane %v57, %v6393
    %vm6395 = vcmask 130048
    %v6397 = vsel %vm6395, %v47, 0
    %6399 = vmatprep.subr.mxu0 0.0
    %v6400 = vand.u32 %v6389, 4294901760
    %6401 = vmatpush1.msra.mxu0 %v6400
    %6402 = vmatprep.subr.mxu0 0.0
    %v6403 = vand.u32 %v6390, 4294901760
    %6404 = vmatpush1.msra.mxu0 %v6403
    %6405 = vmatprep.subr.mxu0 0.0
    %6406 = vmatpush1.msra.mxu0 0.0
    %6407 = vmatprep.subr.mxu0 0.0
    %6408 = vmatpush1.msra.mxu0 0.0
    %6409 = vmatprep.subr.mxu0 0.0
    %6410 = vmatpush1.msra.mxu0 0.0
    %6411 = vmatprep.subr.mxu0 0.0
    %6412 = vmatpush1.msra.mxu0 0.0
    %6413 = vmatprep.subr.mxu0 0.0
    %6414 = vmatpush1.msra.mxu0 0.0
    %6415 = vmatprep.subr.mxu0 0.0
    %6416 = vmatpush1.msra.mxu0 0.0
    %6417 = vmatprep.subr.mxu0 0.0
    %6418 = vmatpush1.msra.mxu0 0.0
    %6419 = vmatprep.subr.mxu0 0.0
    %6420 = vmatpush1.msra.mxu0 0.0
    %6421 = vmatprep.subr.mxu0 0.0
    %6422 = vmatpush1.msra.mxu0 0.0
    %6423 = vmatprep.subr.mxu0 0.0
    %6424 = vmatpush1.msra.mxu0 0.0
    %6425 = vmatprep.subr.mxu0 0.0
    %6426 = vmatpush1.msra.mxu0 0.0
    %6427 = vmatprep.subr.mxu0 0.0
    %6428 = vmatpush1.msra.mxu0 0.0
    %6429 = vmatprep.subr.mxu0 0.0
    %6430 = vmatpush1.msra.mxu0 0.0
    %6431 = vmatprep.subr.mxu0 0.0
    %6432 = vmatpush1.msra.mxu0 0.0
    %6433 = vmatprep.subr.mxu0 0.0
    %6434 = vmatpush1.msra.mxu0 0.0
    %6435 = vmatprep.subr.mxu0 0.0
    %6436 = vmatpush1.msra.mxu0 0.0
    %6437 = vmatprep.subr.mxu0 0.0
    %6438 = vmatpush1.msra.mxu0 0.0
    %6439 = vmatprep.subr.mxu0 0.0
    %6440 = vmatpush1.msra.mxu0 0.0
    %6441 = vmatprep.subr.mxu0 0.0
    %6442 = vmatpush1.msra.mxu0 0.0
    %6443 = vmatprep.subr.mxu0 0.0
    %6444 = vmatpush1.msra.mxu0 0.0
    %6445 = vmatprep.subr.mxu0 0.0
    %6446 = vmatpush1.msra.mxu0 0.0
    %6447 = vmatprep.subr.mxu0 0.0
    %6448 = vmatpush1.msra.mxu0 0.0
    %6449 = vmatprep.subr.mxu0 0.0
    %6450 = vmatpush1.msra.mxu0 0.0
    %6451 = vmatprep.subr.mxu0 0.0
    %6452 = vmatpush1.msra.mxu0 0.0
    %6453 = vmatprep.subr.mxu0 0.0
    %6454 = vmatpush1.msra.mxu0 0.0
    %6455 = vmatprep.subr.mxu0 0.0
    %6456 = vmatpush1.msra.mxu0 0.0
    %6457 = vmatprep.subr.mxu0 0.0
    %6458 = vmatpush1.msra.mxu0 0.0
    %6459 = vmatprep.subr.mxu0 0.0
    %6460 = vmatpush1.msra.mxu0 0.0
    %6461 = vmatprep.subr.mxu0 0.0
    %6462 = vmatpush1.msra.mxu0 0.0
    %6463 = vmatprep.subr.mxu0 0.0
    %6464 = vmatpush1.msra.mxu0 0.0
    %6465 = vmatprep.mubr.f32.mxu0 0.0
    %v6466 = vand.u32 %v6397, 4294901760
    %v6467 = vsub.f32 %v6397, %v6466
    %v6468 = vand.u32 %v6467, 4294901760
    %v6469 = vsub.f32 %v6467, %v6468
    %v6470 = vand.u32 %v6469, 4294901760
    %6471 = vmatmul.mubr.f32.gmra.mrb[0].mxu0 %v6470
    %v6472 = vpop.f32.mrb[0].mxu0
    %v6473 = vadd.f32 %v6394, %v6472
    %v6474 = vpop.f32.mrb[0].mxu0
    %6475 = vdwg.mxu0
    %6476 = vmatprep.subr.mxu0 0.0
    %v6477 = vand.u32 %v6389, 4294901760
    %v6478 = vsub.f32 %v6389, %v6477
    %v6479 = vand.u32 %v6478, 4294901760
    %v6480 = vsub.f32 %v6478, %v6479
    %v6481 = vand.u32 %v6480, 4294901760
    %6482 = vmatpush1.msra.mxu0 %v6481
    %6483 = vmatprep.subr.mxu0 0.0
    %v6484 = vand.u32 %v6390, 4294901760
    %v6485 = vsub.f32 %v6390, %v6484
    %v6486 = vand.u32 %v6485, 4294901760
    %v6487 = vsub.f32 %v6485, %v6486
    %v6488 = vand.u32 %v6487, 4294901760
    %6489 = vmatpush1.msra.mxu0 %v6488
    %6490 = vmatprep.subr.mxu0 0.0
    %6491 = vmatpush1.msra.mxu0 0.0
    %6492 = vmatprep.subr.mxu0 0.0
    %6493 = vmatpush1.msra.mxu0 0.0
    %6494 = vmatprep.subr.mxu0 0.0
    %6495 = vmatpush1.msra.mxu0 0.0
    %6496 = vmatprep.subr.mxu0 0.0
    %6497 = vmatpush1.msra.mxu0 0.0
    %6498 = vmatprep.subr.mxu0 0.0
    %6499 = vmatpush1.msra.mxu0 0.0
    %6500 = vmatprep.subr.mxu0 0.0
    %6501 = vmatpush1.msra.mxu0 0.0
    %6502 = vmatprep.subr.mxu0 0.0
    %6503 = vmatpush1.msra.mxu0 0.0
    %6504 = vmatprep.subr.mxu0 0.0
    %6505 = vmatpush1.msra.mxu0 0.0
    %6506 = vmatprep.subr.mxu0 0.0
    %6507 = vmatpush1.msra.mxu0 0.0
    %6508 = vmatprep.subr.mxu0 0.0
    %6509 = vmatpush1.msra.mxu0 0.0
    %6510 = vmatprep.subr.mxu0 0.0
    %6511 = vmatpush1.msra.mxu0 0.0
    %6512 = vmatprep.subr.mxu0 0.0
    %6513 = vmatpush1.msra.mxu0 0.0
    %6514 = vmatprep.subr.mxu0 0.0
    %6515 = vmatpush1.msra.mxu0 0.0
    %6516 = vmatprep.subr.mxu0 0.0
    %6517 = vmatpush1.msra.mxu0 0.0
    %6518 = vmatprep.subr.mxu0 0.0
    %6519 = vmatpush1.msra.mxu0 0.0
    %6520 = vmatprep.subr.mxu0 0.0
    %6521 = vmatpush1.msra.mxu0 0.0
    %6522 = vmatprep.subr.mxu0 0.0
    %6523 = vmatpush1.msra.mxu0 0.0
    %6524 = vmatprep.subr.mxu0 0.0
    %6525 = vmatpush1.msra.mxu0 0.0
    %6526 = vmatprep.subr.mxu0 0.0
    %6527 = vmatpush1.msra.mxu0 0.0
    %6528 = vmatprep.subr.mxu0 0.0
    %6529 = vmatpush1.msra.mxu0 0.0
    %6530 = vmatprep.subr.mxu0 0.0
    %6531 = vmatpush1.msra.mxu0 0.0
    %6532 = vmatprep.subr.mxu0 0.0
    %6533 = vmatpush1.msra.mxu0 0.0
    %6534 = vmatprep.subr.mxu0 0.0
    %6535 = vmatpush1.msra.mxu0 0.0
    %6536 = vmatprep.subr.mxu0 0.0
    %6537 = vmatpush1.msra.mxu0 0.0
    %6538 = vmatprep.subr.mxu0 0.0
    %6539 = vmatpush1.msra.mxu0 0.0
    %6540 = vmatprep.subr.mxu0 0.0
    %6541 = vmatpush1.msra.mxu0 0.0
    %6542 = vmatprep.subr.mxu0 0.0
    %6543 = vmatpush1.msra.mxu0 0.0
    %6544 = vmatprep.subr.mxu0 0.0
    %6545 = vmatpush1.msra.mxu0 0.0
    %6546 = vmatprep.subr.mxu0 0.0
    %6547 = vmatpush1.msra.mxu0 0.0
    %6548 = vmatprep.subr.mxu0 0.0
    %6549 = vmatpush1.msra.mxu0 0.0
    %6550 = vmatprep.mubr.f32.mxu0 0.0
    %v6551 = vand.u32 %v6397, 4294901760
    %6552 = vmatmul.mubr.f32.gmra.mrb[0].mxu0 %v6551
    %v6553 = vpop.f32.mrb[0].mxu0
    %v6554 = vadd.f32 %v6473, %v6553
    %v6555 = vpop.f32.mrb[0].mxu0
    %6556 = vdwg.mxu0
    %6557 = vmatprep.subr.mxu0 0.0
    %v6558 = vand.u32 %v6389, 4294901760
    %v6559 = vsub.f32 %v6389, %v6558
    %6560 = vmatpush1.msra.mxu0 %v6559
    %6561 = vmatprep.subr.mxu0 0.0
    %v6562 = vand.u32 %v6390, 4294901760
    %v6563 = vsub.f32 %v6390, %v6562
    %6564 = vmatpush1.msra.mxu0 %v6563
    %6565 = vmatprep.subr.mxu0 0.0
    %6566 = vmatpush1.msra.mxu0 0.0
    %6567 = vmatprep.subr.mxu0 0.0
    %6568 = vmatpush1.msra.mxu0 0.0
    %6569 = vmatprep.subr.mxu0 0.0
    %6570 = vmatpush1.msra.mxu0 0.0
    %6571 = vmatprep.subr.mxu0 0.0
    %6572 = vmatpush1.msra.mxu0 0.0
    %6573 = vmatprep.subr.mxu0 0.0
    %6574 = vmatpush1.msra.mxu0 0.0
    %6575 = vmatprep.subr.mxu0 0.0
    %6576 = vmatpush1.msra.mxu0 0.0
    %6577 = vmatprep.subr.mxu0 0.0
    %6578 = vmatpush1.msra.mxu0 0.0
    %6579 = vmatprep.subr.mxu0 0.0
    %6580 = vmatpush1.msra.mxu0 0.0
    %6581 = vmatprep.subr.mxu0 0.0
    %6582 = vmatpush1.msra.mxu0 0.0
    %6583 = vmatprep.subr.mxu0 0.0
    %6584 = vmatpush1.msra.mxu0 0.0
    %6585 = vmatprep.subr.mxu0 0.0
    %6586 = vmatpush1.msra.mxu0 0.0
    %6587 = vmatprep.subr.mxu0 0.0
    %6588 = vmatpush1.msra.mxu0 0.0
    %6589 = vmatprep.subr.mxu0 0.0
    %6590 = vmatpush1.msra.mxu0 0.0
    %6591 = vmatprep.subr.mxu0 0.0
    %6592 = vmatpush1.msra.mxu0 0.0
    %6593 = vmatprep.subr.mxu0 0.0
    %6594 = vmatpush1.msra.mxu0 0.0
    %6595 = vmatprep.subr.mxu0 0.0
    %6596 = vmatpush1.msra.mxu0 0.0
    %6597 = vmatprep.subr.mxu0 0.0
    %6598 = vmatpush1.msra.mxu0 0.0
    %6599 = vmatprep.subr.mxu0 0.0
    %6600 = vmatpush1.msra.mxu0 0.0
    %6601 = vmatprep.subr.mxu0 0.0
    %6602 = vmatpush1.msra.mxu0 0.0
    %6603 = vmatprep.subr.mxu0 0.0
    %6604 = vmatpush1.msra.mxu0 0.0
    %6605 = vmatprep.subr.mxu0 0.0
    %6606 = vmatpush1.msra.mxu0 0.0
    %6607 = vmatprep.subr.mxu0 0.0
    %6608 = vmatpush1.msra.mxu0 0.0
    %6609 = vmatprep.subr.mxu0 0.0
    %6610 = vmatpush1.msra.mxu0 0.0
    %6611 = vmatprep.subr.mxu0 0.0
    %6612 = vmatpush1.msra.mxu0 0.0
    %6613 = vmatprep.subr.mxu0 0.0
    %6614 = vmatpush1.msra.mxu0 0.0
    %6615 = vmatprep.subr.mxu0 0.0
    %6616 = vmatpush1.msra.mxu0 0.0
    %6617 = vmatprep.subr.mxu0 0.0
    %6618 = vmatpush1.msra.mxu0 0.0
    %6619 = vmatprep.subr.mxu0 0.0
    %6620 = vmatpush1.msra.mxu0 0.0
    %6621 = vmatprep.subr.mxu0 0.0
    %6622 = vmatpush1.msra.mxu0 0.0
    %6623 = vmatprep.subr.mxu0 0.0
    %6624 = vmatpush1.msra.mxu0 0.0
    %6625 = vmatprep.mubr.f32.mxu0 0.0
    %v6626 = vand.u32 %v6397, 4294901760
    %v6627 = vsub.f32 %v6397, %v6626
    %6628 = vmatmul.mubr.f32.gmra.mrb[0].mxu0 %v6627
    %v6629 = vpop.f32.mrb[0].mxu0
    %v6630 = vadd.f32 %v6554, %v6629
    %v6631 = vpop.f32.mrb[0].mxu0
    %6632 = vdwg.mxu0
    %6633 = vmatprep.subr.mxu0 0.0
    %v6634 = vand.u32 %v6389, 4294901760
    %6635 = vmatpush1.msra.mxu0 %v6634
    %6636 = vmatprep.subr.mxu0 0.0
    %v6637 = vand.u32 %v6390, 4294901760
    %6638 = vmatpush1.msra.mxu0 %v6637
    %6639 = vmatprep.subr.mxu0 0.0
    %6640 = vmatpush1.msra.mxu0 0.0
    %6641 = vmatprep.subr.mxu0 0.0
    %6642 = vmatpush1.msra.mxu0 0.0
    %6643 = vmatprep.subr.mxu0 0.0
    %6644 = vmatpush1.msra.mxu0 0.0
    %6645 = vmatprep.subr.mxu0 0.0
    %6646 = vmatpush1.msra.mxu0 0.0
    %6647 = vmatprep.subr.mxu0 0.0
    %6648 = vmatpush1.msra.mxu0 0.0
    %6649 = vmatprep.subr.mxu0 0.0
    %6650 = vmatpush1.msra.mxu0 0.0
    %6651 = vmatprep.subr.mxu0 0.0
    %6652 = vmatpush1.msra.mxu0 0.0
    %6653 = vmatprep.subr.mxu0 0.0
    %6654 = vmatpush1.msra.mxu0 0.0
    %6655 = vmatprep.subr.mxu0 0.0
    %6656 = vmatpush1.msra.mxu0 0.0
    %6657 = vmatprep.subr.mxu0 0.0
    %6658 = vmatpush1.msra.mxu0 0.0
    %6659 = vmatprep.subr.mxu0 0.0
    %6660 = vmatpush1.msra.mxu0 0.0
    %6661 = vmatprep.subr.mxu0 0.0
    %6662 = vmatpush1.msra.mxu0 0.0
    %6663 = vmatprep.subr.mxu0 0.0
    %6664 = vmatpush1.msra.mxu0 0.0
    %6665 = vmatprep.subr.mxu0 0.0
    %6666 = vmatpush1.msra.mxu0 0.0
    %6667 = vmatprep.subr.mxu0 0.0
    %6668 = vmatpush1.msra.mxu0 0.0
    %6669 = vmatprep.subr.mxu0 0.0
    %6670 = vmatpush1.msra.mxu0 0.0
    %6671 = vmatprep.subr.mxu0 0.0
    %6672 = vmatpush1.msra.mxu0 0.0
    %6673 = vmatprep.subr.mxu0 0.0
    %6674 = vmatpush1.msra.mxu0 0.0
    %6675 = vmatprep.subr.mxu0 0.0
    %6676 = vmatpush1.msra.mxu0 0.0
    %6677 = vmatprep.subr.mxu0 0.0
    %6678 = vmatpush1.msra.mxu0 0.0
    %6679 = vmatprep.subr.mxu0 0.0
    %6680 = vmatpush1.msra.mxu0 0.0
    %6681 = vmatprep.subr.mxu0 0.0
    %6682 = vmatpush1.msra.mxu0 0.0
    %6683 = vmatprep.subr.mxu0 0.0
    %6684 = vmatpush1.msra.mxu0 0.0
    %6685 = vmatprep.subr.mxu0 0.0
    %6686 = vmatpush1.msra.mxu0 0.0
    %6687 = vmatprep.subr.mxu0 0.0
    %6688 = vmatpush1.msra.mxu0 0.0
    %6689 = vmatprep.subr.mxu0 0.0
    %6690 = vmatpush1.msra.mxu0 0.0
    %6691 = vmatprep.subr.mxu0 0.0
    %6692 = vmatpush1.msra.mxu0 0.0
    %6693 = vmatprep.subr.mxu0 0.0
    %6694 = vmatpush1.msra.mxu0 0.0
    %6695 = vmatprep.subr.mxu0 0.0
    %6696 = vmatpush1.msra.mxu0 0.0
    %6697 = vmatprep.subr.mxu0 0.0
    %6698 = vmatpush1.msra.mxu0 0.0
    %6699 = vmatprep.mubr.f32.mxu0 0.0
    %v6700 = vand.u32 %v6397, 4294901760
    %v6701 = vsub.f32 %v6397, %v6700
    %v6702 = vand.u32 %v6701, 4294901760
    %6703 = vmatmul.mubr.f32.gmra.mrb[0].mxu0 %v6702
    %v6704 = vpop.f32.mrb[0].mxu0
    %v6705 = vadd.f32 %v6630, %v6704
    %v6706 = vpop.f32.mrb[0].mxu0
    %6707 = vdwg.mxu0
    %6708 = vmatprep.subr.mxu0 0.0
    %v6709 = vand.u32 %v6389, 4294901760
    %v6710 = vsub.f32 %v6389, %v6709
    %v6711 = vand.u32 %v6710, 4294901760
    %6712 = vmatpush1.msra.mxu0 %v6711
    %6713 = vmatprep.subr.mxu0 0.0
    %v6714 = vand.u32 %v6390, 4294901760
    %v6715 = vsub.f32 %v6390, %v6714
    %v6716 = vand.u32 %v6715, 4294901760
    %6717 = vmatpush1.msra.mxu0 %v6716
    %6718 = vmatprep.subr.mxu0 0.0
    %6719 = vmatpush1.msra.mxu0 0.0
    %6720 = vmatprep.subr.mxu0 0.0
    %6721 = vmatpush1.msra.mxu0 0.0
    %6722 = vmatprep.subr.mxu0 0.0
    %6723 = vmatpush1.msra.mxu0 0.0
    %6724 = vmatprep.subr.mxu0 0.0
    %6725 = vmatpush1.msra.mxu0 0.0
    %6726 = vmatprep.subr.mxu0 0.0
    %6727 = vmatpush1.msra.mxu0 0.0
    %6728 = vmatprep.subr.mxu0 0.0
    %6729 = vmatpush1.msra.mxu0 0.0
    %6730 = vmatprep.subr.mxu0 0.0
    %6731 = vmatpush1.msra.mxu0 0.0
    %6732 = vmatprep.subr.mxu0 0.0
    %6733 = vmatpush1.msra.mxu0 0.0
    %6734 = vmatprep.subr.mxu0 0.0
    %6735 = vmatpush1.msra.mxu0 0.0
    %6736 = vmatprep.subr.mxu0 0.0
    %6737 = vmatpush1.msra.mxu0 0.0
    %6738 = vmatprep.subr.mxu0 0.0
    %6739 = vmatpush1.msra.mxu0 0.0
    %6740 = vmatprep.subr.mxu0 0.0
    %6741 = vmatpush1.msra.mxu0 0.0
    %6742 = vmatprep.subr.mxu0 0.0
    %6743 = vmatpush1.msra.mxu0 0.0
    %6744 = vmatprep.subr.mxu0 0.0
    %6745 = vmatpush1.msra.mxu0 0.0
    %6746 = vmatprep.subr.mxu0 0.0
    %6747 = vmatpush1.msra.mxu0 0.0
    %6748 = vmatprep.subr.mxu0 0.0
    %6749 = vmatpush1.msra.mxu0 0.0
    %6750 = vmatprep.subr.mxu0 0.0
    %6751 = vmatpush1.msra.mxu0 0.0
    %6752 = vmatprep.subr.mxu0 0.0
    %6753 = vmatpush1.msra.mxu0 0.0
    %6754 = vmatprep.subr.mxu0 0.0
    %6755 = vmatpush1.msra.mxu0 0.0
    %6756 = vmatprep.subr.mxu0 0.0
    %6757 = vmatpush1.msra.mxu0 0.0
    %6758 = vmatprep.subr.mxu0 0.0
    %6759 = vmatpush1.msra.mxu0 0.0
    %6760 = vmatprep.subr.mxu0 0.0
    %6761 = vmatpush1.msra.mxu0 0.0
    %6762 = vmatprep.subr.mxu0 0.0
    %6763 = vmatpush1.msra.mxu0 0.0
    %6764 = vmatprep.subr.mxu0 0.0
    %6765 = vmatpush1.msra.mxu0 0.0
    %6766 = vmatprep.subr.mxu0 0.0
    %6767 = vmatpush1.msra.mxu0 0.0
    %6768 = vmatprep.subr.mxu0 0.0
    %6769 = vmatpush1.msra.mxu0 0.0
    %6770 = vmatprep.subr.mxu0 0.0
    %6771 = vmatpush1.msra.mxu0 0.0
    %6772 = vmatprep.subr.mxu0 0.0
    %6773 = vmatpush1.msra.mxu0 0.0
    %6774 = vmatprep.subr.mxu0 0.0
    %6775 = vmatpush1.msra.mxu0 0.0
    %6776 = vmatprep.subr.mxu0 0.0
    %6777 = vmatpush1.msra.mxu0 0.0
    %6778 = vmatprep.mubr.f32.mxu0 0.0
    %v6779 = vand.u32 %v6397, 4294901760
    %6780 = vmatmul.mubr.f32.gmra.mrb[0].mxu0 %v6779
    %v6781 = vpop.f32.mrb[0].mxu0
    %v6782 = vadd.f32 %v6705, %v6781
    %v6783 = vpop.f32.mrb[0].mxu0
    %6784 = vdwg.mxu0
    %6785 = vmatprep.subr.mxu0 0.0
    %v6786 = vand.u32 %v6389, 4294901760
    %6787 = vmatpush1.msra.mxu0 %v6786
    %6788 = vmatprep.subr.mxu0 0.0
    %v6789 = vand.u32 %v6390, 4294901760
    %6790 = vmatpush1.msra.mxu0 %v6789
    %6791 = vmatprep.subr.mxu0 0.0
    %6792 = vmatpush1.msra.mxu0 0.0
    %6793 = vmatprep.subr.mxu0 0.0
    %6794 = vmatpush1.msra.mxu0 0.0
    %6795 = vmatprep.subr.mxu0 0.0
    %6796 = vmatpush1.msra.mxu0 0.0
    %6797 = vmatprep.subr.mxu0 0.0
    %6798 = vmatpush1.msra.mxu0 0.0
    %6799 = vmatprep.subr.mxu0 0.0
    %6800 = vmatpush1.msra.mxu0 0.0
    %6801 = vmatprep.subr.mxu0 0.0
    %6802 = vmatpush1.msra.mxu0 0.0
    %6803 = vmatprep.subr.mxu0 0.0
    %6804 = vmatpush1.msra.mxu0 0.0
    %6805 = vmatprep.subr.mxu0 0.0
    %6806 = vmatpush1.msra.mxu0 0.0
    %6807 = vmatprep.subr.mxu0 0.0
    %6808 = vmatpush1.msra.mxu0 0.0
    %6809 = vmatprep.subr.mxu0 0.0
    %6810 = vmatpush1.msra.mxu0 0.0
    %6811 = vmatprep.subr.mxu0 0.0
    %6812 = vmatpush1.msra.mxu0 0.0
    %6813 = vmatprep.subr.mxu0 0.0
    %6814 = vmatpush1.msra.mxu0 0.0
    %6815 = vmatprep.subr.mxu0 0.0
    %6816 = vmatpush1.msra.mxu0 0.0
    %6817 = vmatprep.subr.mxu0 0.0
    %6818 = vmatpush1.msra.mxu0 0.0
    %6819 = vmatprep.subr.mxu0 0.0
    %6820 = vmatpush1.msra.mxu0 0.0
    %6821 = vmatprep.subr.mxu0 0.0
    %6822 = vmatpush1.msra.mxu0 0.0
    %6823 = vmatprep.subr.mxu0 0.0
    %6824 = vmatpush1.msra.mxu0 0.0
    %6825 = vmatprep.subr.mxu0 0.0
    %6826 = vmatpush1.msra.mxu0 0.0
    %6827 = vmatprep.subr.mxu0 0.0
    %6828 = vmatpush1.msra.mxu0 0.0
    %6829 = vmatprep.subr.mxu0 0.0
    %6830 = vmatpush1.msra.mxu0 0.0
    %6831 = vmatprep.subr.mxu0 0.0
    %6832 = vmatpush1.msra.mxu0 0.0
    %6833 = vmatprep.subr.mxu0 0.0
    %6834 = vmatpush1.msra.mxu0 0.0
    %6835 = vmatprep.subr.mxu0 0.0
    %6836 = vmatpush1.msra.mxu0 0.0
    %6837 = vmatprep.subr.mxu0 0.0
    %6838 = vmatpush1.msra.mxu0 0.0
    %6839 = vmatprep.subr.mxu0 0.0
    %6840 = vmatpush1.msra.mxu0 0.0
    %6841 = vmatprep.subr.mxu0 0.0
    %6842 = vmatpush1.msra.mxu0 0.0
    %6843 = vmatprep.subr.mxu0 0.0
    %6844 = vmatpush1.msra.mxu0 0.0
    %6845 = vmatprep.subr.mxu0 0.0
    %6846 = vmatpush1.msra.mxu0 0.0
    %6847 = vmatprep.subr.mxu0 0.0
    %6848 = vmatpush1.msra.mxu0 0.0
    %6849 = vmatprep.subr.mxu0 0.0
    %6850 = vmatpush1.msra.mxu0 0.0
    %6851 = vmatprep.mubr.f32.mxu0 0.0
    %v6852 = vand.u32 %v6397, 4294901760
    %6853 = vmatmul.mubr.f32.gmra.mrb[0].mxu0 %v6852
    %v6854 = vpop.f32.mrb[0].mxu0
    %v6855 = vadd.f32 %v6782, %v6854
    %v6856 = vpop.f32.mrb[0].mxu0
    %6857 = vdwg.mxu0
    %v6858 = vadd.f32 %v6855, %v2752
    %v6859 = vadd.f32 %v6858, %v6386
    %v6860 = vsel %vm90, %v6859, 0.0
    %6861 = vadd.xlane.f32.xlu0 %v6860
    %v6862 = vpop.xlane.xlu0 %6861
    %v6863 = vrcp.pop 32.0
    %v6864 = vmul.f32 %v6862, %v6863
    %v6865 = vsub.f32 %v6859, %v6864
    %v6866 = vmul.f32 %v6865, %v6865
    %v6867 = vsel %vm90, %v6866, 0.0
    %6868 = vadd.xlane.f32.xlu0 %v6867
    %v6869 = vpop.xlane.xlu0 %6868
    %v6870 = vmul.f32 %v6869, %v6863
    %v6871 = vadd.f32 %v6870, 1e-05
    %v6872 = vrsqrt.pop %v6871
    %v6873 = vmul.f32 %v6865, %v6872
    %v6874 = vlaneseq
    %v6875 = vshrl.u32 %v6874, 7
    %v6876 = vsub.s32 1, %v6875
    %v6877 = vrot.slane %v57, %v6876
    %v6878 = vmul.f32 %v6873, %v6877
    %v6879 = vlaneseq
    %v6880 = vshrl.u32 %v6879, 7
    %v6881 = vsub.s32 2, %v6880
    %v6882 = vrot.slane %v57, %v6881
    %v6883 = vadd.f32 %v6878, %v6882
    %v6884 = vtanh.pop %v6883
    %v6885 = vld [vmem:[%s6] sm:$0xff]
    %v6886 = vld [vmem:[%s6 + $0x8] sm:$0xff]
    %v6887 = vld [vmem:[%s6 + $0x10] sm:$0xff]
    %v6888 = vld [vmem:[%s6 + $0x18] sm:$0xff]
    %v6889 = vld [vmem:[%s7] sm:$0x1]
    %v6891 = vlaneseq
    %v6892 = vshrl.u32 %v6891, 7
    %v6893 = vsub.s32 0, %v6892
    %v6894 = vrot.slane %v6889, %v6893
    %v6897 = vsel %vm90, %v6884, 0
    %6899 = vmatprep.subr.mxu0 0.0
    %v6900 = vand.u32 %v6885, 4294901760
    %6901 = vmatpush1.msra.mxu0 %v6900
    %6902 = vmatprep.subr.mxu0 0.0
    %v6903 = vand.u32 %v6886, 4294901760
    %6904 = vmatpush1.msra.mxu0 %v6903
    %6905 = vmatprep.subr.mxu0 0.0
    %v6906 = vand.u32 %v6887, 4294901760
    %6907 = vmatpush1.msra.mxu0 %v6906
    %6908 = vmatprep.subr.mxu0 0.0
    %v6909 = vand.u32 %v6888, 4294901760
    %6910 = vmatpush1.msra.mxu0 %v6909
    %6911 = vmatprep.subr.mxu0 0.0
    %6912 = vmatpush1.msra.mxu0 0.0
    %6913 = vmatprep.subr.mxu0 0.0
    %6914 = vmatpush1.msra.mxu0 0.0
    %6915 = vmatprep.subr.mxu0 0.0
    %6916 = vmatpush1.msra.mxu0 0.0
    %6917 = vmatprep.subr.mxu0 0.0
    %6918 = vmatpush1.msra.mxu0 0.0
    %6919 = vmatprep.subr.mxu0 0.0
    %6920 = vmatpush1.msra.mxu0 0.0
    %6921 = vmatprep.subr.mxu0 0.0
    %6922 = vmatpush1.msra.mxu0 0.0
    %6923 = vmatprep.subr.mxu0 0.0
    %6924 = vmatpush1.msra.mxu0 0.0
    %6925 = vmatprep.subr.mxu0 0.0
    %6926 = vmatpush1.msra.mxu0 0.0
    %6927 = vmatprep.subr.mxu0 0.0
    %6928 = vmatpush1.msra.mxu0 0.0
    %6929 = vmatprep.subr.mxu0 0.0
    %6930 = vmatpush1.msra.mxu0 0.0
    %6931 = vmatprep.subr.mxu0 0.0
    %6932 = vmatpush1.msra.mxu0 0.0
    %6933 = vmatprep.subr.mxu0 0.0
    %6934 = vmatpush1.msra.mxu0 0.0
    %6935 = vmatprep.subr.mxu0 0.0
    %6936 = vmatpush1.msra.mxu0 0.0
    %6937 = vmatprep.subr.mxu0 0.0
    %6938 = vmatpush1.msra.mxu0 0.0
    %6939 = vmatprep.subr.mxu0 0.0
    %6940 = vmatpush1.msra.mxu0 0.0
    %6941 = vmatprep.subr.mxu0 0.0
    %6942 = vmatpush1.msra.mxu0 0.0
    %6943 = vmatprep.subr.mxu0 0.0
    %6944 = vmatpush1.msra.mxu0 0.0
    %6945 = vmatprep.subr.mxu0 0.0
    %6946 = vmatpush1.msra.mxu0 0.0
    %6947 = vmatprep.subr.mxu0 0.0
    %6948 = vmatpush1.msra.mxu0 0.0
    %6949 = vmatprep.subr.mxu0 0.0
    %6950 = vmatpush1.msra.mxu0 0.0
    %6951 = vmatprep.subr.mxu0 0.0
    %6952 = vmatpush1.msra.mxu0 0.0
    %6953 = vmatprep.subr.mxu0 0.0
    %6954 = vmatpush1.msra.mxu0 0.0
    %6955 = vmatprep.subr.mxu0 0.0
    %6956 = vmatpush1.msra.mxu0 0.0
    %6957 = vmatprep.subr.mxu0 0.0
    %6958 = vmatpush1.msra.mxu0 0.0
    %6959 = vmatprep.subr.mxu0 0.0
    %6960 = vmatpush1.msra.mxu0 0.0
    %6961 = vmatprep.subr.mxu0 0.0
    %6962 = vmatpush1.msra.mxu0 0.0
    %6963 = vmatprep.subr.mxu0 0.0
    %6964 = vmatpush1.msra.mxu0 0.0
    %6965 = vmatprep.subr.mxu0 0.0
    %6966 = vmatpush1.msra.mxu0 0.0
    %6967 = vmatprep.mubr.f32.mxu0 0.0
    %v6968 = vand.u32 %v6897, 4294901760
    %v6969 = vsub.f32 %v6897, %v6968
    %v6970 = vand.u32 %v6969, 4294901760
    %v6971 = vsub.f32 %v6969, %v6970
    %v6972 = vand.u32 %v6971, 4294901760
    %6973 = vmatmul.mubr.f32.gmra.mrb[0].mxu0 %v6972
    %v6974 = vpop.f32.mrb[0].mxu0
    %v6975 = vadd.f32 %v6894, %v6974
    %v6976 = vpop.f32.mrb[0].mxu0
    %6977 = vdwg.mxu0
    %6978 = vmatprep.subr.mxu0 0.0
    %v6979 = vand.u32 %v6885, 4294901760
    %v6980 = vsub.f32 %v6885, %v6979
    %v6981 = vand.u32 %v6980, 4294901760
    %v6982 = vsub.f32 %v6980, %v6981
    %v6983 = vand.u32 %v6982, 4294901760
    %6984 = vmatpush1.msra.mxu0 %v6983
    %6985 = vmatprep.subr.mxu0 0.0
    %v6986 = vand.u32 %v6886, 4294901760
    %v6987 = vsub.f32 %v6886, %v6986
    %v6988 = vand.u32 %v6987, 4294901760
    %v6989 = vsub.f32 %v6987, %v6988
    %v6990 = vand.u32 %v6989, 4294901760
    %6991 = vmatpush1.msra.mxu0 %v6990
    %6992 = vmatprep.subr.mxu0 0.0
    %v6993 = vand.u32 %v6887, 4294901760
    %v6994 = vsub.f32 %v6887, %v6993
    %v6995 = vand.u32 %v6994, 4294901760
    %v6996 = vsub.f32 %v6994, %v6995
    %v6997 = vand.u32 %v6996, 4294901760
    %6998 = vmatpush1.msra.mxu0 %v6997
    %6999 = vmatprep.subr.mxu0 0.0
    %v7000 = vand.u32 %v6888, 4294901760
    %v7001 = vsub.f32 %v6888, %v7000
    %v7002 = vand.u32 %v7001, 4294901760
    %v7003 = vsub.f32 %v7001, %v7002
    %v7004 = vand.u32 %v7003, 4294901760
    %7005 = vmatpush1.msra.mxu0 %v7004
    %7006 = vmatprep.subr.mxu0 0.0
    %7007 = vmatpush1.msra.mxu0 0.0
    %7008 = vmatprep.subr.mxu0 0.0
    %7009 = vmatpush1.msra.mxu0 0.0
    %7010 = vmatprep.subr.mxu0 0.0
    %7011 = vmatpush1.msra.mxu0 0.0
    %7012 = vmatprep.subr.mxu0 0.0
    %7013 = vmatpush1.msra.mxu0 0.0
    %7014 = vmatprep.subr.mxu0 0.0
    %7015 = vmatpush1.msra.mxu0 0.0
    %7016 = vmatprep.subr.mxu0 0.0
    %7017 = vmatpush1.msra.mxu0 0.0
    %7018 = vmatprep.subr.mxu0 0.0
    %7019 = vmatpush1.msra.mxu0 0.0
    %7020 = vmatprep.subr.mxu0 0.0
    %7021 = vmatpush1.msra.mxu0 0.0
    %7022 = vmatprep.subr.mxu0 0.0
    %7023 = vmatpush1.msra.mxu0 0.0
    %7024 = vmatprep.subr.mxu0 0.0
    %7025 = vmatpush1.msra.mxu0 0.0
    %7026 = vmatprep.subr.mxu0 0.0
    %7027 = vmatpush1.msra.mxu0 0.0
    %7028 = vmatprep.subr.mxu0 0.0
    %7029 = vmatpush1.msra.mxu0 0.0
    %7030 = vmatprep.subr.mxu0 0.0
    %7031 = vmatpush1.msra.mxu0 0.0
    %7032 = vmatprep.subr.mxu0 0.0
    %7033 = vmatpush1.msra.mxu0 0.0
    %7034 = vmatprep.subr.mxu0 0.0
    %7035 = vmatpush1.msra.mxu0 0.0
    %7036 = vmatprep.subr.mxu0 0.0
    %7037 = vmatpush1.msra.mxu0 0.0
    %7038 = vmatprep.subr.mxu0 0.0
    %7039 = vmatpush1.msra.mxu0 0.0
    %7040 = vmatprep.subr.mxu0 0.0
    %7041 = vmatpush1.msra.mxu0 0.0
    %7042 = vmatprep.subr.mxu0 0.0
    %7043 = vmatpush1.msra.mxu0 0.0
    %7044 = vmatprep.subr.mxu0 0.0
    %7045 = vmatpush1.msra.mxu0 0.0
    %7046 = vmatprep.subr.mxu0 0.0
    %7047 = vmatpush1.msra.mxu0 0.0
    %7048 = vmatprep.subr.mxu0 0.0
    %7049 = vmatpush1.msra.mxu0 0.0
    %7050 = vmatprep.subr.mxu0 0.0
    %7051 = vmatpush1.msra.mxu0 0.0
    %7052 = vmatprep.subr.mxu0 0.0
    %7053 = vmatpush1.msra.mxu0 0.0
    %7054 = vmatprep.subr.mxu0 0.0
    %7055 = vmatpush1.msra.mxu0 0.0
    %7056 = vmatprep.subr.mxu0 0.0
    %7057 = vmatpush1.msra.mxu0 0.0
    %7058 = vmatprep.subr.mxu0 0.0
    %7059 = vmatpush1.msra.mxu0 0.0
    %7060 = vmatprep.subr.mxu0 0.0
    %7061 = vmatpush1.msra.mxu0 0.0
    %7062 = vmatprep.mubr.f32.mxu0 0.0
    %v7063 = vand.u32 %v6897, 4294901760
    %7064 = vmatmul.mubr.f32.gmra.mrb[0].mxu0 %v7063
    %v7065 = vpop.f32.mrb[0].mxu0
    %v7066 = vadd.f32 %v6975, %v7065
    %v7067 = vpop.f32.mrb[0].mxu0
    %7068 = vdwg.mxu0
    %7069 = vmatprep.subr.mxu0 0.0
    %v7070 = vand.u32 %v6885, 4294901760
    %v7071 = vsub.f32 %v6885, %v7070
    %7072 = vmatpush1.msra.mxu0 %v7071
    %7073 = vmatprep.subr.mxu0 0.0
    %v7074 = vand.u32 %v6886, 4294901760
    %v7075 = vsub.f32 %v6886, %v7074
    %7076 = vmatpush1.msra.mxu0 %v7075
    %7077 = vmatprep.subr.mxu0 0.0
    %v7078 = vand.u32 %v6887, 4294901760
    %v7079 = vsub.f32 %v6887, %v7078
    %7080 = vmatpush1.msra.mxu0 %v7079
    %7081 = vmatprep.subr.mxu0 0.0
    %v7082 = vand.u32 %v6888, 4294901760
    %v7083 = vsub.f32 %v6888, %v7082
    %7084 = vmatpush1.msra.mxu0 %v7083
    %7085 = vmatprep.subr.mxu0 0.0
    %7086 = vmatpush1.msra.mxu0 0.0
    %7087 = vmatprep.subr.mxu0 0.0
    %7088 = vmatpush1.msra.mxu0 0.0
    %7089 = vmatprep.subr.mxu0 0.0
    %7090 = vmatpush1.msra.mxu0 0.0
    %7091 = vmatprep.subr.mxu0 0.0
    %7092 = vmatpush1.msra.mxu0 0.0
    %7093 = vmatprep.subr.mxu0 0.0
    %7094 = vmatpush1.msra.mxu0 0.0
    %7095 = vmatprep.subr.mxu0 0.0
    %7096 = vmatpush1.msra.mxu0 0.0
    %7097 = vmatprep.subr.mxu0 0.0
    %7098 = vmatpush1.msra.mxu0 0.0
    %7099 = vmatprep.subr.mxu0 0.0
    %7100 = vmatpush1.msra.mxu0 0.0
    %7101 = vmatprep.subr.mxu0 0.0
    %7102 = vmatpush1.msra.mxu0 0.0
    %7103 = vmatprep.subr.mxu0 0.0
    %7104 = vmatpush1.msra.mxu0 0.0
    %7105 = vmatprep.subr.mxu0 0.0
    %7106 = vmatpush1.msra.mxu0 0.0
    %7107 = vmatprep.subr.mxu0 0.0
    %7108 = vmatpush1.msra.mxu0 0.0
    %7109 = vmatprep.subr.mxu0 0.0
    %7110 = vmatpush1.msra.mxu0 0.0
    %7111 = vmatprep.subr.mxu0 0.0
    %7112 = vmatpush1.msra.mxu0 0.0
    %7113 = vmatprep.subr.mxu0 0.0
    %7114 = vmatpush1.msra.mxu0 0.0
    %7115 = vmatprep.subr.mxu0 0.0
    %7116 = vmatpush1.msra.mxu0 0.0
    %7117 = vmatprep.subr.mxu0 0.0
    %7118 = vmatpush1.msra.mxu0 0.0
    %7119 = vmatprep.subr.mxu0 0.0
    %7120 = vmatpush1.msra.mxu0 0.0
    %7121 = vmatprep.subr.mxu0 0.0
    %7122 = vmatpush1.msra.mxu0 0.0
    %7123 = vmatprep.subr.mxu0 0.0
    %7124 = vmatpush1.msra.mxu0 0.0
    %7125 = vmatprep.subr.mxu0 0.0
    %7126 = vmatpush1.msra.mxu0 0.0
    %7127 = vmatprep.subr.mxu0 0.0
    %7128 = vmatpush1.msra.mxu0 0.0
    %7129 = vmatprep.subr.mxu0 0.0
    %7130 = vmatpush1.msra.mxu0 0.0
    %7131 = vmatprep.subr.mxu0 0.0
    %7132 = vmatpush1.msra.mxu0 0.0
    %7133 = vmatprep.subr.mxu0 0.0
    %7134 = vmatpush1.msra.mxu0 0.0
    %7135 = vmatprep.subr.mxu0 0.0
    %7136 = vmatpush1.msra.mxu0 0.0
    %7137 = vmatprep.subr.mxu0 0.0
    %7138 = vmatpush1.msra.mxu0 0.0
    %7139 = vmatprep.subr.mxu0 0.0
    %7140 = vmatpush1.msra.mxu0 0.0
    %7141 = vmatprep.mubr.f32.mxu0 0.0
    %v7142 = vand.u32 %v6897, 4294901760
    %v7143 = vsub.f32 %v6897, %v7142
    %7144 = vmatmul.mubr.f32.gmra.mrb[0].mxu0 %v7143
    %v7145 = vpop.f32.mrb[0].mxu0
    %v7146 = vadd.f32 %v7066, %v7145
    %v7147 = vpop.f32.mrb[0].mxu0
    %7148 = vdwg.mxu0
    %7149 = vmatprep.subr.mxu0 0.0
    %v7150 = vand.u32 %v6885, 4294901760
    %7151 = vmatpush1.msra.mxu0 %v7150
    %7152 = vmatprep.subr.mxu0 0.0
    %v7153 = vand.u32 %v6886, 4294901760
    %7154 = vmatpush1.msra.mxu0 %v7153
    %7155 = vmatprep.subr.mxu0 0.0
    %v7156 = vand.u32 %v6887, 4294901760
    %7157 = vmatpush1.msra.mxu0 %v7156
    %7158 = vmatprep.subr.mxu0 0.0
    %v7159 = vand.u32 %v6888, 4294901760
    %7160 = vmatpush1.msra.mxu0 %v7159
    %7161 = vmatprep.subr.mxu0 0.0
    %7162 = vmatpush1.msra.mxu0 0.0
    %7163 = vmatprep.subr.mxu0 0.0
    %7164 = vmatpush1.msra.mxu0 0.0
    %7165 = vmatprep.subr.mxu0 0.0
    %7166 = vmatpush1.msra.mxu0 0.0
    %7167 = vmatprep.subr.mxu0 0.0
    %7168 = vmatpush1.msra.mxu0 0.0
    %7169 = vmatprep.subr.mxu0 0.0
    %7170 = vmatpush1.msra.mxu0 0.0
    %7171 = vmatprep.subr.mxu0 0.0
    %7172 = vmatpush1.msra.mxu0 0.0
    %7173 = vmatprep.subr.mxu0 0.0
    %7174 = vmatpush1.msra.mxu0 0.0
    %7175 = vmatprep.subr.mxu0 0.0
    %7176 = vmatpush1.msra.mxu0 0.0
    %7177 = vmatprep.subr.mxu0 0.0
    %7178 = vmatpush1.msra.mxu0 0.0
    %7179 = vmatprep.subr.mxu0 0.0
    %7180 = vmatpush1.msra.mxu0 0.0
    %7181 = vmatprep.subr.mxu0 0.0
    %7182 = vmatpush1.msra.mxu0 0.0
    %7183 = vmatprep.subr.mxu0 0.0
    %7184 = vmatpush1.msra.mxu0 0.0
    %7185 = vmatprep.subr.mxu0 0.0
    %7186 = vmatpush1.msra.mxu0 0.0
    %7187 = vmatprep.subr.mxu0 0.0
    %7188 = vmatpush1.msra.mxu0 0.0
    %7189 = vmatprep.subr.mxu0 0.0
    %7190 = vmatpush1.msra.mxu0 0.0
    %7191 = vmatprep.subr.mxu0 0.0
    %7192 = vmatpush1.msra.mxu0 0.0
    %7193 = vmatprep.subr.mxu0 0.0
    %7194 = vmatpush1.msra.mxu0 0.0
    %7195 = vmatprep.subr.mxu0 0.0
    %7196 = vmatpush1.msra.mxu0 0.0
    %7197 = vmatprep.subr.mxu0 0.0
    %7198 = vmatpush1.msra.mxu0 0.0
    %7199 = vmatprep.subr.mxu0 0.0
    %7200 = vmatpush1.msra.mxu0 0.0
    %7201 = vmatprep.subr.mxu0 0.0
    %7202 = vmatpush1.msra.mxu0 0.0
    %7203 = vmatprep.subr.mxu0 0.0
    %7204 = vmatpush1.msra.mxu0 0.0
    %7205 = vmatprep.subr.mxu0 0.0
    %7206 = vmatpush1.msra.mxu0 0.0
    %7207 = vmatprep.subr.mxu0 0.0
    %7208 = vmatpush1.msra.mxu0 0.0
    %7209 = vmatprep.subr.mxu0 0.0
    %7210 = vmatpush1.msra.mxu0 0.0
    %7211 = vmatprep.subr.mxu0 0.0
    %7212 = vmatpush1.msra.mxu0 0.0
    %7213 = vmatprep.subr.mxu0 0.0
    %7214 = vmatpush1.msra.mxu0 0.0
    %7215 = vmatprep.subr.mxu0 0.0
    %7216 = vmatpush1.msra.mxu0 0.0
    %7217 = vmatprep.mubr.f32.mxu0 0.0
    %v7218 = vand.u32 %v6897, 4294901760
    %v7219 = vsub.f32 %v6897, %v7218
    %v7220 = vand.u32 %v7219, 4294901760
    %7221 = vmatmul.mubr.f32.gmra.mrb[0].mxu0 %v7220
    %v7222 = vpop.f32.mrb[0].mxu0
    %v7223 = vadd.f32 %v7146, %v7222
    %v7224 = vpop.f32.mrb[0].mxu0
    %7225 = vdwg.mxu0
    %7226 = vmatprep.subr.mxu0 0.0
    %v7227 = vand.u32 %v6885, 4294901760
    %v7228 = vsub.f32 %v6885, %v7227
    %v7229 = vand.u32 %v7228, 4294901760
    %7230 = vmatpush1.msra.mxu0 %v7229
    %7231 = vmatprep.subr.mxu0 0.0
    %v7232 = vand.u32 %v6886, 4294901760
    %v7233 = vsub.f32 %v6886, %v7232
    %v7234 = vand.u32 %v7233, 4294901760
    %7235 = vmatpush1.msra.mxu0 %v7234
    %7236 = vmatprep.subr.mxu0 0.0
    %v7237 = vand.u32 %v6887, 4294901760
    %v7238 = vsub.f32 %v6887, %v7237
    %v7239 = vand.u32 %v7238, 4294901760
    %7240 = vmatpush1.msra.mxu0 %v7239
    %7241 = vmatprep.subr.mxu0 0.0
    %v7242 = vand.u32 %v6888, 4294901760
    %v7243 = vsub.f32 %v6888, %v7242
    %v7244 = vand.u32 %v7243, 4294901760
    %7245 = vmatpush1.msra.mxu0 %v7244
    %7246 = vmatprep.subr.mxu0 0.0
    %7247 = vmatpush1.msra.mxu0 0.0
    %7248 = vmatprep.subr.mxu0 0.0
    %7249 = vmatpush1.msra.mxu0 0.0
    %7250 = vmatprep.subr.mxu0 0.0
    %7251 = vmatpush1.msra.mxu0 0.0
    %7252 = vmatprep.subr.mxu0 0.0
    %7253 = vmatpush1.msra.mxu0 0.0
    %7254 = vmatprep.subr.mxu0 0.0
    %7255 = vmatpush1.msra.mxu0 0.0
    %7256 = vmatprep.subr.mxu0 0.0
    %7257 = vmatpush1.msra.mxu0 0.0
    %7258 = vmatprep.subr.mxu0 0.0
    %7259 = vmatpush1.msra.mxu0 0.0
    %7260 = vmatprep.subr.mxu0 0.0
    %7261 = vmatpush1.msra.mxu0 0.0
    %7262 = vmatprep.subr.mxu0 0.0
    %7263 = vmatpush1.msra.mxu0 0.0
    %7264 = vmatprep.subr.mxu0 0.0
    %7265 = vmatpush1.msra.mxu0 0.0
    %7266 = vmatprep.subr.mxu0 0.0
    %7267 = vmatpush1.msra.mxu0 0.0
    %7268 = vmatprep.subr.mxu0 0.0
    %7269 = vmatpush1.msra.mxu0 0.0
    %7270 = vmatprep.subr.mxu0 0.0
    %7271 = vmatpush1.msra.mxu0 0.0
    %7272 = vmatprep.subr.mxu0 0.0
    %7273 = vmatpush1.msra.mxu0 0.0
    %7274 = vmatprep.subr.mxu0 0.0
    %7275 = vmatpush1.msra.mxu0 0.0
    %7276 = vmatprep.subr.mxu0 0.0
    %7277 = vmatpush1.msra.mxu0 0.0
    %7278 = vmatprep.subr.mxu0 0.0
    %7279 = vmatpush1.msra.mxu0 0.0
    %7280 = vmatprep.subr.mxu0 0.0
    %7281 = vmatpush1.msra.mxu0 0.0
    %7282 = vmatprep.subr.mxu0 0.0
    %7283 = vmatpush1.msra.mxu0 0.0
    %7284 = vmatprep.subr.mxu0 0.0
    %7285 = vmatpush1.msra.mxu0 0.0
    %7286 = vmatprep.subr.mxu0 0.0
    %7287 = vmatpush1.msra.mxu0 0.0
    %7288 = vmatprep.subr.mxu0 0.0
    %7289 = vmatpush1.msra.mxu0 0.0
    %7290 = vmatprep.subr.mxu0 0.0
    %7291 = vmatpush1.msra.mxu0 0.0
    %7292 = vmatprep.subr.mxu0 0.0
    %7293 = vmatpush1.msra.mxu0 0.0
    %7294 = vmatprep.subr.mxu0 0.0
    %7295 = vmatpush1.msra.mxu0 0.0
    %7296 = vmatprep.subr.mxu0 0.0
    %7297 = vmatpush1.msra.mxu0 0.0
    %7298 = vmatprep.subr.mxu0 0.0
    %7299 = vmatpush1.msra.mxu0 0.0
    %7300 = vmatprep.subr.mxu0 0.0
    %7301 = vmatpush1.msra.mxu0 0.0
    %7302 = vmatprep.mubr.f32.mxu0 0.0
    %v7303 = vand.u32 %v6897, 4294901760
    %7304 = vmatmul.mubr.f32.gmra.mrb[0].mxu0 %v7303
    %v7305 = vpop.f32.mrb[0].mxu0
    %v7306 = vadd.f32 %v7223, %v7305
    %v7307 = vpop.f32.mrb[0].mxu0
    %7308 = vdwg.mxu0
    %7309 = vmatprep.subr.mxu0 0.0
    %v7310 = vand.u32 %v6885, 4294901760
    %7311 = vmatpush1.msra.mxu0 %v7310
    %7312 = vmatprep.subr.mxu0 0.0
    %v7313 = vand.u32 %v6886, 4294901760
    %7314 = vmatpush1.msra.mxu0 %v7313
    %7315 = vmatprep.subr.mxu0 0.0
    %v7316 = vand.u32 %v6887, 4294901760
    %7317 = vmatpush1.msra.mxu0 %v7316
    %7318 = vmatprep.subr.mxu0 0.0
    %v7319 = vand.u32 %v6888, 4294901760
    %7320 = vmatpush1.msra.mxu0 %v7319
    %7321 = vmatprep.subr.mxu0 0.0
    %7322 = vmatpush1.msra.mxu0 0.0
    %7323 = vmatprep.subr.mxu0 0.0
    %7324 = vmatpush1.msra.mxu0 0.0
    %7325 = vmatprep.subr.mxu0 0.0
    %7326 = vmatpush1.msra.mxu0 0.0
    %7327 = vmatprep.subr.mxu0 0.0
    %7328 = vmatpush1.msra.mxu0 0.0
    %7329 = vmatprep.subr.mxu0 0.0
    %7330 = vmatpush1.msra.mxu0 0.0
    %7331 = vmatprep.subr.mxu0 0.0
    %7332 = vmatpush1.msra.mxu0 0.0
    %7333 = vmatprep.subr.mxu0 0.0
    %7334 = vmatpush1.msra.mxu0 0.0
    %7335 = vmatprep.subr.mxu0 0.0
    %7336 = vmatpush1.msra.mxu0 0.0
    %7337 = vmatprep.subr.mxu0 0.0
    %7338 = vmatpush1.msra.mxu0 0.0
    %7339 = vmatprep.subr.mxu0 0.0
    %7340 = vmatpush1.msra.mxu0 0.0
    %7341 = vmatprep.subr.mxu0 0.0
    %7342 = vmatpush1.msra.mxu0 0.0
    %7343 = vmatprep.subr.mxu0 0.0
    %7344 = vmatpush1.msra.mxu0 0.0
    %7345 = vmatprep.subr.mxu0 0.0
    %7346 = vmatpush1.msra.mxu0 0.0
    %7347 = vmatprep.subr.mxu0 0.0
    %7348 = vmatpush1.msra.mxu0 0.0
    %7349 = vmatprep.subr.mxu0 0.0
    %7350 = vmatpush1.msra.mxu0 0.0
    %7351 = vmatprep.subr.mxu0 0.0
    %7352 = vmatpush1.msra.mxu0 0.0
    %7353 = vmatprep.subr.mxu0 0.0
    %7354 = vmatpush1.msra.mxu0 0.0
    %7355 = vmatprep.subr.mxu0 0.0
    %7356 = vmatpush1.msra.mxu0 0.0
    %7357 = vmatprep.subr.mxu0 0.0
    %7358 = vmatpush1.msra.mxu0 0.0
    %7359 = vmatprep.subr.mxu0 0.0
    %7360 = vmatpush1.msra.mxu0 0.0
    %7361 = vmatprep.subr.mxu0 0.0
    %7362 = vmatpush1.msra.mxu0 0.0
    %7363 = vmatprep.subr.mxu0 0.0
    %7364 = vmatpush1.msra.mxu0 0.0
    %7365 = vmatprep.subr.mxu0 0.0
    %7366 = vmatpush1.msra.mxu0 0.0
    %7367 = vmatprep.subr.mxu0 0.0
    %7368 = vmatpush1.msra.mxu0 0.0
    %7369 = vmatprep.subr.mxu0 0.0
    %7370 = vmatpush1.msra.mxu0 0.0
    %7371 = vmatprep.subr.mxu0 0.0
    %7372 = vmatpush1.msra.mxu0 0.0
    %7373 = vmatprep.subr.mxu0 0.0
    %7374 = vmatpush1.msra.mxu0 0.0
    %7375 = vmatprep.subr.mxu0 0.0
    %7376 = vmatpush1.msra.mxu0 0.0
    %7377 = vmatprep.mubr.f32.mxu0 0.0
    %v7378 = vand.u32 %v6897, 4294901760
    %7379 = vmatmul.mubr.f32.gmra.mrb[0].mxu0 %v7378
    %v7380 = vpop.f32.mrb[0].mxu0
    %v7381 = vadd.f32 %v7306, %v7380
    %v7382 = vpop.f32.mrb[0].mxu0
    %7383 = vdwg.mxu0
    %v7384 = vlaneseq
    %v7385 = vshrl.u32 %v7384, 7
    %v7386 = vsub.s32 5, %v7385
    %v7387 = vrot.slane %v57, %v7386
    %v7388 = vmul.f32 %v6884, %v7387
    %v7389 = vsel %vm90, %v7388, 0.0
    %7390 = vadd.xlane.f32.xlu0 %v7389
    %v7391 = vpop.xlane.xlu0 %7390
    %v7392 = vlaneseq
    %v7393 = vshrl.u32 %v7392, 7
    %v7394 = vsub.s32 6, %v7393
    %v7395 = vrot.slane %v57, %v7394
    %v7396 = vadd.f32 %v7391, %v7395
    %v7397 = vtanh.pop %v7396
    %7399 = vset.pattern.permute.xlu0 0
    %7400 = vperm.xlu0 %7399, %v7397
    %v7401 = vpop.permute.xlu0 %7400
    %v7403 = vlaneseq
    %v7404 = vshrl.u32 %v7403, 7
    %v7405 = vsub.s32 3, %v7404
    %v7406 = vrot.slane %v57, %v7405
    %v7407 = vmul.f32 %v7401, %v7406
    %v7408 = vlaneseq
    %v7409 = vshrl.u32 %v7408, 7
    %v7410 = vsub.s32 4, %v7409
    %v7411 = vrot.slane %v57, %v7410
    %v7412 = vadd.f32 %v7407, %v7411
    %v7413 = vmul.f32 %v7412, %v6884
    %v7414 = vld [vmem:[%s10] sm:$0xff]
    %v7415 = vld [vmem:[%s10 + $0x8] sm:$0xff]
    %v7416 = vld [vmem:[%s10 + $0x10] sm:$0xff]
    %v7417 = vld [vmem:[%s10 + $0x18] sm:$0xff]
    %v7418 = vld [vmem:[%s10 + $0x20] sm:$0xff]
    %v7419 = vld [vmem:[%s10 + $0x28] sm:$0xff]
    %v7420 = vld [vmem:[%s10 + $0x30] sm:$0xff]
    %v7421 = vld [vmem:[%s10 + $0x38] sm:$0xff]
    %v7422 = vld [vmem:[%s10 + $0x40] sm:$0xff]
    %v7423 = vld [vmem:[%s10 + $0x48] sm:$0xff]
    %v7424 = vld [vmem:[%s10 + $0x50] sm:$0xff]
    %v7425 = vld [vmem:[%s10 + $0x58] sm:$0xff]
    %v7426 = vld [vmem:[%s10 + $0x60] sm:$0xff]
    %v7427 = vld [vmem:[%s10 + $0x68] sm:$0xff]
    %v7428 = vld [vmem:[%s10 + $0x70] sm:$0xff]
    %v7429 = vld [vmem:[%s10 + $0x78] sm:$0xff]
    %v7430 = vld [vmem:[%s10 + $0x80] sm:$0xff]
    %v7431 = vld [vmem:[%s10 + $0x88] sm:$0xff]
    %v7432 = vld [vmem:[%s10 + $0x90] sm:$0xff]
    %v7433 = vld [vmem:[%s10 + $0x98] sm:$0xff]
    %v7434 = vld [vmem:[%s10 + $0xa0] sm:$0xff]
    %v7435 = vld [vmem:[%s10 + $0xa8] sm:$0xff]
    %v7436 = vld [vmem:[%s10 + $0xb0] sm:$0xff]
    %v7437 = vld [vmem:[%s10 + $0xb8] sm:$0xff]
    %v7438 = vld [vmem:[%s10 + $0xc0] sm:$0xff]
    %v7439 = vld [vmem:[%s10 + $0xc8] sm:$0xff]
    %v7440 = vld [vmem:[%s10 + $0xd0] sm:$0xff]
    %v7441 = vld [vmem:[%s10 + $0xd8] sm:$0xff]
    %v7442 = vld [vmem:[%s10 + $0xe0] sm:$0xff]
    %v7443 = vld [vmem:[%s10 + $0xe8] sm:$0xff]
    %v7444 = vld [vmem:[%s10 + $0xf0] sm:$0xff]
    %v7445 = vld [vmem:[%s10 + $0xf8] sm:$0xff]
    %v7447 = vsel %vm90, %v7413, 0
    %v7449 = vand.u32 %v7415, 4294901760
    %7450 = vmatprep.subr.mxu0 %v7449
    %v7451 = vand.u32 %v7414, 4294901760
    %7452 = vmatpush1.msra.mxu0 %v7451
    %v7453 = vand.u32 %v7423, 4294901760
    %7454 = vmatprep.subr.mxu0 %v7453
    %v7455 = vand.u32 %v7422, 4294901760
    %7456 = vmatpush1.msra.mxu0 %v7455
    %v7457 = vand.u32 %v7431, 4294901760
    %7458 = vmatprep.subr.mxu0 %v7457
    %v7459 = vand.u32 %v7430, 4294901760
    %7460 = vmatpush1.msra.mxu0 %v7459
    %v7461 = vand.u32 %v7439, 4294901760
    %7462 = vmatprep.subr.mxu0 %v7461
    %v7463 = vand.u32 %v7438, 4294901760
    %7464 = vmatpush1.msra.mxu0 %v7463
    %7465 = vmatprep.subr.mxu0 0.0
    %7466 = vmatpush1.msra.mxu0 0.0
    %7467 = vmatprep.subr.mxu0 0.0
    %7468 = vmatpush1.msra.mxu0 0.0
    %7469 = vmatprep.subr.mxu0 0.0
    %7470 = vmatpush1.msra.mxu0 0.0
    %7471 = vmatprep.subr.mxu0 0.0
    %7472 = vmatpush1.msra.mxu0 0.0
    %7473 = vmatprep.subr.mxu0 0.0
    %7474 = vmatpush1.msra.mxu0 0.0
    %7475 = vmatprep.subr.mxu0 0.0
    %7476 = vmatpush1.msra.mxu0 0.0
    %7477 = vmatprep.subr.mxu0 0.0
    %7478 = vmatpush1.msra.mxu0 0.0
    %7479 = vmatprep.subr.mxu0 0.0
    %7480 = vmatpush1.msra.mxu0 0.0
    %7481 = vmatprep.subr.mxu0 0.0
    %7482 = vmatpush1.msra.mxu0 0.0
    %7483 = vmatprep.subr.mxu0 0.0
    %7484 = vmatpush1.msra.mxu0 0.0
    %7485 = vmatprep.subr.mxu0 0.0
    %7486 = vmatpush1.msra.mxu0 0.0
    %7487 = vmatprep.subr.mxu0 0.0
    %7488 = vmatpush1.msra.mxu0 0.0
    %7489 = vmatprep.subr.mxu0 0.0
    %7490 = vmatpush1.msra.mxu0 0.0
    %7491 = vmatprep.subr.mxu0 0.0
    %7492 = vmatpush1.msra.mxu0 0.0
    %7493 = vmatprep.subr.mxu0 0.0
    %7494 = vmatpush1.msra.mxu0 0.0
    %7495 = vmatprep.subr.mxu0 0.0
    %7496 = vmatpush1.msra.mxu0 0.0
    %7497 = vmatprep.subr.mxu0 0.0
    %7498 = vmatpush1.msra.mxu0 0.0
    %7499 = vmatprep.subr.mxu0 0.0
    %7500 = vmatpush1.msra.mxu0 0.0
    %7501 = vmatprep.subr.mxu0 0.0
    %7502 = vmatpush1.msra.mxu0 0.0
    %7503 = vmatprep.subr.mxu0 0.0
    %7504 = vmatpush1.msra.mxu0 0.0
    %7505 = vmatprep.subr.mxu0 0.0
    %7506 = vmatpush1.msra.mxu0 0.0
    %7507 = vmatprep.subr.mxu0 0.0
    %7508 = vmatpush1.msra.mxu0 0.0
    %7509 = vmatprep.subr.mxu0 0.0
    %7510 = vmatpush1.msra.mxu0 0.0
    %7511 = vmatprep.subr.mxu0 0.0
    %7512 = vmatpush1.msra.mxu0 0.0
    %7513 = vmatprep.subr.mxu0 0.0
    %7514 = vmatpush1.msra.mxu0 0.0
    %7515 = vmatprep.subr.mxu0 0.0
    %7516 = vmatpush1.msra.mxu0 0.0
    %7517 = vmatprep.subr.mxu0 0.0
    %7518 = vmatpush1.msra.mxu0 0.0
    %7519 = vmatprep.subr.mxu0 0.0
    %7520 = vmatpush1.msra.mxu0 0.0
    %7521 = vmatprep.mubr.f32.mxu0 0.0
    %v7522 = vand.u32 %v7447, 4294901760
    %v7523 = vsub.f32 %v7447, %v7522
    %v7524 = vand.u32 %v7523, 4294901760
    %v7525 = vsub.f32 %v7523, %v7524
    %v7526 = vand.u32 %v7525, 4294901760
    %7527 = vmatmul.mubr.f32.gmra.mrb[0].mxu0 %v7526
    %v7528 = vpop.f32.mrb[0].mxu0
    %v7529 = vadd.f32 0.0, %v7528
    %v7530 = vpop.f32.mrb[0].mxu0
    %v7531 = vadd.f32 0.0, %v7530
    %7532 = vdwg.mxu0
    %v7533 = vand.u32 %v7415, 4294901760
    %v7534 = vsub.f32 %v7415, %v7533
    %v7535 = vand.u32 %v7534, 4294901760
    %v7536 = vsub.f32 %v7534, %v7535
    %v7537 = vand.u32 %v7536, 4294901760
    %7538 = vmatprep.subr.mxu0 %v7537
    %v7539 = vand.u32 %v7414, 4294901760
    %v7540 = vsub.f32 %v7414, %v7539
    %v7541 = vand.u32 %v7540, 4294901760
    %v7542 = vsub.f32 %v7540, %v7541
    %v7543 = vand.u32 %v7542, 4294901760
    %7544 = vmatpush1.msra.mxu0 %v7543
    %v7545 = vand.u32 %v7423, 4294901760
    %v7546 = vsub.f32 %v7423, %v7545
    %v7547 = vand.u32 %v7546, 4294901760
    %v7548 = vsub.f32 %v7546, %v7547
    %v7549 = vand.u32 %v7548, 4294901760
    %7550 = vmatprep.subr.mxu0 %v7549
    %v7551 = vand.u32 %v7422, 4294901760
    %v7552 = vsub.f32 %v7422, %v7551
    %v7553 = vand.u32 %v7552, 4294901760
    %v7554 = vsub.f32 %v7552, %v7553
    %v7555 = vand.u32 %v7554, 4294901760
    %7556 = vmatpush1.msra.mxu0 %v7555
    %v7557 = vand.u32 %v7431, 4294901760
    %v7558 = vsub.f32 %v7431, %v7557
    %v7559 = vand.u32 %v7558, 4294901760
    %v7560 = vsub.f32 %v7558, %v7559
    %v7561 = vand.u32 %v7560, 4294901760
    %7562 = vmatprep.subr.mxu0 %v7561
    %v7563 = vand.u32 %v7430, 4294901760
    %v7564 = vsub.f32 %v7430, %v7563
    %v7565 = vand.u32 %v7564, 4294901760
    %v7566 = vsub.f32 %v7564, %v7565
    %v7567 = vand.u32 %v7566, 4294901760
    %7568 = vmatpush1.msra.mxu0 %v7567
    %v7569 = vand.u32 %v7439, 4294901760
    %v7570 = vsub.f32 %v7439, %v7569
    %v7571 = vand.u32 %v7570, 4294901760
    %v7572 = vsub.f32 %v7570, %v7571
    %v7573 = vand.u32 %v7572, 4294901760
    %7574 = vmatprep.subr.mxu0 %v7573
    %v7575 = vand.u32 %v7438, 4294901760
    %v7576 = vsub.f32 %v7438, %v7575
    %v7577 = vand.u32 %v7576, 4294901760
    %v7578 = vsub.f32 %v7576, %v7577
    %v7579 = vand.u32 %v7578, 4294901760
    %7580 = vmatpush1.msra.mxu0 %v7579
    %7581 = vmatprep.subr.mxu0 0.0
    %7582 = vmatpush1.msra.mxu0 0.0
    %7583 = vmatprep.subr.mxu0 0.0
    %7584 = vmatpush1.msra.mxu0 0.0
    %7585 = vmatprep.subr.mxu0 0.0
    %7586 = vmatpush1.msra.mxu0 0.0
    %7587 = vmatprep.subr.mxu0 0.0
    %7588 = vmatpush1.msra.mxu0 0.0
    %7589 = vmatprep.subr.mxu0 0.0
    %7590 = vmatpush1.msra.mxu0 0.0
    %7591 = vmatprep.subr.mxu0 0.0
    %7592 = vmatpush1.msra.mxu0 0.0
    %7593 = vmatprep.subr.mxu0 0.0
    %7594 = vmatpush1.msra.mxu0 0.0
    %7595 = vmatprep.subr.mxu0 0.0
    %7596 = vmatpush1.msra.mxu0 0.0
    %7597 = vmatprep.subr.mxu0 0.0
    %7598 = vmatpush1.msra.mxu0 0.0
    %7599 = vmatprep.subr.mxu0 0.0
    %7600 = vmatpush1.msra.mxu0 0.0
    %7601 = vmatprep.subr.mxu0 0.0
    %7602 = vmatpush1.msra.mxu0 0.0
    %7603 = vmatprep.subr.mxu0 0.0
    %7604 = vmatpush1.msra.mxu0 0.0
    %7605 = vmatprep.subr.mxu0 0.0
    %7606 = vmatpush1.msra.mxu0 0.0
    %7607 = vmatprep.subr.mxu0 0.0
    %7608 = vmatpush1.msra.mxu0 0.0
    %7609 = vmatprep.subr.mxu0 0.0
    %7610 = vmatpush1.msra.mxu0 0.0
    %7611 = vmatprep.subr.mxu0 0.0
    %7612 = vmatpush1.msra.mxu0 0.0
    %7613 = vmatprep.subr.mxu0 0.0
    %7614 = vmatpush1.msra.mxu0 0.0
    %7615 = vmatprep.subr.mxu0 0.0
    %7616 = vmatpush1.msra.mxu0 0.0
    %7617 = vmatprep.subr.mxu0 0.0
    %7618 = vmatpush1.msra.mxu0 0.0
    %7619 = vmatprep.subr.mxu0 0.0
    %7620 = vmatpush1.msra.mxu0 0.0
    %7621 = vmatprep.subr.mxu0 0.0
    %7622 = vmatpush1.msra.mxu0 0.0
    %7623 = vmatprep.subr.mxu0 0.0
    %7624 = vmatpush1.msra.mxu0 0.0
    %7625 = vmatprep.subr.mxu0 0.0
    %7626 = vmatpush1.msra.mxu0 0.0
    %7627 = vmatprep.subr.mxu0 0.0
    %7628 = vmatpush1.msra.mxu0 0.0
    %7629 = vmatprep.subr.mxu0 0.0
    %7630 = vmatpush1.msra.mxu0 0.0
    %7631 = vmatprep.subr.mxu0 0.0
    %7632 = vmatpush1.msra.mxu0 0.0
    %7633 = vmatprep.subr.mxu0 0.0
    %7634 = vmatpush1.msra.mxu0 0.0
    %7635 = vmatprep.subr.mxu0 0.0
    %7636 = vmatpush1.msra.mxu0 0.0
    %7637 = vmatprep.mubr.f32.mxu0 0.0
    %v7638 = vand.u32 %v7447, 4294901760
    %7639 = vmatmul.mubr.f32.gmra.mrb[0].mxu0 %v7638
    %v7640 = vpop.f32.mrb[0].mxu0
    %v7641 = vadd.f32 %v7529, %v7640
    %v7642 = vpop.f32.mrb[0].mxu0
    %v7643 = vadd.f32 %v7531, %v7642
    %7644 = vdwg.mxu0
    %v7645 = vand.u32 %v7415, 4294901760
    %v7646 = vsub.f32 %v7415, %v7645
    %7647 = vmatprep.subr.mxu0 %v7646
    %v7648 = vand.u32 %v7414, 4294901760
    %v7649 = vsub.f32 %v7414, %v7648
    %7650 = vmatpush1.msra.mxu0 %v7649
    %v7651 = vand.u32 %v7423, 4294901760
    %v7652 = vsub.f32 %v7423, %v7651
    %7653 = vmatprep.subr.mxu0 %v7652
    %v7654 = vand.u32 %v7422, 4294901760
    %v7655 = vsub.f32 %v7422, %v7654
    %7656 = vmatpush1.msra.mxu0 %v7655
    %v7657 = vand.u32 %v7431, 4294901760
    %v7658 = vsub.f32 %v7431, %v7657
    %7659 = vmatprep.subr.mxu0 %v7658
    %v7660 = vand.u32 %v7430, 4294901760
    %v7661 = vsub.f32 %v7430, %v7660
    %7662 = vmatpush1.msra.mxu0 %v7661
    %v7663 = vand.u32 %v7439, 4294901760
    %v7664 = vsub.f32 %v7439, %v7663
    %7665 = vmatprep.subr.mxu0 %v7664
    %v7666 = vand.u32 %v7438, 4294901760
    %v7667 = vsub.f32 %v7438, %v7666
    %7668 = vmatpush1.msra.mxu0 %v7667
    %7669 = vmatprep.subr.mxu0 0.0
    %7670 = vmatpush1.msra.mxu0 0.0
    %7671 = vmatprep.subr.mxu0 0.0
    %7672 = vmatpush1.msra.mxu0 0.0
    %7673 = vmatprep.subr.mxu0 0.0
    %7674 = vmatpush1.msra.mxu0 0.0
    %7675 = vmatprep.subr.mxu0 0.0
    %7676 = vmatpush1.msra.mxu0 0.0
    %7677 = vmatprep.subr.mxu0 0.0
    %7678 = vmatpush1.msra.mxu0 0.0
    %7679 = vmatprep.subr.mxu0 0.0
    %7680 = vmatpush1.msra.mxu0 0.0
    %7681 = vmatprep.subr.mxu0 0.0
    %7682 = vmatpush1.msra.mxu0 0.0
    %7683 = vmatprep.subr.mxu0 0.0
    %7684 = vmatpush1.msra.mxu0 0.0
    %7685 = vmatprep.subr.mxu0 0.0
    %7686 = vmatpush1.msra.mxu0 0.0
    %7687 = vmatprep.subr.mxu0 0.0
    %7688 = vmatpush1.msra.mxu0 0.0
    %7689 = vmatprep.subr.mxu0 0.0
    %7690 = vmatpush1.msra.mxu0 0.0
    %7691 = vmatprep.subr.mxu0 0.0
    %7692 = vmatpush1.msra.mxu0 0.0
    %7693 = vmatprep.subr.mxu0 0.0
    %7694 = vmatpush1.msra.mxu0 0.0
    %7695 = vmatprep.subr.mxu0 0.0
    %7696 = vmatpush1.msra.mxu0 0.0
    %7697 = vmatprep.subr.mxu0 0.0
    %7698 = vmatpush1.msra.mxu0 0.0
    %7699 = vmatprep.subr.mxu0 0.0
    %7700 = vmatpush1.msra.mxu0 0.0
    %7701 = vmatprep.subr.mxu0 0.0
    %7702 = vmatpush1.msra.mxu0 0.0
    %7703 = vmatprep.subr.mxu0 0.0
    %7704 = vmatpush1.msra.mxu0 0.0
    %7705 = vmatprep.subr.mxu0 0.0
    %7706 = vmatpush1.msra.mxu0 0.0
    %7707 = vmatprep.subr.mxu0 0.0
    %7708 = vmatpush1.msra.mxu0 0.0
    %7709 = vmatprep.subr.mxu0 0.0
    %7710 = vmatpush1.msra.mxu0 0.0
    %7711 = vmatprep.subr.mxu0 0.0
    %7712 = vmatpush1.msra.mxu0 0.0
    %7713 = vmatprep.subr.mxu0 0.0
    %7714 = vmatpush1.msra.mxu0 0.0
    %7715 = vmatprep.subr.mxu0 0.0
    %7716 = vmatpush1.msra.mxu0 0.0
    %7717 = vmatprep.subr.mxu0 0.0
    %7718 = vmatpush1.msra.mxu0 0.0
    %7719 = vmatprep.subr.mxu0 0.0
    %7720 = vmatpush1.msra.mxu0 0.0
    %7721 = vmatprep.subr.mxu0 0.0
    %7722 = vmatpush1.msra.mxu0 0.0
    %7723 = vmatprep.subr.mxu0 0.0
    %7724 = vmatpush1.msra.mxu0 0.0
    %7725 = vmatprep.mubr.f32.mxu0 0.0
    %v7726 = vand.u32 %v7447, 4294901760
    %v7727 = vsub.f32 %v7447, %v7726
    %7728 = vmatmul.mubr.f32.gmra.mrb[0].mxu0 %v7727
    %v7729 = vpop.f32.mrb[0].mxu0
    %v7730 = vadd.f32 %v7641, %v7729
    %v7731 = vpop.f32.mrb[0].mxu0
    %v7732 = vadd.f32 %v7643, %v7731
    %7733 = vdwg.mxu0
    %v7734 = vand.u32 %v7415, 4294901760
    %7735 = vmatprep.subr.mxu0 %v7734
    %v7736 = vand.u32 %v7414, 4294901760
    %7737 = vmatpush1.msra.mxu0 %v7736
    %v7738 = vand.u32 %v7423, 4294901760
    %7739 = vmatprep.subr.mxu0 %v7738
    %v7740 = vand.u32 %v7422, 4294901760
    %7741 = vmatpush1.msra.mxu0 %v7740
    %v7742 = vand.u32 %v7431, 4294901760
    %7743 = vmatprep.subr.mxu0 %v7742
    %v7744 = vand.u32 %v7430, 4294901760
    %7745 = vmatpush1.msra.mxu0 %v7744
    %v7746 = vand.u32 %v7439, 4294901760
    %7747 = vmatprep.subr.mxu0 %v7746
    %v7748 = vand.u32 %v7438, 4294901760
    %7749 = vmatpush1.msra.mxu0 %v7748
    %7750 = vmatprep.subr.mxu0 0.0
    %7751 = vmatpush1.msra.mxu0 0.0
    %7752 = vmatprep.subr.mxu0 0.0
    %7753 = vmatpush1.msra.mxu0 0.0
    %7754 = vmatprep.subr.mxu0 0.0
    %7755 = vmatpush1.msra.mxu0 0.0
    %7756 = vmatprep.subr.mxu0 0.0
    %7757 = vmatpush1.msra.mxu0 0.0
    %7758 = vmatprep.subr.mxu0 0.0
    %7759 = vmatpush1.msra.mxu0 0.0
    %7760 = vmatprep.subr.mxu0 0.0
    %7761 = vmatpush1.msra.mxu0 0.0
    %7762 = vmatprep.subr.mxu0 0.0
    %7763 = vmatpush1.msra.mxu0 0.0
    %7764 = vmatprep.subr.mxu0 0.0
    %7765 = vmatpush1.msra.mxu0 0.0
    %7766 = vmatprep.subr.mxu0 0.0
    %7767 = vmatpush1.msra.mxu0 0.0
    %7768 = vmatprep.subr.mxu0 0.0
    %7769 = vmatpush1.msra.mxu0 0.0
    %7770 = vmatprep.subr.mxu0 0.0
    %7771 = vmatpush1.msra.mxu0 0.0
    %7772 = vmatprep.subr.mxu0 0.0
    %7773 = vmatpush1.msra.mxu0 0.0
    %7774 = vmatprep.subr.mxu0 0.0
    %7775 = vmatpush1.msra.mxu0 0.0
    %7776 = vmatprep.subr.mxu0 0.0
    %7777 = vmatpush1.msra.mxu0 0.0
    %7778 = vmatprep.subr.mxu0 0.0
    %7779 = vmatpush1.msra.mxu0 0.0
    %7780 = vmatprep.subr.mxu0 0.0
    %7781 = vmatpush1.msra.mxu0 0.0
    %7782 = vmatprep.subr.mxu0 0.0
    %7783 = vmatpush1.msra.mxu0 0.0
    %7784 = vmatprep.subr.mxu0 0.0
    %7785 = vmatpush1.msra.mxu0 0.0
    %7786 = vmatprep.subr.mxu0 0.0
    %7787 = vmatpush1.msra.mxu0 0.0
    %7788 = vmatprep.subr.mxu0 0.0
    %7789 = vmatpush1.msra.mxu0 0.0
    %7790 = vmatprep.subr.mxu0 0.0
    %7791 = vmatpush1.msra.mxu0 0.0
    %7792 = vmatprep.subr.mxu0 0.0
    %7793 = vmatpush1.msra.mxu0 0.0
    %7794 = vmatprep.subr.mxu0 0.0
    %7795 = vmatpush1.msra.mxu0 0.0
    %7796 = vmatprep.subr.mxu0 0.0
    %7797 = vmatpush1.msra.mxu0 0.0
    %7798 = vmatprep.subr.mxu0 0.0
    %7799 = vmatpush1.msra.mxu0 0.0
    %7800 = vmatprep.subr.mxu0 0.0
    %7801 = vmatpush1.msra.mxu0 0.0
    %7802 = vmatprep.subr.mxu0 0.0
    %7803 = vmatpush1.msra.mxu0 0.0
    %7804 = vmatprep.subr.mxu0 0.0
    %7805 = vmatpush1.msra.mxu0 0.0
    %7806 = vmatprep.mubr.f32.mxu0 0.0
    %v7807 = vand.u32 %v7447, 4294901760
    %v7808 = vsub.f32 %v7447, %v7807
    %v7809 = vand.u32 %v7808, 4294901760
    %7810 = vmatmul.mubr.f32.gmra.mrb[0].mxu0 %v7809
    %v7811 = vpop.f32.mrb[0].mxu0
    %v7812 = vadd.f32 %v7730, %v7811
    %v7813 = vpop.f32.mrb[0].mxu0
    %v7814 = vadd.f32 %v7732, %v7813
    %7815 = vdwg.mxu0
    %v7816 = vand.u32 %v7415, 4294901760
    %v7817 = vsub.f32 %v7415, %v7816
    %v7818 = vand.u32 %v7817, 4294901760
    %7819 = vmatprep.subr.mxu0 %v7818
    %v7820 = vand.u32 %v7414, 4294901760
    %v7821 = vsub.f32 %v7414, %v7820
    %v7822 = vand.u32 %v7821, 4294901760
    %7823 = vmatpush1.msra.mxu0 %v7822
    %v7824 = vand.u32 %v7423, 4294901760
    %v7825 = vsub.f32 %v7423, %v7824
    %v7826 = vand.u32 %v7825, 4294901760
    %7827 = vmatprep.subr.mxu0 %v7826
    %v7828 = vand.u32 %v7422, 4294901760
    %v7829 = vsub.f32 %v7422, %v7828
    %v7830 = vand.u32 %v7829, 4294901760
    %7831 = vmatpush1.msra.mxu0 %v7830
    %v7832 = vand.u32 %v7431, 4294901760
    %v7833 = vsub.f32 %v7431, %v7832
    %v7834 = vand.u32 %v7833, 4294901760
    %7835 = vmatprep.subr.mxu0 %v7834
    %v7836 = vand.u32 %v7430, 4294901760
    %v7837 = vsub.f32 %v7430, %v7836
    %v7838 = vand.u32 %v7837, 4294901760
    %7839 = vmatpush1.msra.mxu0 %v7838
    %v7840 = vand.u32 %v7439, 4294901760
    %v7841 = vsub.f32 %v7439, %v7840
    %v7842 = vand.u32 %v7841, 4294901760
    %7843 = vmatprep.subr.mxu0 %v7842
    %v7844 = vand.u32 %v7438, 4294901760
    %v7845 = vsub.f32 %v7438, %v7844
    %v7846 = vand.u32 %v7845, 4294901760
    %7847 = vmatpush1.msra.mxu0 %v7846
    %7848 = vmatprep.subr.mxu0 0.0
    %7849 = vmatpush1.msra.mxu0 0.0
    %7850 = vmatprep.subr.mxu0 0.0
    %7851 = vmatpush1.msra.mxu0 0.0
    %7852 = vmatprep.subr.mxu0 0.0
    %7853 = vmatpush1.msra.mxu0 0.0
    %7854 = vmatprep.subr.mxu0 0.0
    %7855 = vmatpush1.msra.mxu0 0.0
    %7856 = vmatprep.subr.mxu0 0.0
    %7857 = vmatpush1.msra.mxu0 0.0
    %7858 = vmatprep.subr.mxu0 0.0
    %7859 = vmatpush1.msra.mxu0 0.0
    %7860 = vmatprep.subr.mxu0 0.0
    %7861 = vmatpush1.msra.mxu0 0.0
    %7862 = vmatprep.subr.mxu0 0.0
    %7863 = vmatpush1.msra.mxu0 0.0
    %7864 = vmatprep.subr.mxu0 0.0
    %7865 = vmatpush1.msra.mxu0 0.0
    %7866 = vmatprep.subr.mxu0 0.0
    %7867 = vmatpush1.msra.mxu0 0.0
    %7868 = vmatprep.subr.mxu0 0.0
    %7869 = vmatpush1.msra.mxu0 0.0
    %7870 = vmatprep.subr.mxu0 0.0
    %7871 = vmatpush1.msra.mxu0 0.0
    %7872 = vmatprep.subr.mxu0 0.0
    %7873 = vmatpush1.msra.mxu0 0.0
    %7874 = vmatprep.subr.mxu0 0.0
    %7875 = vmatpush1.msra.mxu0 0.0
    %7876 = vmatprep.subr.mxu0 0.0
    %7877 = vmatpush1.msra.mxu0 0.0
    %7878 = vmatprep.subr.mxu0 0.0
    %7879 = vmatpush1.msra.mxu0 0.0
    %7880 = vmatprep.subr.mxu0 0.0
    %7881 = vmatpush1.msra.mxu0 0.0
    %7882 = vmatprep.subr.mxu0 0.0
    %7883 = vmatpush1.msra.mxu0 0.0
    %7884 = vmatprep.subr.mxu0 0.0
    %7885 = vmatpush1.msra.mxu0 0.0
    %7886 = vmatprep.subr.mxu0 0.0
    %7887 = vmatpush1.msra.mxu0 0.0
    %7888 = vmatprep.subr.mxu0 0.0
    %7889 = vmatpush1.msra.mxu0 0.0
    %7890 = vmatprep.subr.mxu0 0.0
    %7891 = vmatpush1.msra.mxu0 0.0
    %7892 = vmatprep.subr.mxu0 0.0
    %7893 = vmatpush1.msra.mxu0 0.0
    %7894 = vmatprep.subr.mxu0 0.0
    %7895 = vmatpush1.msra.mxu0 0.0
    %7896 = vmatprep.subr.mxu0 0.0
    %7897 = vmatpush1.msra.mxu0 0.0
    %7898 = vmatprep.subr.mxu0 0.0
    %7899 = vmatpush1.msra.mxu0 0.0
    %7900 = vmatprep.subr.mxu0 0.0
    %7901 = vmatpush1.msra.mxu0 0.0
    %7902 = vmatprep.subr.mxu0 0.0
    %7903 = vmatpush1.msra.mxu0 0.0
    %7904 = vmatprep.mubr.f32.mxu0 0.0
    %v7905 = vand.u32 %v7447, 4294901760
    %7906 = vmatmul.mubr.f32.gmra.mrb[0].mxu0 %v7905
    %v7907 = vpop.f32.mrb[0].mxu0
    %v7908 = vadd.f32 %v7812, %v7907
    %v7909 = vpop.f32.mrb[0].mxu0
    %v7910 = vadd.f32 %v7814, %v7909
    %7911 = vdwg.mxu0
    %v7912 = vand.u32 %v7415, 4294901760
    %7913 = vmatprep.subr.mxu0 %v7912
    %v7914 = vand.u32 %v7414, 4294901760
    %7915 = vmatpush1.msra.mxu0 %v7914
    %v7916 = vand.u32 %v7423, 4294901760
    %7917 = vmatprep.subr.mxu0 %v7916
    %v7918 = vand.u32 %v7422, 4294901760
    %7919 = vmatpush1.msra.mxu0 %v7918
    %v7920 = vand.u32 %v7431, 4294901760
    %7921 = vmatprep.subr.mxu0 %v7920
    %v7922 = vand.u32 %v7430, 4294901760
    %7923 = vmatpush1.msra.mxu0 %v7922
    %v7924 = vand.u32 %v7439, 4294901760
    %7925 = vmatprep.subr.mxu0 %v7924
    %v7926 = vand.u32 %v7438, 4294901760
    %7927 = vmatpush1.msra.mxu0 %v7926
    %7928 = vmatprep.subr.mxu0 0.0
    %7929 = vmatpush1.msra.mxu0 0.0
    %7930 = vmatprep.subr.mxu0 0.0
    %7931 = vmatpush1.msra.mxu0 0.0
    %7932 = vmatprep.subr.mxu0 0.0
    %7933 = vmatpush1.msra.mxu0 0.0
    %7934 = vmatprep.subr.mxu0 0.0
    %7935 = vmatpush1.msra.mxu0 0.0
    %7936 = vmatprep.subr.mxu0 0.0
    %7937 = vmatpush1.msra.mxu0 0.0
    %7938 = vmatprep.subr.mxu0 0.0
    %7939 = vmatpush1.msra.mxu0 0.0
    %7940 = vmatprep.subr.mxu0 0.0
    %7941 = vmatpush1.msra.mxu0 0.0
    %7942 = vmatprep.subr.mxu0 0.0
    %7943 = vmatpush1.msra.mxu0 0.0
    %7944 = vmatprep.subr.mxu0 0.0
    %7945 = vmatpush1.msra.mxu0 0.0
    %7946 = vmatprep.subr.mxu0 0.0
    %7947 = vmatpush1.msra.mxu0 0.0
    %7948 = vmatprep.subr.mxu0 0.0
    %7949 = vmatpush1.msra.mxu0 0.0
    %7950 = vmatprep.subr.mxu0 0.0
    %7951 = vmatpush1.msra.mxu0 0.0
    %7952 = vmatprep.subr.mxu0 0.0
    %7953 = vmatpush1.msra.mxu0 0.0
    %7954 = vmatprep.subr.mxu0 0.0
    %7955 = vmatpush1.msra.mxu0 0.0
    %7956 = vmatprep.subr.mxu0 0.0
    %7957 = vmatpush1.msra.mxu0 0.0
    %7958 = vmatprep.subr.mxu0 0.0
    %7959 = vmatpush1.msra.mxu0 0.0
    %7960 = vmatprep.subr.mxu0 0.0
    %7961 = vmatpush1.msra.mxu0 0.0
    %7962 = vmatprep.subr.mxu0 0.0
    %7963 = vmatpush1.msra.mxu0 0.0
    %7964 = vmatprep.subr.mxu0 0.0
    %7965 = vmatpush1.msra.mxu0 0.0
    %7966 = vmatprep.subr.mxu0 0.0
    %7967 = vmatpush1.msra.mxu0 0.0
    %7968 = vmatprep.subr.mxu0 0.0
    %7969 = vmatpush1.msra.mxu0 0.0
    %7970 = vmatprep.subr.mxu0 0.0
    %7971 = vmatpush1.msra.mxu0 0.0
    %7972 = vmatprep.subr.mxu0 0.0
    %7973 = vmatpush1.msra.mxu0 0.0
    %7974 = vmatprep.subr.mxu0 0.0
    %7975 = vmatpush1.msra.mxu0 0.0
    %7976 = vmatprep.subr.mxu0 0.0
    %7977 = vmatpush1.msra.mxu0 0.0
    %7978 = vmatprep.subr.mxu0 0.0
    %7979 = vmatpush1.msra.mxu0 0.0
    %7980 = vmatprep.subr.mxu0 0.0
    %7981 = vmatpush1.msra.mxu0 0.0
    %7982 = vmatprep.subr.mxu0 0.0
    %7983 = vmatpush1.msra.mxu0 0.0
    %7984 = vmatprep.mubr.f32.mxu0 0.0
    %v7985 = vand.u32 %v7447, 4294901760
    %7986 = vmatmul.mubr.f32.gmra.mrb[0].mxu0 %v7985
    %v7987 = vpop.f32.mrb[0].mxu0
    %v7988 = vadd.f32 %v7908, %v7987
    %v7989 = vpop.f32.mrb[0].mxu0
    %v7990 = vadd.f32 %v7910, %v7989
    %7991 = vdwg.mxu0
    %v7992 = vand.u32 %v7417, 4294901760
    %7993 = vmatprep.subr.mxu0 %v7992
    %v7994 = vand.u32 %v7416, 4294901760
    %7995 = vmatpush1.msra.mxu0 %v7994
    %v7996 = vand.u32 %v7425, 4294901760
    %7997 = vmatprep.subr.mxu0 %v7996
    %v7998 = vand.u32 %v7424, 4294901760
    %7999 = vmatpush1.msra.mxu0 %v7998
    %v8000 = vand.u32 %v7433, 4294901760
    %8001 = vmatprep.subr.mxu0 %v8000
    %v8002 = vand.u32 %v7432, 4294901760
    %8003 = vmatpush1.msra.mxu0 %v8002
    %v8004 = vand.u32 %v7441, 4294901760
    %8005 = vmatprep.subr.mxu0 %v8004
    %v8006 = vand.u32 %v7440, 4294901760
    %8007 = vmatpush1.msra.mxu0 %v8006
    %8008 = vmatprep.subr.mxu0 0.0
    %8009 = vmatpush1.msra.mxu0 0.0
    %8010 = vmatprep.subr.mxu0 0.0
    %8011 = vmatpush1.msra.mxu0 0.0
    %8012 = vmatprep.subr.mxu0 0.0
    %8013 = vmatpush1.msra.mxu0 0.0
    %8014 = vmatprep.subr.mxu0 0.0
    %8015 = vmatpush1.msra.mxu0 0.0
    %8016 = vmatprep.subr.mxu0 0.0
    %8017 = vmatpush1.msra.mxu0 0.0
    %8018 = vmatprep.subr.mxu0 0.0
    %8019 = vmatpush1.msra.mxu0 0.0
    %8020 = vmatprep.subr.mxu0 0.0
    %8021 = vmatpush1.msra.mxu0 0.0
    %8022 = vmatprep.subr.mxu0 0.0
    %8023 = vmatpush1.msra.mxu0 0.0
    %8024 = vmatprep.subr.mxu0 0.0
    %8025 = vmatpush1.msra.mxu0 0.0
    %8026 = vmatprep.subr.mxu0 0.0
    %8027 = vmatpush1.msra.mxu0 0.0
    %8028 = vmatprep.subr.mxu0 0.0
    %8029 = vmatpush1.msra.mxu0 0.0
    %8030 = vmatprep.subr.mxu0 0.0
    %8031 = vmatpush1.msra.mxu0 0.0
    %8032 = vmatprep.subr.mxu0 0.0
    %8033 = vmatpush1.msra.mxu0 0.0
    %8034 = vmatprep.subr.mxu0 0.0
    %8035 = vmatpush1.msra.mxu0 0.0
    %8036 = vmatprep.subr.mxu0 0.0
    %8037 = vmatpush1.msra.mxu0 0.0
    %8038 = vmatprep.subr.mxu0 0.0
    %8039 = vmatpush1.msra.mxu0 0.0
    %8040 = vmatprep.subr.mxu0 0.0
    %8041 = vmatpush1.msra.mxu0 0.0
    %8042 = vmatprep.subr.mxu0 0.0
    %8043 = vmatpush1.msra.mxu0 0.0
    %8044 = vmatprep.subr.mxu0 0.0
    %8045 = vmatpush1.msra.mxu0 0.0
    %8046 = vmatprep.subr.mxu0 0.0
    %8047 = vmatpush1.msra.mxu0 0.0
    %8048 = vmatprep.subr.mxu0 0.0
    %8049 = vmatpush1.msra.mxu0 0.0
    %8050 = vmatprep.subr.mxu0 0.0
    %8051 = vmatpush1.msra.mxu0 0.0
    %8052 = vmatprep.subr.mxu0 0.0
    %8053 = vmatpush1.msra.mxu0 0.0
    %8054 = vmatprep.subr.mxu0 0.0
    %8055 = vmatpush1.msra.mxu0 0.0
    %8056 = vmatprep.subr.mxu0 0.0
    %8057 = vmatpush1.msra.mxu0 0.0
    %8058 = vmatprep.subr.mxu0 0.0
    %8059 = vmatpush1.msra.mxu0 0.0
    %8060 = vmatprep.subr.mxu0 0.0
    %8061 = vmatpush1.msra.mxu0 0.0
    %8062 = vmatprep.subr.mxu0 0.0
    %8063 = vmatpush1.msra.mxu0 0.0
    %8064 = vmatprep.mubr.f32.mxu0 0.0
    %v8065 = vand.u32 %v7447, 4294901760
    %v8066 = vsub.f32 %v7447, %v8065
    %v8067 = vand.u32 %v8066, 4294901760
    %v8068 = vsub.f32 %v8066, %v8067
    %v8069 = vand.u32 %v8068, 4294901760
    %8070 = vmatmul.mubr.f32.gmra.mrb[0].mxu0 %v8069
    %v8071 = vpop.f32.mrb[0].mxu0
    %v8072 = vadd.f32 0.0, %v8071
    %v8073 = vpop.f32.mrb[0].mxu0
    %v8074 = vadd.f32 0.0, %v8073
    %8075 = vdwg.mxu0
    %v8076 = vand.u32 %v7417, 4294901760
    %v8077 = vsub.f32 %v7417, %v8076
    %v8078 = vand.u32 %v8077, 4294901760
    %v8079 = vsub.f32 %v8077, %v8078
    %v8080 = vand.u32 %v8079, 4294901760
    %8081 = vmatprep.subr.mxu0 %v8080
    %v8082 = vand.u32 %v7416, 4294901760
    %v8083 = vsub.f32 %v7416, %v8082
    %v8084 = vand.u32 %v8083, 4294901760
    %v8085 = vsub.f32 %v8083, %v8084
    %v8086 = vand.u32 %v8085, 4294901760
    %8087 = vmatpush1.msra.mxu0 %v8086
    %v8088 = vand.u32 %v7425, 4294901760
    %v8089 = vsub.f32 %v7425, %v8088
    %v8090 = vand.u32 %v8089, 4294901760
    %v8091 = vsub.f32 %v8089, %v8090
    %v8092 = vand.u32 %v8091, 4294901760
    %8093 = vmatprep.subr.mxu0 %v8092
    %v8094 = vand.u32 %v7424, 4294901760
    %v8095 = vsub.f32 %v7424, %v8094
    %v8096 = vand.u32 %v8095, 4294901760
    %v8097 = vsub.f32 %v8095, %v8096
    %v8098 = vand.u32 %v8097, 4294901760
    %8099 = vmatpush1.msra.mxu0 %v8098
    %v8100 = vand.u32 %v7433, 4294901760
    %v8101 = vsub.f32 %v7433, %v8100
    %v8102 = vand.u32 %v8101, 4294901760
    %v8103 = vsub.f32 %v8101, %v8102
    %v8104 = vand.u32 %v8103, 4294901760
    %8105 = vmatprep.subr.mxu0 %v8104
    %v8106 = vand.u32 %v7432, 4294901760
    %v8107 = vsub.f32 %v7432, %v8106
    %v8108 = vand.u32 %v8107, 4294901760
    %v8109 = vsub.f32 %v8107, %v8108
    %v8110 = vand.u32 %v8109, 4294901760
    %8111 = vmatpush1.msra.mxu0 %v8110
    %v8112 = vand.u32 %v7441, 4294901760
    %v8113 = vsub.f32 %v7441, %v8112
    %v8114 = vand.u32 %v8113, 4294901760
    %v8115 = vsub.f32 %v8113, %v8114
    %v8116 = vand.u32 %v8115, 4294901760
    %8117 = vmatprep.subr.mxu0 %v8116
    %v8118 = vand.u32 %v7440, 4294901760
    %v8119 = vsub.f32 %v7440, %v8118
    %v8120 = vand.u32 %v8119, 4294901760
    %v8121 = vsub.f32 %v8119, %v8120
    %v8122 = vand.u32 %v8121, 4294901760
    %8123 = vmatpush1.msra.mxu0 %v8122
    %8124 = vmatprep.subr.mxu0 0.0
    %8125 = vmatpush1.msra.mxu0 0.0
    %8126 = vmatprep.subr.mxu0 0.0
    %8127 = vmatpush1.msra.mxu0 0.0
    %8128 = vmatprep.subr.mxu0 0.0
    %8129 = vmatpush1.msra.mxu0 0.0
    %8130 = vmatprep.subr.mxu0 0.0
    %8131 = vmatpush1.msra.mxu0 0.0
    %8132 = vmatprep.subr.mxu0 0.0
    %8133 = vmatpush1.msra.mxu0 0.0
    %8134 = vmatprep.subr.mxu0 0.0
    %8135 = vmatpush1.msra.mxu0 0.0
    %8136 = vmatprep.subr.mxu0 0.0
    %8137 = vmatpush1.msra.mxu0 0.0
    %8138 = vmatprep.subr.mxu0 0.0
    %8139 = vmatpush1.msra.mxu0 0.0
    %8140 = vmatprep.subr.mxu0 0.0
    %8141 = vmatpush1.msra.mxu0 0.0
    %8142 = vmatprep.subr.mxu0 0.0
    %8143 = vmatpush1.msra.mxu0 0.0
    %8144 = vmatprep.subr.mxu0 0.0
    %8145 = vmatpush1.msra.mxu0 0.0
    %8146 = vmatprep.subr.mxu0 0.0
    %8147 = vmatpush1.msra.mxu0 0.0
    %8148 = vmatprep.subr.mxu0 0.0
    %8149 = vmatpush1.msra.mxu0 0.0
    %8150 = vmatprep.subr.mxu0 0.0
    %8151 = vmatpush1.msra.mxu0 0.0
    %8152 = vmatprep.subr.mxu0 0.0
    %8153 = vmatpush1.msra.mxu0 0.0
    %8154 = vmatprep.subr.mxu0 0.0
    %8155 = vmatpush1.msra.mxu0 0.0
    %8156 = vmatprep.subr.mxu0 0.0
    %8157 = vmatpush1.msra.mxu0 0.0
    %8158 = vmatprep.subr.mxu0 0.0
    %8159 = vmatpush1.msra.mxu0 0.0
    %8160 = vmatprep.subr.mxu0 0.0
    %8161 = vmatpush1.msra.mxu0 0.0
    %8162 = vmatprep.subr.mxu0 0.0
    %8163 = vmatpush1.msra.mxu0 0.0
    %8164 = vmatprep.subr.mxu0 0.0
    %8165 = vmatpush1.msra.mxu0 0.0
    %8166 = vmatprep.subr.mxu0 0.0
    %8167 = vmatpush1.msra.mxu0 0.0
    %8168 = vmatprep.subr.mxu0 0.0
    %8169 = vmatpush1.msra.mxu0 0.0
    %8170 = vmatprep.subr.mxu0 0.0
    %8171 = vmatpush1.msra.mxu0 0.0
    %8172 = vmatprep.subr.mxu0 0.0
    %8173 = vmatpush1.msra.mxu0 0.0
    %8174 = vmatprep.subr.mxu0 0.0
    %8175 = vmatpush1.msra.mxu0 0.0
    %8176 = vmatprep.subr.mxu0 0.0
    %8177 = vmatpush1.msra.mxu0 0.0
    %8178 = vmatprep.subr.mxu0 0.0
    %8179 = vmatpush1.msra.mxu0 0.0
    %8180 = vmatprep.mubr.f32.mxu0 0.0
    %v8181 = vand.u32 %v7447, 4294901760
    %8182 = vmatmul.mubr.f32.gmra.mrb[0].mxu0 %v8181
    %v8183 = vpop.f32.mrb[0].mxu0
    %v8184 = vadd.f32 %v8072, %v8183
    %v8185 = vpop.f32.mrb[0].mxu0
    %v8186 = vadd.f32 %v8074, %v8185
    %8187 = vdwg.mxu0
    %v8188 = vand.u32 %v7417, 4294901760
    %v8189 = vsub.f32 %v7417, %v8188
    %8190 = vmatprep.subr.mxu0 %v8189
    %v8191 = vand.u32 %v7416, 4294901760
    %v8192 = vsub.f32 %v7416, %v8191
    %8193 = vmatpush1.msra.mxu0 %v8192
    %v8194 = vand.u32 %v7425, 4294901760
    %v8195 = vsub.f32 %v7425, %v8194
    %8196 = vmatprep.subr.mxu0 %v8195
    %v8197 = vand.u32 %v7424, 4294901760
    %v8198 = vsub.f32 %v7424, %v8197
    %8199 = vmatpush1.msra.mxu0 %v8198
    %v8200 = vand.u32 %v7433, 4294901760
    %v8201 = vsub.f32 %v7433, %v8200
    %8202 = vmatprep.subr.mxu0 %v8201
    %v8203 = vand.u32 %v7432, 4294901760
    %v8204 = vsub.f32 %v7432, %v8203
    %8205 = vmatpush1.msra.mxu0 %v8204
    %v8206 = vand.u32 %v7441, 4294901760
    %v8207 = vsub.f32 %v7441, %v8206
    %8208 = vmatprep.subr.mxu0 %v8207
    %v8209 = vand.u32 %v7440, 4294901760
    %v8210 = vsub.f32 %v7440, %v8209
    %8211 = vmatpush1.msra.mxu0 %v8210
    %8212 = vmatprep.subr.mxu0 0.0
    %8213 = vmatpush1.msra.mxu0 0.0
    %8214 = vmatprep.subr.mxu0 0.0
    %8215 = vmatpush1.msra.mxu0 0.0
    %8216 = vmatprep.subr.mxu0 0.0
    %8217 = vmatpush1.msra.mxu0 0.0
    %8218 = vmatprep.subr.mxu0 0.0
    %8219 = vmatpush1.msra.mxu0 0.0
    %8220 = vmatprep.subr.mxu0 0.0
    %8221 = vmatpush1.msra.mxu0 0.0
    %8222 = vmatprep.subr.mxu0 0.0
    %8223 = vmatpush1.msra.mxu0 0.0
    %8224 = vmatprep.subr.mxu0 0.0
    %8225 = vmatpush1.msra.mxu0 0.0
    %8226 = vmatprep.subr.mxu0 0.0
    %8227 = vmatpush1.msra.mxu0 0.0
    %8228 = vmatprep.subr.mxu0 0.0
    %8229 = vmatpush1.msra.mxu0 0.0
    %8230 = vmatprep.subr.mxu0 0.0
    %8231 = vmatpush1.msra.mxu0 0.0
    %8232 = vmatprep.subr.mxu0 0.0
    %8233 = vmatpush1.msra.mxu0 0.0
    %8234 = vmatprep.subr.mxu0 0.0
    %8235 = vmatpush1.msra.mxu0 0.0
    %8236 = vmatprep.subr.mxu0 0.0
    %8237 = vmatpush1.msra.mxu0 0.0
    %8238 = vmatprep.subr.mxu0 0.0
    %8239 = vmatpush1.msra.mxu0 0.0
    %8240 = vmatprep.subr.mxu0 0.0
    %8241 = vmatpush1.msra.mxu0 0.0
    %8242 = vmatprep.subr.mxu0 0.0
    %8243 = vmatpush1.msra.mxu0 0.0
    %8244 = vmatprep.subr.mxu0 0.0
    %8245 = vmatpush1.msra.mxu0 0.0
    %8246 = vmatprep.subr.mxu0 0.0
    %8247 = vmatpush1.msra.mxu0 0.0
    %8248 = vmatprep.subr.mxu0 0.0
    %8249 = vmatpush1.msra.mxu0 0.0
    %8250 = vmatprep.subr.mxu0 0.0
    %8251 = vmatpush1.msra.mxu0 0.0
    %8252 = vmatprep.subr.mxu0 0.0
    %8253 = vmatpush1.msra.mxu0 0.0
    %8254 = vmatprep.subr.mxu0 0.0
    %8255 = vmatpush1.msra.mxu0 0.0
    %8256 = vmatprep.subr.mxu0 0.0
    %8257 = vmatpush1.msra.mxu0 0.0
    %8258 = vmatprep.subr.mxu0 0.0
    %8259 = vmatpush1.msra.mxu0 0.0
    %8260 = vmatprep.subr.mxu0 0.0
    %8261 = vmatpush1.msra.mxu0 0.0
    %8262 = vmatprep.subr.mxu0 0.0
    %8263 = vmatpush1.msra.mxu0 0.0
    %8264 = vmatprep.subr.mxu0 0.0
    %8265 = vmatpush1.msra.mxu0 0.0
    %8266 = vmatprep.subr.mxu0 0.0
    %8267 = vmatpush1.msra.mxu0 0.0
    %8268 = vmatprep.mubr.f32.mxu0 0.0
    %v8269 = vand.u32 %v7447, 4294901760
    %v8270 = vsub.f32 %v7447, %v8269
    %8271 = vmatmul.mubr.f32.gmra.mrb[0].mxu0 %v8270
    %v8272 = vpop.f32.mrb[0].mxu0
    %v8273 = vadd.f32 %v8184, %v8272
    %v8274 = vpop.f32.mrb[0].mxu0
    %v8275 = vadd.f32 %v8186, %v8274
    %8276 = vdwg.mxu0
    %v8277 = vand.u32 %v7417, 4294901760
    %8278 = vmatprep.subr.mxu0 %v8277
    %v8279 = vand.u32 %v7416, 4294901760
    %8280 = vmatpush1.msra.mxu0 %v8279
    %v8281 = vand.u32 %v7425, 4294901760
    %8282 = vmatprep.subr.mxu0 %v8281
    %v8283 = vand.u32 %v7424, 4294901760
    %8284 = vmatpush1.msra.mxu0 %v8283
    %v8285 = vand.u32 %v7433, 4294901760
    %8286 = vmatprep.subr.mxu0 %v8285
    %v8287 = vand.u32 %v7432, 4294901760
    %8288 = vmatpush1.msra.mxu0 %v8287
    %v8289 = vand.u32 %v7441, 4294901760
    %8290 = vmatprep.subr.mxu0 %v8289
    %v8291 = vand.u32 %v7440, 4294901760
    %8292 = vmatpush1.msra.mxu0 %v8291
    %8293 = vmatprep.subr.mxu0 0.0
    %8294 = vmatpush1.msra.mxu0 0.0
    %8295 = vmatprep.subr.mxu0 0.0
    %8296 = vmatpush1.msra.mxu0 0.0
    %8297 = vmatprep.subr.mxu0 0.0
    %8298 = vmatpush1.msra.mxu0 0.0
    %8299 = vmatprep.subr.mxu0 0.0
    %8300 = vmatpush1.msra.mxu0 0.0
    %8301 = vmatprep.subr.mxu0 0.0
    %8302 = vmatpush1.msra.mxu0 0.0
    %8303 = vmatprep.subr.mxu0 0.0
    %8304 = vmatpush1.msra.mxu0 0.0
    %8305 = vmatprep.subr.mxu0 0.0
    %8306 = vmatpush1.msra.mxu0 0.0
    %8307 = vmatprep.subr.mxu0 0.0
    %8308 = vmatpush1.msra.mxu0 0.0
    %8309 = vmatprep.subr.mxu0 0.0
    %8310 = vmatpush1.msra.mxu0 0.0
    %8311 = vmatprep.subr.mxu0 0.0
    %8312 = vmatpush1.msra.mxu0 0.0
    %8313 = vmatprep.subr.mxu0 0.0
    %8314 = vmatpush1.msra.mxu0 0.0
    %8315 = vmatprep.subr.mxu0 0.0
    %8316 = vmatpush1.msra.mxu0 0.0
    %8317 = vmatprep.subr.mxu0 0.0
    %8318 = vmatpush1.msra.mxu0 0.0
    %8319 = vmatprep.subr.mxu0 0.0
    %8320 = vmatpush1.msra.mxu0 0.0
    %8321 = vmatprep.subr.mxu0 0.0
    %8322 = vmatpush1.msra.mxu0 0.0
    %8323 = vmatprep.subr.mxu0 0.0
    %8324 = vmatpush1.msra.mxu0 0.0
    %8325 = vmatprep.subr.mxu0 0.0
    %8326 = vmatpush1.msra.mxu0 0.0
    %8327 = vmatprep.subr.mxu0 0.0
    %8328 = vmatpush1.msra.mxu0 0.0
    %8329 = vmatprep.subr.mxu0 0.0
    %8330 = vmatpush1.msra.mxu0 0.0
    %8331 = vmatprep.subr.mxu0 0.0
    %8332 = vmatpush1.msra.mxu0 0.0
    %8333 = vmatprep.subr.mxu0 0.0
    %8334 = vmatpush1.msra.mxu0 0.0
    %8335 = vmatprep.subr.mxu0 0.0
    %8336 = vmatpush1.msra.mxu0 0.0
    %8337 = vmatprep.subr.mxu0 0.0
    %8338 = vmatpush1.msra.mxu0 0.0
    %8339 = vmatprep.subr.mxu0 0.0
    %8340 = vmatpush1.msra.mxu0 0.0
    %8341 = vmatprep.subr.mxu0 0.0
    %8342 = vmatpush1.msra.mxu0 0.0
    %8343 = vmatprep.subr.mxu0 0.0
    %8344 = vmatpush1.msra.mxu0 0.0
    %8345 = vmatprep.subr.mxu0 0.0
    %8346 = vmatpush1.msra.mxu0 0.0
    %8347 = vmatprep.subr.mxu0 0.0
    %8348 = vmatpush1.msra.mxu0 0.0
    %8349 = vmatprep.mubr.f32.mxu0 0.0
    %v8350 = vand.u32 %v7447, 4294901760
    %v8351 = vsub.f32 %v7447, %v8350
    %v8352 = vand.u32 %v8351, 4294901760
    %8353 = vmatmul.mubr.f32.gmra.mrb[0].mxu0 %v8352
    %v8354 = vpop.f32.mrb[0].mxu0
    %v8355 = vadd.f32 %v8273, %v8354
    %v8356 = vpop.f32.mrb[0].mxu0
    %v8357 = vadd.f32 %v8275, %v8356
    %8358 = vdwg.mxu0
    %v8359 = vand.u32 %v7417, 4294901760
    %v8360 = vsub.f32 %v7417, %v8359
    %v8361 = vand.u32 %v8360, 4294901760
    %8362 = vmatprep.subr.mxu0 %v8361
    %v8363 = vand.u32 %v7416, 4294901760
    %v8364 = vsub.f32 %v7416, %v8363
    %v8365 = vand.u32 %v8364, 4294901760
    %8366 = vmatpush1.msra.mxu0 %v8365
    %v8367 = vand.u32 %v7425, 4294901760
    %v8368 = vsub.f32 %v7425, %v8367
    %v8369 = vand.u32 %v8368, 4294901760
    %8370 = vmatprep.subr.mxu0 %v8369
    %v8371 = vand.u32 %v7424, 4294901760
    %v8372 = vsub.f32 %v7424, %v8371
    %v8373 = vand.u32 %v8372, 4294901760
    %8374 = vmatpush1.msra.mxu0 %v8373
    %v8375 = vand.u32 %v7433, 4294901760
    %v8376 = vsub.f32 %v7433, %v8375
    %v8377 = vand.u32 %v8376, 4294901760
    %8378 = vmatprep.subr.mxu0 %v8377
    %v8379 = vand.u32 %v7432, 4294901760
    %v8380 = vsub.f32 %v7432, %v8379
    %v8381 = vand.u32 %v8380, 4294901760
    %8382 = vmatpush1.msra.mxu0 %v8381
    %v8383 = vand.u32 %v7441, 4294901760
    %v8384 = vsub.f32 %v7441, %v8383
    %v8385 = vand.u32 %v8384, 4294901760
    %8386 = vmatprep.subr.mxu0 %v8385
    %v8387 = vand.u32 %v7440, 4294901760
    %v8388 = vsub.f32 %v7440, %v8387
    %v8389 = vand.u32 %v8388, 4294901760
    %8390 = vmatpush1.msra.mxu0 %v8389
    %8391 = vmatprep.subr.mxu0 0.0
    %8392 = vmatpush1.msra.mxu0 0.0
    %8393 = vmatprep.subr.mxu0 0.0
    %8394 = vmatpush1.msra.mxu0 0.0
    %8395 = vmatprep.subr.mxu0 0.0
    %8396 = vmatpush1.msra.mxu0 0.0
    %8397 = vmatprep.subr.mxu0 0.0
    %8398 = vmatpush1.msra.mxu0 0.0
    %8399 = vmatprep.subr.mxu0 0.0
    %8400 = vmatpush1.msra.mxu0 0.0
    %8401 = vmatprep.subr.mxu0 0.0
    %8402 = vmatpush1.msra.mxu0 0.0
    %8403 = vmatprep.subr.mxu0 0.0
    %8404 = vmatpush1.msra.mxu0 0.0
    %8405 = vmatprep.subr.mxu0 0.0
    %8406 = vmatpush1.msra.mxu0 0.0
    %8407 = vmatprep.subr.mxu0 0.0
    %8408 = vmatpush1.msra.mxu0 0.0
    %8409 = vmatprep.subr.mxu0 0.0
    %8410 = vmatpush1.msra.mxu0 0.0
    %8411 = vmatprep.subr.mxu0 0.0
    %8412 = vmatpush1.msra.mxu0 0.0
    %8413 = vmatprep.subr.mxu0 0.0
    %8414 = vmatpush1.msra.mxu0 0.0
    %8415 = vmatprep.subr.mxu0 0.0
    %8416 = vmatpush1.msra.mxu0 0.0
    %8417 = vmatprep.subr.mxu0 0.0
    %8418 = vmatpush1.msra.mxu0 0.0
    %8419 = vmatprep.subr.mxu0 0.0
    %8420 = vmatpush1.msra.mxu0 0.0
    %8421 = vmatprep.subr.mxu0 0.0
    %8422 = vmatpush1.msra.mxu0 0.0
    %8423 = vmatprep.subr.mxu0 0.0
    %8424 = vmatpush1.msra.mxu0 0.0
    %8425 = vmatprep.subr.mxu0 0.0
    %8426 = vmatpush1.msra.mxu0 0.0
    %8427 = vmatprep.subr.mxu0 0.0
    %8428 = vmatpush1.msra.mxu0 0.0
    %8429 = vmatprep.subr.mxu0 0.0
    %8430 = vmatpush1.msra.mxu0 0.0
    %8431 = vmatprep.subr.mxu0 0.0
    %8432 = vmatpush1.msra.mxu0 0.0
    %8433 = vmatprep.subr.mxu0 0.0
    %8434 = vmatpush1.msra.mxu0 0.0
    %8435 = vmatprep.subr.mxu0 0.0
    %8436 = vmatpush1.msra.mxu0 0.0
    %8437 = vmatprep.subr.mxu0 0.0
    %8438 = vmatpush1.msra.mxu0 0.0
    %8439 = vmatprep.subr.mxu0 0.0
    %8440 = vmatpush1.msra.mxu0 0.0
    %8441 = vmatprep.subr.mxu0 0.0
    %8442 = vmatpush1.msra.mxu0 0.0
    %8443 = vmatprep.subr.mxu0 0.0
    %8444 = vmatpush1.msra.mxu0 0.0
    %8445 = vmatprep.subr.mxu0 0.0
    %8446 = vmatpush1.msra.mxu0 0.0
    %8447 = vmatprep.mubr.f32.mxu0 0.0
    %v8448 = vand.u32 %v7447, 4294901760
    %8449 = vmatmul.mubr.f32.gmra.mrb[0].mxu0 %v8448
    %v8450 = vpop.f32.mrb[0].mxu0
    %v8451 = vadd.f32 %v8355, %v8450
    %v8452 = vpop.f32.mrb[0].mxu0
    %v8453 = vadd.f32 %v8357, %v8452
    %8454 = vdwg.mxu0
    %v8455 = vand.u32 %v7417, 4294901760
    %8456 = vmatprep.subr.mxu0 %v8455
    %v8457 = vand.u32 %v7416, 4294901760
    %8458 = vmatpush1.msra.mxu0 %v8457
    %v8459 = vand.u32 %v7425, 4294901760
    %8460 = vmatprep.subr.mxu0 %v8459
    %v8461 = vand.u32 %v7424, 4294901760
    %8462 = vmatpush1.msra.mxu0 %v8461
    %v8463 = vand.u32 %v7433, 4294901760
    %8464 = vmatprep.subr.mxu0 %v8463
    %v8465 = vand.u32 %v7432, 4294901760
    %8466 = vmatpush1.msra.mxu0 %v8465
    %v8467 = vand.u32 %v7441, 4294901760
    %8468 = vmatprep.subr.mxu0 %v8467
    %v8469 = vand.u32 %v7440, 4294901760
    %8470 = vmatpush1.msra.mxu0 %v8469
    %8471 = vmatprep.subr.mxu0 0.0
    %8472 = vmatpush1.msra.mxu0 0.0
    %8473 = vmatprep.subr.mxu0 0.0
    %8474 = vmatpush1.msra.mxu0 0.0
    %8475 = vmatprep.subr.mxu0 0.0
    %8476 = vmatpush1.msra.mxu0 0.0
    %8477 = vmatprep.subr.mxu0 0.0
    %8478 = vmatpush1.msra.mxu0 0.0
    %8479 = vmatprep.subr.mxu0 0.0
    %8480 = vmatpush1.msra.mxu0 0.0
    %8481 = vmatprep.subr.mxu0 0.0
    %8482 = vmatpush1.msra.mxu0 0.0
    %8483 = vmatprep.subr.mxu0 0.0
    %8484 = vmatpush1.msra.mxu0 0.0
    %8485 = vmatprep.subr.mxu0 0.0
    %8486 = vmatpush1.msra.mxu0 0.0
    %8487 = vmatprep.subr.mxu0 0.0
    %8488 = vmatpush1.msra.mxu0 0.0
    %8489 = vmatprep.subr.mxu0 0.0
    %8490 = vmatpush1.msra.mxu0 0.0
    %8491 = vmatprep.subr.mxu0 0.0
    %8492 = vmatpush1.msra.mxu0 0.0
    %8493 = vmatprep.subr.mxu0 0.0
    %8494 = vmatpush1.msra.mxu0 0.0
    %8495 = vmatprep.subr.mxu0 0.0
    %8496 = vmatpush1.msra.mxu0 0.0
    %8497 = vmatprep.subr.mxu0 0.0
    %8498 = vmatpush1.msra.mxu0 0.0
    %8499 = vmatprep.subr.mxu0 0.0
    %8500 = vmatpush1.msra.mxu0 0.0
    %8501 = vmatprep.subr.mxu0 0.0
    %8502 = vmatpush1.msra.mxu0 0.0
    %8503 = vmatprep.subr.mxu0 0.0
    %8504 = vmatpush1.msra.mxu0 0.0
    %8505 = vmatprep.subr.mxu0 0.0
    %8506 = vmatpush1.msra.mxu0 0.0
    %8507 = vmatprep.subr.mxu0 0.0
    %8508 = vmatpush1.msra.mxu0 0.0
    %8509 = vmatprep.subr.mxu0 0.0
    %8510 = vmatpush1.msra.mxu0 0.0
    %8511 = vmatprep.subr.mxu0 0.0
    %8512 = vmatpush1.msra.mxu0 0.0
    %8513 = vmatprep.subr.mxu0 0.0
    %8514 = vmatpush1.msra.mxu0 0.0
    %8515 = vmatprep.subr.mxu0 0.0
    %8516 = vmatpush1.msra.mxu0 0.0
    %8517 = vmatprep.subr.mxu0 0.0
    %8518 = vmatpush1.msra.mxu0 0.0
    %8519 = vmatprep.subr.mxu0 0.0
    %8520 = vmatpush1.msra.mxu0 0.0
    %8521 = vmatprep.subr.mxu0 0.0
    %8522 = vmatpush1.msra.mxu0 0.0
    %8523 = vmatprep.subr.mxu0 0.0
    %8524 = vmatpush1.msra.mxu0 0.0
    %8525 = vmatprep.subr.mxu0 0.0
    %8526 = vmatpush1.msra.mxu0 0.0
    %8527 = vmatprep.mubr.f32.mxu0 0.0
    %v8528 = vand.u32 %v7447, 4294901760
    %8529 = vmatmul.mubr.f32.gmra.mrb[0].mxu0 %v8528
    %v8530 = vpop.f32.mrb[0].mxu0
    %v8531 = vadd.f32 %v8451, %v8530
    %v8532 = vpop.f32.mrb[0].mxu0
    %v8533 = vadd.f32 %v8453, %v8532
    %8534 = vdwg.mxu0
    %v8535 = vand.u32 %v7419, 4294901760
    %8536 = vmatprep.subr.mxu0 %v8535
    %v8537 = vand.u32 %v7418, 4294901760
    %8538 = vmatpush1.msra.mxu0 %v8537
    %v8539 = vand.u32 %v7427, 4294901760
    %8540 = vmatprep.subr.mxu0 %v8539
    %v8541 = vand.u32 %v7426, 4294901760
    %8542 = vmatpush1.msra.mxu0 %v8541
    %v8543 = vand.u32 %v7435, 4294901760
    %8544 = vmatprep.subr.mxu0 %v8543
    %v8545 = vand.u32 %v7434, 4294901760
    %8546 = vmatpush1.msra.mxu0 %v8545
    %v8547 = vand.u32 %v7443, 4294901760
    %8548 = vmatprep.subr.mxu0 %v8547
    %v8549 = vand.u32 %v7442, 4294901760
    %8550 = vmatpush1.msra.mxu0 %v8549
    %8551 = vmatprep.subr.mxu0 0.0
    %8552 = vmatpush1.msra.mxu0 0.0
    %8553 = vmatprep.subr.mxu0 0.0
    %8554 = vmatpush1.msra.mxu0 0.0
    %8555 = vmatprep.subr.mxu0 0.0
    %8556 = vmatpush1.msra.mxu0 0.0
    %8557 = vmatprep.subr.mxu0 0.0
    %8558 = vmatpush1.msra.mxu0 0.0
    %8559 = vmatprep.subr.mxu0 0.0
    %8560 = vmatpush1.msra.mxu0 0.0
    %8561 = vmatprep.subr.mxu0 0.0
    %8562 = vmatpush1.msra.mxu0 0.0
    %8563 = vmatprep.subr.mxu0 0.0
    %8564 = vmatpush1.msra.mxu0 0.0
    %8565 = vmatprep.subr.mxu0 0.0
    %8566 = vmatpush1.msra.mxu0 0.0
    %8567 = vmatprep.subr.mxu0 0.0
    %8568 = vmatpush1.msra.mxu0 0.0
    %8569 = vmatprep.subr.mxu0 0.0
    %8570 = vmatpush1.msra.mxu0 0.0
    %8571 = vmatprep.subr.mxu0 0.0
    %8572 = vmatpush1.msra.mxu0 0.0
    %8573 = vmatprep.subr.mxu0 0.0
    %8574 = vmatpush1.msra.mxu0 0.0
    %8575 = vmatprep.subr.mxu0 0.0
    %8576 = vmatpush1.msra.mxu0 0.0
    %8577 = vmatprep.subr.mxu0 0.0
    %8578 = vmatpush1.msra.mxu0 0.0
    %8579 = vmatprep.subr.mxu0 0.0
    %8580 = vmatpush1.msra.mxu0 0.0
    %8581 = vmatprep.subr.mxu0 0.0
    %8582 = vmatpush1.msra.mxu0 0.0
    %8583 = vmatprep.subr.mxu0 0.0
    %8584 = vmatpush1.msra.mxu0 0.0
    %8585 = vmatprep.subr.mxu0 0.0
    %8586 = vmatpush1.msra.mxu0 0.0
    %8587 = vmatprep.subr.mxu0 0.0
    %8588 = vmatpush1.msra.mxu0 0.0
    %8589 = vmatprep.subr.mxu0 0.0
    %8590 = vmatpush1.msra.mxu0 0.0
    %8591 = vmatprep.subr.mxu0 0.0
    %8592 = vmatpush1.msra.mxu0 0.0
    %8593 = vmatprep.subr.mxu0 0.0
    %8594 = vmatpush1.msra.mxu0 0.0
    %8595 = vmatprep.subr.mxu0 0.0
    %8596 = vmatpush1.msra.mxu0 0.0
    %8597 = vmatprep.subr.mxu0 0.0
    %8598 = vmatpush1.msra.mxu0 0.0
    %8599 = vmatprep.subr.mxu0 0.0
    %8600 = vmatpush1.msra.mxu0 0.0
    %8601 = vmatprep.subr.mxu0 0.0
    %8602 = vmatpush1.msra.mxu0 0.0
    %8603 = vmatprep.subr.mxu0 0.0
    %8604 = vmatpush1.msra.mxu0 0.0
    %8605 = vmatprep.subr.mxu0 0.0
    %8606 = vmatpush1.msra.mxu0 0.0
    %8607 = vmatprep.mubr.f32.mxu0 0.0
    %v8608 = vand.u32 %v7447, 4294901760
    %v8609 = vsub.f32 %v7447, %v8608
    %v8610 = vand.u32 %v8609, 4294901760
    %v8611 = vsub.f32 %v8609, %v8610
    %v8612 = vand.u32 %v8611, 4294901760
    %8613 = vmatmul.mubr.f32.gmra.mrb[0].mxu0 %v8612
    %v8614 = vpop.f32.mrb[0].mxu0
    %v8615 = vadd.f32 0.0, %v8614
    %v8616 = vpop.f32.mrb[0].mxu0
    %v8617 = vadd.f32 0.0, %v8616
    %8618 = vdwg.mxu0
    %v8619 = vand.u32 %v7419, 4294901760
    %v8620 = vsub.f32 %v7419, %v8619
    %v8621 = vand.u32 %v8620, 4294901760
    %v8622 = vsub.f32 %v8620, %v8621
    %v8623 = vand.u32 %v8622, 4294901760
    %8624 = vmatprep.subr.mxu0 %v8623
    %v8625 = vand.u32 %v7418, 4294901760
    %v8626 = vsub.f32 %v7418, %v8625
    %v8627 = vand.u32 %v8626, 4294901760
    %v8628 = vsub.f32 %v8626, %v8627
    %v8629 = vand.u32 %v8628, 4294901760
    %8630 = vmatpush1.msra.mxu0 %v8629
    %v8631 = vand.u32 %v7427, 4294901760
    %v8632 = vsub.f32 %v7427, %v8631
    %v8633 = vand.u32 %v8632, 4294901760
    %v8634 = vsub.f32 %v8632, %v8633
    %v8635 = vand.u32 %v8634, 4294901760
    %8636 = vmatprep.subr.mxu0 %v8635
    %v8637 = vand.u32 %v7426, 4294901760
    %v8638 = vsub.f32 %v7426, %v8637
    %v8639 = vand.u32 %v8638, 4294901760
    %v8640 = vsub.f32 %v8638, %v8639
    %v8641 = vand.u32 %v8640, 4294901760
    %8642 = vmatpush1.msra.mxu0 %v8641
    %v8643 = vand.u32 %v7435, 4294901760
    %v8644 = vsub.f32 %v7435, %v8643
    %v8645 = vand.u32 %v8644, 4294901760
    %v8646 = vsub.f32 %v8644, %v8645
    %v8647 = vand.u32 %v8646, 4294901760
    %8648 = vmatprep.subr.mxu0 %v8647
    %v8649 = vand.u32 %v7434, 4294901760
    %v8650 = vsub.f32 %v7434, %v8649
    %v8651 = vand.u32 %v8650, 4294901760
    %v8652 = vsub.f32 %v8650, %v8651
    %v8653 = vand.u32 %v8652, 4294901760
    %8654 = vmatpush1.msra.mxu0 %v8653
    %v8655 = vand.u32 %v7443, 4294901760
    %v8656 = vsub.f32 %v7443, %v8655
    %v8657 = vand.u32 %v8656, 4294901760
    %v8658 = vsub.f32 %v8656, %v8657
    %v8659 = vand.u32 %v8658, 4294901760
    %8660 = vmatprep.subr.mxu0 %v8659
    %v8661 = vand.u32 %v7442, 4294901760
    %v8662 = vsub.f32 %v7442, %v8661
    %v8663 = vand.u32 %v8662, 4294901760
    %v8664 = vsub.f32 %v8662, %v8663
    %v8665 = vand.u32 %v8664, 4294901760
    %8666 = vmatpush1.msra.mxu0 %v8665
    %8667 = vmatprep.subr.mxu0 0.0
    %8668 = vmatpush1.msra.mxu0 0.0
    %8669 = vmatprep.subr.mxu0 0.0
    %8670 = vmatpush1.msra.mxu0 0.0
    %8671 = vmatprep.subr.mxu0 0.0
    %8672 = vmatpush1.msra.mxu0 0.0
    %8673 = vmatprep.subr.mxu0 0.0
    %8674 = vmatpush1.msra.mxu0 0.0
    %8675 = vmatprep.subr.mxu0 0.0
    %8676 = vmatpush1.msra.mxu0 0.0
    %8677 = vmatprep.subr.mxu0 0.0
    %8678 = vmatpush1.msra.mxu0 0.0
    %8679 = vmatprep.subr.mxu0 0.0
    %8680 = vmatpush1.msra.mxu0 0.0
    %8681 = vmatprep.subr.mxu0 0.0
    %8682 = vmatpush1.msra.mxu0 0.0
    %8683 = vmatprep.subr.mxu0 0.0
    %8684 = vmatpush1.msra.mxu0 0.0
    %8685 = vmatprep.subr.mxu0 0.0
    %8686 = vmatpush1.msra.mxu0 0.0
    %8687 = vmatprep.subr.mxu0 0.0
    %8688 = vmatpush1.msra.mxu0 0.0
    %8689 = vmatprep.subr.mxu0 0.0
    %8690 = vmatpush1.msra.mxu0 0.0
    %8691 = vmatprep.subr.mxu0 0.0
    %8692 = vmatpush1.msra.mxu0 0.0
    %8693 = vmatprep.subr.mxu0 0.0
    %8694 = vmatpush1.msra.mxu0 0.0
    %8695 = vmatprep.subr.mxu0 0.0
    %8696 = vmatpush1.msra.mxu0 0.0
    %8697 = vmatprep.subr.mxu0 0.0
    %8698 = vmatpush1.msra.mxu0 0.0
    %8699 = vmatprep.subr.mxu0 0.0
    %8700 = vmatpush1.msra.mxu0 0.0
    %8701 = vmatprep.subr.mxu0 0.0
    %8702 = vmatpush1.msra.mxu0 0.0
    %8703 = vmatprep.subr.mxu0 0.0
    %8704 = vmatpush1.msra.mxu0 0.0
    %8705 = vmatprep.subr.mxu0 0.0
    %8706 = vmatpush1.msra.mxu0 0.0
    %8707 = vmatprep.subr.mxu0 0.0
    %8708 = vmatpush1.msra.mxu0 0.0
    %8709 = vmatprep.subr.mxu0 0.0
    %8710 = vmatpush1.msra.mxu0 0.0
    %8711 = vmatprep.subr.mxu0 0.0
    %8712 = vmatpush1.msra.mxu0 0.0
    %8713 = vmatprep.subr.mxu0 0.0
    %8714 = vmatpush1.msra.mxu0 0.0
    %8715 = vmatprep.subr.mxu0 0.0
    %8716 = vmatpush1.msra.mxu0 0.0
    %8717 = vmatprep.subr.mxu0 0.0
    %8718 = vmatpush1.msra.mxu0 0.0
    %8719 = vmatprep.subr.mxu0 0.0
    %8720 = vmatpush1.msra.mxu0 0.0
    %8721 = vmatprep.subr.mxu0 0.0
    %8722 = vmatpush1.msra.mxu0 0.0
    %8723 = vmatprep.mubr.f32.mxu0 0.0
    %v8724 = vand.u32 %v7447, 4294901760
    %8725 = vmatmul.mubr.f32.gmra.mrb[0].mxu0 %v8724
    %v8726 = vpop.f32.mrb[0].mxu0
    %v8727 = vadd.f32 %v8615, %v8726
    %v8728 = vpop.f32.mrb[0].mxu0
    %v8729 = vadd.f32 %v8617, %v8728
    %8730 = vdwg.mxu0
    %v8731 = vand.u32 %v7419, 4294901760
    %v8732 = vsub.f32 %v7419, %v8731
    %8733 = vmatprep.subr.mxu0 %v8732
    %v8734 = vand.u32 %v7418, 4294901760
    %v8735 = vsub.f32 %v7418, %v8734
    %8736 = vmatpush1.msra.mxu0 %v8735
    %v8737 = vand.u32 %v7427, 4294901760
    %v8738 = vsub.f32 %v7427, %v8737
    %8739 = vmatprep.subr.mxu0 %v8738
    %v8740 = vand.u32 %v7426, 4294901760
    %v8741 = vsub.f32 %v7426, %v8740
    %8742 = vmatpush1.msra.mxu0 %v8741
    %v8743 = vand.u32 %v7435, 4294901760
    %v8744 = vsub.f32 %v7435, %v8743
    %8745 = vmatprep.subr.mxu0 %v8744
    %v8746 = vand.u32 %v7434, 4294901760
    %v8747 = vsub.f32 %v7434, %v8746
    %8748 = vmatpush1.msra.mxu0 %v8747
    %v8749 = vand.u32 %v7443, 4294901760
    %v8750 = vsub.f32 %v7443, %v8749
    %8751 = vmatprep.subr.mxu0 %v8750
    %v8752 = vand.u32 %v7442, 4294901760
    %v8753 = vsub.f32 %v7442, %v8752
    %8754 = vmatpush1.msra.mxu0 %v8753
    %8755 = vmatprep.subr.mxu0 0.0
    %8756 = vmatpush1.msra.mxu0 0.0
    %8757 = vmatprep.subr.mxu0 0.0
    %8758 = vmatpush1.msra.mxu0 0.0
    %8759 = vmatprep.subr.mxu0 0.0
    %8760 = vmatpush1.msra.mxu0 0.0
    %8761 = vmatprep.subr.mxu0 0.0
    %8762 = vmatpush1.msra.mxu0 0.0
    %8763 = vmatprep.subr.mxu0 0.0
    %8764 = vmatpush1.msra.mxu0 0.0
    %8765 = vmatprep.subr.mxu0 0.0
    %8766 = vmatpush1.msra.mxu0 0.0
    %8767 = vmatprep.subr.mxu0 0.0
    %8768 = vmatpush1.msra.mxu0 0.0
    %8769 = vmatprep.subr.mxu0 0.0
    %8770 = vmatpush1.msra.mxu0 0.0
    %8771 = vmatprep.subr.mxu0 0.0
    %8772 = vmatpush1.msra.mxu0 0.0
    %8773 = vmatprep.subr.mxu0 0.0
    %8774 = vmatpush1.msra.mxu0 0.0
    %8775 = vmatprep.subr.mxu0 0.0
    %8776 = vmatpush1.msra.mxu0 0.0
    %8777 = vmatprep.subr.mxu0 0.0
    %8778 = vmatpush1.msra.mxu0 0.0
    %8779 = vmatprep.subr.mxu0 0.0
    %8780 = vmatpush1.msra.mxu0 0.0
    %8781 = vmatprep.subr.mxu0 0.0
    %8782 = vmatpush1.msra.mxu0 0.0
    %8783 = vmatprep.subr.mxu0 0.0
    %8784 = vmatpush1.msra.mxu0 0.0
    %8785 = vmatprep.subr.mxu0 0.0
    %8786 = vmatpush1.msra.mxu0 0.0
    %8787 = vmatprep.subr.mxu0 0.0
    %8788 = vmatpush1.msra.mxu0 0.0
    %8789 = vmatprep.subr.mxu0 0.0
    %8790 = vmatpush1.msra.mxu0 0.0
    %8791 = vmatprep.subr.mxu0 0.0
    %8792 = vmatpush1.msra.mxu0 0.0
    %8793 = vmatprep.subr.mxu0 0.0
    %8794 = vmatpush1.msra.mxu0 0.0
    %8795 = vmatprep.subr.mxu0 0.0
    %8796 = vmatpush1.msra.mxu0 0.0
    %8797 = vmatprep.subr.mxu0 0.0
    %8798 = vmatpush1.msra.mxu0 0.0
    %8799 = vmatprep.subr.mxu0 0.0
    %8800 = vmatpush1.msra.mxu0 0.0
    %8801 = vmatprep.subr.mxu0 0.0
    %8802 = vmatpush1.msra.mxu0 0.0
    %8803 = vmatprep.subr.mxu0 0.0
    %8804 = vmatpush1.msra.mxu0 0.0
    %8805 = vmatprep.subr.mxu0 0.0
    %8806 = vmatpush1.msra.mxu0 0.0
    %8807 = vmatprep.subr.mxu0 0.0
    %8808 = vmatpush1.msra.mxu0 0.0
    %8809 = vmatprep.subr.mxu0 0.0
    %8810 = vmatpush1.msra.mxu0 0.0
    %8811 = vmatprep.mubr.f32.mxu0 0.0
    %v8812 = vand.u32 %v7447, 4294901760
    %v8813 = vsub.f32 %v7447, %v8812
    %8814 = vmatmul.mubr.f32.gmra.mrb[0].mxu0 %v8813
    %v8815 = vpop.f32.mrb[0].mxu0
    %v8816 = vadd.f32 %v8727, %v8815
    %v8817 = vpop.f32.mrb[0].mxu0
    %v8818 = vadd.f32 %v8729, %v8817
    %8819 = vdwg.mxu0
    %v8820 = vand.u32 %v7419, 4294901760
    %8821 = vmatprep.subr.mxu0 %v8820
    %v8822 = vand.u32 %v7418, 4294901760
    %8823 = vmatpush1.msra.mxu0 %v8822
    %v8824 = vand.u32 %v7427, 4294901760
    %8825 = vmatprep.subr.mxu0 %v8824
    %v8826 = vand.u32 %v7426, 4294901760
    %8827 = vmatpush1.msra.mxu0 %v8826
    %v8828 = vand.u32 %v7435, 4294901760
    %8829 = vmatprep.subr.mxu0 %v8828
    %v8830 = vand.u32 %v7434, 4294901760
    %8831 = vmatpush1.msra.mxu0 %v8830
    %v8832 = vand.u32 %v7443, 4294901760
    %8833 = vmatprep.subr.mxu0 %v8832
    %v8834 = vand.u32 %v7442, 4294901760
    %8835 = vmatpush1.msra.mxu0 %v8834
    %8836 = vmatprep.subr.mxu0 0.0
    %8837 = vmatpush1.msra.mxu0 0.0
    %8838 = vmatprep.subr.mxu0 0.0
    %8839 = vmatpush1.msra.mxu0 0.0
    %8840 = vmatprep.subr.mxu0 0.0
    %8841 = vmatpush1.msra.mxu0 0.0
    %8842 = vmatprep.subr.mxu0 0.0
    %8843 = vmatpush1.msra.mxu0 0.0
    %8844 = vmatprep.subr.mxu0 0.0
    %8845 = vmatpush1.msra.mxu0 0.0
    %8846 = vmatprep.subr.mxu0 0.0
    %8847 = vmatpush1.msra.mxu0 0.0
    %8848 = vmatprep.subr.mxu0 0.0
    %8849 = vmatpush1.msra.mxu0 0.0
    %8850 = vmatprep.subr.mxu0 0.0
    %8851 = vmatpush1.msra.mxu0 0.0
    %8852 = vmatprep.subr.mxu0 0.0
    %8853 = vmatpush1.msra.mxu0 0.0
    %8854 = vmatprep.subr.mxu0 0.0
    %8855 = vmatpush1.msra.mxu0 0.0
    %8856 = vmatprep.subr.mxu0 0.0
    %8857 = vmatpush1.msra.mxu0 0.0
    %8858 = vmatprep.subr.mxu0 0.0
    %8859 = vmatpush1.msra.mxu0 0.0
    %8860 = vmatprep.subr.mxu0 0.0
    %8861 = vmatpush1.msra.mxu0 0.0
    %8862 = vmatprep.subr.mxu0 0.0
    %8863 = vmatpush1.msra.mxu0 0.0
    %8864 = vmatprep.subr.mxu0 0.0
    %8865 = vmatpush1.msra.mxu0 0.0
    %8866 = vmatprep.subr.mxu0 0.0
    %8867 = vmatpush1.msra.mxu0 0.0
    %8868 = vmatprep.subr.mxu0 0.0
    %8869 = vmatpush1.msra.mxu0 0.0
    %8870 = vmatprep.subr.mxu0 0.0
    %8871 = vmatpush1.msra.mxu0 0.0
    %8872 = vmatprep.subr.mxu0 0.0
    %8873 = vmatpush1.msra.mxu0 0.0
    %8874 = vmatprep.subr.mxu0 0.0
    %8875 = vmatpush1.msra.mxu0 0.0
    %8876 = vmatprep.subr.mxu0 0.0
    %8877 = vmatpush1.msra.mxu0 0.0
    %8878 = vmatprep.subr.mxu0 0.0
    %8879 = vmatpush1.msra.mxu0 0.0
    %8880 = vmatprep.subr.mxu0 0.0
    %8881 = vmatpush1.msra.mxu0 0.0
    %8882 = vmatprep.subr.mxu0 0.0
    %8883 = vmatpush1.msra.mxu0 0.0
    %8884 = vmatprep.subr.mxu0 0.0
    %8885 = vmatpush1.msra.mxu0 0.0
    %8886 = vmatprep.subr.mxu0 0.0
    %8887 = vmatpush1.msra.mxu0 0.0
    %8888 = vmatprep.subr.mxu0 0.0
    %8889 = vmatpush1.msra.mxu0 0.0
    %8890 = vmatprep.subr.mxu0 0.0
    %8891 = vmatpush1.msra.mxu0 0.0
    %8892 = vmatprep.mubr.f32.mxu0 0.0
    %v8893 = vand.u32 %v7447, 4294901760
    %v8894 = vsub.f32 %v7447, %v8893
    %v8895 = vand.u32 %v8894, 4294901760
    %8896 = vmatmul.mubr.f32.gmra.mrb[0].mxu0 %v8895
    %v8897 = vpop.f32.mrb[0].mxu0
    %v8898 = vadd.f32 %v8816, %v8897
    %v8899 = vpop.f32.mrb[0].mxu0
    %v8900 = vadd.f32 %v8818, %v8899
    %8901 = vdwg.mxu0
    %v8902 = vand.u32 %v7419, 4294901760
    %v8903 = vsub.f32 %v7419, %v8902
    %v8904 = vand.u32 %v8903, 4294901760
    %8905 = vmatprep.subr.mxu0 %v8904
    %v8906 = vand.u32 %v7418, 4294901760
    %v8907 = vsub.f32 %v7418, %v8906
    %v8908 = vand.u32 %v8907, 4294901760
    %8909 = vmatpush1.msra.mxu0 %v8908
    %v8910 = vand.u32 %v7427, 4294901760
    %v8911 = vsub.f32 %v7427, %v8910
    %v8912 = vand.u32 %v8911, 4294901760
    %8913 = vmatprep.subr.mxu0 %v8912
    %v8914 = vand.u32 %v7426, 4294901760
    %v8915 = vsub.f32 %v7426, %v8914
    %v8916 = vand.u32 %v8915, 4294901760
    %8917 = vmatpush1.msra.mxu0 %v8916
    %v8918 = vand.u32 %v7435, 4294901760
    %v8919 = vsub.f32 %v7435, %v8918
    %v8920 = vand.u32 %v8919, 4294901760
    %8921 = vmatprep.subr.mxu0 %v8920
    %v8922 = vand.u32 %v7434, 4294901760
    %v8923 = vsub.f32 %v7434, %v8922
    %v8924 = vand.u32 %v8923, 4294901760
    %8925 = vmatpush1.msra.mxu0 %v8924
    %v8926 = vand.u32 %v7443, 4294901760
    %v8927 = vsub.f32 %v7443, %v8926
    %v8928 = vand.u32 %v8927, 4294901760
    %8929 = vmatprep.subr.mxu0 %v8928
    %v8930 = vand.u32 %v7442, 4294901760
    %v8931 = vsub.f32 %v7442, %v8930
    %v8932 = vand.u32 %v8931, 4294901760
    %8933 = vmatpush1.msra.mxu0 %v8932
    %8934 = vmatprep.subr.mxu0 0.0
    %8935 = vmatpush1.msra.mxu0 0.0
    %8936 = vmatprep.subr.mxu0 0.0
    %8937 = vmatpush1.msra.mxu0 0.0
    %8938 = vmatprep.subr.mxu0 0.0
    %8939 = vmatpush1.msra.mxu0 0.0
    %8940 = vmatprep.subr.mxu0 0.0
    %8941 = vmatpush1.msra.mxu0 0.0
    %8942 = vmatprep.subr.mxu0 0.0
    %8943 = vmatpush1.msra.mxu0 0.0
    %8944 = vmatprep.subr.mxu0 0.0
    %8945 = vmatpush1.msra.mxu0 0.0
    %8946 = vmatprep.subr.mxu0 0.0
    %8947 = vmatpush1.msra.mxu0 0.0
    %8948 = vmatprep.subr.mxu0 0.0
    %8949 = vmatpush1.msra.mxu0 0.0
    %8950 = vmatprep.subr.mxu0 0.0
    %8951 = vmatpush1.msra.mxu0 0.0
    %8952 = vmatprep.subr.mxu0 0.0
    %8953 = vmatpush1.msra.mxu0 0.0
    %8954 = vmatprep.subr.mxu0 0.0
    %8955 = vmatpush1.msra.mxu0 0.0
    %8956 = vmatprep.subr.mxu0 0.0
    %8957 = vmatpush1.msra.mxu0 0.0
    %8958 = vmatprep.subr.mxu0 0.0
    %8959 = vmatpush1.msra.mxu0 0.0
    %8960 = vmatprep.subr.mxu0 0.0
    %8961 = vmatpush1.msra.mxu0 0.0
    %8962 = vmatprep.subr.mxu0 0.0
    %8963 = vmatpush1.msra.mxu0 0.0
    %8964 = vmatprep.subr.mxu0 0.0
    %8965 = vmatpush1.msra.mxu0 0.0
    %8966 = vmatprep.subr.mxu0 0.0
    %8967 = vmatpush1.msra.mxu0 0.0
    %8968 = vmatprep.subr.mxu0 0.0
    %8969 = vmatpush1.msra.mxu0 0.0
    %8970 = vmatprep.subr.mxu0 0.0
    %8971 = vmatpush1.msra.mxu0 0.0
    %8972 = vmatprep.subr.mxu0 0.0
    %8973 = vmatpush1.msra.mxu0 0.0
    %8974 = vmatprep.subr.mxu0 0.0
    %8975 = vmatpush1.msra.mxu0 0.0
    %8976 = vmatprep.subr.mxu0 0.0
    %8977 = vmatpush1.msra.mxu0 0.0
    %8978 = vmatprep.subr.mxu0 0.0
    %8979 = vmatpush1.msra.mxu0 0.0
    %8980 = vmatprep.subr.mxu0 0.0
    %8981 = vmatpush1.msra.mxu0 0.0
    %8982 = vmatprep.subr.mxu0 0.0
    %8983 = vmatpush1.msra.mxu0 0.0
    %8984 = vmatprep.subr.mxu0 0.0
    %8985 = vmatpush1.msra.mxu0 0.0
    %8986 = vmatprep.subr.mxu0 0.0
    %8987 = vmatpush1.msra.mxu0 0.0
    %8988 = vmatprep.subr.mxu0 0.0
    %8989 = vmatpush1.msra.mxu0 0.0
    %8990 = vmatprep.mubr.f32.mxu0 0.0
    %v8991 = vand.u32 %v7447, 4294901760
    %8992 = vmatmul.mubr.f32.gmra.mrb[0].mxu0 %v8991
    %v8993 = vpop.f32.mrb[0].mxu0
    %v8994 = vadd.f32 %v8898, %v8993
    %v8995 = vpop.f32.mrb[0].mxu0
    %v8996 = vadd.f32 %v8900, %v8995
    %8997 = vdwg.mxu0
    %v8998 = vand.u32 %v7419, 4294901760
    %8999 = vmatprep.subr.mxu0 %v8998
    %v9000 = vand.u32 %v7418, 4294901760
    %9001 = vmatpush1.msra.mxu0 %v9000
    %v9002 = vand.u32 %v7427, 4294901760
    %9003 = vmatprep.subr.mxu0 %v9002
    %v9004 = vand.u32 %v7426, 4294901760
    %9005 = vmatpush1.msra.mxu0 %v9004
    %v9006 = vand.u32 %v7435, 4294901760
    %9007 = vmatprep.subr.mxu0 %v9006
    %v9008 = vand.u32 %v7434, 4294901760
    %9009 = vmatpush1.msra.mxu0 %v9008
    %v9010 = vand.u32 %v7443, 4294901760
    %9011 = vmatprep.subr.mxu0 %v9010
    %v9012 = vand.u32 %v7442, 4294901760
    %9013 = vmatpush1.msra.mxu0 %v9012
    %9014 = vmatprep.subr.mxu0 0.0
    %9015 = vmatpush1.msra.mxu0 0.0
    %9016 = vmatprep.subr.mxu0 0.0
    %9017 = vmatpush1.msra.mxu0 0.0
    %9018 = vmatprep.subr.mxu0 0.0
    %9019 = vmatpush1.msra.mxu0 0.0
    %9020 = vmatprep.subr.mxu0 0.0
    %9021 = vmatpush1.msra.mxu0 0.0
    %9022 = vmatprep.subr.mxu0 0.0
    %9023 = vmatpush1.msra.mxu0 0.0
    %9024 = vmatprep.subr.mxu0 0.0
    %9025 = vmatpush1.msra.mxu0 0.0
    %9026 = vmatprep.subr.mxu0 0.0
    %9027 = vmatpush1.msra.mxu0 0.0
    %9028 = vmatprep.subr.mxu0 0.0
    %9029 = vmatpush1.msra.mxu0 0.0
    %9030 = vmatprep.subr.mxu0 0.0
    %9031 = vmatpush1.msra.mxu0 0.0
    %9032 = vmatprep.subr.mxu0 0.0
    %9033 = vmatpush1.msra.mxu0 0.0
    %9034 = vmatprep.subr.mxu0 0.0
    %9035 = vmatpush1.msra.mxu0 0.0
    %9036 = vmatprep.subr.mxu0 0.0
    %9037 = vmatpush1.msra.mxu0 0.0
    %9038 = vmatprep.subr.mxu0 0.0
    %9039 = vmatpush1.msra.mxu0 0.0
    %9040 = vmatprep.subr.mxu0 0.0
    %9041 = vmatpush1.msra.mxu0 0.0
    %9042 = vmatprep.subr.mxu0 0.0
    %9043 = vmatpush1.msra.mxu0 0.0
    %9044 = vmatprep.subr.mxu0 0.0
    %9045 = vmatpush1.msra.mxu0 0.0
    %9046 = vmatprep.subr.mxu0 0.0
    %9047 = vmatpush1.msra.mxu0 0.0
    %9048 = vmatprep.subr.mxu0 0.0
    %9049 = vmatpush1.msra.mxu0 0.0
    %9050 = vmatprep.subr.mxu0 0.0
    %9051 = vmatpush1.msra.mxu0 0.0
    %9052 = vmatprep.subr.mxu0 0.0
    %9053 = vmatpush1.msra.mxu0 0.0
    %9054 = vmatprep.subr.mxu0 0.0
    %9055 = vmatpush1.msra.mxu0 0.0
    %9056 = vmatprep.subr.mxu0 0.0
    %9057 = vmatpush1.msra.mxu0 0.0
    %9058 = vmatprep.subr.mxu0 0.0
    %9059 = vmatpush1.msra.mxu0 0.0
    %9060 = vmatprep.subr.mxu0 0.0
    %9061 = vmatpush1.msra.mxu0 0.0
    %9062 = vmatprep.subr.mxu0 0.0
    %9063 = vmatpush1.msra.mxu0 0.0
    %9064 = vmatprep.subr.mxu0 0.0
    %9065 = vmatpush1.msra.mxu0 0.0
    %9066 = vmatprep.subr.mxu0 0.0
    %9067 = vmatpush1.msra.mxu0 0.0
    %9068 = vmatprep.subr.mxu0 0.0
    %9069 = vmatpush1.msra.mxu0 0.0
    %9070 = vmatprep.mubr.f32.mxu0 0.0
    %v9071 = vand.u32 %v7447, 4294901760
    %9072 = vmatmul.mubr.f32.gmra.mrb[0].mxu0 %v9071
    %v9073 = vpop.f32.mrb[0].mxu0
    %v9074 = vadd.f32 %v8994, %v9073
    %v9075 = vpop.f32.mrb[0].mxu0
    %v9076 = vadd.f32 %v8996, %v9075
    %9077 = vdwg.mxu0
    %v9078 = vand.u32 %v7421, 4294901760
    %9079 = vmatprep.subr.mxu0 %v9078
    %v9080 = vand.u32 %v7420, 4294901760
    %9081 = vmatpush1.msra.mxu0 %v9080
    %v9082 = vand.u32 %v7429, 4294901760
    %9083 = vmatprep.subr.mxu0 %v9082
    %v9084 = vand.u32 %v7428, 4294901760
    %9085 = vmatpush1.msra.mxu0 %v9084
    %v9086 = vand.u32 %v7437, 4294901760
    %9087 = vmatprep.subr.mxu0 %v9086
    %v9088 = vand.u32 %v7436, 4294901760
    %9089 = vmatpush1.msra.mxu0 %v9088
    %v9090 = vand.u32 %v7445, 4294901760
    %9091 = vmatprep.subr.mxu0 %v9090
    %v9092 = vand.u32 %v7444, 4294901760
    %9093 = vmatpush1.msra.mxu0 %v9092
    %9094 = vmatprep.subr.mxu0 0.0
    %9095 = vmatpush1.msra.mxu0 0.0
    %9096 = vmatprep.subr.mxu0 0.0
    %9097 = vmatpush1.msra.mxu0 0.0
    %9098 = vmatprep.subr.mxu0 0.0
    %9099 = vmatpush1.msra.mxu0 0.0
    %9100 = vmatprep.subr.mxu0 0.0
    %9101 = vmatpush1.msra.mxu0 0.0
    %9102 = vmatprep.subr.mxu0 0.0
    %9103 = vmatpush1.msra.mxu0 0.0
    %9104 = vmatprep.subr.mxu0 0.0
    %9105 = vmatpush1.msra.mxu0 0.0
    %9106 = vmatprep.subr.mxu0 0.0
    %9107 = vmatpush1.msra.mxu0 0.0
    %9108 = vmatprep.subr.mxu0 0.0
    %9109 = vmatpush1.msra.mxu0 0.0
    %9110 = vmatprep.subr.mxu0 0.0
    %9111 = vmatpush1.msra.mxu0 0.0
    %9112 = vmatprep.subr.mxu0 0.0
    %9113 = vmatpush1.msra.mxu0 0.0
    %9114 = vmatprep.subr.mxu0 0.0
    %9115 = vmatpush1.msra.mxu0 0.0
    %9116 = vmatprep.subr.mxu0 0.0
    %9117 = vmatpush1.msra.mxu0 0.0
    %9118 = vmatprep.subr.mxu0 0.0
    %9119 = vmatpush1.msra.mxu0 0.0
    %9120 = vmatprep.subr.mxu0 0.0
    %9121 = vmatpush1.msra.mxu0 0.0
    %9122 = vmatprep.subr.mxu0 0.0
    %9123 = vmatpush1.msra.mxu0 0.0
    %9124 = vmatprep.subr.mxu0 0.0
    %9125 = vmatpush1.msra.mxu0 0.0
    %9126 = vmatprep.subr.mxu0 0.0
    %9127 = vmatpush1.msra.mxu0 0.0
    %9128 = vmatprep.subr.mxu0 0.0
    %9129 = vmatpush1.msra.mxu0 0.0
    %9130 = vmatprep.subr.mxu0 0.0
    %9131 = vmatpush1.msra.mxu0 0.0
    %9132 = vmatprep.subr.mxu0 0.0
    %9133 = vmatpush1.msra.mxu0 0.0
    %9134 = vmatprep.subr.mxu0 0.0
    %9135 = vmatpush1.msra.mxu0 0.0
    %9136 = vmatprep.subr.mxu0 0.0
    %9137 = vmatpush1.msra.mxu0 0.0
    %9138 = vmatprep.subr.mxu0 0.0
    %9139 = vmatpush1.msra.mxu0 0.0
    %9140 = vmatprep.subr.mxu0 0.0
    %9141 = vmatpush1.msra.mxu0 0.0
    %9142 = vmatprep.subr.mxu0 0.0
    %9143 = vmatpush1.msra.mxu0 0.0
    %9144 = vmatprep.subr.mxu0 0.0
    %9145 = vmatpush1.msra.mxu0 0.0
    %9146 = vmatprep.subr.mxu0 0.0
    %9147 = vmatpush1.msra.mxu0 0.0
    %9148 = vmatprep.subr.mxu0 0.0
    %9149 = vmatpush1.msra.mxu0 0.0
    %9150 = vmatprep.mubr.f32.mxu0 0.0
    %v9151 = vand.u32 %v7447, 4294901760
    %v9152 = vsub.f32 %v7447, %v9151
    %v9153 = vand.u32 %v9152, 4294901760
    %v9154 = vsub.f32 %v9152, %v9153
    %v9155 = vand.u32 %v9154, 4294901760
    %9156 = vmatmul.mubr.f32.gmra.mrb[0].mxu0 %v9155
    %v9157 = vpop.f32.mrb[0].mxu0
    %v9158 = vadd.f32 0.0, %v9157
    %v9159 = vpop.f32.mrb[0].mxu0
    %v9160 = vadd.f32 0.0, %v9159
    %9161 = vdwg.mxu0
    %v9162 = vand.u32 %v7421, 4294901760
    %v9163 = vsub.f32 %v7421, %v9162
    %v9164 = vand.u32 %v9163, 4294901760
    %v9165 = vsub.f32 %v9163, %v9164
    %v9166 = vand.u32 %v9165, 4294901760
    %9167 = vmatprep.subr.mxu0 %v9166
    %v9168 = vand.u32 %v7420, 4294901760
    %v9169 = vsub.f32 %v7420, %v9168
    %v9170 = vand.u32 %v9169, 4294901760
    %v9171 = vsub.f32 %v9169, %v9170
    %v9172 = vand.u32 %v9171, 4294901760
    %9173 = vmatpush1.msra.mxu0 %v9172
    %v9174 = vand.u32 %v7429, 4294901760
    %v9175 = vsub.f32 %v7429, %v9174
    %v9176 = vand.u32 %v9175, 4294901760
    %v9177 = vsub.f32 %v9175, %v9176
    %v9178 = vand.u32 %v9177, 4294901760
    %9179 = vmatprep.subr.mxu0 %v9178
    %v9180 = vand.u32 %v7428, 4294901760
    %v9181 = vsub.f32 %v7428, %v9180
    %v9182 = vand.u32 %v9181, 4294901760
    %v9183 = vsub.f32 %v9181, %v9182
    %v9184 = vand.u32 %v9183, 4294901760
    %9185 = vmatpush1.msra.mxu0 %v9184
    %v9186 = vand.u32 %v7437, 4294901760
    %v9187 = vsub.f32 %v7437, %v9186
    %v9188 = vand.u32 %v9187, 4294901760
    %v9189 = vsub.f32 %v9187, %v9188
    %v9190 = vand.u32 %v9189, 4294901760
    %9191 = vmatprep.subr.mxu0 %v9190
    %v9192 = vand.u32 %v7436, 4294901760
    %v9193 = vsub.f32 %v7436, %v9192
    %v9194 = vand.u32 %v9193, 4294901760
    %v9195 = vsub.f32 %v9193, %v9194
    %v9196 = vand.u32 %v9195, 4294901760
    %9197 = vmatpush1.msra.mxu0 %v9196
    %v9198 = vand.u32 %v7445, 4294901760
    %v9199 = vsub.f32 %v7445, %v9198
    %v9200 = vand.u32 %v9199, 4294901760
    %v9201 = vsub.f32 %v9199, %v9200
    %v9202 = vand.u32 %v9201, 4294901760
    %9203 = vmatprep.subr.mxu0 %v9202
    %v9204 = vand.u32 %v7444, 4294901760
    %v9205 = vsub.f32 %v7444, %v9204
    %v9206 = vand.u32 %v9205, 4294901760
    %v9207 = vsub.f32 %v9205, %v9206
    %v9208 = vand.u32 %v9207, 4294901760
    %9209 = vmatpush1.msra.mxu0 %v9208
    %9210 = vmatprep.subr.mxu0 0.0
    %9211 = vmatpush1.msra.mxu0 0.0
    %9212 = vmatprep.subr.mxu0 0.0
    %9213 = vmatpush1.msra.mxu0 0.0
    %9214 = vmatprep.subr.mxu0 0.0
    %9215 = vmatpush1.msra.mxu0 0.0
    %9216 = vmatprep.subr.mxu0 0.0
    %9217 = vmatpush1.msra.mxu0 0.0
    %9218 = vmatprep.subr.mxu0 0.0
    %9219 = vmatpush1.msra.mxu0 0.0
    %9220 = vmatprep.subr.mxu0 0.0
    %9221 = vmatpush1.msra.mxu0 0.0
    %9222 = vmatprep.subr.mxu0 0.0
    %9223 = vmatpush1.msra.mxu0 0.0
    %9224 = vmatprep.subr.mxu0 0.0
    %9225 = vmatpush1.msra.mxu0 0.0
    %9226 = vmatprep.subr.mxu0 0.0
    %9227 = vmatpush1.msra.mxu0 0.0
    %9228 = vmatprep.subr.mxu0 0.0
    %9229 = vmatpush1.msra.mxu0 0.0
    %9230 = vmatprep.subr.mxu0 0.0
    %9231 = vmatpush1.msra.mxu0 0.0
    %9232 = vmatprep.subr.mxu0 0.0
    %9233 = vmatpush1.msra.mxu0 0.0
    %9234 = vmatprep.subr.mxu0 0.0
    %9235 = vmatpush1.msra.mxu0 0.0
    %9236 = vmatprep.subr.mxu0 0.0
    %9237 = vmatpush1.msra.mxu0 0.0
    %9238 = vmatprep.subr.mxu0 0.0
    %9239 = vmatpush1.msra.mxu0 0.0
    %9240 = vmatprep.subr.mxu0 0.0
    %9241 = vmatpush1.msra.mxu0 0.0
    %9242 = vmatprep.subr.mxu0 0.0
    %9243 = vmatpush1.msra.mxu0 0.0
    %9244 = vmatprep.subr.mxu0 0.0
    %9245 = vmatpush1.msra.mxu0 0.0
    %9246 = vmatprep.subr.mxu0 0.0
    %9247 = vmatpush1.msra.mxu0 0.0
    %9248 = vmatprep.subr.mxu0 0.0
    %9249 = vmatpush1.msra.mxu0 0.0
    %9250 = vmatprep.subr.mxu0 0.0
    %9251 = vmatpush1.msra.mxu0 0.0
    %9252 = vmatprep.subr.mxu0 0.0
    %9253 = vmatpush1.msra.mxu0 0.0
    %9254 = vmatprep.subr.mxu0 0.0
    %9255 = vmatpush1.msra.mxu0 0.0
    %9256 = vmatprep.subr.mxu0 0.0
    %9257 = vmatpush1.msra.mxu0 0.0
    %9258 = vmatprep.subr.mxu0 0.0
    %9259 = vmatpush1.msra.mxu0 0.0
    %9260 = vmatprep.subr.mxu0 0.0
    %9261 = vmatpush1.msra.mxu0 0.0
    %9262 = vmatprep.subr.mxu0 0.0
    %9263 = vmatpush1.msra.mxu0 0.0
    %9264 = vmatprep.subr.mxu0 0.0
    %9265 = vmatpush1.msra.mxu0 0.0
    %9266 = vmatprep.mubr.f32.mxu0 0.0
    %v9267 = vand.u32 %v7447, 4294901760
    %9268 = vmatmul.mubr.f32.gmra.mrb[0].mxu0 %v9267
    %v9269 = vpop.f32.mrb[0].mxu0
    %v9270 = vadd.f32 %v9158, %v9269
    %v9271 = vpop.f32.mrb[0].mxu0
    %v9272 = vadd.f32 %v9160, %v9271
    %9273 = vdwg.mxu0
    %v9274 = vand.u32 %v7421, 4294901760
    %v9275 = vsub.f32 %v7421, %v9274
    %9276 = vmatprep.subr.mxu0 %v9275
    %v9277 = vand.u32 %v7420, 4294901760
    %v9278 = vsub.f32 %v7420, %v9277
    %9279 = vmatpush1.msra.mxu0 %v9278
    %v9280 = vand.u32 %v7429, 4294901760
    %v9281 = vsub.f32 %v7429, %v9280
    %9282 = vmatprep.subr.mxu0 %v9281
    %v9283 = vand.u32 %v7428, 4294901760
    %v9284 = vsub.f32 %v7428, %v9283
    %9285 = vmatpush1.msra.mxu0 %v9284
    %v9286 = vand.u32 %v7437, 4294901760
    %v9287 = vsub.f32 %v7437, %v9286
    %9288 = vmatprep.subr.mxu0 %v9287
    %v9289 = vand.u32 %v7436, 4294901760
    %v9290 = vsub.f32 %v7436, %v9289
    %9291 = vmatpush1.msra.mxu0 %v9290
    %v9292 = vand.u32 %v7445, 4294901760
    %v9293 = vsub.f32 %v7445, %v9292
    %9294 = vmatprep.subr.mxu0 %v9293
    %v9295 = vand.u32 %v7444, 4294901760
    %v9296 = vsub.f32 %v7444, %v9295
    %9297 = vmatpush1.msra.mxu0 %v9296
    %9298 = vmatprep.subr.mxu0 0.0
    %9299 = vmatpush1.msra.mxu0 0.0
    %9300 = vmatprep.subr.mxu0 0.0
    %9301 = vmatpush1.msra.mxu0 0.0
    %9302 = vmatprep.subr.mxu0 0.0
    %9303 = vmatpush1.msra.mxu0 0.0
    %9304 = vmatprep.subr.mxu0 0.0
    %9305 = vmatpush1.msra.mxu0 0.0
    %9306 = vmatprep.subr.mxu0 0.0
    %9307 = vmatpush1.msra.mxu0 0.0
    %9308 = vmatprep.subr.mxu0 0.0
    %9309 = vmatpush1.msra.mxu0 0.0
    %9310 = vmatprep.subr.mxu0 0.0
    %9311 = vmatpush1.msra.mxu0 0.0
    %9312 = vmatprep.subr.mxu0 0.0
    %9313 = vmatpush1.msra.mxu0 0.0
    %9314 = vmatprep.subr.mxu0 0.0
    %9315 = vmatpush1.msra.mxu0 0.0
    %9316 = vmatprep.subr.mxu0 0.0
    %9317 = vmatpush1.msra.mxu0 0.0
    %9318 = vmatprep.subr.mxu0 0.0
    %9319 = vmatpush1.msra.mxu0 0.0
    %9320 = vmatprep.subr.mxu0 0.0
    %9321 = vmatpush1.msra.mxu0 0.0
    %9322 = vmatprep.subr.mxu0 0.0
    %9323 = vmatpush1.msra.mxu0 0.0
    %9324 = vmatprep.subr.mxu0 0.0
    %9325 = vmatpush1.msra.mxu0 0.0
    %9326 = vmatprep.subr.mxu0 0.0
    %9327 = vmatpush1.msra.mxu0 0.0
    %9328 = vmatprep.subr.mxu0 0.0
    %9329 = vmatpush1.msra.mxu0 0.0
    %9330 = vmatprep.subr.mxu0 0.0
    %9331 = vmatpush1.msra.mxu0 0.0
    %9332 = vmatprep.subr.mxu0 0.0
    %9333 = vmatpush1.msra.mxu0 0.0
    %9334 = vmatprep.subr.mxu0 0.0
    %9335 = vmatpush1.msra.mxu0 0.0
    %9336 = vmatprep.subr.mxu0 0.0
    %9337 = vmatpush1.msra.mxu0 0.0
    %9338 = vmatprep.subr.mxu0 0.0
    %9339 = vmatpush1.msra.mxu0 0.0
    %9340 = vmatprep.subr.mxu0 0.0
    %9341 = vmatpush1.msra.mxu0 0.0
    %9342 = vmatprep.subr.mxu0 0.0
    %9343 = vmatpush1.msra.mxu0 0.0
    %9344 = vmatprep.subr.mxu0 0.0
    %9345 = vmatpush1.msra.mxu0 0.0
    %9346 = vmatprep.subr.mxu0 0.0
    %9347 = vmatpush1.msra.mxu0 0.0
    %9348 = vmatprep.subr.mxu0 0.0
    %9349 = vmatpush1.msra.mxu0 0.0
    %9350 = vmatprep.subr.mxu0 0.0
    %9351 = vmatpush1.msra.mxu0 0.0
    %9352 = vmatprep.subr.mxu0 0.0
    %9353 = vmatpush1.msra.mxu0 0.0
    %9354 = vmatprep.mubr.f32.mxu0 0.0
    %v9355 = vand.u32 %v7447, 4294901760
    %v9356 = vsub.f32 %v7447, %v9355
    %9357 = vmatmul.mubr.f32.gmra.mrb[0].mxu0 %v9356
    %v9358 = vpop.f32.mrb[0].mxu0
    %v9359 = vadd.f32 %v9270, %v9358
    %v9360 = vpop.f32.mrb[0].mxu0
    %v9361 = vadd.f32 %v9272, %v9360
    %9362 = vdwg.mxu0
    %v9363 = vand.u32 %v7421, 4294901760
    %9364 = vmatprep.subr.mxu0 %v9363
    %v9365 = vand.u32 %v7420, 4294901760
    %9366 = vmatpush1.msra.mxu0 %v9365
    %v9367 = vand.u32 %v7429, 4294901760
    %9368 = vmatprep.subr.mxu0 %v9367
    %v9369 = vand.u32 %v7428, 4294901760
    %9370 = vmatpush1.msra.mxu0 %v9369
    %v9371 = vand.u32 %v7437, 4294901760
    %9372 = vmatprep.subr.mxu0 %v9371
    %v9373 = vand.u32 %v7436, 4294901760
    %9374 = vmatpush1.msra.mxu0 %v9373
    %v9375 = vand.u32 %v7445, 4294901760
    %9376 = vmatprep.subr.mxu0 %v9375
    %v9377 = vand.u32 %v7444, 4294901760
    %9378 = vmatpush1.msra.mxu0 %v9377
    %9379 = vmatprep.subr.mxu0 0.0
    %9380 = vmatpush1.msra.mxu0 0.0
    %9381 = vmatprep.subr.mxu0 0.0
    %9382 = vmatpush1.msra.mxu0 0.0
    %9383 = vmatprep.subr.mxu0 0.0
    %9384 = vmatpush1.msra.mxu0 0.0
    %9385 = vmatprep.subr.mxu0 0.0
    %9386 = vmatpush1.msra.mxu0 0.0
    %9387 = vmatprep.subr.mxu0 0.0
    %9388 = vmatpush1.msra.mxu0 0.0
    %9389 = vmatprep.subr.mxu0 0.0
    %9390 = vmatpush1.msra.mxu0 0.0
    %9391 = vmatprep.subr.mxu0 0.0
    %9392 = vmatpush1.msra.mxu0 0.0
    %9393 = vmatprep.subr.mxu0 0.0
    %9394 = vmatpush1.msra.mxu0 0.0
    %9395 = vmatprep.subr.mxu0 0.0
    %9396 = vmatpush1.msra.mxu0 0.0
    %9397 = vmatprep.subr.mxu0 0.0
    %9398 = vmatpush1.msra.mxu0 0.0
    %9399 = vmatprep.subr.mxu0 0.0
    %9400 = vmatpush1.msra.mxu0 0.0
    %9401 = vmatprep.subr.mxu0 0.0
    %9402 = vmatpush1.msra.mxu0 0.0
    %9403 = vmatprep.subr.mxu0 0.0
    %9404 = vmatpush1.msra.mxu0 0.0
    %9405 = vmatprep.subr.mxu0 0.0
    %9406 = vmatpush1.msra.mxu0 0.0
    %9407 = vmatprep.subr.mxu0 0.0
    %9408 = vmatpush1.msra.mxu0 0.0
    %9409 = vmatprep.subr.mxu0 0.0
    %9410 = vmatpush1.msra.mxu0 0.0
    %9411 = vmatprep.subr.mxu0 0.0
    %9412 = vmatpush1.msra.mxu0 0.0
    %9413 = vmatprep.subr.mxu0 0.0
    %9414 = vmatpush1.msra.mxu0 0.0
    %9415 = vmatprep.subr.mxu0 0.0
    %9416 = vmatpush1.msra.mxu0 0.0
    %9417 = vmatprep.subr.mxu0 0.0
    %9418 = vmatpush1.msra.mxu0 0.0
    %9419 = vmatprep.subr.mxu0 0.0
    %9420 = vmatpush1.msra.mxu0 0.0
    %9421 = vmatprep.subr.mxu0 0.0
    %9422 = vmatpush1.msra.mxu0 0.0
    %9423 = vmatprep.subr.mxu0 0.0
    %9424 = vmatpush1.msra.mxu0 0.0
    %9425 = vmatprep.subr.mxu0 0.0
    %9426 = vmatpush1.msra.mxu0 0.0
    %9427 = vmatprep.subr.mxu0 0.0
    %9428 = vmatpush1.msra.mxu0 0.0
    %9429 = vmatprep.subr.mxu0 0.0
    %9430 = vmatpush1.msra.mxu0 0.0
    %9431 = vmatprep.subr.mxu0 0.0
    %9432 = vmatpush1.msra.mxu0 0.0
    %9433 = vmatprep.subr.mxu0 0.0
    %9434 = vmatpush1.msra.mxu0 0.0
    %9435 = vmatprep.mubr.f32.mxu0 0.0
    %v9436 = vand.u32 %v7447, 4294901760
    %v9437 = vsub.f32 %v7447, %v9436
    %v9438 = vand.u32 %v9437, 4294901760
    %9439 = vmatmul.mubr.f32.gmra.mrb[0].mxu0 %v9438
    %v9440 = vpop.f32.mrb[0].mxu0
    %v9441 = vadd.f32 %v9359, %v9440
    %v9442 = vpop.f32.mrb[0].mxu0
    %v9443 = vadd.f32 %v9361, %v9442
    %9444 = vdwg.mxu0
    %v9445 = vand.u32 %v7421, 4294901760
    %v9446 = vsub.f32 %v7421, %v9445
    %v9447 = vand.u32 %v9446, 4294901760
    %9448 = vmatprep.subr.mxu0 %v9447
    %v9449 = vand.u32 %v7420, 4294901760
    %v9450 = vsub.f32 %v7420, %v9449
    %v9451 = vand.u32 %v9450, 4294901760
    %9452 = vmatpush1.msra.mxu0 %v9451
    %v9453 = vand.u32 %v7429, 4294901760
    %v9454 = vsub.f32 %v7429, %v9453
    %v9455 = vand.u32 %v9454, 4294901760
    %9456 = vmatprep.subr.mxu0 %v9455
    %v9457 = vand.u32 %v7428, 4294901760
    %v9458 = vsub.f32 %v7428, %v9457
    %v9459 = vand.u32 %v9458, 4294901760
    %9460 = vmatpush1.msra.mxu0 %v9459
    %v9461 = vand.u32 %v7437, 4294901760
    %v9462 = vsub.f32 %v7437, %v9461
    %v9463 = vand.u32 %v9462, 4294901760
    %9464 = vmatprep.subr.mxu0 %v9463
    %v9465 = vand.u32 %v7436, 4294901760
    %v9466 = vsub.f32 %v7436, %v9465
    %v9467 = vand.u32 %v9466, 4294901760
    %9468 = vmatpush1.msra.mxu0 %v9467
    %v9469 = vand.u32 %v7445, 4294901760
    %v9470 = vsub.f32 %v7445, %v9469
    %v9471 = vand.u32 %v9470, 4294901760
    %9472 = vmatprep.subr.mxu0 %v9471
    %v9473 = vand.u32 %v7444, 4294901760
    %v9474 = vsub.f32 %v7444, %v9473
    %v9475 = vand.u32 %v9474, 4294901760
    %9476 = vmatpush1.msra.mxu0 %v9475
    %9477 = vmatprep.subr.mxu0 0.0
    %9478 = vmatpush1.msra.mxu0 0.0
    %9479 = vmatprep.subr.mxu0 0.0
    %9480 = vmatpush1.msra.mxu0 0.0
    %9481 = vmatprep.subr.mxu0 0.0
    %9482 = vmatpush1.msra.mxu0 0.0
    %9483 = vmatprep.subr.mxu0 0.0
    %9484 = vmatpush1.msra.mxu0 0.0
    %9485 = vmatprep.subr.mxu0 0.0
    %9486 = vmatpush1.msra.mxu0 0.0
    %9487 = vmatprep.subr.mxu0 0.0
    %9488 = vmatpush1.msra.mxu0 0.0
    %9489 = vmatprep.subr.mxu0 0.0
    %9490 = vmatpush1.msra.mxu0 0.0
    %9491 = vmatprep.subr.mxu0 0.0
    %9492 = vmatpush1.msra.mxu0 0.0
    %9493 = vmatprep.subr.mxu0 0.0
    %9494 = vmatpush1.msra.mxu0 0.0
    %9495 = vmatprep.subr.mxu0 0.0
    %9496 = vmatpush1.msra.mxu0 0.0
    %9497 = vmatprep.subr.mxu0 0.0
    %9498 = vmatpush1.msra.mxu0 0.0
    %9499 = vmatprep.subr.mxu0 0.0
    %9500 = vmatpush1.msra.mxu0 0.0
    %9501 = vmatprep.subr.mxu0 0.0
    %9502 = vmatpush1.msra.mxu0 0.0
    %9503 = vmatprep.subr.mxu0 0.0
    %9504 = vmatpush1.msra.mxu0 0.0
    %9505 = vmatprep.subr.mxu0 0.0
    %9506 = vmatpush1.msra.mxu0 0.0
    %9507 = vmatprep.subr.mxu0 0.0
    %9508 = vmatpush1.msra.mxu0 0.0
    %9509 = vmatprep.subr.mxu0 0.0
    %9510 = vmatpush1.msra.mxu0 0.0
    %9511 = vmatprep.subr.mxu0 0.0
    %9512 = vmatpush1.msra.mxu0 0.0
    %9513 = vmatprep.subr.mxu0 0.0
    %9514 = vmatpush1.msra.mxu0 0.0
    %9515 = vmatprep.subr.mxu0 0.0
    %9516 = vmatpush1.msra.mxu0 0.0
    %9517 = vmatprep.subr.mxu0 0.0
    %9518 = vmatpush1.msra.mxu0 0.0
    %9519 = vmatprep.subr.mxu0 0.0
    %9520 = vmatpush1.msra.mxu0 0.0
    %9521 = vmatprep.subr.mxu0 0.0
    %9522 = vmatpush1.msra.mxu0 0.0
    %9523 = vmatprep.subr.mxu0 0.0
    %9524 = vmatpush1.msra.mxu0 0.0
    %9525 = vmatprep.subr.mxu0 0.0
    %9526 = vmatpush1.msra.mxu0 0.0
    %9527 = vmatprep.subr.mxu0 0.0
    %9528 = vmatpush1.msra.mxu0 0.0
    %9529 = vmatprep.subr.mxu0 0.0
    %9530 = vmatpush1.msra.mxu0 0.0
    %9531 = vmatprep.subr.mxu0 0.0
    %9532 = vmatpush1.msra.mxu0 0.0
    %9533 = vmatprep.mubr.f32.mxu0 0.0
    %v9534 = vand.u32 %v7447, 4294901760
    %9535 = vmatmul.mubr.f32.gmra.mrb[0].mxu0 %v9534
    %v9536 = vpop.f32.mrb[0].mxu0
    %v9537 = vadd.f32 %v9441, %v9536
    %v9538 = vpop.f32.mrb[0].mxu0
    %v9539 = vadd.f32 %v9443, %v9538
    %9540 = vdwg.mxu0
    %v9541 = vand.u32 %v7421, 4294901760
    %9542 = vmatprep.subr.mxu0 %v9541
    %v9543 = vand.u32 %v7420, 4294901760
    %9544 = vmatpush1.msra.mxu0 %v9543
    %v9545 = vand.u32 %v7429, 4294901760
    %9546 = vmatprep.subr.mxu0 %v9545
    %v9547 = vand.u32 %v7428, 4294901760
    %9548 = vmatpush1.msra.mxu0 %v9547
    %v9549 = vand.u32 %v7437, 4294901760
    %9550 = vmatprep.subr.mxu0 %v9549
    %v9551 = vand.u32 %v7436, 4294901760
    %9552 = vmatpush1.msra.mxu0 %v9551
    %v9553 = vand.u32 %v7445, 4294901760
    %9554 = vmatprep.subr.mxu0 %v9553
    %v9555 = vand.u32 %v7444, 4294901760
    %9556 = vmatpush1.msra.mxu0 %v9555
    %9557 = vmatprep.subr.mxu0 0.0
    %9558 = vmatpush1.msra.mxu0 0.0
    %9559 = vmatprep.subr.mxu0 0.0
    %9560 = vmatpush1.msra.mxu0 0.0
    %9561 = vmatprep.subr.mxu0 0.0
    %9562 = vmatpush1.msra.mxu0 0.0
    %9563 = vmatprep.subr.mxu0 0.0
    %9564 = vmatpush1.msra.mxu0 0.0
    %9565 = vmatprep.subr.mxu0 0.0
    %9566 = vmatpush1.msra.mxu0 0.0
    %9567 = vmatprep.subr.mxu0 0.0
    %9568 = vmatpush1.msra.mxu0 0.0
    %9569 = vmatprep.subr.mxu0 0.0
    %9570 = vmatpush1.msra.mxu0 0.0
    %9571 = vmatprep.subr.mxu0 0.0
    %9572 = vmatpush1.msra.mxu0 0.0
    %9573 = vmatprep.subr.mxu0 0.0
    %9574 = vmatpush1.msra.mxu0 0.0
    %9575 = vmatprep.subr.mxu0 0.0
    %9576 = vmatpush1.msra.mxu0 0.0
    %9577 = vmatprep.subr.mxu0 0.0
    %9578 = vmatpush1.msra.mxu0 0.0
    %9579 = vmatprep.subr.mxu0 0.0
    %9580 = vmatpush1.msra.mxu0 0.0
    %9581 = vmatprep.subr.mxu0 0.0
    %9582 = vmatpush1.msra.mxu0 0.0
    %9583 = vmatprep.subr.mxu0 0.0
    %9584 = vmatpush1.msra.mxu0 0.0
    %9585 = vmatprep.subr.mxu0 0.0
    %9586 = vmatpush1.msra.mxu0 0.0
    %9587 = vmatprep.subr.mxu0 0.0
    %9588 = vmatpush1.msra.mxu0 0.0
    %9589 = vmatprep.subr.mxu0 0.0
    %9590 = vmatpush1.msra.mxu0 0.0
    %9591 = vmatprep.subr.mxu0 0.0
    %9592 = vmatpush1.msra.mxu0 0.0
    %9593 = vmatprep.subr.mxu0 0.0
    %9594 = vmatpush1.msra.mxu0 0.0
    %9595 = vmatprep.subr.mxu0 0.0
    %9596 = vmatpush1.msra.mxu0 0.0
    %9597 = vmatprep.subr.mxu0 0.0
    %9598 = vmatpush1.msra.mxu0 0.0
    %9599 = vmatprep.subr.mxu0 0.0
    %9600 = vmatpush1.msra.mxu0 0.0
    %9601 = vmatprep.subr.mxu0 0.0
    %9602 = vmatpush1.msra.mxu0 0.0
    %9603 = vmatprep.subr.mxu0 0.0
    %9604 = vmatpush1.msra.mxu0 0.0
    %9605 = vmatprep.subr.mxu0 0.0
    %9606 = vmatpush1.msra.mxu0 0.0
    %9607 = vmatprep.subr.mxu0 0.0
    %9608 = vmatpush1.msra.mxu0 0.0
    %9609 = vmatprep.subr.mxu0 0.0
    %9610 = vmatpush1.msra.mxu0 0.0
    %9611 = vmatprep.subr.mxu0 0.0
    %9612 = vmatpush1.msra.mxu0 0.0
    %9613 = vmatprep.mubr.f32.mxu0 0.0
    %v9614 = vand.u32 %v7447, 4294901760
    %9615 = vmatmul.mubr.f32.gmra.mrb[0].mxu0 %v9614
    %v9616 = vpop.f32.mrb[0].mxu0
    %v9617 = vadd.f32 %v9537, %v9616
    %v9618 = vpop.f32.mrb[0].mxu0
    %v9619 = vadd.f32 %v9539, %v9618
    %9620 = vdwg.mxu0
    %v9621 = vmul.f32 %v633, %v7988
    %v9622 = vmul.f32 %v635, %v7990
    %v9623 = vmul.f32 %v1176, %v8531
    %v9624 = vmul.f32 %v1178, %v8533
    %v9625 = vmul.f32 %v1719, %v9074
    %v9626 = vmul.f32 %v1721, %v9076
    %v9627 = vmul.f32 %v2262, %v9617
    %v9628 = vmul.f32 %v2264, %v9619
    %v9629 = vadd.f32 %v49, %v9621
    %v9630 = vadd.f32 %v50, %v9622
    %v9631 = vadd.f32 %v51, %v9623
    %v9632 = vadd.f32 %v52, %v9624
    %v9633 = vadd.f32 %v53, %v9625
    %v9634 = vadd.f32 %v54, %v9626
    %v9635 = vadd.f32 %v55, %v9627
    %v9636 = vadd.f32 %v56, %v9628
    %v9637 = vmax.f32 %v9629, -2.0
    %v9638 = vmax.f32 %v9630, -2.0
    %v9639 = vmax.f32 %v9631, -2.0
    %v9640 = vmax.f32 %v9632, -2.0
    %v9641 = vmax.f32 %v9633, -2.0
    %v9642 = vmax.f32 %v9634, -2.0
    %v9643 = vmax.f32 %v9635, -2.0
    %v9644 = vmax.f32 %v9636, -2.0
    %v9645 = vmin.f32 %v9637, 2.0
    %v9646 = vmin.f32 %v9638, 2.0
    %v9647 = vmin.f32 %v9639, 2.0
    %v9648 = vmin.f32 %v9640, 2.0
    %v9649 = vmin.f32 %v9641, 2.0
    %v9650 = vmin.f32 %v9642, 2.0
    %v9651 = vmin.f32 %v9643, 2.0
    %v9652 = vmin.f32 %v9644, 2.0
    %vm9653 = vcmask 64512
    %9654 = vst.msk [vmem:[#allocation2] sm:$0xff] %vm9653, %v7381
    %9655 = vst.msk [vmem:[#allocation4] sm:$0xff] %vm90, %v6884
    %vm9656 = vcmask 7168
    %9657 = vst.msk [vmem:[%s14] sm:$0xff] %vm9656, %v7397
    %9658 = vst [vmem:[%s15] sm:$0xff] %v9645
    %9659 = vst [vmem:[%s15 + $0x8] sm:$0xff] %v9646
    %9660 = vst [vmem:[%s15 + $0x10] sm:$0xff] %v9647
    %9661 = vst [vmem:[%s15 + $0x18] sm:$0xff] %v9648
    %9662 = vst [vmem:[%s15 + $0x20] sm:$0xff] %v9649
    %9663 = vst [vmem:[%s15 + $0x28] sm:$0xff] %v9650
    %9664 = vst [vmem:[%s15 + $0x30] sm:$0xff] %v9651
    %9665 = vst [vmem:[%s15 + $0x38] sm:$0xff] %v9652
    // Predicated region
    $region50: #{nprnn_cell_forward.1} parent=1 // pred_check
      _
    $region51: #{nprnn_cell_forward.1} parent=1 // pred_check_branch
      %9667 = sbr.rel (0) target = $region53
    $region52: #{nprnn_cell_forward.1} parent=1 // pred_region
      %s9669 = ssub.s32 128, 128
      %9670 = vsyncadd [#allocation3], %s9669
      %s9672 = sshll.u32 [#allocation2], 4
      %s9673 = int_to_ptr.vmem [resolvable:$true] %s9672
      %9675 = dma.vmem_to_hbm [thread:$0]  %s9673, 128, %s12, [#allocation3]
    $region53: #{nprnn_cell_forward.1} parent=1 // pred_fallthru
      _
    // Predicated region
    $region54: #{nprnn_cell_forward.1} parent=1 // pred_check
      _
    $region55: #{nprnn_cell_forward.1} parent=1 // pred_check_branch
      %9677 = sbr.rel (0) target = $region57
    $region56: #{nprnn_cell_forward.1} parent=1 // pred_region
      %s9679 = ssub.s32 128, 128
      %9680 = vsyncadd [#allocation5], %s9679
      %s9682 = sshll.u32 [#allocation4], 4
      %s9683 = int_to_ptr.vmem [resolvable:$true] %s9682
      %9685 = dma.vmem_to_hbm [thread:$0]  %s9683, 128, %s13, [#allocation5]
    $region57: #{nprnn_cell_forward.1} parent=1 // pred_fallthru
      _
    // Predicated region
    $region58: #{nprnn_cell_forward.1} parent=1 // pred_check
      _
    $region59: #{nprnn_cell_forward.1} parent=1 // pred_check_branch
      %9687 = sbr.rel (0) target = $region61
    $region60: #{nprnn_cell_forward.1} parent=1 // pred_region
      _
    $region61: #{nprnn_cell_forward.1} parent=1 // pred_fallthru
      _
    // Predicated region
    $region62: #{nprnn_cell_forward.1} parent=1 // pred_check
      _
    $region63: #{nprnn_cell_forward.1} parent=1 // pred_check_branch
      %9689 = sbr.rel (0) target = $region65
    $region64: #{nprnn_cell_forward.1} parent=1 // pred_region
      _
    $region65: #{nprnn_cell_forward.1} parent=1 // pred_fallthru
      _
    // Predicated region
    $region66: #{nprnn_cell_forward.1} parent=1 // pred_check
      _
    $region67: #{nprnn_cell_forward.1} parent=1 // pred_check_branch
      %9691 = sbr.rel (0) target = $region69
    $region68: #{nprnn_cell_forward.1} parent=1 // pred_region
      %9692 = dma.done [#allocation3], 128
    $region69: #{nprnn_cell_forward.1} parent=1 // pred_fallthru
      _
    // Predicated region
    $region70: #{nprnn_cell_forward.1} parent=1 // pred_check
      _
    $region71: #{nprnn_cell_forward.1} parent=1 // pred_check_branch
      %9694 = sbr.rel (0) target = $region73
    $region72: #{nprnn_cell_forward.1} parent=1 // pred_region
      %9695 = dma.done [#allocation5], 128
    $region73: #{nprnn_cell_forward.1} parent=1 // pred_fallthru
      _
    // Predicated region
    $region74: #{nprnn_cell_forward.1} parent=1 // pred_check
      _
    $region75: #{nprnn_cell_forward.1} parent=1 // pred_check_branch
      %9697 = sbr.rel (0) target = $region77
    $region76: #{nprnn_cell_forward.1} parent=1 // pred_region
      _
    $region77: #{nprnn_cell_forward.1} parent=1 // pred_fallthru
      _
    // Predicated region
    $region78: #{nprnn_cell_forward.1} parent=1 // pred_check
      _
    $region79: #{nprnn_cell_forward.1} parent=1 // pred_check_branch
      %9699 = sbr.rel (0) target = $region81
    $region80: #{nprnn_cell_forward.1} parent=1 // pred_region
      _
    $region81: #{nprnn_cell_forward.1} parent=1 // pred_fallthru
      _
    %9700 = vsyncpa [#allocation3], 1
    %9701 = vsyncpa [#allocation5], 1

</llo_original>
